<compile_context>
chip_gen: v6e
topology: v6e:2x2x1
jax: 0.10.0
libtpu: 0.0.40
codegen_flags: <defaults>
</compile_context>

<pallas_src>
import math
import jax
import jax.numpy as jnp
from jax.experimental import pallas as pl
from jax.experimental.pallas import tpu as pltpu

# ---------------- problem sizes ----------------
N_BATCH = 1
CIN, COUT = 3, 8
H, W = 64, 64
KH, KW = 3, 3
PAD_H = (1, 2)            # from padding=[1, 2, 3, 1]
PAD_W = (3, 1)
HP = H + PAD_H[0] + PAD_H[1]      # 67
WP = W + PAD_W[0] + PAD_W[1]      # 68
OH = HP - KH + 1                  # 65
OW = WP - KW + 1                  # 66


# ---------------- Pallas kernel ----------------
def conv2x_relu_kernel(w_ref, b_ref, x_ref, o_ref):
    # w_ref: (COUT*CIN*KH*KW,) f32 in SMEM   -- flattened conv weight
    # b_ref: (COUT,)           f32 in SMEM   -- bias
    # x_ref: (CIN, HP, WP)     f32 in VMEM   -- zero-padded input, CHW
    # o_ref: (COUT, OH, OW)    f32 in VMEM   -- final NCHW (N=1) output
    for cout in range(COUT):
        acc = jnp.zeros((OH, OW), jnp.float32)
        for cin in range(CIN):
            for kh in range(KH):
                for kw in range(KW):
                    idx = ((cout * CIN + cin) * KH + kh) * KW + kw
                    # static shifted patch view of the resident padded input
                    patch = x_ref[cin, kh:kh + OH, kw:kw + OW]
                    acc = acc + w_ref[idx] * patch
        # v1 + v2 == 2 * conv(x); then relu
        o_ref[cout, :, :] = jnp.maximum(2.0 * (acc + b_ref[cout]), 0.0)


def _conv_double_relu_impl(x_nchw, weight_oihw, bias):
    """relu(2 * conv2d(x)) with asymmetric padding, matching the torch module."""
    n = x_nchw.shape[0]
    x_pad = jnp.pad(x_nchw.astype(jnp.float32),
                    ((0, 0), (0, 0), PAD_H, PAD_W))            # (N, CIN, HP, WP)
    w_flat = weight_oihw.astype(jnp.float32).reshape(-1)       # (216,)
    b = bias.astype(jnp.float32)                               # (8,)

    call = pl.pallas_call(
        conv2x_relu_kernel,
        out_shape=jax.ShapeDtypeStruct((COUT, OH, OW), jnp.float32),
        in_specs=[
            pl.BlockSpec(memory_space=pltpu.MemorySpace.SMEM),   # weights
            pl.BlockSpec(memory_space=pltpu.MemorySpace.SMEM),   # bias
            pl.BlockSpec(memory_space=pltpu.MemorySpace.VMEM),   # padded input
        ],
        out_specs=pl.BlockSpec(memory_space=pltpu.MemorySpace.VMEM),
    )

    # N_BATCH == 1 for this module; the static loop generalizes trivially.
    outs = [call(w_flat, b, x_pad[i]) for i in range(n)]
    return jnp.stack(outs, axis=0)                             # (N, COUT, OH, OW)


# Single jit so the pad / stack glue fuses around the pallas_call.
conv_double_relu = jax.jit(_conv_double_relu_impl)


def reference(x_nchw, weight_oihw, bias):
    y = jax.lax.conv_general_dilated(
        x_nchw, weight_oihw, window_strides=(1, 1),
        padding=(PAD_H, PAD_W),
        dimension_numbers=("NCHW", "OIHW", "NCHW"),
        precision=jax.lax.Precision.HIGHEST)
    y = y + bias[None, :, None, None]
    return jnp.maximum(2.0 * y, 0.0)


if __name__ == "__main__":
    key = jax.random.PRNGKey(0)
    kw_key, kb_key, kx_key = jax.random.split(key, 3)

    # deterministic Conv2d-style init (uniform in +/- 1/sqrt(fan_in))
    fan_in = CIN * KH * KW
    bound = 1.0 / math.sqrt(fan_in)
    weight = jax.random.uniform(kw_key, (COUT, CIN, KH, KW),
                                minval=-bound, maxval=bound, dtype=jnp.float32)
    bias = jax.random.uniform(kb_key, (COUT,),
                              minval=-bound, maxval=bound, dtype=jnp.float32)
    x1 = jax.random.normal(kx_key, (N_BATCH, CIN, H, W), dtype=jnp.float32)

    out = jax.block_until_ready(conv_double_relu(x1, weight, bias))
    ref = jax.block_until_ready(reference(x1, weight, bias))

    assert out.shape == (N_BATCH, COUT, OH, OW), out.shape
    assert jnp.allclose(out, ref, atol=1e-4, rtol=1e-4), \
        float(jnp.max(jnp.abs(out - ref)))

    print("KERNEL_OK")
</pallas_src>

<mosaic_0001>
module attributes {stable_mosaic.version = 11 : i64} {
  func.func @conv2x_relu_kernel(%arg0: memref<216xf32, #tpu.memory_space<smem>>, %arg1: memref<8xf32, #tpu.memory_space<smem>>, %arg2: memref<3x67x68xf32, #tpu.memory_space<vmem>>, %arg3: memref<8x65x66xf32, #tpu.memory_space<vmem>>) attributes {dimension_semantics = [], scalar_prefetch = 0 : i64, scratch_operands = 0 : i64, tpu.core_type = #tpu.core_type<tc>} {
    %cst = arith.constant 0.000000e+00 : f32
    %0 = vector.broadcast %cst : f32 to vector<65x66xf32>
    %c0 = arith.constant 0 : index
    %c0_0 = arith.constant 0 : index
    %c0_1 = arith.constant 0 : index
    %1 = vector.load %arg2[%c0, %c0_0, %c0_1] : memref<3x67x68xf32, #tpu.memory_space<vmem>>, vector<1x65x66xf32>
    %2 = vector.shape_cast %1 : vector<1x65x66xf32> to vector<65x66xf32>
    %c0_2 = arith.constant 0 : index
    %3 = memref.load %arg0[%c0_2] : memref<216xf32, #tpu.memory_space<smem>>
    %4 = vector.broadcast %3 : f32 to vector<65x66xf32>
    %5 = arith.mulf %4, %2 : vector<65x66xf32>
    %6 = arith.addf %0, %5 : vector<65x66xf32>
    %c0_3 = arith.constant 0 : index
    %c0_4 = arith.constant 0 : index
    %c1 = arith.constant 1 : index
    %7 = vector.load %arg2[%c0_3, %c0_4, %c1] : memref<3x67x68xf32, #tpu.memory_space<vmem>>, vector<1x65x66xf32>
    %8 = vector.shape_cast %7 : vector<1x65x66xf32> to vector<65x66xf32>
    %c1_5 = arith.constant 1 : index
    %9 = memref.load %arg0[%c1_5] : memref<216xf32, #tpu.memory_space<smem>>
    %10 = vector.broadcast %9 : f32 to vector<65x66xf32>
    %11 = arith.mulf %10, %8 : vector<65x66xf32>
    %12 = arith.addf %6, %11 : vector<65x66xf32>
    %c0_6 = arith.constant 0 : index
    %c0_7 = arith.constant 0 : index
    %c2 = arith.constant 2 : index
    %13 = vector.load %arg2[%c0_6, %c0_7, %c2] : memref<3x67x68xf32, #tpu.memory_space<vmem>>, vector<1x65x66xf32>
    %14 = vector.shape_cast %13 : vector<1x65x66xf32> to vector<65x66xf32>
    %c2_8 = arith.constant 2 : index
    %15 = memref.load %arg0[%c2_8] : memref<216xf32, #tpu.memory_space<smem>>
    %16 = vector.broadcast %15 : f32 to vector<65x66xf32>
    %17 = arith.mulf %16, %14 : vector<65x66xf32>
    %18 = arith.addf %12, %17 : vector<65x66xf32>
    %c0_9 = arith.constant 0 : index
    %c1_10 = arith.constant 1 : index
    %c0_11 = arith.constant 0 : index
    %19 = vector.load %arg2[%c0_9, %c1_10, %c0_11] : memref<3x67x68xf32, #tpu.memory_space<vmem>>, vector<1x65x66xf32>
    %20 = vector.shape_cast %19 : vector<1x65x66xf32> to vector<65x66xf32>
    %c3 = arith.constant 3 : index
    %21 = memref.load %arg0[%c3] : memref<216xf32, #tpu.memory_space<smem>>
    %22 = vector.broadcast %21 : f32 to vector<65x66xf32>
    %23 = arith.mulf %22, %20 : vector<65x66xf32>
    %24 = arith.addf %18, %23 : vector<65x66xf32>
    %c0_12 = arith.constant 0 : index
    %c1_13 = arith.constant 1 : index
    %c1_14 = arith.constant 1 : index
    %25 = vector.load %arg2[%c0_12, %c1_13, %c1_14] : memref<3x67x68xf32, #tpu.memory_space<vmem>>, vector<1x65x66xf32>
    %26 = vector.shape_cast %25 : vector<1x65x66xf32> to vector<65x66xf32>
    %c4 = arith.constant 4 : index
    %27 = memref.load %arg0[%c4] : memref<216xf32, #tpu.memory_space<smem>>
    %28 = vector.broadcast %27 : f32 to vector<65x66xf32>
    %29 = arith.mulf %28, %26 : vector<65x66xf32>
    %30 = arith.addf %24, %29 : vector<65x66xf32>
    %c0_15 = arith.constant 0 : index
    %c1_16 = arith.constant 1 : index
    %c2_17 = arith.constant 2 : index
    %31 = vector.load %arg2[%c0_15, %c1_16, %c2_17] : memref<3x67x68xf32, #tpu.memory_space<vmem>>, vector<1x65x66xf32>
    %32 = vector.shape_cast %31 : vector<1x65x66xf32> to vector<65x66xf32>
    %c5 = arith.constant 5 : index
    %33 = memref.load %arg0[%c5] : memref<216xf32, #tpu.memory_space<smem>>
    %34 = vector.broadcast %33 : f32 to vector<65x66xf32>
    %35 = arith.mulf %34, %32 : vector<65x66xf32>
    %36 = arith.addf %30, %35 : vector<65x66xf32>
    %c0_18 = arith.constant 0 : index
    %c2_19 = arith.constant 2 : index
    %c0_20 = arith.constant 0 : index
    %37 = vector.load %arg2[%c0_18, %c2_19, %c0_20] : memref<3x67x68xf32, #tpu.memory_space<vmem>>, vector<1x65x66xf32>
    %38 = vector.shape_cast %37 : vector<1x65x66xf32> to vector<65x66xf32>
    %c6 = arith.constant 6 : index
    %39 = memref.load %arg0[%c6] : memref<216xf32, #tpu.memory_space<smem>>
    %40 = vector.broadcast %39 : f32 to vector<65x66xf32>
    %41 = arith.mulf %40, %38 : vector<65x66xf32>
    %42 = arith.addf %36, %41 : vector<65x66xf32>
    %c0_21 = arith.constant 0 : index
    %c2_22 = arith.constant 2 : index
    %c1_23 = arith.constant 1 : index
    %43 = vector.load %arg2[%c0_21, %c2_22, %c1_23] : memref<3x67x68xf32, #tpu.memory_space<vmem>>, vector<1x65x66xf32>
    %44 = vector.shape_cast %43 : vector<1x65x66xf32> to vector<65x66xf32>
    %c7 = arith.constant 7 : index
    %45 = memref.load %arg0[%c7] : memref<216xf32, #tpu.memory_space<smem>>
    %46 = vector.broadcast %45 : f32 to vector<65x66xf32>
    %47 = arith.mulf %46, %44 : vector<65x66xf32>
    %48 = arith.addf %42, %47 : vector<65x66xf32>
    %c0_24 = arith.constant 0 : index
    %c2_25 = arith.constant 2 : index
    %c2_26 = arith.constant 2 : index
    %49 = vector.load %arg2[%c0_24, %c2_25, %c2_26] : memref<3x67x68xf32, #tpu.memory_space<vmem>>, vector<1x65x66xf32>
    %50 = vector.shape_cast %49 : vector<1x65x66xf32> to vector<65x66xf32>
    %c8 = arith.constant 8 : index
    %51 = memref.load %arg0[%c8] : memref<216xf32, #tpu.memory_space<smem>>
    %52 = vector.broadcast %51 : f32 to vector<65x66xf32>
    %53 = arith.mulf %52, %50 : vector<65x66xf32>
    %54 = arith.addf %48, %53 : vector<65x66xf32>
    %c1_27 = arith.constant 1 : index
    %c0_28 = arith.constant 0 : index
    %c0_29 = arith.constant 0 : index
    %55 = vector.load %arg2[%c1_27, %c0_28, %c0_29] : memref<3x67x68xf32, #tpu.memory_space<vmem>>, vector<1x65x66xf32>
    %56 = vector.shape_cast %55 : vector<1x65x66xf32> to vector<65x66xf32>
    %c9 = arith.constant 9 : index
    %57 = memref.load %arg0[%c9] : memref<216xf32, #tpu.memory_space<smem>>
    %58 = vector.broadcast %57 : f32 to vector<65x66xf32>
    %59 = arith.mulf %58, %56 : vector<65x66xf32>
    %60 = arith.addf %54, %59 : vector<65x66xf32>
    %c1_30 = arith.constant 1 : index
    %c0_31 = arith.constant 0 : index
    %c1_32 = arith.constant 1 : index
    %61 = vector.load %arg2[%c1_30, %c0_31, %c1_32] : memref<3x67x68xf32, #tpu.memory_space<vmem>>, vector<1x65x66xf32>
    %62 = vector.shape_cast %61 : vector<1x65x66xf32> to vector<65x66xf32>
    %c10 = arith.constant 10 : index
    %63 = memref.load %arg0[%c10] : memref<216xf32, #tpu.memory_space<smem>>
    %64 = vector.broadcast %63 : f32 to vector<65x66xf32>
    %65 = arith.mulf %64, %62 : vector<65x66xf32>
    %66 = arith.addf %60, %65 : vector<65x66xf32>
    %c1_33 = arith.constant 1 : index
    %c0_34 = arith.constant 0 : index
    %c2_35 = arith.constant 2 : index
    %67 = vector.load %arg2[%c1_33, %c0_34, %c2_35] : memref<3x67x68xf32, #tpu.memory_space<vmem>>, vector<1x65x66xf32>
    %68 = vector.shape_cast %67 : vector<1x65x66xf32> to vector<65x66xf32>
    %c11 = arith.constant 11 : index
    %69 = memref.load %arg0[%c11] : memref<216xf32, #tpu.memory_space<smem>>
    %70 = vector.broadcast %69 : f32 to vector<65x66xf32>
    %71 = arith.mulf %70, %68 : vector<65x66xf32>
    %72 = arith.addf %66, %71 : vector<65x66xf32>
    %c1_36 = arith.constant 1 : index
    %c1_37 = arith.constant 1 : index
    %c0_38 = arith.constant 0 : index
    %73 = vector.load %arg2[%c1_36, %c1_37, %c0_38] : memref<3x67x68xf32, #tpu.memory_space<vmem>>, vector<1x65x66xf32>
    %74 = vector.shape_cast %73 : vector<1x65x66xf32> to vector<65x66xf32>
    %c12 = arith.constant 12 : index
    %75 = memref.load %arg0[%c12] : memref<216xf32, #tpu.memory_space<smem>>
    %76 = vector.broadcast %75 : f32 to vector<65x66xf32>
    %77 = arith.mulf %76, %74 : vector<65x66xf32>
    %78 = arith.addf %72, %77 : vector<65x66xf32>
    %c1_39 = arith.constant 1 : index
    %c1_40 = arith.constant 1 : index
    %c1_41 = arith.constant 1 : index
    %79 = vector.load %arg2[%c1_39, %c1_40, %c1_41] : memref<3x67x68xf32, #tpu.memory_space<vmem>>, vector<1x65x66xf32>
    %80 = vector.shape_cast %79 : vector<1x65x66xf32> to vector<65x66xf32>
    %c13 = arith.constant 13 : index
    %81 = memref.load %arg0[%c13] : memref<216xf32, #tpu.memory_space<smem>>
    %82 = vector.broadcast %81 : f32 to vector<65x66xf32>
    %83 = arith.mulf %82, %80 : vector<65x66xf32>
    %84 = arith.addf %78, %83 : vector<65x66xf32>
    %c1_42 = arith.constant 1 : index
    %c1_43 = arith.constant 1 : index
    %c2_44 = arith.constant 2 : index
    %85 = vector.load %arg2[%c1_42, %c1_43, %c2_44] : memref<3x67x68xf32, #tpu.memory_space<vmem>>, vector<1x65x66xf32>
    %86 = vector.shape_cast %85 : vector<1x65x66xf32> to vector<65x66xf32>
    %c14 = arith.constant 14 : index
    %87 = memref.load %arg0[%c14] : memref<216xf32, #tpu.memory_space<smem>>
    %88 = vector.broadcast %87 : f32 to vector<65x66xf32>
    %89 = arith.mulf %88, %86 : vector<65x66xf32>
    %90 = arith.addf %84, %89 : vector<65x66xf32>
    %c1_45 = arith.constant 1 : index
    %c2_46 = arith.constant 2 : index
    %c0_47 = arith.constant 0 : index
    %91 = vector.load %arg2[%c1_45, %c2_46, %c0_47] : memref<3x67x68xf32, #tpu.memory_space<vmem>>, vector<1x65x66xf32>
    %92 = vector.shape_cast %91 : vector<1x65x66xf32> to vector<65x66xf32>
    %c15 = arith.constant 15 : index
    %93 = memref.load %arg0[%c15] : memref<216xf32, #tpu.memory_space<smem>>
    %94 = vector.broadcast %93 : f32 to vector<65x66xf32>
    %95 = arith.mulf %94, %92 : vector<65x66xf32>
    %96 = arith.addf %90, %95 : vector<65x66xf32>
    %c1_48 = arith.constant 1 : index
    %c2_49 = arith.constant 2 : index
    %c1_50 = arith.constant 1 : index
    %97 = vector.load %arg2[%c1_48, %c2_49, %c1_50] : memref<3x67x68xf32, #tpu.memory_space<vmem>>, vector<1x65x66xf32>
    %98 = vector.shape_cast %97 : vector<1x65x66xf32> to vector<65x66xf32>
    %c16 = arith.constant 16 : index
    %99 = memref.load %arg0[%c16] : memref<216xf32, #tpu.memory_space<smem>>
    %100 = vector.broadcast %99 : f32 to vector<65x66xf32>
    %101 = arith.mulf %100, %98 : vector<65x66xf32>
    %102 = arith.addf %96, %101 : vector<65x66xf32>
    %c1_51 = arith.constant 1 : index
    %c2_52 = arith.constant 2 : index
    %c2_53 = arith.constant 2 : index
    %103 = vector.load %arg2[%c1_51, %c2_52, %c2_53] : memref<3x67x68xf32, #tpu.memory_space<vmem>>, vector<1x65x66xf32>
    %104 = vector.shape_cast %103 : vector<1x65x66xf32> to vector<65x66xf32>
    %c17 = arith.constant 17 : index
    %105 = memref.load %arg0[%c17] : memref<216xf32, #tpu.memory_space<smem>>
    %106 = vector.broadcast %105 : f32 to vector<65x66xf32>
    %107 = arith.mulf %106, %104 : vector<65x66xf32>
    %108 = arith.addf %102, %107 : vector<65x66xf32>
    %c2_54 = arith.constant 2 : index
    %c0_55 = arith.constant 0 : index
    %c0_56 = arith.constant 0 : index
    %109 = vector.load %arg2[%c2_54, %c0_55, %c0_56] : memref<3x67x68xf32, #tpu.memory_space<vmem>>, vector<1x65x66xf32>
    %110 = vector.shape_cast %109 : vector<1x65x66xf32> to vector<65x66xf32>
    %c18 = arith.constant 18 : index
    %111 = memref.load %arg0[%c18] : memref<216xf32, #tpu.memory_space<smem>>
    %112 = vector.broadcast %111 : f32 to vector<65x66xf32>
    %113 = arith.mulf %112, %110 : vector<65x66xf32>
    %114 = arith.addf %108, %113 : vector<65x66xf32>
    %c2_57 = arith.constant 2 : index
    %c0_58 = arith.constant 0 : index
    %c1_59 = arith.constant 1 : index
    %115 = vector.load %arg2[%c2_57, %c0_58, %c1_59] : memref<3x67x68xf32, #tpu.memory_space<vmem>>, vector<1x65x66xf32>
    %116 = vector.shape_cast %115 : vector<1x65x66xf32> to vector<65x66xf32>
    %c19 = arith.constant 19 : index
    %117 = memref.load %arg0[%c19] : memref<216xf32, #tpu.memory_space<smem>>
    %118 = vector.broadcast %117 : f32 to vector<65x66xf32>
    %119 = arith.mulf %118, %116 : vector<65x66xf32>
    %120 = arith.addf %114, %119 : vector<65x66xf32>
    %c2_60 = arith.constant 2 : index
    %c0_61 = arith.constant 0 : index
    %c2_62 = arith.constant 2 : index
    %121 = vector.load %arg2[%c2_60, %c0_61, %c2_62] : memref<3x67x68xf32, #tpu.memory_space<vmem>>, vector<1x65x66xf32>
    %122 = vector.shape_cast %121 : vector<1x65x66xf32> to vector<65x66xf32>
    %c20 = arith.constant 20 : index
    %123 = memref.load %arg0[%c20] : memref<216xf32, #tpu.memory_space<smem>>
    %124 = vector.broadcast %123 : f32 to vector<65x66xf32>
    %125 = arith.mulf %124, %122 : vector<65x66xf32>
    %126 = arith.addf %120, %125 : vector<65x66xf32>
    %c2_63 = arith.constant 2 : index
    %c1_64 = arith.constant 1 : index
    %c0_65 = arith.constant 0 : index
    %127 = vector.load %arg2[%c2_63, %c1_64, %c0_65] : memref<3x67x68xf32, #tpu.memory_space<vmem>>, vector<1x65x66xf32>
    %128 = vector.shape_cast %127 : vector<1x65x66xf32> to vector<65x66xf32>
    %c21 = arith.constant 21 : index
    %129 = memref.load %arg0[%c21] : memref<216xf32, #tpu.memory_space<smem>>
    %130 = vector.broadcast %129 : f32 to vector<65x66xf32>
    %131 = arith.mulf %130, %128 : vector<65x66xf32>
    %132 = arith.addf %126, %131 : vector<65x66xf32>
    %c2_66 = arith.constant 2 : index
    %c1_67 = arith.constant 1 : index
    %c1_68 = arith.constant 1 : index
    %133 = vector.load %arg2[%c2_66, %c1_67, %c1_68] : memref<3x67x68xf32, #tpu.memory_space<vmem>>, vector<1x65x66xf32>
    %134 = vector.shape_cast %133 : vector<1x65x66xf32> to vector<65x66xf32>
    %c22 = arith.constant 22 : index
    %135 = memref.load %arg0[%c22] : memref<216xf32, #tpu.memory_space<smem>>
    %136 = vector.broadcast %135 : f32 to vector<65x66xf32>
    %137 = arith.mulf %136, %134 : vector<65x66xf32>
    %138 = arith.addf %132, %137 : vector<65x66xf32>
    %c2_69 = arith.constant 2 : index
    %c1_70 = arith.constant 1 : index
    %c2_71 = arith.constant 2 : index
    %139 = vector.load %arg2[%c2_69, %c1_70, %c2_71] : memref<3x67x68xf32, #tpu.memory_space<vmem>>, vector<1x65x66xf32>
    %140 = vector.shape_cast %139 : vector<1x65x66xf32> to vector<65x66xf32>
    %c23 = arith.constant 23 : index
    %141 = memref.load %arg0[%c23] : memref<216xf32, #tpu.memory_space<smem>>
    %142 = vector.broadcast %141 : f32 to vector<65x66xf32>
    %143 = arith.mulf %142, %140 : vector<65x66xf32>
    %144 = arith.addf %138, %143 : vector<65x66xf32>
    %c2_72 = arith.constant 2 : index
    %c2_73 = arith.constant 2 : index
    %c0_74 = arith.constant 0 : index
    %145 = vector.load %arg2[%c2_72, %c2_73, %c0_74] : memref<3x67x68xf32, #tpu.memory_space<vmem>>, vector<1x65x66xf32>
    %146 = vector.shape_cast %145 : vector<1x65x66xf32> to vector<65x66xf32>
    %c24 = arith.constant 24 : index
    %147 = memref.load %arg0[%c24] : memref<216xf32, #tpu.memory_space<smem>>
    %148 = vector.broadcast %147 : f32 to vector<65x66xf32>
    %149 = arith.mulf %148, %146 : vector<65x66xf32>
    %150 = arith.addf %144, %149 : vector<65x66xf32>
    %c2_75 = arith.constant 2 : index
    %c2_76 = arith.constant 2 : index
    %c1_77 = arith.constant 1 : index
    %151 = vector.load %arg2[%c2_75, %c2_76, %c1_77] : memref<3x67x68xf32, #tpu.memory_space<vmem>>, vector<1x65x66xf32>
    %152 = vector.shape_cast %151 : vector<1x65x66xf32> to vector<65x66xf32>
    %c25 = arith.constant 25 : index
    %153 = memref.load %arg0[%c25] : memref<216xf32, #tpu.memory_space<smem>>
    %154 = vector.broadcast %153 : f32 to vector<65x66xf32>
    %155 = arith.mulf %154, %152 : vector<65x66xf32>
    %156 = arith.addf %150, %155 : vector<65x66xf32>
    %c2_78 = arith.constant 2 : index
    %c2_79 = arith.constant 2 : index
    %c2_80 = arith.constant 2 : index
    %157 = vector.load %arg2[%c2_78, %c2_79, %c2_80] : memref<3x67x68xf32, #tpu.memory_space<vmem>>, vector<1x65x66xf32>
    %158 = vector.shape_cast %157 : vector<1x65x66xf32> to vector<65x66xf32>
    %c26 = arith.constant 26 : index
    %159 = memref.load %arg0[%c26] : memref<216xf32, #tpu.memory_space<smem>>
    %160 = vector.broadcast %159 : f32 to vector<65x66xf32>
    %161 = arith.mulf %160, %158 : vector<65x66xf32>
    %162 = arith.addf %156, %161 : vector<65x66xf32>
    %c0_81 = arith.constant 0 : index
    %163 = memref.load %arg1[%c0_81] : memref<8xf32, #tpu.memory_space<smem>>
    %164 = vector.broadcast %163 : f32 to vector<65x66xf32>
    %165 = arith.addf %162, %164 : vector<65x66xf32>
    %cst_82 = arith.constant 2.000000e+00 : f32
    %166 = vector.broadcast %cst_82 : f32 to vector<65x66xf32>
    %167 = arith.mulf %166, %165 : vector<65x66xf32>
    %cst_83 = arith.constant 0.000000e+00 : f32
    %168 = vector.broadcast %cst_83 : f32 to vector<65x66xf32>
    %169 = arith.maximumf %167, %168 : vector<65x66xf32>
    %c0_84 = arith.constant 0 : index
    %c0_85 = arith.constant 0 : index
    %c0_86 = arith.constant 0 : index
    %170 = vector.load %arg3[%c0_84, %c0_85, %c0_86] : memref<8x65x66xf32, #tpu.memory_space<vmem>>, vector<1x65x66xf32>
    %171 = vector.shape_cast %170 : vector<1x65x66xf32> to vector<65x66xf32>
    %172 = vector.shape_cast %169 : vector<65x66xf32> to vector<1x65x66xf32>
    tpu.vector_store %arg3[%c0_84, %c0_85, %c0_86], %172 {strides = array<i32>} : memref<8x65x66xf32, #tpu.memory_space<vmem>>, vector<1x65x66xf32>,
    %cst_87 = arith.constant 0.000000e+00 : f32
    %173 = vector.broadcast %cst_87 : f32 to vector<65x66xf32>
    %c0_88 = arith.constant 0 : index
    %c0_89 = arith.constant 0 : index
    %c0_90 = arith.constant 0 : index
    %174 = vector.load %arg2[%c0_88, %c0_89, %c0_90] : memref<3x67x68xf32, #tpu.memory_space<vmem>>, vector<1x65x66xf32>
    %175 = vector.shape_cast %174 : vector<1x65x66xf32> to vector<65x66xf32>
    %c27 = arith.constant 27 : index
    %176 = memref.load %arg0[%c27] : memref<216xf32, #tpu.memory_space<smem>>
    %177 = vector.broadcast %176 : f32 to vector<65x66xf32>
    %178 = arith.mulf %177, %175 : vector<65x66xf32>
    %179 = arith.addf %173, %178 : vector<65x66xf32>
    %c0_91 = arith.constant 0 : index
    %c0_92 = arith.constant 0 : index
    %c1_93 = arith.constant 1 : index
    %180 = vector.load %arg2[%c0_91, %c0_92, %c1_93] : memref<3x67x68xf32, #tpu.memory_space<vmem>>, vector<1x65x66xf32>
    %181 = vector.shape_cast %180 : vector<1x65x66xf32> to vector<65x66xf32>
    %c28 = arith.constant 28 : index
    %182 = memref.load %arg0[%c28] : memref<216xf32, #tpu.memory_space<smem>>
    %183 = vector.broadcast %182 : f32 to vector<65x66xf32>
    %184 = arith.mulf %183, %181 : vector<65x66xf32>
    %185 = arith.addf %179, %184 : vector<65x66xf32>
    %c0_94 = arith.constant 0 : index
    %c0_95 = arith.constant 0 : index
    %c2_96 = arith.constant 2 : index
    %186 = vector.load %arg2[%c0_94, %c0_95, %c2_96] : memref<3x67x68xf32, #tpu.memory_space<vmem>>, vector<1x65x66xf32>
    %187 = vector.shape_cast %186 : vector<1x65x66xf32> to vector<65x66xf32>
    %c29 = arith.constant 29 : index
    %188 = memref.load %arg0[%c29] : memref<216xf32, #tpu.memory_space<smem>>
    %189 = vector.broadcast %188 : f32 to vector<65x66xf32>
    %190 = arith.mulf %189, %187 : vector<65x66xf32>
    %191 = arith.addf %185, %190 : vector<65x66xf32>
    %c0_97 = arith.constant 0 : index
    %c1_98 = arith.constant 1 : index
    %c0_99 = arith.constant 0 : index
    %192 = vector.load %arg2[%c0_97, %c1_98, %c0_99] : memref<3x67x68xf32, #tpu.memory_space<vmem>>, vector<1x65x66xf32>
    %193 = vector.shape_cast %192 : vector<1x65x66xf32> to vector<65x66xf32>
    %c30 = arith.constant 30 : index
    %194 = memref.load %arg0[%c30] : memref<216xf32, #tpu.memory_space<smem>>
    %195 = vector.broadcast %194 : f32 to vector<65x66xf32>
    %196 = arith.mulf %195, %193 : vector<65x66xf32>
    %197 = arith.addf %191, %196 : vector<65x66xf32>
    %c0_100 = arith.constant 0 : index
    %c1_101 = arith.constant 1 : index
    %c1_102 = arith.constant 1 : index
    %198 = vector.load %arg2[%c0_100, %c1_101, %c1_102] : memref<3x67x68xf32, #tpu.memory_space<vmem>>, vector<1x65x66xf32>
    %199 = vector.shape_cast %198 : vector<1x65x66xf32> to vector<65x66xf32>
    %c31 = arith.constant 31 : index
    %200 = memref.load %arg0[%c31] : memref<216xf32, #tpu.memory_space<smem>>
    %201 = vector.broadcast %200 : f32 to vector<65x66xf32>
    %202 = arith.mulf %201, %199 : vector<65x66xf32>
    %203 = arith.addf %197, %202 : vector<65x66xf32>
    %c0_103 = arith.constant 0 : index
    %c1_104 = arith.constant 1 : index
    %c2_105 = arith.constant 2 : index
    %204 = vector.load %arg2[%c0_103, %c1_104, %c2_105] : memref<3x67x68xf32, #tpu.memory_space<vmem>>, vector<1x65x66xf32>
    %205 = vector.shape_cast %204 : vector<1x65x66xf32> to vector<65x66xf32>
    %c32 = arith.constant 32 : index
    %206 = memref.load %arg0[%c32] : memref<216xf32, #tpu.memory_space<smem>>
    %207 = vector.broadcast %206 : f32 to vector<65x66xf32>
    %208 = arith.mulf %207, %205 : vector<65x66xf32>
    %209 = arith.addf %203, %208 : vector<65x66xf32>
    %c0_106 = arith.constant 0 : index
    %c2_107 = arith.constant 2 : index
    %c0_108 = arith.constant 0 : index
    %210 = vector.load %arg2[%c0_106, %c2_107, %c0_108] : memref<3x67x68xf32, #tpu.memory_space<vmem>>, vector<1x65x66xf32>
    %211 = vector.shape_cast %210 : vector<1x65x66xf32> to vector<65x66xf32>
    %c33 = arith.constant 33 : index
    %212 = memref.load %arg0[%c33] : memref<216xf32, #tpu.memory_space<smem>>
    %213 = vector.broadcast %212 : f32 to vector<65x66xf32>
    %214 = arith.mulf %213, %211 : vector<65x66xf32>
    %215 = arith.addf %209, %214 : vector<65x66xf32>
    %c0_109 = arith.constant 0 : index
    %c2_110 = arith.constant 2 : index
    %c1_111 = arith.constant 1 : index
    %216 = vector.load %arg2[%c0_109, %c2_110, %c1_111] : memref<3x67x68xf32, #tpu.memory_space<vmem>>, vector<1x65x66xf32>
    %217 = vector.shape_cast %216 : vector<1x65x66xf32> to vector<65x66xf32>
    %c34 = arith.constant 34 : index
    %218 = memref.load %arg0[%c34] : memref<216xf32, #tpu.memory_space<smem>>
    %219 = vector.broadcast %218 : f32 to vector<65x66xf32>
    %220 = arith.mulf %219, %217 : vector<65x66xf32>
    %221 = arith.addf %215, %220 : vector<65x66xf32>
    %c0_112 = arith.constant 0 : index
    %c2_113 = arith.constant 2 : index
    %c2_114 = arith.constant 2 : index
    %222 = vector.load %arg2[%c0_112, %c2_113, %c2_114] : memref<3x67x68xf32, #tpu.memory_space<vmem>>, vector<1x65x66xf32>
    %223 = vector.shape_cast %222 : vector<1x65x66xf32> to vector<65x66xf32>
    %c35 = arith.constant 35 : index
    %224 = memref.load %arg0[%c35] : memref<216xf32, #tpu.memory_space<smem>>
    %225 = vector.broadcast %224 : f32 to vector<65x66xf32>
    %226 = arith.mulf %225, %223 : vector<65x66xf32>
    %227 = arith.addf %221, %226 : vector<65x66xf32>
    %c1_115 = arith.constant 1 : index
    %c0_116 = arith.constant 0 : index
    %c0_117 = arith.constant 0 : index
    %228 = vector.load %arg2[%c1_115, %c0_116, %c0_117] : memref<3x67x68xf32, #tpu.memory_space<vmem>>, vector<1x65x66xf32>
    %229 = vector.shape_cast %228 : vector<1x65x66xf32> to vector<65x66xf32>
    %c36 = arith.constant 36 : index
    %230 = memref.load %arg0[%c36] : memref<216xf32, #tpu.memory_space<smem>>
    %231 = vector.broadcast %230 : f32 to vector<65x66xf32>
    %232 = arith.mulf %231, %229 : vector<65x66xf32>
    %233 = arith.addf %227, %232 : vector<65x66xf32>
    %c1_118 = arith.constant 1 : index
    %c0_119 = arith.constant 0 : index
    %c1_120 = arith.constant 1 : index
    %234 = vector.load %arg2[%c1_118, %c0_119, %c1_120] : memref<3x67x68xf32, #tpu.memory_space<vmem>>, vector<1x65x66xf32>
    %235 = vector.shape_cast %234 : vector<1x65x66xf32> to vector<65x66xf32>
    %c37 = arith.constant 37 : index
    %236 = memref.load %arg0[%c37] : memref<216xf32, #tpu.memory_space<smem>>
    %237 = vector.broadcast %236 : f32 to vector<65x66xf32>
    %238 = arith.mulf %237, %235 : vector<65x66xf32>
    %239 = arith.addf %233, %238 : vector<65x66xf32>
    %c1_121 = arith.constant 1 : index
    %c0_122 = arith.constant 0 : index
    %c2_123 = arith.constant 2 : index
    %240 = vector.load %arg2[%c1_121, %c0_122, %c2_123] : memref<3x67x68xf32, #tpu.memory_space<vmem>>, vector<1x65x66xf32>
    %241 = vector.shape_cast %240 : vector<1x65x66xf32> to vector<65x66xf32>
    %c38 = arith.constant 38 : index
    %242 = memref.load %arg0[%c38] : memref<216xf32, #tpu.memory_space<smem>>
    %243 = vector.broadcast %242 : f32 to vector<65x66xf32>
    %244 = arith.mulf %243, %241 : vector<65x66xf32>
    %245 = arith.addf %239, %244 : vector<65x66xf32>
    %c1_124 = arith.constant 1 : index
    %c1_125 = arith.constant 1 : index
    %c0_126 = arith.constant 0 : index
    %246 = vector.load %arg2[%c1_124, %c1_125, %c0_126] : memref<3x67x68xf32, #tpu.memory_space<vmem>>, vector<1x65x66xf32>
    %247 = vector.shape_cast %246 : vector<1x65x66xf32> to vector<65x66xf32>
    %c39 = arith.constant 39 : index
    %248 = memref.load %arg0[%c39] : memref<216xf32, #tpu.memory_space<smem>>
    %249 = vector.broadcast %248 : f32 to vector<65x66xf32>
    %250 = arith.mulf %249, %247 : vector<65x66xf32>
    %251 = arith.addf %245, %250 : vector<65x66xf32>
    %c1_127 = arith.constant 1 : index
    %c1_128 = arith.constant 1 : index
    %c1_129 = arith.constant 1 : index
    %252 = vector.load %arg2[%c1_127, %c1_128, %c1_129] : memref<3x67x68xf32, #tpu.memory_space<vmem>>, vector<1x65x66xf32>
    %253 = vector.shape_cast %252 : vector<1x65x66xf32> to vector<65x66xf32>
    %c40 = arith.constant 40 : index
    %254 = memref.load %arg0[%c40] : memref<216xf32, #tpu.memory_space<smem>>
    %255 = vector.broadcast %254 : f32 to vector<65x66xf32>
    %256 = arith.mulf %255, %253 : vector<65x66xf32>
    %257 = arith.addf %251, %256 : vector<65x66xf32>
    %c1_130 = arith.constant 1 : index
    %c1_131 = arith.constant 1 : index
    %c2_132 = arith.constant 2 : index
    %258 = vector.load %arg2[%c1_130, %c1_131, %c2_132] : memref<3x67x68xf32, #tpu.memory_space<vmem>>, vector<1x65x66xf32>
    %259 = vector.shape_cast %258 : vector<1x65x66xf32> to vector<65x66xf32>
    %c41 = arith.constant 41 : index
    %260 = memref.load %arg0[%c41] : memref<216xf32, #tpu.memory_space<smem>>
    %261 = vector.broadcast %260 : f32 to vector<65x66xf32>
    %262 = arith.mulf %261, %259 : vector<65x66xf32>
    %263 = arith.addf %257, %262 : vector<65x66xf32>
    %c1_133 = arith.constant 1 : index
    %c2_134 = arith.constant 2 : index
    %c0_135 = arith.constant 0 : index
    %264 = vector.load %arg2[%c1_133, %c2_134, %c0_135] : memref<3x67x68xf32, #tpu.memory_space<vmem>>, vector<1x65x66xf32>
    %265 = vector.shape_cast %264 : vector<1x65x66xf32> to vector<65x66xf32>
    %c42 = arith.constant 42 : index
    %266 = memref.load %arg0[%c42] : memref<216xf32, #tpu.memory_space<smem>>
    %267 = vector.broadcast %266 : f32 to vector<65x66xf32>
    %268 = arith.mulf %267, %265 : vector<65x66xf32>
    %269 = arith.addf %263, %268 : vector<65x66xf32>
    %c1_136 = arith.constant 1 : index
    %c2_137 = arith.constant 2 : index
    %c1_138 = arith.constant 1 : index
    %270 = vector.load %arg2[%c1_136, %c2_137, %c1_138] : memref<3x67x68xf32, #tpu.memory_space<vmem>>, vector<1x65x66xf32>
    %271 = vector.shape_cast %270 : vector<1x65x66xf32> to vector<65x66xf32>
    %c43 = arith.constant 43 : index
    %272 = memref.load %arg0[%c43] : memref<216xf32, #tpu.memory_space<smem>>
    %273 = vector.broadcast %272 : f32 to vector<65x66xf32>
    %274 = arith.mulf %273, %271 : vector<65x66xf32>
    %275 = arith.addf %269, %274 : vector<65x66xf32>
    %c1_139 = arith.constant 1 : index
    %c2_140 = arith.constant 2 : index
    %c2_141 = arith.constant 2 : index
    %276 = vector.load %arg2[%c1_139, %c2_140, %c2_141] : memref<3x67x68xf32, #tpu.memory_space<vmem>>, vector<1x65x66xf32>
    %277 = vector.shape_cast %276 : vector<1x65x66xf32> to vector<65x66xf32>
    %c44 = arith.constant 44 : index
    %278 = memref.load %arg0[%c44] : memref<216xf32, #tpu.memory_space<smem>>
    %279 = vector.broadcast %278 : f32 to vector<65x66xf32>
    %280 = arith.mulf %279, %277 : vector<65x66xf32>
    %281 = arith.addf %275, %280 : vector<65x66xf32>
    %c2_142 = arith.constant 2 : index
    %c0_143 = arith.constant 0 : index
    %c0_144 = arith.constant 0 : index
    %282 = vector.load %arg2[%c2_142, %c0_143, %c0_144] : memref<3x67x68xf32, #tpu.memory_space<vmem>>, vector<1x65x66xf32>
    %283 = vector.shape_cast %282 : vector<1x65x66xf32> to vector<65x66xf32>
    %c45 = arith.constant 45 : index
    %284 = memref.load %arg0[%c45] : memref<216xf32, #tpu.memory_space<smem>>
    %285 = vector.broadcast %284 : f32 to vector<65x66xf32>
    %286 = arith.mulf %285, %283 : vector<65x66xf32>
    %287 = arith.addf %281, %286 : vector<65x66xf32>
    %c2_145 = arith.constant 2 : index
    %c0_146 = arith.constant 0 : index
    %c1_147 = arith.constant 1 : index
    %288 = vector.load %arg2[%c2_145, %c0_146, %c1_147] : memref<3x67x68xf32, #tpu.memory_space<vmem>>, vector<1x65x66xf32>
    %289 = vector.shape_cast %288 : vector<1x65x66xf32> to vector<65x66xf32>
    %c46 = arith.constant 46 : index
    %290 = memref.load %arg0[%c46] : memref<216xf32, #tpu.memory_space<smem>>
    %291 = vector.broadcast %290 : f32 to vector<65x66xf32>
    %292 = arith.mulf %291, %289 : vector<65x66xf32>
    %293 = arith.addf %287, %292 : vector<65x66xf32>
    %c2_148 = arith.constant 2 : index
    %c0_149 = arith.constant 0 : index
    %c2_150 = arith.constant 2 : index
    %294 = vector.load %arg2[%c2_148, %c0_149, %c2_150] : memref<3x67x68xf32, #tpu.memory_space<vmem>>, vector<1x65x66xf32>
    %295 = vector.shape_cast %294 : vector<1x65x66xf32> to vector<65x66xf32>
    %c47 = arith.constant 47 : index
    %296 = memref.load %arg0[%c47] : memref<216xf32, #tpu.memory_space<smem>>
    %297 = vector.broadcast %296 : f32 to vector<65x66xf32>
    %298 = arith.mulf %297, %295 : vector<65x66xf32>
    %299 = arith.addf %293, %298 : vector<65x66xf32>
    %c2_151 = arith.constant 2 : index
    %c1_152 = arith.constant 1 : index
    %c0_153 = arith.constant 0 : index
    %300 = vector.load %arg2[%c2_151, %c1_152, %c0_153] : memref<3x67x68xf32, #tpu.memory_space<vmem>>, vector<1x65x66xf32>
    %301 = vector.shape_cast %300 : vector<1x65x66xf32> to vector<65x66xf32>
    %c48 = arith.constant 48 : index
    %302 = memref.load %arg0[%c48] : memref<216xf32, #tpu.memory_space<smem>>
    %303 = vector.broadcast %302 : f32 to vector<65x66xf32>
    %304 = arith.mulf %303, %301 : vector<65x66xf32>
    %305 = arith.addf %299, %304 : vector<65x66xf32>
    %c2_154 = arith.constant 2 : index
    %c1_155 = arith.constant 1 : index
    %c1_156 = arith.constant 1 : index
    %306 = vector.load %arg2[%c2_154, %c1_155, %c1_156] : memref<3x67x68xf32, #tpu.memory_space<vmem>>, vector<1x65x66xf32>
    %307 = vector.shape_cast %306 : vector<1x65x66xf32> to vector<65x66xf32>
    %c49 = arith.constant 49 : index
    %308 = memref.load %arg0[%c49] : memref<216xf32, #tpu.memory_space<smem>>
    %309 = vector.broadcast %308 : f32 to vector<65x66xf32>
    %310 = arith.mulf %309, %307 : vector<65x66xf32>
    %311 = arith.addf %305, %310 : vector<65x66xf32>
    %c2_157 = arith.constant 2 : index
    %c1_158 = arith.constant 1 : index
    %c2_159 = arith.constant 2 : index
    %312 = vector.load %arg2[%c2_157, %c1_158, %c2_159] : memref<3x67x68xf32, #tpu.memory_space<vmem>>, vector<1x65x66xf32>
    %313 = vector.shape_cast %312 : vector<1x65x66xf32> to vector<65x66xf32>
    %c50 = arith.constant 50 : index
    %314 = memref.load %arg0[%c50] : memref<216xf32, #tpu.memory_space<smem>>
    %315 = vector.broadcast %314 : f32 to vector<65x66xf32>
    %316 = arith.mulf %315, %313 : vector<65x66xf32>
    %317 = arith.addf %311, %316 : vector<65x66xf32>
    %c2_160 = arith.constant 2 : index
    %c2_161 = arith.constant 2 : index
    %c0_162 = arith.constant 0 : index
    %318 = vector.load %arg2[%c2_160, %c2_161, %c0_162] : memref<3x67x68xf32, #tpu.memory_space<vmem>>, vector<1x65x66xf32>
    %319 = vector.shape_cast %318 : vector<1x65x66xf32> to vector<65x66xf32>
    %c51 = arith.constant 51 : index
    %320 = memref.load %arg0[%c51] : memref<216xf32, #tpu.memory_space<smem>>
    %321 = vector.broadcast %320 : f32 to vector<65x66xf32>
    %322 = arith.mulf %321, %319 : vector<65x66xf32>
    %323 = arith.addf %317, %322 : vector<65x66xf32>
    %c2_163 = arith.constant 2 : index
    %c2_164 = arith.constant 2 : index
    %c1_165 = arith.constant 1 : index
    %324 = vector.load %arg2[%c2_163, %c2_164, %c1_165] : memref<3x67x68xf32, #tpu.memory_space<vmem>>, vector<1x65x66xf32>
    %325 = vector.shape_cast %324 : vector<1x65x66xf32> to vector<65x66xf32>
    %c52 = arith.constant 52 : index
    %326 = memref.load %arg0[%c52] : memref<216xf32, #tpu.memory_space<smem>>
    %327 = vector.broadcast %326 : f32 to vector<65x66xf32>
    %328 = arith.mulf %327, %325 : vector<65x66xf32>
    %329 = arith.addf %323, %328 : vector<65x66xf32>
    %c2_166 = arith.constant 2 : index
    %c2_167 = arith.constant 2 : index
    %c2_168 = arith.constant 2 : index
    %330 = vector.load %arg2[%c2_166, %c2_167, %c2_168] : memref<3x67x68xf32, #tpu.memory_space<vmem>>, vector<1x65x66xf32>
    %331 = vector.shape_cast %330 : vector<1x65x66xf32> to vector<65x66xf32>
    %c53 = arith.constant 53 : index
    %332 = memref.load %arg0[%c53] : memref<216xf32, #tpu.memory_space<smem>>
    %333 = vector.broadcast %332 : f32 to vector<65x66xf32>
    %334 = arith.mulf %333, %331 : vector<65x66xf32>
    %335 = arith.addf %329, %334 : vector<65x66xf32>
    %c1_169 = arith.constant 1 : index
    %336 = memref.load %arg1[%c1_169] : memref<8xf32, #tpu.memory_space<smem>>
    %337 = vector.broadcast %336 : f32 to vector<65x66xf32>
    %338 = arith.addf %335, %337 : vector<65x66xf32>
    %cst_170 = arith.constant 2.000000e+00 : f32
    %339 = vector.broadcast %cst_170 : f32 to vector<65x66xf32>
    %340 = arith.mulf %339, %338 : vector<65x66xf32>
    %cst_171 = arith.constant 0.000000e+00 : f32
    %341 = vector.broadcast %cst_171 : f32 to vector<65x66xf32>
    %342 = arith.maximumf %340, %341 : vector<65x66xf32>
    %c1_172 = arith.constant 1 : index
    %c0_173 = arith.constant 0 : index
    %c0_174 = arith.constant 0 : index
    %343 = vector.load %arg3[%c1_172, %c0_173, %c0_174] : memref<8x65x66xf32, #tpu.memory_space<vmem>>, vector<1x65x66xf32>
    %344 = vector.shape_cast %343 : vector<1x65x66xf32> to vector<65x66xf32>
    %345 = vector.shape_cast %342 : vector<65x66xf32> to vector<1x65x66xf32>
    tpu.vector_store %arg3[%c1_172, %c0_173, %c0_174], %345 {strides = array<i32>} : memref<8x65x66xf32, #tpu.memory_space<vmem>>, vector<1x65x66xf32>,
    %cst_175 = arith.constant 0.000000e+00 : f32
    %346 = vector.broadcast %cst_175 : f32 to vector<65x66xf32>
    %c0_176 = arith.constant 0 : index
    %c0_177 = arith.constant 0 : index
    %c0_178 = arith.constant 0 : index
    %347 = vector.load %arg2[%c0_176, %c0_177, %c0_178] : memref<3x67x68xf32, #tpu.memory_space<vmem>>, vector<1x65x66xf32>
    %348 = vector.shape_cast %347 : vector<1x65x66xf32> to vector<65x66xf32>
    %c54 = arith.constant 54 : index
    %349 = memref.load %arg0[%c54] : memref<216xf32, #tpu.memory_space<smem>>
    %350 = vector.broadcast %349 : f32 to vector<65x66xf32>
    %351 = arith.mulf %350, %348 : vector<65x66xf32>
    %352 = arith.addf %346, %351 : vector<65x66xf32>
    %c0_179 = arith.constant 0 : index
    %c0_180 = arith.constant 0 : index
    %c1_181 = arith.constant 1 : index
    %353 = vector.load %arg2[%c0_179, %c0_180, %c1_181] : memref<3x67x68xf32, #tpu.memory_space<vmem>>, vector<1x65x66xf32>
    %354 = vector.shape_cast %353 : vector<1x65x66xf32> to vector<65x66xf32>
    %c55 = arith.constant 55 : index
    %355 = memref.load %arg0[%c55] : memref<216xf32, #tpu.memory_space<smem>>
    %356 = vector.broadcast %355 : f32 to vector<65x66xf32>
    %357 = arith.mulf %356, %354 : vector<65x66xf32>
    %358 = arith.addf %352, %357 : vector<65x66xf32>
    %c0_182 = arith.constant 0 : index
    %c0_183 = arith.constant 0 : index
    %c2_184 = arith.constant 2 : index
    %359 = vector.load %arg2[%c0_182, %c0_183, %c2_184] : memref<3x67x68xf32, #tpu.memory_space<vmem>>, vector<1x65x66xf32>
    %360 = vector.shape_cast %359 : vector<1x65x66xf32> to vector<65x66xf32>
    %c56 = arith.constant 56 : index
    %361 = memref.load %arg0[%c56] : memref<216xf32, #tpu.memory_space<smem>>
    %362 = vector.broadcast %361 : f32 to vector<65x66xf32>
    %363 = arith.mulf %362, %360 : vector<65x66xf32>
    %364 = arith.addf %358, %363 : vector<65x66xf32>
    %c0_185 = arith.constant 0 : index
    %c1_186 = arith.constant 1 : index
    %c0_187 = arith.constant 0 : index
    %365 = vector.load %arg2[%c0_185, %c1_186, %c0_187] : memref<3x67x68xf32, #tpu.memory_space<vmem>>, vector<1x65x66xf32>
    %366 = vector.shape_cast %365 : vector<1x65x66xf32> to vector<65x66xf32>
    %c57 = arith.constant 57 : index
    %367 = memref.load %arg0[%c57] : memref<216xf32, #tpu.memory_space<smem>>
    %368 = vector.broadcast %367 : f32 to vector<65x66xf32>
    %369 = arith.mulf %368, %366 : vector<65x66xf32>
    %370 = arith.addf %364, %369 : vector<65x66xf32>
    %c0_188 = arith.constant 0 : index
    %c1_189 = arith.constant 1 : index
    %c1_190 = arith.constant 1 : index
    %371 = vector.load %arg2[%c0_188, %c1_189, %c1_190] : memref<3x67x68xf32, #tpu.memory_space<vmem>>, vector<1x65x66xf32>
    %372 = vector.shape_cast %371 : vector<1x65x66xf32> to vector<65x66xf32>
    %c58 = arith.constant 58 : index
    %373 = memref.load %arg0[%c58] : memref<216xf32, #tpu.memory_space<smem>>
    %374 = vector.broadcast %373 : f32 to vector<65x66xf32>
    %375 = arith.mulf %374, %372 : vector<65x66xf32>
    %376 = arith.addf %370, %375 : vector<65x66xf32>
    %c0_191 = arith.constant 0 : index
    %c1_192 = arith.constant 1 : index
    %c2_193 = arith.constant 2 : index
    %377 = vector.load %arg2[%c0_191, %c1_192, %c2_193] : memref<3x67x68xf32, #tpu.memory_space<vmem>>, vector<1x65x66xf32>
    %378 = vector.shape_cast %377 : vector<1x65x66xf32> to vector<65x66xf32>
    %c59 = arith.constant 59 : index
    %379 = memref.load %arg0[%c59] : memref<216xf32, #tpu.memory_space<smem>>
    %380 = vector.broadcast %379 : f32 to vector<65x66xf32>
    %381 = arith.mulf %380, %378 : vector<65x66xf32>
    %382 = arith.addf %376, %381 : vector<65x66xf32>
    %c0_194 = arith.constant 0 : index
    %c2_195 = arith.constant 2 : index
    %c0_196 = arith.constant 0 : index
    %383 = vector.load %arg2[%c0_194, %c2_195, %c0_196] : memref<3x67x68xf32, #tpu.memory_space<vmem>>, vector<1x65x66xf32>
    %384 = vector.shape_cast %383 : vector<1x65x66xf32> to vector<65x66xf32>
    %c60 = arith.constant 60 : index
    %385 = memref.load %arg0[%c60] : memref<216xf32, #tpu.memory_space<smem>>
    %386 = vector.broadcast %385 : f32 to vector<65x66xf32>
    %387 = arith.mulf %386, %384 : vector<65x66xf32>
    %388 = arith.addf %382, %387 : vector<65x66xf32>
    %c0_197 = arith.constant 0 : index
    %c2_198 = arith.constant 2 : index
    %c1_199 = arith.constant 1 : index
    %389 = vector.load %arg2[%c0_197, %c2_198, %c1_199] : memref<3x67x68xf32, #tpu.memory_space<vmem>>, vector<1x65x66xf32>
    %390 = vector.shape_cast %389 : vector<1x65x66xf32> to vector<65x66xf32>
    %c61 = arith.constant 61 : index
    %391 = memref.load %arg0[%c61] : memref<216xf32, #tpu.memory_space<smem>>
    %392 = vector.broadcast %391 : f32 to vector<65x66xf32>
    %393 = arith.mulf %392, %390 : vector<65x66xf32>
    %394 = arith.addf %388, %393 : vector<65x66xf32>
    %c0_200 = arith.constant 0 : index
    %c2_201 = arith.constant 2 : index
    %c2_202 = arith.constant 2 : index
    %395 = vector.load %arg2[%c0_200, %c2_201, %c2_202] : memref<3x67x68xf32, #tpu.memory_space<vmem>>, vector<1x65x66xf32>
    %396 = vector.shape_cast %395 : vector<1x65x66xf32> to vector<65x66xf32>
    %c62 = arith.constant 62 : index
    %397 = memref.load %arg0[%c62] : memref<216xf32, #tpu.memory_space<smem>>
    %398 = vector.broadcast %397 : f32 to vector<65x66xf32>
    %399 = arith.mulf %398, %396 : vector<65x66xf32>
    %400 = arith.addf %394, %399 : vector<65x66xf32>
    %c1_203 = arith.constant 1 : index
    %c0_204 = arith.constant 0 : index
    %c0_205 = arith.constant 0 : index
    %401 = vector.load %arg2[%c1_203, %c0_204, %c0_205] : memref<3x67x68xf32, #tpu.memory_space<vmem>>, vector<1x65x66xf32>
    %402 = vector.shape_cast %401 : vector<1x65x66xf32> to vector<65x66xf32>
    %c63 = arith.constant 63 : index
    %403 = memref.load %arg0[%c63] : memref<216xf32, #tpu.memory_space<smem>>
    %404 = vector.broadcast %403 : f32 to vector<65x66xf32>
    %405 = arith.mulf %404, %402 : vector<65x66xf32>
    %406 = arith.addf %400, %405 : vector<65x66xf32>
    %c1_206 = arith.constant 1 : index
    %c0_207 = arith.constant 0 : index
    %c1_208 = arith.constant 1 : index
    %407 = vector.load %arg2[%c1_206, %c0_207, %c1_208] : memref<3x67x68xf32, #tpu.memory_space<vmem>>, vector<1x65x66xf32>
    %408 = vector.shape_cast %407 : vector<1x65x66xf32> to vector<65x66xf32>
    %c64 = arith.constant 64 : index
    %409 = memref.load %arg0[%c64] : memref<216xf32, #tpu.memory_space<smem>>
    %410 = vector.broadcast %409 : f32 to vector<65x66xf32>
    %411 = arith.mulf %410, %408 : vector<65x66xf32>
    %412 = arith.addf %406, %411 : vector<65x66xf32>
    %c1_209 = arith.constant 1 : index
    %c0_210 = arith.constant 0 : index
    %c2_211 = arith.constant 2 : index
    %413 = vector.load %arg2[%c1_209, %c0_210, %c2_211] : memref<3x67x68xf32, #tpu.memory_space<vmem>>, vector<1x65x66xf32>
    %414 = vector.shape_cast %413 : vector<1x65x66xf32> to vector<65x66xf32>
    %c65 = arith.constant 65 : index
    %415 = memref.load %arg0[%c65] : memref<216xf32, #tpu.memory_space<smem>>
    %416 = vector.broadcast %415 : f32 to vector<65x66xf32>
    %417 = arith.mulf %416, %414 : vector<65x66xf32>
    %418 = arith.addf %412, %417 : vector<65x66xf32>
    %c1_212 = arith.constant 1 : index
    %c1_213 = arith.constant 1 : index
    %c0_214 = arith.constant 0 : index
    %419 = vector.load %arg2[%c1_212, %c1_213, %c0_214] : memref<3x67x68xf32, #tpu.memory_space<vmem>>, vector<1x65x66xf32>
    %420 = vector.shape_cast %419 : vector<1x65x66xf32> to vector<65x66xf32>
    %c66 = arith.constant 66 : index
    %421 = memref.load %arg0[%c66] : memref<216xf32, #tpu.memory_space<smem>>
    %422 = vector.broadcast %421 : f32 to vector<65x66xf32>
    %423 = arith.mulf %422, %420 : vector<65x66xf32>
    %424 = arith.addf %418, %423 : vector<65x66xf32>
    %c1_215 = arith.constant 1 : index
    %c1_216 = arith.constant 1 : index
    %c1_217 = arith.constant 1 : index
    %425 = vector.load %arg2[%c1_215, %c1_216, %c1_217] : memref<3x67x68xf32, #tpu.memory_space<vmem>>, vector<1x65x66xf32>
    %426 = vector.shape_cast %425 : vector<1x65x66xf32> to vector<65x66xf32>
    %c67 = arith.constant 67 : index
    %427 = memref.load %arg0[%c67] : memref<216xf32, #tpu.memory_space<smem>>
    %428 = vector.broadcast %427 : f32 to vector<65x66xf32>
    %429 = arith.mulf %428, %426 : vector<65x66xf32>
    %430 = arith.addf %424, %429 : vector<65x66xf32>
    %c1_218 = arith.constant 1 : index
    %c1_219 = arith.constant 1 : index
    %c2_220 = arith.constant 2 : index
    %431 = vector.load %arg2[%c1_218, %c1_219, %c2_220] : memref<3x67x68xf32, #tpu.memory_space<vmem>>, vector<1x65x66xf32>
    %432 = vector.shape_cast %431 : vector<1x65x66xf32> to vector<65x66xf32>
    %c68 = arith.constant 68 : index
    %433 = memref.load %arg0[%c68] : memref<216xf32, #tpu.memory_space<smem>>
    %434 = vector.broadcast %433 : f32 to vector<65x66xf32>
    %435 = arith.mulf %434, %432 : vector<65x66xf32>
    %436 = arith.addf %430, %435 : vector<65x66xf32>
    %c1_221 = arith.constant 1 : index
    %c2_222 = arith.constant 2 : index
    %c0_223 = arith.constant 0 : index
    %437 = vector.load %arg2[%c1_221, %c2_222, %c0_223] : memref<3x67x68xf32, #tpu.memory_space<vmem>>, vector<1x65x66xf32>
    %438 = vector.shape_cast %437 : vector<1x65x66xf32> to vector<65x66xf32>
    %c69 = arith.constant 69 : index
    %439 = memref.load %arg0[%c69] : memref<216xf32, #tpu.memory_space<smem>>
    %440 = vector.broadcast %439 : f32 to vector<65x66xf32>
    %441 = arith.mulf %440, %438 : vector<65x66xf32>
    %442 = arith.addf %436, %441 : vector<65x66xf32>
    %c1_224 = arith.constant 1 : index
    %c2_225 = arith.constant 2 : index
    %c1_226 = arith.constant 1 : index
    %443 = vector.load %arg2[%c1_224, %c2_225, %c1_226] : memref<3x67x68xf32, #tpu.memory_space<vmem>>, vector<1x65x66xf32>
    %444 = vector.shape_cast %443 : vector<1x65x66xf32> to vector<65x66xf32>
    %c70 = arith.constant 70 : index
    %445 = memref.load %arg0[%c70] : memref<216xf32, #tpu.memory_space<smem>>
    %446 = vector.broadcast %445 : f32 to vector<65x66xf32>
    %447 = arith.mulf %446, %444 : vector<65x66xf32>
    %448 = arith.addf %442, %447 : vector<65x66xf32>
    %c1_227 = arith.constant 1 : index
    %c2_228 = arith.constant 2 : index
    %c2_229 = arith.constant 2 : index
    %449 = vector.load %arg2[%c1_227, %c2_228, %c2_229] : memref<3x67x68xf32, #tpu.memory_space<vmem>>, vector<1x65x66xf32>
    %450 = vector.shape_cast %449 : vector<1x65x66xf32> to vector<65x66xf32>
    %c71 = arith.constant 71 : index
    %451 = memref.load %arg0[%c71] : memref<216xf32, #tpu.memory_space<smem>>
    %452 = vector.broadcast %451 : f32 to vector<65x66xf32>
    %453 = arith.mulf %452, %450 : vector<65x66xf32>
    %454 = arith.addf %448, %453 : vector<65x66xf32>
    %c2_230 = arith.constant 2 : index
    %c0_231 = arith.constant 0 : index
    %c0_232 = arith.constant 0 : index
    %455 = vector.load %arg2[%c2_230, %c0_231, %c0_232] : memref<3x67x68xf32, #tpu.memory_space<vmem>>, vector<1x65x66xf32>
    %456 = vector.shape_cast %455 : vector<1x65x66xf32> to vector<65x66xf32>
    %c72 = arith.constant 72 : index
    %457 = memref.load %arg0[%c72] : memref<216xf32, #tpu.memory_space<smem>>
    %458 = vector.broadcast %457 : f32 to vector<65x66xf32>
    %459 = arith.mulf %458, %456 : vector<65x66xf32>
    %460 = arith.addf %454, %459 : vector<65x66xf32>
    %c2_233 = arith.constant 2 : index
    %c0_234 = arith.constant 0 : index
    %c1_235 = arith.constant 1 : index
    %461 = vector.load %arg2[%c2_233, %c0_234, %c1_235] : memref<3x67x68xf32, #tpu.memory_space<vmem>>, vector<1x65x66xf32>
    %462 = vector.shape_cast %461 : vector<1x65x66xf32> to vector<65x66xf32>
    %c73 = arith.constant 73 : index
    %463 = memref.load %arg0[%c73] : memref<216xf32, #tpu.memory_space<smem>>
    %464 = vector.broadcast %463 : f32 to vector<65x66xf32>
    %465 = arith.mulf %464, %462 : vector<65x66xf32>
    %466 = arith.addf %460, %465 : vector<65x66xf32>
    %c2_236 = arith.constant 2 : index
    %c0_237 = arith.constant 0 : index
    %c2_238 = arith.constant 2 : index
    %467 = vector.load %arg2[%c2_236, %c0_237, %c2_238] : memref<3x67x68xf32, #tpu.memory_space<vmem>>, vector<1x65x66xf32>
    %468 = vector.shape_cast %467 : vector<1x65x66xf32> to vector<65x66xf32>
    %c74 = arith.constant 74 : index
    %469 = memref.load %arg0[%c74] : memref<216xf32, #tpu.memory_space<smem>>
    %470 = vector.broadcast %469 : f32 to vector<65x66xf32>
    %471 = arith.mulf %470, %468 : vector<65x66xf32>
    %472 = arith.addf %466, %471 : vector<65x66xf32>
    %c2_239 = arith.constant 2 : index
    %c1_240 = arith.constant 1 : index
    %c0_241 = arith.constant 0 : index
    %473 = vector.load %arg2[%c2_239, %c1_240, %c0_241] : memref<3x67x68xf32, #tpu.memory_space<vmem>>, vector<1x65x66xf32>
    %474 = vector.shape_cast %473 : vector<1x65x66xf32> to vector<65x66xf32>
    %c75 = arith.constant 75 : index
    %475 = memref.load %arg0[%c75] : memref<216xf32, #tpu.memory_space<smem>>
    %476 = vector.broadcast %475 : f32 to vector<65x66xf32>
    %477 = arith.mulf %476, %474 : vector<65x66xf32>
    %478 = arith.addf %472, %477 : vector<65x66xf32>
    %c2_242 = arith.constant 2 : index
    %c1_243 = arith.constant 1 : index
    %c1_244 = arith.constant 1 : index
    %479 = vector.load %arg2[%c2_242, %c1_243, %c1_244] : memref<3x67x68xf32, #tpu.memory_space<vmem>>, vector<1x65x66xf32>
    %480 = vector.shape_cast %479 : vector<1x65x66xf32> to vector<65x66xf32>
    %c76 = arith.constant 76 : index
    %481 = memref.load %arg0[%c76] : memref<216xf32, #tpu.memory_space<smem>>
    %482 = vector.broadcast %481 : f32 to vector<65x66xf32>
    %483 = arith.mulf %482, %480 : vector<65x66xf32>
    %484 = arith.addf %478, %483 : vector<65x66xf32>
    %c2_245 = arith.constant 2 : index
    %c1_246 = arith.constant 1 : index
    %c2_247 = arith.constant 2 : index
    %485 = vector.load %arg2[%c2_245, %c1_246, %c2_247] : memref<3x67x68xf32, #tpu.memory_space<vmem>>, vector<1x65x66xf32>
    %486 = vector.shape_cast %485 : vector<1x65x66xf32> to vector<65x66xf32>
    %c77 = arith.constant 77 : index
    %487 = memref.load %arg0[%c77] : memref<216xf32, #tpu.memory_space<smem>>
    %488 = vector.broadcast %487 : f32 to vector<65x66xf32>
    %489 = arith.mulf %488, %486 : vector<65x66xf32>
    %490 = arith.addf %484, %489 : vector<65x66xf32>
    %c2_248 = arith.constant 2 : index
    %c2_249 = arith.constant 2 : index
    %c0_250 = arith.constant 0 : index
    %491 = vector.load %arg2[%c2_248, %c2_249, %c0_250] : memref<3x67x68xf32, #tpu.memory_space<vmem>>, vector<1x65x66xf32>
    %492 = vector.shape_cast %491 : vector<1x65x66xf32> to vector<65x66xf32>
    %c78 = arith.constant 78 : index
    %493 = memref.load %arg0[%c78] : memref<216xf32, #tpu.memory_space<smem>>
    %494 = vector.broadcast %493 : f32 to vector<65x66xf32>
    %495 = arith.mulf %494, %492 : vector<65x66xf32>
    %496 = arith.addf %490, %495 : vector<65x66xf32>
    %c2_251 = arith.constant 2 : index
    %c2_252 = arith.constant 2 : index
    %c1_253 = arith.constant 1 : index
    %497 = vector.load %arg2[%c2_251, %c2_252, %c1_253] : memref<3x67x68xf32, #tpu.memory_space<vmem>>, vector<1x65x66xf32>
    %498 = vector.shape_cast %497 : vector<1x65x66xf32> to vector<65x66xf32>
    %c79 = arith.constant 79 : index
    %499 = memref.load %arg0[%c79] : memref<216xf32, #tpu.memory_space<smem>>
    %500 = vector.broadcast %499 : f32 to vector<65x66xf32>
    %501 = arith.mulf %500, %498 : vector<65x66xf32>
    %502 = arith.addf %496, %501 : vector<65x66xf32>
    %c2_254 = arith.constant 2 : index
    %c2_255 = arith.constant 2 : index
    %c2_256 = arith.constant 2 : index
    %503 = vector.load %arg2[%c2_254, %c2_255, %c2_256] : memref<3x67x68xf32, #tpu.memory_space<vmem>>, vector<1x65x66xf32>
    %504 = vector.shape_cast %503 : vector<1x65x66xf32> to vector<65x66xf32>
    %c80 = arith.constant 80 : index
    %505 = memref.load %arg0[%c80] : memref<216xf32, #tpu.memory_space<smem>>
    %506 = vector.broadcast %505 : f32 to vector<65x66xf32>
    %507 = arith.mulf %506, %504 : vector<65x66xf32>
    %508 = arith.addf %502, %507 : vector<65x66xf32>
    %c2_257 = arith.constant 2 : index
    %509 = memref.load %arg1[%c2_257] : memref<8xf32, #tpu.memory_space<smem>>
    %510 = vector.broadcast %509 : f32 to vector<65x66xf32>
    %511 = arith.addf %508, %510 : vector<65x66xf32>
    %cst_258 = arith.constant 2.000000e+00 : f32
    %512 = vector.broadcast %cst_258 : f32 to vector<65x66xf32>
    %513 = arith.mulf %512, %511 : vector<65x66xf32>
    %cst_259 = arith.constant 0.000000e+00 : f32
    %514 = vector.broadcast %cst_259 : f32 to vector<65x66xf32>
    %515 = arith.maximumf %513, %514 : vector<65x66xf32>
    %c2_260 = arith.constant 2 : index
    %c0_261 = arith.constant 0 : index
    %c0_262 = arith.constant 0 : index
    %516 = vector.load %arg3[%c2_260, %c0_261, %c0_262] : memref<8x65x66xf32, #tpu.memory_space<vmem>>, vector<1x65x66xf32>
    %517 = vector.shape_cast %516 : vector<1x65x66xf32> to vector<65x66xf32>
    %518 = vector.shape_cast %515 : vector<65x66xf32> to vector<1x65x66xf32>
    tpu.vector_store %arg3[%c2_260, %c0_261, %c0_262], %518 {strides = array<i32>} : memref<8x65x66xf32, #tpu.memory_space<vmem>>, vector<1x65x66xf32>,
    %cst_263 = arith.constant 0.000000e+00 : f32
    %519 = vector.broadcast %cst_263 : f32 to vector<65x66xf32>
    %c0_264 = arith.constant 0 : index
    %c0_265 = arith.constant 0 : index
    %c0_266 = arith.constant 0 : index
    %520 = vector.load %arg2[%c0_264, %c0_265, %c0_266] : memref<3x67x68xf32, #tpu.memory_space<vmem>>, vector<1x65x66xf32>
    %521 = vector.shape_cast %520 : vector<1x65x66xf32> to vector<65x66xf32>
    %c81 = arith.constant 81 : index
    %522 = memref.load %arg0[%c81] : memref<216xf32, #tpu.memory_space<smem>>
    %523 = vector.broadcast %522 : f32 to vector<65x66xf32>
    %524 = arith.mulf %523, %521 : vector<65x66xf32>
    %525 = arith.addf %519, %524 : vector<65x66xf32>
    %c0_267 = arith.constant 0 : index
    %c0_268 = arith.constant 0 : index
    %c1_269 = arith.constant 1 : index
    %526 = vector.load %arg2[%c0_267, %c0_268, %c1_269] : memref<3x67x68xf32, #tpu.memory_space<vmem>>, vector<1x65x66xf32>
    %527 = vector.shape_cast %526 : vector<1x65x66xf32> to vector<65x66xf32>
    %c82 = arith.constant 82 : index
    %528 = memref.load %arg0[%c82] : memref<216xf32, #tpu.memory_space<smem>>
    %529 = vector.broadcast %528 : f32 to vector<65x66xf32>
    %530 = arith.mulf %529, %527 : vector<65x66xf32>
    %531 = arith.addf %525, %530 : vector<65x66xf32>
    %c0_270 = arith.constant 0 : index
    %c0_271 = arith.constant 0 : index
    %c2_272 = arith.constant 2 : index
    %532 = vector.load %arg2[%c0_270, %c0_271, %c2_272] : memref<3x67x68xf32, #tpu.memory_space<vmem>>, vector<1x65x66xf32>
    %533 = vector.shape_cast %532 : vector<1x65x66xf32> to vector<65x66xf32>
    %c83 = arith.constant 83 : index
    %534 = memref.load %arg0[%c83] : memref<216xf32, #tpu.memory_space<smem>>
    %535 = vector.broadcast %534 : f32 to vector<65x66xf32>
    %536 = arith.mulf %535, %533 : vector<65x66xf32>
    %537 = arith.addf %531, %536 : vector<65x66xf32>
    %c0_273 = arith.constant 0 : index
    %c1_274 = arith.constant 1 : index
    %c0_275 = arith.constant 0 : index
    %538 = vector.load %arg2[%c0_273, %c1_274, %c0_275] : memref<3x67x68xf32, #tpu.memory_space<vmem>>, vector<1x65x66xf32>
    %539 = vector.shape_cast %538 : vector<1x65x66xf32> to vector<65x66xf32>
    %c84 = arith.constant 84 : index
    %540 = memref.load %arg0[%c84] : memref<216xf32, #tpu.memory_space<smem>>
    %541 = vector.broadcast %540 : f32 to vector<65x66xf32>
    %542 = arith.mulf %541, %539 : vector<65x66xf32>
    %543 = arith.addf %537, %542 : vector<65x66xf32>
    %c0_276 = arith.constant 0 : index
    %c1_277 = arith.constant 1 : index
    %c1_278 = arith.constant 1 : index
    %544 = vector.load %arg2[%c0_276, %c1_277, %c1_278] : memref<3x67x68xf32, #tpu.memory_space<vmem>>, vector<1x65x66xf32>
    %545 = vector.shape_cast %544 : vector<1x65x66xf32> to vector<65x66xf32>
    %c85 = arith.constant 85 : index
    %546 = memref.load %arg0[%c85] : memref<216xf32, #tpu.memory_space<smem>>
    %547 = vector.broadcast %546 : f32 to vector<65x66xf32>
    %548 = arith.mulf %547, %545 : vector<65x66xf32>
    %549 = arith.addf %543, %548 : vector<65x66xf32>
    %c0_279 = arith.constant 0 : index
    %c1_280 = arith.constant 1 : index
    %c2_281 = arith.constant 2 : index
    %550 = vector.load %arg2[%c0_279, %c1_280, %c2_281] : memref<3x67x68xf32, #tpu.memory_space<vmem>>, vector<1x65x66xf32>
    %551 = vector.shape_cast %550 : vector<1x65x66xf32> to vector<65x66xf32>
    %c86 = arith.constant 86 : index
    %552 = memref.load %arg0[%c86] : memref<216xf32, #tpu.memory_space<smem>>
    %553 = vector.broadcast %552 : f32 to vector<65x66xf32>
    %554 = arith.mulf %553, %551 : vector<65x66xf32>
    %555 = arith.addf %549, %554 : vector<65x66xf32>
    %c0_282 = arith.constant 0 : index
    %c2_283 = arith.constant 2 : index
    %c0_284 = arith.constant 0 : index
    %556 = vector.load %arg2[%c0_282, %c2_283, %c0_284] : memref<3x67x68xf32, #tpu.memory_space<vmem>>, vector<1x65x66xf32>
    %557 = vector.shape_cast %556 : vector<1x65x66xf32> to vector<65x66xf32>
    %c87 = arith.constant 87 : index
    %558 = memref.load %arg0[%c87] : memref<216xf32, #tpu.memory_space<smem>>
    %559 = vector.broadcast %558 : f32 to vector<65x66xf32>
    %560 = arith.mulf %559, %557 : vector<65x66xf32>
    %561 = arith.addf %555, %560 : vector<65x66xf32>
    %c0_285 = arith.constant 0 : index
    %c2_286 = arith.constant 2 : index
    %c1_287 = arith.constant 1 : index
    %562 = vector.load %arg2[%c0_285, %c2_286, %c1_287] : memref<3x67x68xf32, #tpu.memory_space<vmem>>, vector<1x65x66xf32>
    %563 = vector.shape_cast %562 : vector<1x65x66xf32> to vector<65x66xf32>
    %c88 = arith.constant 88 : index
    %564 = memref.load %arg0[%c88] : memref<216xf32, #tpu.memory_space<smem>>
    %565 = vector.broadcast %564 : f32 to vector<65x66xf32>
    %566 = arith.mulf %565, %563 : vector<65x66xf32>
    %567 = arith.addf %561, %566 : vector<65x66xf32>
    %c0_288 = arith.constant 0 : index
    %c2_289 = arith.constant 2 : index
    %c2_290 = arith.constant 2 : index
    %568 = vector.load %arg2[%c0_288, %c2_289, %c2_290] : memref<3x67x68xf32, #tpu.memory_space<vmem>>, vector<1x65x66xf32>
    %569 = vector.shape_cast %568 : vector<1x65x66xf32> to vector<65x66xf32>
    %c89 = arith.constant 89 : index
    %570 = memref.load %arg0[%c89] : memref<216xf32, #tpu.memory_space<smem>>
    %571 = vector.broadcast %570 : f32 to vector<65x66xf32>
    %572 = arith.mulf %571, %569 : vector<65x66xf32>
    %573 = arith.addf %567, %572 : vector<65x66xf32>
    %c1_291 = arith.constant 1 : index
    %c0_292 = arith.constant 0 : index
    %c0_293 = arith.constant 0 : index
    %574 = vector.load %arg2[%c1_291, %c0_292, %c0_293] : memref<3x67x68xf32, #tpu.memory_space<vmem>>, vector<1x65x66xf32>
    %575 = vector.shape_cast %574 : vector<1x65x66xf32> to vector<65x66xf32>
    %c90 = arith.constant 90 : index
    %576 = memref.load %arg0[%c90] : memref<216xf32, #tpu.memory_space<smem>>
    %577 = vector.broadcast %576 : f32 to vector<65x66xf32>
    %578 = arith.mulf %577, %575 : vector<65x66xf32>
    %579 = arith.addf %573, %578 : vector<65x66xf32>
    %c1_294 = arith.constant 1 : index
    %c0_295 = arith.constant 0 : index
    %c1_296 = arith.constant 1 : index
    %580 = vector.load %arg2[%c1_294, %c0_295, %c1_296] : memref<3x67x68xf32, #tpu.memory_space<vmem>>, vector<1x65x66xf32>
    %581 = vector.shape_cast %580 : vector<1x65x66xf32> to vector<65x66xf32>
    %c91 = arith.constant 91 : index
    %582 = memref.load %arg0[%c91] : memref<216xf32, #tpu.memory_space<smem>>
    %583 = vector.broadcast %582 : f32 to vector<65x66xf32>
    %584 = arith.mulf %583, %581 : vector<65x66xf32>
    %585 = arith.addf %579, %584 : vector<65x66xf32>
    %c1_297 = arith.constant 1 : index
    %c0_298 = arith.constant 0 : index
    %c2_299 = arith.constant 2 : index
    %586 = vector.load %arg2[%c1_297, %c0_298, %c2_299] : memref<3x67x68xf32, #tpu.memory_space<vmem>>, vector<1x65x66xf32>
    %587 = vector.shape_cast %586 : vector<1x65x66xf32> to vector<65x66xf32>
    %c92 = arith.constant 92 : index
    %588 = memref.load %arg0[%c92] : memref<216xf32, #tpu.memory_space<smem>>
    %589 = vector.broadcast %588 : f32 to vector<65x66xf32>
    %590 = arith.mulf %589, %587 : vector<65x66xf32>
    %591 = arith.addf %585, %590 : vector<65x66xf32>
    %c1_300 = arith.constant 1 : index
    %c1_301 = arith.constant 1 : index
    %c0_302 = arith.constant 0 : index
    %592 = vector.load %arg2[%c1_300, %c1_301, %c0_302] : memref<3x67x68xf32, #tpu.memory_space<vmem>>, vector<1x65x66xf32>
    %593 = vector.shape_cast %592 : vector<1x65x66xf32> to vector<65x66xf32>
    %c93 = arith.constant 93 : index
    %594 = memref.load %arg0[%c93] : memref<216xf32, #tpu.memory_space<smem>>
    %595 = vector.broadcast %594 : f32 to vector<65x66xf32>
    %596 = arith.mulf %595, %593 : vector<65x66xf32>
    %597 = arith.addf %591, %596 : vector<65x66xf32>
    %c1_303 = arith.constant 1 : index
    %c1_304 = arith.constant 1 : index
    %c1_305 = arith.constant 1 : index
    %598 = vector.load %arg2[%c1_303, %c1_304, %c1_305] : memref<3x67x68xf32, #tpu.memory_space<vmem>>, vector<1x65x66xf32>
    %599 = vector.shape_cast %598 : vector<1x65x66xf32> to vector<65x66xf32>
    %c94 = arith.constant 94 : index
    %600 = memref.load %arg0[%c94] : memref<216xf32, #tpu.memory_space<smem>>
    %601 = vector.broadcast %600 : f32 to vector<65x66xf32>
    %602 = arith.mulf %601, %599 : vector<65x66xf32>
    %603 = arith.addf %597, %602 : vector<65x66xf32>
    %c1_306 = arith.constant 1 : index
    %c1_307 = arith.constant 1 : index
    %c2_308 = arith.constant 2 : index
    %604 = vector.load %arg2[%c1_306, %c1_307, %c2_308] : memref<3x67x68xf32, #tpu.memory_space<vmem>>, vector<1x65x66xf32>
    %605 = vector.shape_cast %604 : vector<1x65x66xf32> to vector<65x66xf32>
    %c95 = arith.constant 95 : index
    %606 = memref.load %arg0[%c95] : memref<216xf32, #tpu.memory_space<smem>>
    %607 = vector.broadcast %606 : f32 to vector<65x66xf32>
    %608 = arith.mulf %607, %605 : vector<65x66xf32>
    %609 = arith.addf %603, %608 : vector<65x66xf32>
    %c1_309 = arith.constant 1 : index
    %c2_310 = arith.constant 2 : index
    %c0_311 = arith.constant 0 : index
    %610 = vector.load %arg2[%c1_309, %c2_310, %c0_311] : memref<3x67x68xf32, #tpu.memory_space<vmem>>, vector<1x65x66xf32>
    %611 = vector.shape_cast %610 : vector<1x65x66xf32> to vector<65x66xf32>
    %c96 = arith.constant 96 : index
    %612 = memref.load %arg0[%c96] : memref<216xf32, #tpu.memory_space<smem>>
    %613 = vector.broadcast %612 : f32 to vector<65x66xf32>
    %614 = arith.mulf %613, %611 : vector<65x66xf32>
    %615 = arith.addf %609, %614 : vector<65x66xf32>
    %c1_312 = arith.constant 1 : index
    %c2_313 = arith.constant 2 : index
    %c1_314 = arith.constant 1 : index
    %616 = vector.load %arg2[%c1_312, %c2_313, %c1_314] : memref<3x67x68xf32, #tpu.memory_space<vmem>>, vector<1x65x66xf32>
    %617 = vector.shape_cast %616 : vector<1x65x66xf32> to vector<65x66xf32>
    %c97 = arith.constant 97 : index
    %618 = memref.load %arg0[%c97] : memref<216xf32, #tpu.memory_space<smem>>
    %619 = vector.broadcast %618 : f32 to vector<65x66xf32>
    %620 = arith.mulf %619, %617 : vector<65x66xf32>
    %621 = arith.addf %615, %620 : vector<65x66xf32>
    %c1_315 = arith.constant 1 : index
    %c2_316 = arith.constant 2 : index
    %c2_317 = arith.constant 2 : index
    %622 = vector.load %arg2[%c1_315, %c2_316, %c2_317] : memref<3x67x68xf32, #tpu.memory_space<vmem>>, vector<1x65x66xf32>
    %623 = vector.shape_cast %622 : vector<1x65x66xf32> to vector<65x66xf32>
    %c98 = arith.constant 98 : index
    %624 = memref.load %arg0[%c98] : memref<216xf32, #tpu.memory_space<smem>>
    %625 = vector.broadcast %624 : f32 to vector<65x66xf32>
    %626 = arith.mulf %625, %623 : vector<65x66xf32>
    %627 = arith.addf %621, %626 : vector<65x66xf32>
    %c2_318 = arith.constant 2 : index
    %c0_319 = arith.constant 0 : index
    %c0_320 = arith.constant 0 : index
    %628 = vector.load %arg2[%c2_318, %c0_319, %c0_320] : memref<3x67x68xf32, #tpu.memory_space<vmem>>, vector<1x65x66xf32>
    %629 = vector.shape_cast %628 : vector<1x65x66xf32> to vector<65x66xf32>
    %c99 = arith.constant 99 : index
    %630 = memref.load %arg0[%c99] : memref<216xf32, #tpu.memory_space<smem>>
    %631 = vector.broadcast %630 : f32 to vector<65x66xf32>
    %632 = arith.mulf %631, %629 : vector<65x66xf32>
    %633 = arith.addf %627, %632 : vector<65x66xf32>
    %c2_321 = arith.constant 2 : index
    %c0_322 = arith.constant 0 : index
    %c1_323 = arith.constant 1 : index
    %634 = vector.load %arg2[%c2_321, %c0_322, %c1_323] : memref<3x67x68xf32, #tpu.memory_space<vmem>>, vector<1x65x66xf32>
    %635 = vector.shape_cast %634 : vector<1x65x66xf32> to vector<65x66xf32>
    %c100 = arith.constant 100 : index
    %636 = memref.load %arg0[%c100] : memref<216xf32, #tpu.memory_space<smem>>
    %637 = vector.broadcast %636 : f32 to vector<65x66xf32>
    %638 = arith.mulf %637, %635 : vector<65x66xf32>
    %639 = arith.addf %633, %638 : vector<65x66xf32>
    %c2_324 = arith.constant 2 : index
    %c0_325 = arith.constant 0 : index
    %c2_326 = arith.constant 2 : index
    %640 = vector.load %arg2[%c2_324, %c0_325, %c2_326] : memref<3x67x68xf32, #tpu.memory_space<vmem>>, vector<1x65x66xf32>
    %641 = vector.shape_cast %640 : vector<1x65x66xf32> to vector<65x66xf32>
    %c101 = arith.constant 101 : index
    %642 = memref.load %arg0[%c101] : memref<216xf32, #tpu.memory_space<smem>>
    %643 = vector.broadcast %642 : f32 to vector<65x66xf32>
    %644 = arith.mulf %643, %641 : vector<65x66xf32>
    %645 = arith.addf %639, %644 : vector<65x66xf32>
    %c2_327 = arith.constant 2 : index
    %c1_328 = arith.constant 1 : index
    %c0_329 = arith.constant 0 : index
    %646 = vector.load %arg2[%c2_327, %c1_328, %c0_329] : memref<3x67x68xf32, #tpu.memory_space<vmem>>, vector<1x65x66xf32>
    %647 = vector.shape_cast %646 : vector<1x65x66xf32> to vector<65x66xf32>
    %c102 = arith.constant 102 : index
    %648 = memref.load %arg0[%c102] : memref<216xf32, #tpu.memory_space<smem>>
    %649 = vector.broadcast %648 : f32 to vector<65x66xf32>
    %650 = arith.mulf %649, %647 : vector<65x66xf32>
    %651 = arith.addf %645, %650 : vector<65x66xf32>
    %c2_330 = arith.constant 2 : index
    %c1_331 = arith.constant 1 : index
    %c1_332 = arith.constant 1 : index
    %652 = vector.load %arg2[%c2_330, %c1_331, %c1_332] : memref<3x67x68xf32, #tpu.memory_space<vmem>>, vector<1x65x66xf32>
    %653 = vector.shape_cast %652 : vector<1x65x66xf32> to vector<65x66xf32>
    %c103 = arith.constant 103 : index
    %654 = memref.load %arg0[%c103] : memref<216xf32, #tpu.memory_space<smem>>
    %655 = vector.broadcast %654 : f32 to vector<65x66xf32>
    %656 = arith.mulf %655, %653 : vector<65x66xf32>
    %657 = arith.addf %651, %656 : vector<65x66xf32>
    %c2_333 = arith.constant 2 : index
    %c1_334 = arith.constant 1 : index
    %c2_335 = arith.constant 2 : index
    %658 = vector.load %arg2[%c2_333, %c1_334, %c2_335] : memref<3x67x68xf32, #tpu.memory_space<vmem>>, vector<1x65x66xf32>
    %659 = vector.shape_cast %658 : vector<1x65x66xf32> to vector<65x66xf32>
    %c104 = arith.constant 104 : index
    %660 = memref.load %arg0[%c104] : memref<216xf32, #tpu.memory_space<smem>>
    %661 = vector.broadcast %660 : f32 to vector<65x66xf32>
    %662 = arith.mulf %661, %659 : vector<65x66xf32>
    %663 = arith.addf %657, %662 : vector<65x66xf32>
    %c2_336 = arith.constant 2 : index
    %c2_337 = arith.constant 2 : index
    %c0_338 = arith.constant 0 : index
    %664 = vector.load %arg2[%c2_336, %c2_337, %c0_338] : memref<3x67x68xf32, #tpu.memory_space<vmem>>, vector<1x65x66xf32>
    %665 = vector.shape_cast %664 : vector<1x65x66xf32> to vector<65x66xf32>
    %c105 = arith.constant 105 : index
    %666 = memref.load %arg0[%c105] : memref<216xf32, #tpu.memory_space<smem>>
    %667 = vector.broadcast %666 : f32 to vector<65x66xf32>
    %668 = arith.mulf %667, %665 : vector<65x66xf32>
    %669 = arith.addf %663, %668 : vector<65x66xf32>
    %c2_339 = arith.constant 2 : index
    %c2_340 = arith.constant 2 : index
    %c1_341 = arith.constant 1 : index
    %670 = vector.load %arg2[%c2_339, %c2_340, %c1_341] : memref<3x67x68xf32, #tpu.memory_space<vmem>>, vector<1x65x66xf32>
    %671 = vector.shape_cast %670 : vector<1x65x66xf32> to vector<65x66xf32>
    %c106 = arith.constant 106 : index
    %672 = memref.load %arg0[%c106] : memref<216xf32, #tpu.memory_space<smem>>
    %673 = vector.broadcast %672 : f32 to vector<65x66xf32>
    %674 = arith.mulf %673, %671 : vector<65x66xf32>
    %675 = arith.addf %669, %674 : vector<65x66xf32>
    %c2_342 = arith.constant 2 : index
    %c2_343 = arith.constant 2 : index
    %c2_344 = arith.constant 2 : index
    %676 = vector.load %arg2[%c2_342, %c2_343, %c2_344] : memref<3x67x68xf32, #tpu.memory_space<vmem>>, vector<1x65x66xf32>
    %677 = vector.shape_cast %676 : vector<1x65x66xf32> to vector<65x66xf32>
    %c107 = arith.constant 107 : index
    %678 = memref.load %arg0[%c107] : memref<216xf32, #tpu.memory_space<smem>>
    %679 = vector.broadcast %678 : f32 to vector<65x66xf32>
    %680 = arith.mulf %679, %677 : vector<65x66xf32>
    %681 = arith.addf %675, %680 : vector<65x66xf32>
    %c3_345 = arith.constant 3 : index
    %682 = memref.load %arg1[%c3_345] : memref<8xf32, #tpu.memory_space<smem>>
    %683 = vector.broadcast %682 : f32 to vector<65x66xf32>
    %684 = arith.addf %681, %683 : vector<65x66xf32>
    %cst_346 = arith.constant 2.000000e+00 : f32
    %685 = vector.broadcast %cst_346 : f32 to vector<65x66xf32>
    %686 = arith.mulf %685, %684 : vector<65x66xf32>
    %cst_347 = arith.constant 0.000000e+00 : f32
    %687 = vector.broadcast %cst_347 : f32 to vector<65x66xf32>
    %688 = arith.maximumf %686, %687 : vector<65x66xf32>
    %c3_348 = arith.constant 3 : index
    %c0_349 = arith.constant 0 : index
    %c0_350 = arith.constant 0 : index
    %689 = vector.load %arg3[%c3_348, %c0_349, %c0_350] : memref<8x65x66xf32, #tpu.memory_space<vmem>>, vector<1x65x66xf32>
    %690 = vector.shape_cast %689 : vector<1x65x66xf32> to vector<65x66xf32>
    %691 = vector.shape_cast %688 : vector<65x66xf32> to vector<1x65x66xf32>
    tpu.vector_store %arg3[%c3_348, %c0_349, %c0_350], %691 {strides = array<i32>} : memref<8x65x66xf32, #tpu.memory_space<vmem>>, vector<1x65x66xf32>,
    %cst_351 = arith.constant 0.000000e+00 : f32
    %692 = vector.broadcast %cst_351 : f32 to vector<65x66xf32>
    %c0_352 = arith.constant 0 : index
    %c0_353 = arith.constant 0 : index
    %c0_354 = arith.constant 0 : index
    %693 = vector.load %arg2[%c0_352, %c0_353, %c0_354] : memref<3x67x68xf32, #tpu.memory_space<vmem>>, vector<1x65x66xf32>
    %694 = vector.shape_cast %693 : vector<1x65x66xf32> to vector<65x66xf32>
    %c108 = arith.constant 108 : index
    %695 = memref.load %arg0[%c108] : memref<216xf32, #tpu.memory_space<smem>>
    %696 = vector.broadcast %695 : f32 to vector<65x66xf32>
    %697 = arith.mulf %696, %694 : vector<65x66xf32>
    %698 = arith.addf %692, %697 : vector<65x66xf32>
    %c0_355 = arith.constant 0 : index
    %c0_356 = arith.constant 0 : index
    %c1_357 = arith.constant 1 : index
    %699 = vector.load %arg2[%c0_355, %c0_356, %c1_357] : memref<3x67x68xf32, #tpu.memory_space<vmem>>, vector<1x65x66xf32>
    %700 = vector.shape_cast %699 : vector<1x65x66xf32> to vector<65x66xf32>
    %c109 = arith.constant 109 : index
    %701 = memref.load %arg0[%c109] : memref<216xf32, #tpu.memory_space<smem>>
    %702 = vector.broadcast %701 : f32 to vector<65x66xf32>
    %703 = arith.mulf %702, %700 : vector<65x66xf32>
    %704 = arith.addf %698, %703 : vector<65x66xf32>
    %c0_358 = arith.constant 0 : index
    %c0_359 = arith.constant 0 : index
    %c2_360 = arith.constant 2 : index
    %705 = vector.load %arg2[%c0_358, %c0_359, %c2_360] : memref<3x67x68xf32, #tpu.memory_space<vmem>>, vector<1x65x66xf32>
    %706 = vector.shape_cast %705 : vector<1x65x66xf32> to vector<65x66xf32>
    %c110 = arith.constant 110 : index
    %707 = memref.load %arg0[%c110] : memref<216xf32, #tpu.memory_space<smem>>
    %708 = vector.broadcast %707 : f32 to vector<65x66xf32>
    %709 = arith.mulf %708, %706 : vector<65x66xf32>
    %710 = arith.addf %704, %709 : vector<65x66xf32>
    %c0_361 = arith.constant 0 : index
    %c1_362 = arith.constant 1 : index
    %c0_363 = arith.constant 0 : index
    %711 = vector.load %arg2[%c0_361, %c1_362, %c0_363] : memref<3x67x68xf32, #tpu.memory_space<vmem>>, vector<1x65x66xf32>
    %712 = vector.shape_cast %711 : vector<1x65x66xf32> to vector<65x66xf32>
    %c111 = arith.constant 111 : index
    %713 = memref.load %arg0[%c111] : memref<216xf32, #tpu.memory_space<smem>>
    %714 = vector.broadcast %713 : f32 to vector<65x66xf32>
    %715 = arith.mulf %714, %712 : vector<65x66xf32>
    %716 = arith.addf %710, %715 : vector<65x66xf32>
    %c0_364 = arith.constant 0 : index
    %c1_365 = arith.constant 1 : index
    %c1_366 = arith.constant 1 : index
    %717 = vector.load %arg2[%c0_364, %c1_365, %c1_366] : memref<3x67x68xf32, #tpu.memory_space<vmem>>, vector<1x65x66xf32>
    %718 = vector.shape_cast %717 : vector<1x65x66xf32> to vector<65x66xf32>
    %c112 = arith.constant 112 : index
    %719 = memref.load %arg0[%c112] : memref<216xf32, #tpu.memory_space<smem>>
    %720 = vector.broadcast %719 : f32 to vector<65x66xf32>
    %721 = arith.mulf %720, %718 : vector<65x66xf32>
    %722 = arith.addf %716, %721 : vector<65x66xf32>
    %c0_367 = arith.constant 0 : index
    %c1_368 = arith.constant 1 : index
    %c2_369 = arith.constant 2 : index
    %723 = vector.load %arg2[%c0_367, %c1_368, %c2_369] : memref<3x67x68xf32, #tpu.memory_space<vmem>>, vector<1x65x66xf32>
    %724 = vector.shape_cast %723 : vector<1x65x66xf32> to vector<65x66xf32>
    %c113 = arith.constant 113 : index
    %725 = memref.load %arg0[%c113] : memref<216xf32, #tpu.memory_space<smem>>
    %726 = vector.broadcast %725 : f32 to vector<65x66xf32>
    %727 = arith.mulf %726, %724 : vector<65x66xf32>
    %728 = arith.addf %722, %727 : vector<65x66xf32>
    %c0_370 = arith.constant 0 : index
    %c2_371 = arith.constant 2 : index
    %c0_372 = arith.constant 0 : index
    %729 = vector.load %arg2[%c0_370, %c2_371, %c0_372] : memref<3x67x68xf32, #tpu.memory_space<vmem>>, vector<1x65x66xf32>
    %730 = vector.shape_cast %729 : vector<1x65x66xf32> to vector<65x66xf32>
    %c114 = arith.constant 114 : index
    %731 = memref.load %arg0[%c114] : memref<216xf32, #tpu.memory_space<smem>>
    %732 = vector.broadcast %731 : f32 to vector<65x66xf32>
    %733 = arith.mulf %732, %730 : vector<65x66xf32>
    %734 = arith.addf %728, %733 : vector<65x66xf32>
    %c0_373 = arith.constant 0 : index
    %c2_374 = arith.constant 2 : index
    %c1_375 = arith.constant 1 : index
    %735 = vector.load %arg2[%c0_373, %c2_374, %c1_375] : memref<3x67x68xf32, #tpu.memory_space<vmem>>, vector<1x65x66xf32>
    %736 = vector.shape_cast %735 : vector<1x65x66xf32> to vector<65x66xf32>
    %c115 = arith.constant 115 : index
    %737 = memref.load %arg0[%c115] : memref<216xf32, #tpu.memory_space<smem>>
    %738 = vector.broadcast %737 : f32 to vector<65x66xf32>
    %739 = arith.mulf %738, %736 : vector<65x66xf32>
    %740 = arith.addf %734, %739 : vector<65x66xf32>
    %c0_376 = arith.constant 0 : index
    %c2_377 = arith.constant 2 : index
    %c2_378 = arith.constant 2 : index
    %741 = vector.load %arg2[%c0_376, %c2_377, %c2_378] : memref<3x67x68xf32, #tpu.memory_space<vmem>>, vector<1x65x66xf32>
    %742 = vector.shape_cast %741 : vector<1x65x66xf32> to vector<65x66xf32>
    %c116 = arith.constant 116 : index
    %743 = memref.load %arg0[%c116] : memref<216xf32, #tpu.memory_space<smem>>
    %744 = vector.broadcast %743 : f32 to vector<65x66xf32>
    %745 = arith.mulf %744, %742 : vector<65x66xf32>
    %746 = arith.addf %740, %745 : vector<65x66xf32>
    %c1_379 = arith.constant 1 : index
    %c0_380 = arith.constant 0 : index
    %c0_381 = arith.constant 0 : index
    %747 = vector.load %arg2[%c1_379, %c0_380, %c0_381] : memref<3x67x68xf32, #tpu.memory_space<vmem>>, vector<1x65x66xf32>
    %748 = vector.shape_cast %747 : vector<1x65x66xf32> to vector<65x66xf32>
    %c117 = arith.constant 117 : index
    %749 = memref.load %arg0[%c117] : memref<216xf32, #tpu.memory_space<smem>>
    %750 = vector.broadcast %749 : f32 to vector<65x66xf32>
    %751 = arith.mulf %750, %748 : vector<65x66xf32>
    %752 = arith.addf %746, %751 : vector<65x66xf32>
    %c1_382 = arith.constant 1 : index
    %c0_383 = arith.constant 0 : index
    %c1_384 = arith.constant 1 : index
    %753 = vector.load %arg2[%c1_382, %c0_383, %c1_384] : memref<3x67x68xf32, #tpu.memory_space<vmem>>, vector<1x65x66xf32>
    %754 = vector.shape_cast %753 : vector<1x65x66xf32> to vector<65x66xf32>
    %c118 = arith.constant 118 : index
    %755 = memref.load %arg0[%c118] : memref<216xf32, #tpu.memory_space<smem>>
    %756 = vector.broadcast %755 : f32 to vector<65x66xf32>
    %757 = arith.mulf %756, %754 : vector<65x66xf32>
    %758 = arith.addf %752, %757 : vector<65x66xf32>
    %c1_385 = arith.constant 1 : index
    %c0_386 = arith.constant 0 : index
    %c2_387 = arith.constant 2 : index
    %759 = vector.load %arg2[%c1_385, %c0_386, %c2_387] : memref<3x67x68xf32, #tpu.memory_space<vmem>>, vector<1x65x66xf32>
    %760 = vector.shape_cast %759 : vector<1x65x66xf32> to vector<65x66xf32>
    %c119 = arith.constant 119 : index
    %761 = memref.load %arg0[%c119] : memref<216xf32, #tpu.memory_space<smem>>
    %762 = vector.broadcast %761 : f32 to vector<65x66xf32>
    %763 = arith.mulf %762, %760 : vector<65x66xf32>
    %764 = arith.addf %758, %763 : vector<65x66xf32>
    %c1_388 = arith.constant 1 : index
    %c1_389 = arith.constant 1 : index
    %c0_390 = arith.constant 0 : index
    %765 = vector.load %arg2[%c1_388, %c1_389, %c0_390] : memref<3x67x68xf32, #tpu.memory_space<vmem>>, vector<1x65x66xf32>
    %766 = vector.shape_cast %765 : vector<1x65x66xf32> to vector<65x66xf32>
    %c120 = arith.constant 120 : index
    %767 = memref.load %arg0[%c120] : memref<216xf32, #tpu.memory_space<smem>>
    %768 = vector.broadcast %767 : f32 to vector<65x66xf32>
    %769 = arith.mulf %768, %766 : vector<65x66xf32>
    %770 = arith.addf %764, %769 : vector<65x66xf32>
    %c1_391 = arith.constant 1 : index
    %c1_392 = arith.constant 1 : index
    %c1_393 = arith.constant 1 : index
    %771 = vector.load %arg2[%c1_391, %c1_392, %c1_393] : memref<3x67x68xf32, #tpu.memory_space<vmem>>, vector<1x65x66xf32>
    %772 = vector.shape_cast %771 : vector<1x65x66xf32> to vector<65x66xf32>
    %c121 = arith.constant 121 : index
    %773 = memref.load %arg0[%c121] : memref<216xf32, #tpu.memory_space<smem>>
    %774 = vector.broadcast %773 : f32 to vector<65x66xf32>
    %775 = arith.mulf %774, %772 : vector<65x66xf32>
    %776 = arith.addf %770, %775 : vector<65x66xf32>
    %c1_394 = arith.constant 1 : index
    %c1_395 = arith.constant 1 : index
    %c2_396 = arith.constant 2 : index
    %777 = vector.load %arg2[%c1_394, %c1_395, %c2_396] : memref<3x67x68xf32, #tpu.memory_space<vmem>>, vector<1x65x66xf32>
    %778 = vector.shape_cast %777 : vector<1x65x66xf32> to vector<65x66xf32>
    %c122 = arith.constant 122 : index
    %779 = memref.load %arg0[%c122] : memref<216xf32, #tpu.memory_space<smem>>
    %780 = vector.broadcast %779 : f32 to vector<65x66xf32>
    %781 = arith.mulf %780, %778 : vector<65x66xf32>
    %782 = arith.addf %776, %781 : vector<65x66xf32>
    %c1_397 = arith.constant 1 : index
    %c2_398 = arith.constant 2 : index
    %c0_399 = arith.constant 0 : index
    %783 = vector.load %arg2[%c1_397, %c2_398, %c0_399] : memref<3x67x68xf32, #tpu.memory_space<vmem>>, vector<1x65x66xf32>
    %784 = vector.shape_cast %783 : vector<1x65x66xf32> to vector<65x66xf32>
    %c123 = arith.constant 123 : index
    %785 = memref.load %arg0[%c123] : memref<216xf32, #tpu.memory_space<smem>>
    %786 = vector.broadcast %785 : f32 to vector<65x66xf32>
    %787 = arith.mulf %786, %784 : vector<65x66xf32>
    %788 = arith.addf %782, %787 : vector<65x66xf32>
    %c1_400 = arith.constant 1 : index
    %c2_401 = arith.constant 2 : index
    %c1_402 = arith.constant 1 : index
    %789 = vector.load %arg2[%c1_400, %c2_401, %c1_402] : memref<3x67x68xf32, #tpu.memory_space<vmem>>, vector<1x65x66xf32>
    %790 = vector.shape_cast %789 : vector<1x65x66xf32> to vector<65x66xf32>
    %c124 = arith.constant 124 : index
    %791 = memref.load %arg0[%c124] : memref<216xf32, #tpu.memory_space<smem>>
    %792 = vector.broadcast %791 : f32 to vector<65x66xf32>
    %793 = arith.mulf %792, %790 : vector<65x66xf32>
    %794 = arith.addf %788, %793 : vector<65x66xf32>
    %c1_403 = arith.constant 1 : index
    %c2_404 = arith.constant 2 : index
    %c2_405 = arith.constant 2 : index
    %795 = vector.load %arg2[%c1_403, %c2_404, %c2_405] : memref<3x67x68xf32, #tpu.memory_space<vmem>>, vector<1x65x66xf32>
    %796 = vector.shape_cast %795 : vector<1x65x66xf32> to vector<65x66xf32>
    %c125 = arith.constant 125 : index
    %797 = memref.load %arg0[%c125] : memref<216xf32, #tpu.memory_space<smem>>
    %798 = vector.broadcast %797 : f32 to vector<65x66xf32>
    %799 = arith.mulf %798, %796 : vector<65x66xf32>
    %800 = arith.addf %794, %799 : vector<65x66xf32>
    %c2_406 = arith.constant 2 : index
    %c0_407 = arith.constant 0 : index
    %c0_408 = arith.constant 0 : index
    %801 = vector.load %arg2[%c2_406, %c0_407, %c0_408] : memref<3x67x68xf32, #tpu.memory_space<vmem>>, vector<1x65x66xf32>
    %802 = vector.shape_cast %801 : vector<1x65x66xf32> to vector<65x66xf32>
    %c126 = arith.constant 126 : index
    %803 = memref.load %arg0[%c126] : memref<216xf32, #tpu.memory_space<smem>>
    %804 = vector.broadcast %803 : f32 to vector<65x66xf32>
    %805 = arith.mulf %804, %802 : vector<65x66xf32>
    %806 = arith.addf %800, %805 : vector<65x66xf32>
    %c2_409 = arith.constant 2 : index
    %c0_410 = arith.constant 0 : index
    %c1_411 = arith.constant 1 : index
    %807 = vector.load %arg2[%c2_409, %c0_410, %c1_411] : memref<3x67x68xf32, #tpu.memory_space<vmem>>, vector<1x65x66xf32>
    %808 = vector.shape_cast %807 : vector<1x65x66xf32> to vector<65x66xf32>
    %c127 = arith.constant 127 : index
    %809 = memref.load %arg0[%c127] : memref<216xf32, #tpu.memory_space<smem>>
    %810 = vector.broadcast %809 : f32 to vector<65x66xf32>
    %811 = arith.mulf %810, %808 : vector<65x66xf32>
    %812 = arith.addf %806, %811 : vector<65x66xf32>
    %c2_412 = arith.constant 2 : index
    %c0_413 = arith.constant 0 : index
    %c2_414 = arith.constant 2 : index
    %813 = vector.load %arg2[%c2_412, %c0_413, %c2_414] : memref<3x67x68xf32, #tpu.memory_space<vmem>>, vector<1x65x66xf32>
    %814 = vector.shape_cast %813 : vector<1x65x66xf32> to vector<65x66xf32>
    %c128 = arith.constant 128 : index
    %815 = memref.load %arg0[%c128] : memref<216xf32, #tpu.memory_space<smem>>
    %816 = vector.broadcast %815 : f32 to vector<65x66xf32>
    %817 = arith.mulf %816, %814 : vector<65x66xf32>
    %818 = arith.addf %812, %817 : vector<65x66xf32>
    %c2_415 = arith.constant 2 : index
    %c1_416 = arith.constant 1 : index
    %c0_417 = arith.constant 0 : index
    %819 = vector.load %arg2[%c2_415, %c1_416, %c0_417] : memref<3x67x68xf32, #tpu.memory_space<vmem>>, vector<1x65x66xf32>
    %820 = vector.shape_cast %819 : vector<1x65x66xf32> to vector<65x66xf32>
    %c129 = arith.constant 129 : index
    %821 = memref.load %arg0[%c129] : memref<216xf32, #tpu.memory_space<smem>>
    %822 = vector.broadcast %821 : f32 to vector<65x66xf32>
    %823 = arith.mulf %822, %820 : vector<65x66xf32>
    %824 = arith.addf %818, %823 : vector<65x66xf32>
    %c2_418 = arith.constant 2 : index
    %c1_419 = arith.constant 1 : index
    %c1_420 = arith.constant 1 : index
    %825 = vector.load %arg2[%c2_418, %c1_419, %c1_420] : memref<3x67x68xf32, #tpu.memory_space<vmem>>, vector<1x65x66xf32>
    %826 = vector.shape_cast %825 : vector<1x65x66xf32> to vector<65x66xf32>
    %c130 = arith.constant 130 : index
    %827 = memref.load %arg0[%c130] : memref<216xf32, #tpu.memory_space<smem>>
    %828 = vector.broadcast %827 : f32 to vector<65x66xf32>
    %829 = arith.mulf %828, %826 : vector<65x66xf32>
    %830 = arith.addf %824, %829 : vector<65x66xf32>
    %c2_421 = arith.constant 2 : index
    %c1_422 = arith.constant 1 : index
    %c2_423 = arith.constant 2 : index
    %831 = vector.load %arg2[%c2_421, %c1_422, %c2_423] : memref<3x67x68xf32, #tpu.memory_space<vmem>>, vector<1x65x66xf32>
    %832 = vector.shape_cast %831 : vector<1x65x66xf32> to vector<65x66xf32>
    %c131 = arith.constant 131 : index
    %833 = memref.load %arg0[%c131] : memref<216xf32, #tpu.memory_space<smem>>
    %834 = vector.broadcast %833 : f32 to vector<65x66xf32>
    %835 = arith.mulf %834, %832 : vector<65x66xf32>
    %836 = arith.addf %830, %835 : vector<65x66xf32>
    %c2_424 = arith.constant 2 : index
    %c2_425 = arith.constant 2 : index
    %c0_426 = arith.constant 0 : index
    %837 = vector.load %arg2[%c2_424, %c2_425, %c0_426] : memref<3x67x68xf32, #tpu.memory_space<vmem>>, vector<1x65x66xf32>
    %838 = vector.shape_cast %837 : vector<1x65x66xf32> to vector<65x66xf32>
    %c132 = arith.constant 132 : index
    %839 = memref.load %arg0[%c132] : memref<216xf32, #tpu.memory_space<smem>>
    %840 = vector.broadcast %839 : f32 to vector<65x66xf32>
    %841 = arith.mulf %840, %838 : vector<65x66xf32>
    %842 = arith.addf %836, %841 : vector<65x66xf32>
    %c2_427 = arith.constant 2 : index
    %c2_428 = arith.constant 2 : index
    %c1_429 = arith.constant 1 : index
    %843 = vector.load %arg2[%c2_427, %c2_428, %c1_429] : memref<3x67x68xf32, #tpu.memory_space<vmem>>, vector<1x65x66xf32>
    %844 = vector.shape_cast %843 : vector<1x65x66xf32> to vector<65x66xf32>
    %c133 = arith.constant 133 : index
    %845 = memref.load %arg0[%c133] : memref<216xf32, #tpu.memory_space<smem>>
    %846 = vector.broadcast %845 : f32 to vector<65x66xf32>
    %847 = arith.mulf %846, %844 : vector<65x66xf32>
    %848 = arith.addf %842, %847 : vector<65x66xf32>
    %c2_430 = arith.constant 2 : index
    %c2_431 = arith.constant 2 : index
    %c2_432 = arith.constant 2 : index
    %849 = vector.load %arg2[%c2_430, %c2_431, %c2_432] : memref<3x67x68xf32, #tpu.memory_space<vmem>>, vector<1x65x66xf32>
    %850 = vector.shape_cast %849 : vector<1x65x66xf32> to vector<65x66xf32>
    %c134 = arith.constant 134 : index
    %851 = memref.load %arg0[%c134] : memref<216xf32, #tpu.memory_space<smem>>
    %852 = vector.broadcast %851 : f32 to vector<65x66xf32>
    %853 = arith.mulf %852, %850 : vector<65x66xf32>
    %854 = arith.addf %848, %853 : vector<65x66xf32>
    %c4_433 = arith.constant 4 : index
    %855 = memref.load %arg1[%c4_433] : memref<8xf32, #tpu.memory_space<smem>>
    %856 = vector.broadcast %855 : f32 to vector<65x66xf32>
    %857 = arith.addf %854, %856 : vector<65x66xf32>
    %cst_434 = arith.constant 2.000000e+00 : f32
    %858 = vector.broadcast %cst_434 : f32 to vector<65x66xf32>
    %859 = arith.mulf %858, %857 : vector<65x66xf32>
    %cst_435 = arith.constant 0.000000e+00 : f32
    %860 = vector.broadcast %cst_435 : f32 to vector<65x66xf32>
    %861 = arith.maximumf %859, %860 : vector<65x66xf32>
    %c4_436 = arith.constant 4 : index
    %c0_437 = arith.constant 0 : index
    %c0_438 = arith.constant 0 : index
    %862 = vector.load %arg3[%c4_436, %c0_437, %c0_438] : memref<8x65x66xf32, #tpu.memory_space<vmem>>, vector<1x65x66xf32>
    %863 = vector.shape_cast %862 : vector<1x65x66xf32> to vector<65x66xf32>
    %864 = vector.shape_cast %861 : vector<65x66xf32> to vector<1x65x66xf32>
    tpu.vector_store %arg3[%c4_436, %c0_437, %c0_438], %864 {strides = array<i32>} : memref<8x65x66xf32, #tpu.memory_space<vmem>>, vector<1x65x66xf32>,
    %cst_439 = arith.constant 0.000000e+00 : f32
    %865 = vector.broadcast %cst_439 : f32 to vector<65x66xf32>
    %c0_440 = arith.constant 0 : index
    %c0_441 = arith.constant 0 : index
    %c0_442 = arith.constant 0 : index
    %866 = vector.load %arg2[%c0_440, %c0_441, %c0_442] : memref<3x67x68xf32, #tpu.memory_space<vmem>>, vector<1x65x66xf32>
    %867 = vector.shape_cast %866 : vector<1x65x66xf32> to vector<65x66xf32>
    %c135 = arith.constant 135 : index
    %868 = memref.load %arg0[%c135] : memref<216xf32, #tpu.memory_space<smem>>
    %869 = vector.broadcast %868 : f32 to vector<65x66xf32>
    %870 = arith.mulf %869, %867 : vector<65x66xf32>
    %871 = arith.addf %865, %870 : vector<65x66xf32>
    %c0_443 = arith.constant 0 : index
    %c0_444 = arith.constant 0 : index
    %c1_445 = arith.constant 1 : index
    %872 = vector.load %arg2[%c0_443, %c0_444, %c1_445] : memref<3x67x68xf32, #tpu.memory_space<vmem>>, vector<1x65x66xf32>
    %873 = vector.shape_cast %872 : vector<1x65x66xf32> to vector<65x66xf32>
    %c136 = arith.constant 136 : index
    %874 = memref.load %arg0[%c136] : memref<216xf32, #tpu.memory_space<smem>>
    %875 = vector.broadcast %874 : f32 to vector<65x66xf32>
    %876 = arith.mulf %875, %873 : vector<65x66xf32>
    %877 = arith.addf %871, %876 : vector<65x66xf32>
    %c0_446 = arith.constant 0 : index
    %c0_447 = arith.constant 0 : index
    %c2_448 = arith.constant 2 : index
    %878 = vector.load %arg2[%c0_446, %c0_447, %c2_448] : memref<3x67x68xf32, #tpu.memory_space<vmem>>, vector<1x65x66xf32>
    %879 = vector.shape_cast %878 : vector<1x65x66xf32> to vector<65x66xf32>
    %c137 = arith.constant 137 : index
    %880 = memref.load %arg0[%c137] : memref<216xf32, #tpu.memory_space<smem>>
    %881 = vector.broadcast %880 : f32 to vector<65x66xf32>
    %882 = arith.mulf %881, %879 : vector<65x66xf32>
    %883 = arith.addf %877, %882 : vector<65x66xf32>
    %c0_449 = arith.constant 0 : index
    %c1_450 = arith.constant 1 : index
    %c0_451 = arith.constant 0 : index
    %884 = vector.load %arg2[%c0_449, %c1_450, %c0_451] : memref<3x67x68xf32, #tpu.memory_space<vmem>>, vector<1x65x66xf32>
    %885 = vector.shape_cast %884 : vector<1x65x66xf32> to vector<65x66xf32>
    %c138 = arith.constant 138 : index
    %886 = memref.load %arg0[%c138] : memref<216xf32, #tpu.memory_space<smem>>
    %887 = vector.broadcast %886 : f32 to vector<65x66xf32>
    %888 = arith.mulf %887, %885 : vector<65x66xf32>
    %889 = arith.addf %883, %888 : vector<65x66xf32>
    %c0_452 = arith.constant 0 : index
    %c1_453 = arith.constant 1 : index
    %c1_454 = arith.constant 1 : index
    %890 = vector.load %arg2[%c0_452, %c1_453, %c1_454] : memref<3x67x68xf32, #tpu.memory_space<vmem>>, vector<1x65x66xf32>
    %891 = vector.shape_cast %890 : vector<1x65x66xf32> to vector<65x66xf32>
    %c139 = arith.constant 139 : index
    %892 = memref.load %arg0[%c139] : memref<216xf32, #tpu.memory_space<smem>>
    %893 = vector.broadcast %892 : f32 to vector<65x66xf32>
    %894 = arith.mulf %893, %891 : vector<65x66xf32>
    %895 = arith.addf %889, %894 : vector<65x66xf32>
    %c0_455 = arith.constant 0 : index
    %c1_456 = arith.constant 1 : index
    %c2_457 = arith.constant 2 : index
    %896 = vector.load %arg2[%c0_455, %c1_456, %c2_457] : memref<3x67x68xf32, #tpu.memory_space<vmem>>, vector<1x65x66xf32>
    %897 = vector.shape_cast %896 : vector<1x65x66xf32> to vector<65x66xf32>
    %c140 = arith.constant 140 : index
    %898 = memref.load %arg0[%c140] : memref<216xf32, #tpu.memory_space<smem>>
    %899 = vector.broadcast %898 : f32 to vector<65x66xf32>
    %900 = arith.mulf %899, %897 : vector<65x66xf32>
    %901 = arith.addf %895, %900 : vector<65x66xf32>
    %c0_458 = arith.constant 0 : index
    %c2_459 = arith.constant 2 : index
    %c0_460 = arith.constant 0 : index
    %902 = vector.load %arg2[%c0_458, %c2_459, %c0_460] : memref<3x67x68xf32, #tpu.memory_space<vmem>>, vector<1x65x66xf32>
    %903 = vector.shape_cast %902 : vector<1x65x66xf32> to vector<65x66xf32>
    %c141 = arith.constant 141 : index
    %904 = memref.load %arg0[%c141] : memref<216xf32, #tpu.memory_space<smem>>
    %905 = vector.broadcast %904 : f32 to vector<65x66xf32>
    %906 = arith.mulf %905, %903 : vector<65x66xf32>
    %907 = arith.addf %901, %906 : vector<65x66xf32>
    %c0_461 = arith.constant 0 : index
    %c2_462 = arith.constant 2 : index
    %c1_463 = arith.constant 1 : index
    %908 = vector.load %arg2[%c0_461, %c2_462, %c1_463] : memref<3x67x68xf32, #tpu.memory_space<vmem>>, vector<1x65x66xf32>
    %909 = vector.shape_cast %908 : vector<1x65x66xf32> to vector<65x66xf32>
    %c142 = arith.constant 142 : index
    %910 = memref.load %arg0[%c142] : memref<216xf32, #tpu.memory_space<smem>>
    %911 = vector.broadcast %910 : f32 to vector<65x66xf32>
    %912 = arith.mulf %911, %909 : vector<65x66xf32>
    %913 = arith.addf %907, %912 : vector<65x66xf32>
    %c0_464 = arith.constant 0 : index
    %c2_465 = arith.constant 2 : index
    %c2_466 = arith.constant 2 : index
    %914 = vector.load %arg2[%c0_464, %c2_465, %c2_466] : memref<3x67x68xf32, #tpu.memory_space<vmem>>, vector<1x65x66xf32>
    %915 = vector.shape_cast %914 : vector<1x65x66xf32> to vector<65x66xf32>
    %c143 = arith.constant 143 : index
    %916 = memref.load %arg0[%c143] : memref<216xf32, #tpu.memory_space<smem>>
    %917 = vector.broadcast %916 : f32 to vector<65x66xf32>
    %918 = arith.mulf %917, %915 : vector<65x66xf32>
    %919 = arith.addf %913, %918 : vector<65x66xf32>
    %c1_467 = arith.constant 1 : index
    %c0_468 = arith.constant 0 : index
    %c0_469 = arith.constant 0 : index
    %920 = vector.load %arg2[%c1_467, %c0_468, %c0_469] : memref<3x67x68xf32, #tpu.memory_space<vmem>>, vector<1x65x66xf32>
    %921 = vector.shape_cast %920 : vector<1x65x66xf32> to vector<65x66xf32>
    %c144 = arith.constant 144 : index
    %922 = memref.load %arg0[%c144] : memref<216xf32, #tpu.memory_space<smem>>
    %923 = vector.broadcast %922 : f32 to vector<65x66xf32>
    %924 = arith.mulf %923, %921 : vector<65x66xf32>
    %925 = arith.addf %919, %924 : vector<65x66xf32>
    %c1_470 = arith.constant 1 : index
    %c0_471 = arith.constant 0 : index
    %c1_472 = arith.constant 1 : index
    %926 = vector.load %arg2[%c1_470, %c0_471, %c1_472] : memref<3x67x68xf32, #tpu.memory_space<vmem>>, vector<1x65x66xf32>
    %927 = vector.shape_cast %926 : vector<1x65x66xf32> to vector<65x66xf32>
    %c145 = arith.constant 145 : index
    %928 = memref.load %arg0[%c145] : memref<216xf32, #tpu.memory_space<smem>>
    %929 = vector.broadcast %928 : f32 to vector<65x66xf32>
    %930 = arith.mulf %929, %927 : vector<65x66xf32>
    %931 = arith.addf %925, %930 : vector<65x66xf32>
    %c1_473 = arith.constant 1 : index
    %c0_474 = arith.constant 0 : index
    %c2_475 = arith.constant 2 : index
    %932 = vector.load %arg2[%c1_473, %c0_474, %c2_475] : memref<3x67x68xf32, #tpu.memory_space<vmem>>, vector<1x65x66xf32>
    %933 = vector.shape_cast %932 : vector<1x65x66xf32> to vector<65x66xf32>
    %c146 = arith.constant 146 : index
    %934 = memref.load %arg0[%c146] : memref<216xf32, #tpu.memory_space<smem>>
    %935 = vector.broadcast %934 : f32 to vector<65x66xf32>
    %936 = arith.mulf %935, %933 : vector<65x66xf32>
    %937 = arith.addf %931, %936 : vector<65x66xf32>
    %c1_476 = arith.constant 1 : index
    %c1_477 = arith.constant 1 : index
    %c0_478 = arith.constant 0 : index
    %938 = vector.load %arg2[%c1_476, %c1_477, %c0_478] : memref<3x67x68xf32, #tpu.memory_space<vmem>>, vector<1x65x66xf32>
    %939 = vector.shape_cast %938 : vector<1x65x66xf32> to vector<65x66xf32>
    %c147 = arith.constant 147 : index
    %940 = memref.load %arg0[%c147] : memref<216xf32, #tpu.memory_space<smem>>
    %941 = vector.broadcast %940 : f32 to vector<65x66xf32>
    %942 = arith.mulf %941, %939 : vector<65x66xf32>
    %943 = arith.addf %937, %942 : vector<65x66xf32>
    %c1_479 = arith.constant 1 : index
    %c1_480 = arith.constant 1 : index
    %c1_481 = arith.constant 1 : index
    %944 = vector.load %arg2[%c1_479, %c1_480, %c1_481] : memref<3x67x68xf32, #tpu.memory_space<vmem>>, vector<1x65x66xf32>
    %945 = vector.shape_cast %944 : vector<1x65x66xf32> to vector<65x66xf32>
    %c148 = arith.constant 148 : index
    %946 = memref.load %arg0[%c148] : memref<216xf32, #tpu.memory_space<smem>>
    %947 = vector.broadcast %946 : f32 to vector<65x66xf32>
    %948 = arith.mulf %947, %945 : vector<65x66xf32>
    %949 = arith.addf %943, %948 : vector<65x66xf32>
    %c1_482 = arith.constant 1 : index
    %c1_483 = arith.constant 1 : index
    %c2_484 = arith.constant 2 : index
    %950 = vector.load %arg2[%c1_482, %c1_483, %c2_484] : memref<3x67x68xf32, #tpu.memory_space<vmem>>, vector<1x65x66xf32>
    %951 = vector.shape_cast %950 : vector<1x65x66xf32> to vector<65x66xf32>
    %c149 = arith.constant 149 : index
    %952 = memref.load %arg0[%c149] : memref<216xf32, #tpu.memory_space<smem>>
    %953 = vector.broadcast %952 : f32 to vector<65x66xf32>
    %954 = arith.mulf %953, %951 : vector<65x66xf32>
    %955 = arith.addf %949, %954 : vector<65x66xf32>
    %c1_485 = arith.constant 1 : index
    %c2_486 = arith.constant 2 : index
    %c0_487 = arith.constant 0 : index
    %956 = vector.load %arg2[%c1_485, %c2_486, %c0_487] : memref<3x67x68xf32, #tpu.memory_space<vmem>>, vector<1x65x66xf32>
    %957 = vector.shape_cast %956 : vector<1x65x66xf32> to vector<65x66xf32>
    %c150 = arith.constant 150 : index
    %958 = memref.load %arg0[%c150] : memref<216xf32, #tpu.memory_space<smem>>
    %959 = vector.broadcast %958 : f32 to vector<65x66xf32>
    %960 = arith.mulf %959, %957 : vector<65x66xf32>
    %961 = arith.addf %955, %960 : vector<65x66xf32>
    %c1_488 = arith.constant 1 : index
    %c2_489 = arith.constant 2 : index
    %c1_490 = arith.constant 1 : index
    %962 = vector.load %arg2[%c1_488, %c2_489, %c1_490] : memref<3x67x68xf32, #tpu.memory_space<vmem>>, vector<1x65x66xf32>
    %963 = vector.shape_cast %962 : vector<1x65x66xf32> to vector<65x66xf32>
    %c151 = arith.constant 151 : index
    %964 = memref.load %arg0[%c151] : memref<216xf32, #tpu.memory_space<smem>>
    %965 = vector.broadcast %964 : f32 to vector<65x66xf32>
    %966 = arith.mulf %965, %963 : vector<65x66xf32>
    %967 = arith.addf %961, %966 : vector<65x66xf32>
    %c1_491 = arith.constant 1 : index
    %c2_492 = arith.constant 2 : index
    %c2_493 = arith.constant 2 : index
    %968 = vector.load %arg2[%c1_491, %c2_492, %c2_493] : memref<3x67x68xf32, #tpu.memory_space<vmem>>, vector<1x65x66xf32>
    %969 = vector.shape_cast %968 : vector<1x65x66xf32> to vector<65x66xf32>
    %c152 = arith.constant 152 : index
    %970 = memref.load %arg0[%c152] : memref<216xf32, #tpu.memory_space<smem>>
    %971 = vector.broadcast %970 : f32 to vector<65x66xf32>
    %972 = arith.mulf %971, %969 : vector<65x66xf32>
    %973 = arith.addf %967, %972 : vector<65x66xf32>
    %c2_494 = arith.constant 2 : index
    %c0_495 = arith.constant 0 : index
    %c0_496 = arith.constant 0 : index
    %974 = vector.load %arg2[%c2_494, %c0_495, %c0_496] : memref<3x67x68xf32, #tpu.memory_space<vmem>>, vector<1x65x66xf32>
    %975 = vector.shape_cast %974 : vector<1x65x66xf32> to vector<65x66xf32>
    %c153 = arith.constant 153 : index
    %976 = memref.load %arg0[%c153] : memref<216xf32, #tpu.memory_space<smem>>
    %977 = vector.broadcast %976 : f32 to vector<65x66xf32>
    %978 = arith.mulf %977, %975 : vector<65x66xf32>
    %979 = arith.addf %973, %978 : vector<65x66xf32>
    %c2_497 = arith.constant 2 : index
    %c0_498 = arith.constant 0 : index
    %c1_499 = arith.constant 1 : index
    %980 = vector.load %arg2[%c2_497, %c0_498, %c1_499] : memref<3x67x68xf32, #tpu.memory_space<vmem>>, vector<1x65x66xf32>
    %981 = vector.shape_cast %980 : vector<1x65x66xf32> to vector<65x66xf32>
    %c154 = arith.constant 154 : index
    %982 = memref.load %arg0[%c154] : memref<216xf32, #tpu.memory_space<smem>>
    %983 = vector.broadcast %982 : f32 to vector<65x66xf32>
    %984 = arith.mulf %983, %981 : vector<65x66xf32>
    %985 = arith.addf %979, %984 : vector<65x66xf32>
    %c2_500 = arith.constant 2 : index
    %c0_501 = arith.constant 0 : index
    %c2_502 = arith.constant 2 : index
    %986 = vector.load %arg2[%c2_500, %c0_501, %c2_502] : memref<3x67x68xf32, #tpu.memory_space<vmem>>, vector<1x65x66xf32>
    %987 = vector.shape_cast %986 : vector<1x65x66xf32> to vector<65x66xf32>
    %c155 = arith.constant 155 : index
    %988 = memref.load %arg0[%c155] : memref<216xf32, #tpu.memory_space<smem>>
    %989 = vector.broadcast %988 : f32 to vector<65x66xf32>
    %990 = arith.mulf %989, %987 : vector<65x66xf32>
    %991 = arith.addf %985, %990 : vector<65x66xf32>
    %c2_503 = arith.constant 2 : index
    %c1_504 = arith.constant 1 : index
    %c0_505 = arith.constant 0 : index
    %992 = vector.load %arg2[%c2_503, %c1_504, %c0_505] : memref<3x67x68xf32, #tpu.memory_space<vmem>>, vector<1x65x66xf32>
    %993 = vector.shape_cast %992 : vector<1x65x66xf32> to vector<65x66xf32>
    %c156 = arith.constant 156 : index
    %994 = memref.load %arg0[%c156] : memref<216xf32, #tpu.memory_space<smem>>
    %995 = vector.broadcast %994 : f32 to vector<65x66xf32>
    %996 = arith.mulf %995, %993 : vector<65x66xf32>
    %997 = arith.addf %991, %996 : vector<65x66xf32>
    %c2_506 = arith.constant 2 : index
    %c1_507 = arith.constant 1 : index
    %c1_508 = arith.constant 1 : index
    %998 = vector.load %arg2[%c2_506, %c1_507, %c1_508] : memref<3x67x68xf32, #tpu.memory_space<vmem>>, vector<1x65x66xf32>
    %999 = vector.shape_cast %998 : vector<1x65x66xf32> to vector<65x66xf32>
    %c157 = arith.constant 157 : index
    %1000 = memref.load %arg0[%c157] : memref<216xf32, #tpu.memory_space<smem>>
    %1001 = vector.broadcast %1000 : f32 to vector<65x66xf32>
    %1002 = arith.mulf %1001, %999 : vector<65x66xf32>
    %1003 = arith.addf %997, %1002 : vector<65x66xf32>
    %c2_509 = arith.constant 2 : index
    %c1_510 = arith.constant 1 : index
    %c2_511 = arith.constant 2 : index
    %1004 = vector.load %arg2[%c2_509, %c1_510, %c2_511] : memref<3x67x68xf32, #tpu.memory_space<vmem>>, vector<1x65x66xf32>
    %1005 = vector.shape_cast %1004 : vector<1x65x66xf32> to vector<65x66xf32>
    %c158 = arith.constant 158 : index
    %1006 = memref.load %arg0[%c158] : memref<216xf32, #tpu.memory_space<smem>>
    %1007 = vector.broadcast %1006 : f32 to vector<65x66xf32>
    %1008 = arith.mulf %1007, %1005 : vector<65x66xf32>
    %1009 = arith.addf %1003, %1008 : vector<65x66xf32>
    %c2_512 = arith.constant 2 : index
    %c2_513 = arith.constant 2 : index
    %c0_514 = arith.constant 0 : index
    %1010 = vector.load %arg2[%c2_512, %c2_513, %c0_514] : memref<3x67x68xf32, #tpu.memory_space<vmem>>, vector<1x65x66xf32>
    %1011 = vector.shape_cast %1010 : vector<1x65x66xf32> to vector<65x66xf32>
    %c159 = arith.constant 159 : index
    %1012 = memref.load %arg0[%c159] : memref<216xf32, #tpu.memory_space<smem>>
    %1013 = vector.broadcast %1012 : f32 to vector<65x66xf32>
    %1014 = arith.mulf %1013, %1011 : vector<65x66xf32>
    %1015 = arith.addf %1009, %1014 : vector<65x66xf32>
    %c2_515 = arith.constant 2 : index
    %c2_516 = arith.constant 2 : index
    %c1_517 = arith.constant 1 : index
    %1016 = vector.load %arg2[%c2_515, %c2_516, %c1_517] : memref<3x67x68xf32, #tpu.memory_space<vmem>>, vector<1x65x66xf32>
    %1017 = vector.shape_cast %1016 : vector<1x65x66xf32> to vector<65x66xf32>
    %c160 = arith.constant 160 : index
    %1018 = memref.load %arg0[%c160] : memref<216xf32, #tpu.memory_space<smem>>
    %1019 = vector.broadcast %1018 : f32 to vector<65x66xf32>
    %1020 = arith.mulf %1019, %1017 : vector<65x66xf32>
    %1021 = arith.addf %1015, %1020 : vector<65x66xf32>
    %c2_518 = arith.constant 2 : index
    %c2_519 = arith.constant 2 : index
    %c2_520 = arith.constant 2 : index
    %1022 = vector.load %arg2[%c2_518, %c2_519, %c2_520] : memref<3x67x68xf32, #tpu.memory_space<vmem>>, vector<1x65x66xf32>
    %1023 = vector.shape_cast %1022 : vector<1x65x66xf32> to vector<65x66xf32>
    %c161 = arith.constant 161 : index
    %1024 = memref.load %arg0[%c161] : memref<216xf32, #tpu.memory_space<smem>>
    %1025 = vector.broadcast %1024 : f32 to vector<65x66xf32>
    %1026 = arith.mulf %1025, %1023 : vector<65x66xf32>
    %1027 = arith.addf %1021, %1026 : vector<65x66xf32>
    %c5_521 = arith.constant 5 : index
    %1028 = memref.load %arg1[%c5_521] : memref<8xf32, #tpu.memory_space<smem>>
    %1029 = vector.broadcast %1028 : f32 to vector<65x66xf32>
    %1030 = arith.addf %1027, %1029 : vector<65x66xf32>
    %cst_522 = arith.constant 2.000000e+00 : f32
    %1031 = vector.broadcast %cst_522 : f32 to vector<65x66xf32>
    %1032 = arith.mulf %1031, %1030 : vector<65x66xf32>
    %cst_523 = arith.constant 0.000000e+00 : f32
    %1033 = vector.broadcast %cst_523 : f32 to vector<65x66xf32>
    %1034 = arith.maximumf %1032, %1033 : vector<65x66xf32>
    %c5_524 = arith.constant 5 : index
    %c0_525 = arith.constant 0 : index
    %c0_526 = arith.constant 0 : index
    %1035 = vector.load %arg3[%c5_524, %c0_525, %c0_526] : memref<8x65x66xf32, #tpu.memory_space<vmem>>, vector<1x65x66xf32>
    %1036 = vector.shape_cast %1035 : vector<1x65x66xf32> to vector<65x66xf32>
    %1037 = vector.shape_cast %1034 : vector<65x66xf32> to vector<1x65x66xf32>
    tpu.vector_store %arg3[%c5_524, %c0_525, %c0_526], %1037 {strides = array<i32>} : memref<8x65x66xf32, #tpu.memory_space<vmem>>, vector<1x65x66xf32>,
    %cst_527 = arith.constant 0.000000e+00 : f32
    %1038 = vector.broadcast %cst_527 : f32 to vector<65x66xf32>
    %c0_528 = arith.constant 0 : index
    %c0_529 = arith.constant 0 : index
    %c0_530 = arith.constant 0 : index
    %1039 = vector.load %arg2[%c0_528, %c0_529, %c0_530] : memref<3x67x68xf32, #tpu.memory_space<vmem>>, vector<1x65x66xf32>
    %1040 = vector.shape_cast %1039 : vector<1x65x66xf32> to vector<65x66xf32>
    %c162 = arith.constant 162 : index
    %1041 = memref.load %arg0[%c162] : memref<216xf32, #tpu.memory_space<smem>>
    %1042 = vector.broadcast %1041 : f32 to vector<65x66xf32>
    %1043 = arith.mulf %1042, %1040 : vector<65x66xf32>
    %1044 = arith.addf %1038, %1043 : vector<65x66xf32>
    %c0_531 = arith.constant 0 : index
    %c0_532 = arith.constant 0 : index
    %c1_533 = arith.constant 1 : index
    %1045 = vector.load %arg2[%c0_531, %c0_532, %c1_533] : memref<3x67x68xf32, #tpu.memory_space<vmem>>, vector<1x65x66xf32>
    %1046 = vector.shape_cast %1045 : vector<1x65x66xf32> to vector<65x66xf32>
    %c163 = arith.constant 163 : index
    %1047 = memref.load %arg0[%c163] : memref<216xf32, #tpu.memory_space<smem>>
    %1048 = vector.broadcast %1047 : f32 to vector<65x66xf32>
    %1049 = arith.mulf %1048, %1046 : vector<65x66xf32>
    %1050 = arith.addf %1044, %1049 : vector<65x66xf32>
    %c0_534 = arith.constant 0 : index
    %c0_535 = arith.constant 0 : index
    %c2_536 = arith.constant 2 : index
    %1051 = vector.load %arg2[%c0_534, %c0_535, %c2_536] : memref<3x67x68xf32, #tpu.memory_space<vmem>>, vector<1x65x66xf32>
    %1052 = vector.shape_cast %1051 : vector<1x65x66xf32> to vector<65x66xf32>
    %c164 = arith.constant 164 : index
    %1053 = memref.load %arg0[%c164] : memref<216xf32, #tpu.memory_space<smem>>
    %1054 = vector.broadcast %1053 : f32 to vector<65x66xf32>
    %1055 = arith.mulf %1054, %1052 : vector<65x66xf32>
    %1056 = arith.addf %1050, %1055 : vector<65x66xf32>
    %c0_537 = arith.constant 0 : index
    %c1_538 = arith.constant 1 : index
    %c0_539 = arith.constant 0 : index
    %1057 = vector.load %arg2[%c0_537, %c1_538, %c0_539] : memref<3x67x68xf32, #tpu.memory_space<vmem>>, vector<1x65x66xf32>
    %1058 = vector.shape_cast %1057 : vector<1x65x66xf32> to vector<65x66xf32>
    %c165 = arith.constant 165 : index
    %1059 = memref.load %arg0[%c165] : memref<216xf32, #tpu.memory_space<smem>>
    %1060 = vector.broadcast %1059 : f32 to vector<65x66xf32>
    %1061 = arith.mulf %1060, %1058 : vector<65x66xf32>
    %1062 = arith.addf %1056, %1061 : vector<65x66xf32>
    %c0_540 = arith.constant 0 : index
    %c1_541 = arith.constant 1 : index
    %c1_542 = arith.constant 1 : index
    %1063 = vector.load %arg2[%c0_540, %c1_541, %c1_542] : memref<3x67x68xf32, #tpu.memory_space<vmem>>, vector<1x65x66xf32>
    %1064 = vector.shape_cast %1063 : vector<1x65x66xf32> to vector<65x66xf32>
    %c166 = arith.constant 166 : index
    %1065 = memref.load %arg0[%c166] : memref<216xf32, #tpu.memory_space<smem>>
    %1066 = vector.broadcast %1065 : f32 to vector<65x66xf32>
    %1067 = arith.mulf %1066, %1064 : vector<65x66xf32>
    %1068 = arith.addf %1062, %1067 : vector<65x66xf32>
    %c0_543 = arith.constant 0 : index
    %c1_544 = arith.constant 1 : index
    %c2_545 = arith.constant 2 : index
    %1069 = vector.load %arg2[%c0_543, %c1_544, %c2_545] : memref<3x67x68xf32, #tpu.memory_space<vmem>>, vector<1x65x66xf32>
    %1070 = vector.shape_cast %1069 : vector<1x65x66xf32> to vector<65x66xf32>
    %c167 = arith.constant 167 : index
    %1071 = memref.load %arg0[%c167] : memref<216xf32, #tpu.memory_space<smem>>
    %1072 = vector.broadcast %1071 : f32 to vector<65x66xf32>
    %1073 = arith.mulf %1072, %1070 : vector<65x66xf32>
    %1074 = arith.addf %1068, %1073 : vector<65x66xf32>
    %c0_546 = arith.constant 0 : index
    %c2_547 = arith.constant 2 : index
    %c0_548 = arith.constant 0 : index
    %1075 = vector.load %arg2[%c0_546, %c2_547, %c0_548] : memref<3x67x68xf32, #tpu.memory_space<vmem>>, vector<1x65x66xf32>
    %1076 = vector.shape_cast %1075 : vector<1x65x66xf32> to vector<65x66xf32>
    %c168 = arith.constant 168 : index
    %1077 = memref.load %arg0[%c168] : memref<216xf32, #tpu.memory_space<smem>>
    %1078 = vector.broadcast %1077 : f32 to vector<65x66xf32>
    %1079 = arith.mulf %1078, %1076 : vector<65x66xf32>
    %1080 = arith.addf %1074, %1079 : vector<65x66xf32>
    %c0_549 = arith.constant 0 : index
    %c2_550 = arith.constant 2 : index
    %c1_551 = arith.constant 1 : index
    %1081 = vector.load %arg2[%c0_549, %c2_550, %c1_551] : memref<3x67x68xf32, #tpu.memory_space<vmem>>, vector<1x65x66xf32>
    %1082 = vector.shape_cast %1081 : vector<1x65x66xf32> to vector<65x66xf32>
    %c169 = arith.constant 169 : index
    %1083 = memref.load %arg0[%c169] : memref<216xf32, #tpu.memory_space<smem>>
    %1084 = vector.broadcast %1083 : f32 to vector<65x66xf32>
    %1085 = arith.mulf %1084, %1082 : vector<65x66xf32>
    %1086 = arith.addf %1080, %1085 : vector<65x66xf32>
    %c0_552 = arith.constant 0 : index
    %c2_553 = arith.constant 2 : index
    %c2_554 = arith.constant 2 : index
    %1087 = vector.load %arg2[%c0_552, %c2_553, %c2_554] : memref<3x67x68xf32, #tpu.memory_space<vmem>>, vector<1x65x66xf32>
    %1088 = vector.shape_cast %1087 : vector<1x65x66xf32> to vector<65x66xf32>
    %c170 = arith.constant 170 : index
    %1089 = memref.load %arg0[%c170] : memref<216xf32, #tpu.memory_space<smem>>
    %1090 = vector.broadcast %1089 : f32 to vector<65x66xf32>
    %1091 = arith.mulf %1090, %1088 : vector<65x66xf32>
    %1092 = arith.addf %1086, %1091 : vector<65x66xf32>
    %c1_555 = arith.constant 1 : index
    %c0_556 = arith.constant 0 : index
    %c0_557 = arith.constant 0 : index
    %1093 = vector.load %arg2[%c1_555, %c0_556, %c0_557] : memref<3x67x68xf32, #tpu.memory_space<vmem>>, vector<1x65x66xf32>
    %1094 = vector.shape_cast %1093 : vector<1x65x66xf32> to vector<65x66xf32>
    %c171 = arith.constant 171 : index
    %1095 = memref.load %arg0[%c171] : memref<216xf32, #tpu.memory_space<smem>>
    %1096 = vector.broadcast %1095 : f32 to vector<65x66xf32>
    %1097 = arith.mulf %1096, %1094 : vector<65x66xf32>
    %1098 = arith.addf %1092, %1097 : vector<65x66xf32>
    %c1_558 = arith.constant 1 : index
    %c0_559 = arith.constant 0 : index
    %c1_560 = arith.constant 1 : index
    %1099 = vector.load %arg2[%c1_558, %c0_559, %c1_560] : memref<3x67x68xf32, #tpu.memory_space<vmem>>, vector<1x65x66xf32>
    %1100 = vector.shape_cast %1099 : vector<1x65x66xf32> to vector<65x66xf32>
    %c172 = arith.constant 172 : index
    %1101 = memref.load %arg0[%c172] : memref<216xf32, #tpu.memory_space<smem>>
    %1102 = vector.broadcast %1101 : f32 to vector<65x66xf32>
    %1103 = arith.mulf %1102, %1100 : vector<65x66xf32>
    %1104 = arith.addf %1098, %1103 : vector<65x66xf32>
    %c1_561 = arith.constant 1 : index
    %c0_562 = arith.constant 0 : index
    %c2_563 = arith.constant 2 : index
    %1105 = vector.load %arg2[%c1_561, %c0_562, %c2_563] : memref<3x67x68xf32, #tpu.memory_space<vmem>>, vector<1x65x66xf32>
    %1106 = vector.shape_cast %1105 : vector<1x65x66xf32> to vector<65x66xf32>
    %c173 = arith.constant 173 : index
    %1107 = memref.load %arg0[%c173] : memref<216xf32, #tpu.memory_space<smem>>
    %1108 = vector.broadcast %1107 : f32 to vector<65x66xf32>
    %1109 = arith.mulf %1108, %1106 : vector<65x66xf32>
    %1110 = arith.addf %1104, %1109 : vector<65x66xf32>
    %c1_564 = arith.constant 1 : index
    %c1_565 = arith.constant 1 : index
    %c0_566 = arith.constant 0 : index
    %1111 = vector.load %arg2[%c1_564, %c1_565, %c0_566] : memref<3x67x68xf32, #tpu.memory_space<vmem>>, vector<1x65x66xf32>
    %1112 = vector.shape_cast %1111 : vector<1x65x66xf32> to vector<65x66xf32>
    %c174 = arith.constant 174 : index
    %1113 = memref.load %arg0[%c174] : memref<216xf32, #tpu.memory_space<smem>>
    %1114 = vector.broadcast %1113 : f32 to vector<65x66xf32>
    %1115 = arith.mulf %1114, %1112 : vector<65x66xf32>
    %1116 = arith.addf %1110, %1115 : vector<65x66xf32>
    %c1_567 = arith.constant 1 : index
    %c1_568 = arith.constant 1 : index
    %c1_569 = arith.constant 1 : index
    %1117 = vector.load %arg2[%c1_567, %c1_568, %c1_569] : memref<3x67x68xf32, #tpu.memory_space<vmem>>, vector<1x65x66xf32>
    %1118 = vector.shape_cast %1117 : vector<1x65x66xf32> to vector<65x66xf32>
    %c175 = arith.constant 175 : index
    %1119 = memref.load %arg0[%c175] : memref<216xf32, #tpu.memory_space<smem>>
    %1120 = vector.broadcast %1119 : f32 to vector<65x66xf32>
    %1121 = arith.mulf %1120, %1118 : vector<65x66xf32>
    %1122 = arith.addf %1116, %1121 : vector<65x66xf32>
    %c1_570 = arith.constant 1 : index
    %c1_571 = arith.constant 1 : index
    %c2_572 = arith.constant 2 : index
    %1123 = vector.load %arg2[%c1_570, %c1_571, %c2_572] : memref<3x67x68xf32, #tpu.memory_space<vmem>>, vector<1x65x66xf32>
    %1124 = vector.shape_cast %1123 : vector<1x65x66xf32> to vector<65x66xf32>
    %c176 = arith.constant 176 : index
    %1125 = memref.load %arg0[%c176] : memref<216xf32, #tpu.memory_space<smem>>
    %1126 = vector.broadcast %1125 : f32 to vector<65x66xf32>
    %1127 = arith.mulf %1126, %1124 : vector<65x66xf32>
    %1128 = arith.addf %1122, %1127 : vector<65x66xf32>
    %c1_573 = arith.constant 1 : index
    %c2_574 = arith.constant 2 : index
    %c0_575 = arith.constant 0 : index
    %1129 = vector.load %arg2[%c1_573, %c2_574, %c0_575] : memref<3x67x68xf32, #tpu.memory_space<vmem>>, vector<1x65x66xf32>
    %1130 = vector.shape_cast %1129 : vector<1x65x66xf32> to vector<65x66xf32>
    %c177 = arith.constant 177 : index
    %1131 = memref.load %arg0[%c177] : memref<216xf32, #tpu.memory_space<smem>>
    %1132 = vector.broadcast %1131 : f32 to vector<65x66xf32>
    %1133 = arith.mulf %1132, %1130 : vector<65x66xf32>
    %1134 = arith.addf %1128, %1133 : vector<65x66xf32>
    %c1_576 = arith.constant 1 : index
    %c2_577 = arith.constant 2 : index
    %c1_578 = arith.constant 1 : index
    %1135 = vector.load %arg2[%c1_576, %c2_577, %c1_578] : memref<3x67x68xf32, #tpu.memory_space<vmem>>, vector<1x65x66xf32>
    %1136 = vector.shape_cast %1135 : vector<1x65x66xf32> to vector<65x66xf32>
    %c178 = arith.constant 178 : index
    %1137 = memref.load %arg0[%c178] : memref<216xf32, #tpu.memory_space<smem>>
    %1138 = vector.broadcast %1137 : f32 to vector<65x66xf32>
    %1139 = arith.mulf %1138, %1136 : vector<65x66xf32>
    %1140 = arith.addf %1134, %1139 : vector<65x66xf32>
    %c1_579 = arith.constant 1 : index
    %c2_580 = arith.constant 2 : index
    %c2_581 = arith.constant 2 : index
    %1141 = vector.load %arg2[%c1_579, %c2_580, %c2_581] : memref<3x67x68xf32, #tpu.memory_space<vmem>>, vector<1x65x66xf32>
    %1142 = vector.shape_cast %1141 : vector<1x65x66xf32> to vector<65x66xf32>
    %c179 = arith.constant 179 : index
    %1143 = memref.load %arg0[%c179] : memref<216xf32, #tpu.memory_space<smem>>
    %1144 = vector.broadcast %1143 : f32 to vector<65x66xf32>
    %1145 = arith.mulf %1144, %1142 : vector<65x66xf32>
    %1146 = arith.addf %1140, %1145 : vector<65x66xf32>
    %c2_582 = arith.constant 2 : index
    %c0_583 = arith.constant 0 : index
    %c0_584 = arith.constant 0 : index
    %1147 = vector.load %arg2[%c2_582, %c0_583, %c0_584] : memref<3x67x68xf32, #tpu.memory_space<vmem>>, vector<1x65x66xf32>
    %1148 = vector.shape_cast %1147 : vector<1x65x66xf32> to vector<65x66xf32>
    %c180 = arith.constant 180 : index
    %1149 = memref.load %arg0[%c180] : memref<216xf32, #tpu.memory_space<smem>>
    %1150 = vector.broadcast %1149 : f32 to vector<65x66xf32>
    %1151 = arith.mulf %1150, %1148 : vector<65x66xf32>
    %1152 = arith.addf %1146, %1151 : vector<65x66xf32>
    %c2_585 = arith.constant 2 : index
    %c0_586 = arith.constant 0 : index
    %c1_587 = arith.constant 1 : index
    %1153 = vector.load %arg2[%c2_585, %c0_586, %c1_587] : memref<3x67x68xf32, #tpu.memory_space<vmem>>, vector<1x65x66xf32>
    %1154 = vector.shape_cast %1153 : vector<1x65x66xf32> to vector<65x66xf32>
    %c181 = arith.constant 181 : index
    %1155 = memref.load %arg0[%c181] : memref<216xf32, #tpu.memory_space<smem>>
    %1156 = vector.broadcast %1155 : f32 to vector<65x66xf32>
    %1157 = arith.mulf %1156, %1154 : vector<65x66xf32>
    %1158 = arith.addf %1152, %1157 : vector<65x66xf32>
    %c2_588 = arith.constant 2 : index
    %c0_589 = arith.constant 0 : index
    %c2_590 = arith.constant 2 : index
    %1159 = vector.load %arg2[%c2_588, %c0_589, %c2_590] : memref<3x67x68xf32, #tpu.memory_space<vmem>>, vector<1x65x66xf32>
    %1160 = vector.shape_cast %1159 : vector<1x65x66xf32> to vector<65x66xf32>
    %c182 = arith.constant 182 : index
    %1161 = memref.load %arg0[%c182] : memref<216xf32, #tpu.memory_space<smem>>
    %1162 = vector.broadcast %1161 : f32 to vector<65x66xf32>
    %1163 = arith.mulf %1162, %1160 : vector<65x66xf32>
    %1164 = arith.addf %1158, %1163 : vector<65x66xf32>
    %c2_591 = arith.constant 2 : index
    %c1_592 = arith.constant 1 : index
    %c0_593 = arith.constant 0 : index
    %1165 = vector.load %arg2[%c2_591, %c1_592, %c0_593] : memref<3x67x68xf32, #tpu.memory_space<vmem>>, vector<1x65x66xf32>
    %1166 = vector.shape_cast %1165 : vector<1x65x66xf32> to vector<65x66xf32>
    %c183 = arith.constant 183 : index
    %1167 = memref.load %arg0[%c183] : memref<216xf32, #tpu.memory_space<smem>>
    %1168 = vector.broadcast %1167 : f32 to vector<65x66xf32>
    %1169 = arith.mulf %1168, %1166 : vector<65x66xf32>
    %1170 = arith.addf %1164, %1169 : vector<65x66xf32>
    %c2_594 = arith.constant 2 : index
    %c1_595 = arith.constant 1 : index
    %c1_596 = arith.constant 1 : index
    %1171 = vector.load %arg2[%c2_594, %c1_595, %c1_596] : memref<3x67x68xf32, #tpu.memory_space<vmem>>, vector<1x65x66xf32>
    %1172 = vector.shape_cast %1171 : vector<1x65x66xf32> to vector<65x66xf32>
    %c184 = arith.constant 184 : index
    %1173 = memref.load %arg0[%c184] : memref<216xf32, #tpu.memory_space<smem>>
    %1174 = vector.broadcast %1173 : f32 to vector<65x66xf32>
    %1175 = arith.mulf %1174, %1172 : vector<65x66xf32>
    %1176 = arith.addf %1170, %1175 : vector<65x66xf32>
    %c2_597 = arith.constant 2 : index
    %c1_598 = arith.constant 1 : index
    %c2_599 = arith.constant 2 : index
    %1177 = vector.load %arg2[%c2_597, %c1_598, %c2_599] : memref<3x67x68xf32, #tpu.memory_space<vmem>>, vector<1x65x66xf32>
    %1178 = vector.shape_cast %1177 : vector<1x65x66xf32> to vector<65x66xf32>
    %c185 = arith.constant 185 : index
    %1179 = memref.load %arg0[%c185] : memref<216xf32, #tpu.memory_space<smem>>
    %1180 = vector.broadcast %1179 : f32 to vector<65x66xf32>
    %1181 = arith.mulf %1180, %1178 : vector<65x66xf32>
    %1182 = arith.addf %1176, %1181 : vector<65x66xf32>
    %c2_600 = arith.constant 2 : index
    %c2_601 = arith.constant 2 : index
    %c0_602 = arith.constant 0 : index
    %1183 = vector.load %arg2[%c2_600, %c2_601, %c0_602] : memref<3x67x68xf32, #tpu.memory_space<vmem>>, vector<1x65x66xf32>
    %1184 = vector.shape_cast %1183 : vector<1x65x66xf32> to vector<65x66xf32>
    %c186 = arith.constant 186 : index
    %1185 = memref.load %arg0[%c186] : memref<216xf32, #tpu.memory_space<smem>>
    %1186 = vector.broadcast %1185 : f32 to vector<65x66xf32>
    %1187 = arith.mulf %1186, %1184 : vector<65x66xf32>
    %1188 = arith.addf %1182, %1187 : vector<65x66xf32>
    %c2_603 = arith.constant 2 : index
    %c2_604 = arith.constant 2 : index
    %c1_605 = arith.constant 1 : index
    %1189 = vector.load %arg2[%c2_603, %c2_604, %c1_605] : memref<3x67x68xf32, #tpu.memory_space<vmem>>, vector<1x65x66xf32>
    %1190 = vector.shape_cast %1189 : vector<1x65x66xf32> to vector<65x66xf32>
    %c187 = arith.constant 187 : index
    %1191 = memref.load %arg0[%c187] : memref<216xf32, #tpu.memory_space<smem>>
    %1192 = vector.broadcast %1191 : f32 to vector<65x66xf32>
    %1193 = arith.mulf %1192, %1190 : vector<65x66xf32>
    %1194 = arith.addf %1188, %1193 : vector<65x66xf32>
    %c2_606 = arith.constant 2 : index
    %c2_607 = arith.constant 2 : index
    %c2_608 = arith.constant 2 : index
    %1195 = vector.load %arg2[%c2_606, %c2_607, %c2_608] : memref<3x67x68xf32, #tpu.memory_space<vmem>>, vector<1x65x66xf32>
    %1196 = vector.shape_cast %1195 : vector<1x65x66xf32> to vector<65x66xf32>
    %c188 = arith.constant 188 : index
    %1197 = memref.load %arg0[%c188] : memref<216xf32, #tpu.memory_space<smem>>
    %1198 = vector.broadcast %1197 : f32 to vector<65x66xf32>
    %1199 = arith.mulf %1198, %1196 : vector<65x66xf32>
    %1200 = arith.addf %1194, %1199 : vector<65x66xf32>
    %c6_609 = arith.constant 6 : index
    %1201 = memref.load %arg1[%c6_609] : memref<8xf32, #tpu.memory_space<smem>>
    %1202 = vector.broadcast %1201 : f32 to vector<65x66xf32>
    %1203 = arith.addf %1200, %1202 : vector<65x66xf32>
    %cst_610 = arith.constant 2.000000e+00 : f32
    %1204 = vector.broadcast %cst_610 : f32 to vector<65x66xf32>
    %1205 = arith.mulf %1204, %1203 : vector<65x66xf32>
    %cst_611 = arith.constant 0.000000e+00 : f32
    %1206 = vector.broadcast %cst_611 : f32 to vector<65x66xf32>
    %1207 = arith.maximumf %1205, %1206 : vector<65x66xf32>
    %c6_612 = arith.constant 6 : index
    %c0_613 = arith.constant 0 : index
    %c0_614 = arith.constant 0 : index
    %1208 = vector.load %arg3[%c6_612, %c0_613, %c0_614] : memref<8x65x66xf32, #tpu.memory_space<vmem>>, vector<1x65x66xf32>
    %1209 = vector.shape_cast %1208 : vector<1x65x66xf32> to vector<65x66xf32>
    %1210 = vector.shape_cast %1207 : vector<65x66xf32> to vector<1x65x66xf32>
    tpu.vector_store %arg3[%c6_612, %c0_613, %c0_614], %1210 {strides = array<i32>} : memref<8x65x66xf32, #tpu.memory_space<vmem>>, vector<1x65x66xf32>,
    %cst_615 = arith.constant 0.000000e+00 : f32
    %1211 = vector.broadcast %cst_615 : f32 to vector<65x66xf32>
    %c0_616 = arith.constant 0 : index
    %c0_617 = arith.constant 0 : index
    %c0_618 = arith.constant 0 : index
    %1212 = vector.load %arg2[%c0_616, %c0_617, %c0_618] : memref<3x67x68xf32, #tpu.memory_space<vmem>>, vector<1x65x66xf32>
    %1213 = vector.shape_cast %1212 : vector<1x65x66xf32> to vector<65x66xf32>
    %c189 = arith.constant 189 : index
    %1214 = memref.load %arg0[%c189] : memref<216xf32, #tpu.memory_space<smem>>
    %1215 = vector.broadcast %1214 : f32 to vector<65x66xf32>
    %1216 = arith.mulf %1215, %1213 : vector<65x66xf32>
    %1217 = arith.addf %1211, %1216 : vector<65x66xf32>
    %c0_619 = arith.constant 0 : index
    %c0_620 = arith.constant 0 : index
    %c1_621 = arith.constant 1 : index
    %1218 = vector.load %arg2[%c0_619, %c0_620, %c1_621] : memref<3x67x68xf32, #tpu.memory_space<vmem>>, vector<1x65x66xf32>
    %1219 = vector.shape_cast %1218 : vector<1x65x66xf32> to vector<65x66xf32>
    %c190 = arith.constant 190 : index
    %1220 = memref.load %arg0[%c190] : memref<216xf32, #tpu.memory_space<smem>>
    %1221 = vector.broadcast %1220 : f32 to vector<65x66xf32>
    %1222 = arith.mulf %1221, %1219 : vector<65x66xf32>
    %1223 = arith.addf %1217, %1222 : vector<65x66xf32>
    %c0_622 = arith.constant 0 : index
    %c0_623 = arith.constant 0 : index
    %c2_624 = arith.constant 2 : index
    %1224 = vector.load %arg2[%c0_622, %c0_623, %c2_624] : memref<3x67x68xf32, #tpu.memory_space<vmem>>, vector<1x65x66xf32>
    %1225 = vector.shape_cast %1224 : vector<1x65x66xf32> to vector<65x66xf32>
    %c191 = arith.constant 191 : index
    %1226 = memref.load %arg0[%c191] : memref<216xf32, #tpu.memory_space<smem>>
    %1227 = vector.broadcast %1226 : f32 to vector<65x66xf32>
    %1228 = arith.mulf %1227, %1225 : vector<65x66xf32>
    %1229 = arith.addf %1223, %1228 : vector<65x66xf32>
    %c0_625 = arith.constant 0 : index
    %c1_626 = arith.constant 1 : index
    %c0_627 = arith.constant 0 : index
    %1230 = vector.load %arg2[%c0_625, %c1_626, %c0_627] : memref<3x67x68xf32, #tpu.memory_space<vmem>>, vector<1x65x66xf32>
    %1231 = vector.shape_cast %1230 : vector<1x65x66xf32> to vector<65x66xf32>
    %c192 = arith.constant 192 : index
    %1232 = memref.load %arg0[%c192] : memref<216xf32, #tpu.memory_space<smem>>
    %1233 = vector.broadcast %1232 : f32 to vector<65x66xf32>
    %1234 = arith.mulf %1233, %1231 : vector<65x66xf32>
    %1235 = arith.addf %1229, %1234 : vector<65x66xf32>
    %c0_628 = arith.constant 0 : index
    %c1_629 = arith.constant 1 : index
    %c1_630 = arith.constant 1 : index
    %1236 = vector.load %arg2[%c0_628, %c1_629, %c1_630] : memref<3x67x68xf32, #tpu.memory_space<vmem>>, vector<1x65x66xf32>
    %1237 = vector.shape_cast %1236 : vector<1x65x66xf32> to vector<65x66xf32>
    %c193 = arith.constant 193 : index
    %1238 = memref.load %arg0[%c193] : memref<216xf32, #tpu.memory_space<smem>>
    %1239 = vector.broadcast %1238 : f32 to vector<65x66xf32>
    %1240 = arith.mulf %1239, %1237 : vector<65x66xf32>
    %1241 = arith.addf %1235, %1240 : vector<65x66xf32>
    %c0_631 = arith.constant 0 : index
    %c1_632 = arith.constant 1 : index
    %c2_633 = arith.constant 2 : index
    %1242 = vector.load %arg2[%c0_631, %c1_632, %c2_633] : memref<3x67x68xf32, #tpu.memory_space<vmem>>, vector<1x65x66xf32>
    %1243 = vector.shape_cast %1242 : vector<1x65x66xf32> to vector<65x66xf32>
    %c194 = arith.constant 194 : index
    %1244 = memref.load %arg0[%c194] : memref<216xf32, #tpu.memory_space<smem>>
    %1245 = vector.broadcast %1244 : f32 to vector<65x66xf32>
    %1246 = arith.mulf %1245, %1243 : vector<65x66xf32>
    %1247 = arith.addf %1241, %1246 : vector<65x66xf32>
    %c0_634 = arith.constant 0 : index
    %c2_635 = arith.constant 2 : index
    %c0_636 = arith.constant 0 : index
    %1248 = vector.load %arg2[%c0_634, %c2_635, %c0_636] : memref<3x67x68xf32, #tpu.memory_space<vmem>>, vector<1x65x66xf32>
    %1249 = vector.shape_cast %1248 : vector<1x65x66xf32> to vector<65x66xf32>
    %c195 = arith.constant 195 : index
    %1250 = memref.load %arg0[%c195] : memref<216xf32, #tpu.memory_space<smem>>
    %1251 = vector.broadcast %1250 : f32 to vector<65x66xf32>
    %1252 = arith.mulf %1251, %1249 : vector<65x66xf32>
    %1253 = arith.addf %1247, %1252 : vector<65x66xf32>
    %c0_637 = arith.constant 0 : index
    %c2_638 = arith.constant 2 : index
    %c1_639 = arith.constant 1 : index
    %1254 = vector.load %arg2[%c0_637, %c2_638, %c1_639] : memref<3x67x68xf32, #tpu.memory_space<vmem>>, vector<1x65x66xf32>
    %1255 = vector.shape_cast %1254 : vector<1x65x66xf32> to vector<65x66xf32>
    %c196 = arith.constant 196 : index
    %1256 = memref.load %arg0[%c196] : memref<216xf32, #tpu.memory_space<smem>>
    %1257 = vector.broadcast %1256 : f32 to vector<65x66xf32>
    %1258 = arith.mulf %1257, %1255 : vector<65x66xf32>
    %1259 = arith.addf %1253, %1258 : vector<65x66xf32>
    %c0_640 = arith.constant 0 : index
    %c2_641 = arith.constant 2 : index
    %c2_642 = arith.constant 2 : index
    %1260 = vector.load %arg2[%c0_640, %c2_641, %c2_642] : memref<3x67x68xf32, #tpu.memory_space<vmem>>, vector<1x65x66xf32>
    %1261 = vector.shape_cast %1260 : vector<1x65x66xf32> to vector<65x66xf32>
    %c197 = arith.constant 197 : index
    %1262 = memref.load %arg0[%c197] : memref<216xf32, #tpu.memory_space<smem>>
    %1263 = vector.broadcast %1262 : f32 to vector<65x66xf32>
    %1264 = arith.mulf %1263, %1261 : vector<65x66xf32>
    %1265 = arith.addf %1259, %1264 : vector<65x66xf32>
    %c1_643 = arith.constant 1 : index
    %c0_644 = arith.constant 0 : index
    %c0_645 = arith.constant 0 : index
    %1266 = vector.load %arg2[%c1_643, %c0_644, %c0_645] : memref<3x67x68xf32, #tpu.memory_space<vmem>>, vector<1x65x66xf32>
    %1267 = vector.shape_cast %1266 : vector<1x65x66xf32> to vector<65x66xf32>
    %c198 = arith.constant 198 : index
    %1268 = memref.load %arg0[%c198] : memref<216xf32, #tpu.memory_space<smem>>
    %1269 = vector.broadcast %1268 : f32 to vector<65x66xf32>
    %1270 = arith.mulf %1269, %1267 : vector<65x66xf32>
    %1271 = arith.addf %1265, %1270 : vector<65x66xf32>
    %c1_646 = arith.constant 1 : index
    %c0_647 = arith.constant 0 : index
    %c1_648 = arith.constant 1 : index
    %1272 = vector.load %arg2[%c1_646, %c0_647, %c1_648] : memref<3x67x68xf32, #tpu.memory_space<vmem>>, vector<1x65x66xf32>
    %1273 = vector.shape_cast %1272 : vector<1x65x66xf32> to vector<65x66xf32>
    %c199 = arith.constant 199 : index
    %1274 = memref.load %arg0[%c199] : memref<216xf32, #tpu.memory_space<smem>>
    %1275 = vector.broadcast %1274 : f32 to vector<65x66xf32>
    %1276 = arith.mulf %1275, %1273 : vector<65x66xf32>
    %1277 = arith.addf %1271, %1276 : vector<65x66xf32>
    %c1_649 = arith.constant 1 : index
    %c0_650 = arith.constant 0 : index
    %c2_651 = arith.constant 2 : index
    %1278 = vector.load %arg2[%c1_649, %c0_650, %c2_651] : memref<3x67x68xf32, #tpu.memory_space<vmem>>, vector<1x65x66xf32>
    %1279 = vector.shape_cast %1278 : vector<1x65x66xf32> to vector<65x66xf32>
    %c200 = arith.constant 200 : index
    %1280 = memref.load %arg0[%c200] : memref<216xf32, #tpu.memory_space<smem>>
    %1281 = vector.broadcast %1280 : f32 to vector<65x66xf32>
    %1282 = arith.mulf %1281, %1279 : vector<65x66xf32>
    %1283 = arith.addf %1277, %1282 : vector<65x66xf32>
    %c1_652 = arith.constant 1 : index
    %c1_653 = arith.constant 1 : index
    %c0_654 = arith.constant 0 : index
    %1284 = vector.load %arg2[%c1_652, %c1_653, %c0_654] : memref<3x67x68xf32, #tpu.memory_space<vmem>>, vector<1x65x66xf32>
    %1285 = vector.shape_cast %1284 : vector<1x65x66xf32> to vector<65x66xf32>
    %c201 = arith.constant 201 : index
    %1286 = memref.load %arg0[%c201] : memref<216xf32, #tpu.memory_space<smem>>
    %1287 = vector.broadcast %1286 : f32 to vector<65x66xf32>
    %1288 = arith.mulf %1287, %1285 : vector<65x66xf32>
    %1289 = arith.addf %1283, %1288 : vector<65x66xf32>
    %c1_655 = arith.constant 1 : index
    %c1_656 = arith.constant 1 : index
    %c1_657 = arith.constant 1 : index
    %1290 = vector.load %arg2[%c1_655, %c1_656, %c1_657] : memref<3x67x68xf32, #tpu.memory_space<vmem>>, vector<1x65x66xf32>
    %1291 = vector.shape_cast %1290 : vector<1x65x66xf32> to vector<65x66xf32>
    %c202 = arith.constant 202 : index
    %1292 = memref.load %arg0[%c202] : memref<216xf32, #tpu.memory_space<smem>>
    %1293 = vector.broadcast %1292 : f32 to vector<65x66xf32>
    %1294 = arith.mulf %1293, %1291 : vector<65x66xf32>
    %1295 = arith.addf %1289, %1294 : vector<65x66xf32>
    %c1_658 = arith.constant 1 : index
    %c1_659 = arith.constant 1 : index
    %c2_660 = arith.constant 2 : index
    %1296 = vector.load %arg2[%c1_658, %c1_659, %c2_660] : memref<3x67x68xf32, #tpu.memory_space<vmem>>, vector<1x65x66xf32>
    %1297 = vector.shape_cast %1296 : vector<1x65x66xf32> to vector<65x66xf32>
    %c203 = arith.constant 203 : index
    %1298 = memref.load %arg0[%c203] : memref<216xf32, #tpu.memory_space<smem>>
    %1299 = vector.broadcast %1298 : f32 to vector<65x66xf32>
    %1300 = arith.mulf %1299, %1297 : vector<65x66xf32>
    %1301 = arith.addf %1295, %1300 : vector<65x66xf32>
    %c1_661 = arith.constant 1 : index
    %c2_662 = arith.constant 2 : index
    %c0_663 = arith.constant 0 : index
    %1302 = vector.load %arg2[%c1_661, %c2_662, %c0_663] : memref<3x67x68xf32, #tpu.memory_space<vmem>>, vector<1x65x66xf32>
    %1303 = vector.shape_cast %1302 : vector<1x65x66xf32> to vector<65x66xf32>
    %c204 = arith.constant 204 : index
    %1304 = memref.load %arg0[%c204] : memref<216xf32, #tpu.memory_space<smem>>
    %1305 = vector.broadcast %1304 : f32 to vector<65x66xf32>
    %1306 = arith.mulf %1305, %1303 : vector<65x66xf32>
    %1307 = arith.addf %1301, %1306 : vector<65x66xf32>
    %c1_664 = arith.constant 1 : index
    %c2_665 = arith.constant 2 : index
    %c1_666 = arith.constant 1 : index
    %1308 = vector.load %arg2[%c1_664, %c2_665, %c1_666] : memref<3x67x68xf32, #tpu.memory_space<vmem>>, vector<1x65x66xf32>
    %1309 = vector.shape_cast %1308 : vector<1x65x66xf32> to vector<65x66xf32>
    %c205 = arith.constant 205 : index
    %1310 = memref.load %arg0[%c205] : memref<216xf32, #tpu.memory_space<smem>>
    %1311 = vector.broadcast %1310 : f32 to vector<65x66xf32>
    %1312 = arith.mulf %1311, %1309 : vector<65x66xf32>
    %1313 = arith.addf %1307, %1312 : vector<65x66xf32>
    %c1_667 = arith.constant 1 : index
    %c2_668 = arith.constant 2 : index
    %c2_669 = arith.constant 2 : index
    %1314 = vector.load %arg2[%c1_667, %c2_668, %c2_669] : memref<3x67x68xf32, #tpu.memory_space<vmem>>, vector<1x65x66xf32>
    %1315 = vector.shape_cast %1314 : vector<1x65x66xf32> to vector<65x66xf32>
    %c206 = arith.constant 206 : index
    %1316 = memref.load %arg0[%c206] : memref<216xf32, #tpu.memory_space<smem>>
    %1317 = vector.broadcast %1316 : f32 to vector<65x66xf32>
    %1318 = arith.mulf %1317, %1315 : vector<65x66xf32>
    %1319 = arith.addf %1313, %1318 : vector<65x66xf32>
    %c2_670 = arith.constant 2 : index
    %c0_671 = arith.constant 0 : index
    %c0_672 = arith.constant 0 : index
    %1320 = vector.load %arg2[%c2_670, %c0_671, %c0_672] : memref<3x67x68xf32, #tpu.memory_space<vmem>>, vector<1x65x66xf32>
    %1321 = vector.shape_cast %1320 : vector<1x65x66xf32> to vector<65x66xf32>
    %c207 = arith.constant 207 : index
    %1322 = memref.load %arg0[%c207] : memref<216xf32, #tpu.memory_space<smem>>
    %1323 = vector.broadcast %1322 : f32 to vector<65x66xf32>
    %1324 = arith.mulf %1323, %1321 : vector<65x66xf32>
    %1325 = arith.addf %1319, %1324 : vector<65x66xf32>
    %c2_673 = arith.constant 2 : index
    %c0_674 = arith.constant 0 : index
    %c1_675 = arith.constant 1 : index
    %1326 = vector.load %arg2[%c2_673, %c0_674, %c1_675] : memref<3x67x68xf32, #tpu.memory_space<vmem>>, vector<1x65x66xf32>
    %1327 = vector.shape_cast %1326 : vector<1x65x66xf32> to vector<65x66xf32>
    %c208 = arith.constant 208 : index
    %1328 = memref.load %arg0[%c208] : memref<216xf32, #tpu.memory_space<smem>>
    %1329 = vector.broadcast %1328 : f32 to vector<65x66xf32>
    %1330 = arith.mulf %1329, %1327 : vector<65x66xf32>
    %1331 = arith.addf %1325, %1330 : vector<65x66xf32>
    %c2_676 = arith.constant 2 : index
    %c0_677 = arith.constant 0 : index
    %c2_678 = arith.constant 2 : index
    %1332 = vector.load %arg2[%c2_676, %c0_677, %c2_678] : memref<3x67x68xf32, #tpu.memory_space<vmem>>, vector<1x65x66xf32>
    %1333 = vector.shape_cast %1332 : vector<1x65x66xf32> to vector<65x66xf32>
    %c209 = arith.constant 209 : index
    %1334 = memref.load %arg0[%c209] : memref<216xf32, #tpu.memory_space<smem>>
    %1335 = vector.broadcast %1334 : f32 to vector<65x66xf32>
    %1336 = arith.mulf %1335, %1333 : vector<65x66xf32>
    %1337 = arith.addf %1331, %1336 : vector<65x66xf32>
    %c2_679 = arith.constant 2 : index
    %c1_680 = arith.constant 1 : index
    %c0_681 = arith.constant 0 : index
    %1338 = vector.load %arg2[%c2_679, %c1_680, %c0_681] : memref<3x67x68xf32, #tpu.memory_space<vmem>>, vector<1x65x66xf32>
    %1339 = vector.shape_cast %1338 : vector<1x65x66xf32> to vector<65x66xf32>
    %c210 = arith.constant 210 : index
    %1340 = memref.load %arg0[%c210] : memref<216xf32, #tpu.memory_space<smem>>
    %1341 = vector.broadcast %1340 : f32 to vector<65x66xf32>
    %1342 = arith.mulf %1341, %1339 : vector<65x66xf32>
    %1343 = arith.addf %1337, %1342 : vector<65x66xf32>
    %c2_682 = arith.constant 2 : index
    %c1_683 = arith.constant 1 : index
    %c1_684 = arith.constant 1 : index
    %1344 = vector.load %arg2[%c2_682, %c1_683, %c1_684] : memref<3x67x68xf32, #tpu.memory_space<vmem>>, vector<1x65x66xf32>
    %1345 = vector.shape_cast %1344 : vector<1x65x66xf32> to vector<65x66xf32>
    %c211 = arith.constant 211 : index
    %1346 = memref.load %arg0[%c211] : memref<216xf32, #tpu.memory_space<smem>>
    %1347 = vector.broadcast %1346 : f32 to vector<65x66xf32>
    %1348 = arith.mulf %1347, %1345 : vector<65x66xf32>
    %1349 = arith.addf %1343, %1348 : vector<65x66xf32>
    %c2_685 = arith.constant 2 : index
    %c1_686 = arith.constant 1 : index
    %c2_687 = arith.constant 2 : index
    %1350 = vector.load %arg2[%c2_685, %c1_686, %c2_687] : memref<3x67x68xf32, #tpu.memory_space<vmem>>, vector<1x65x66xf32>
    %1351 = vector.shape_cast %1350 : vector<1x65x66xf32> to vector<65x66xf32>
    %c212 = arith.constant 212 : index
    %1352 = memref.load %arg0[%c212] : memref<216xf32, #tpu.memory_space<smem>>
    %1353 = vector.broadcast %1352 : f32 to vector<65x66xf32>
    %1354 = arith.mulf %1353, %1351 : vector<65x66xf32>
    %1355 = arith.addf %1349, %1354 : vector<65x66xf32>
    %c2_688 = arith.constant 2 : index
    %c2_689 = arith.constant 2 : index
    %c0_690 = arith.constant 0 : index
    %1356 = vector.load %arg2[%c2_688, %c2_689, %c0_690] : memref<3x67x68xf32, #tpu.memory_space<vmem>>, vector<1x65x66xf32>
    %1357 = vector.shape_cast %1356 : vector<1x65x66xf32> to vector<65x66xf32>
    %c213 = arith.constant 213 : index
    %1358 = memref.load %arg0[%c213] : memref<216xf32, #tpu.memory_space<smem>>
    %1359 = vector.broadcast %1358 : f32 to vector<65x66xf32>
    %1360 = arith.mulf %1359, %1357 : vector<65x66xf32>
    %1361 = arith.addf %1355, %1360 : vector<65x66xf32>
    %c2_691 = arith.constant 2 : index
    %c2_692 = arith.constant 2 : index
    %c1_693 = arith.constant 1 : index
    %1362 = vector.load %arg2[%c2_691, %c2_692, %c1_693] : memref<3x67x68xf32, #tpu.memory_space<vmem>>, vector<1x65x66xf32>
    %1363 = vector.shape_cast %1362 : vector<1x65x66xf32> to vector<65x66xf32>
    %c214 = arith.constant 214 : index
    %1364 = memref.load %arg0[%c214] : memref<216xf32, #tpu.memory_space<smem>>
    %1365 = vector.broadcast %1364 : f32 to vector<65x66xf32>
    %1366 = arith.mulf %1365, %1363 : vector<65x66xf32>
    %1367 = arith.addf %1361, %1366 : vector<65x66xf32>
    %c2_694 = arith.constant 2 : index
    %c2_695 = arith.constant 2 : index
    %c2_696 = arith.constant 2 : index
    %1368 = vector.load %arg2[%c2_694, %c2_695, %c2_696] : memref<3x67x68xf32, #tpu.memory_space<vmem>>, vector<1x65x66xf32>
    %1369 = vector.shape_cast %1368 : vector<1x65x66xf32> to vector<65x66xf32>
    %c215 = arith.constant 215 : index
    %1370 = memref.load %arg0[%c215] : memref<216xf32, #tpu.memory_space<smem>>
    %1371 = vector.broadcast %1370 : f32 to vector<65x66xf32>
    %1372 = arith.mulf %1371, %1369 : vector<65x66xf32>
    %1373 = arith.addf %1367, %1372 : vector<65x66xf32>
    %c7_697 = arith.constant 7 : index
    %1374 = memref.load %arg1[%c7_697] : memref<8xf32, #tpu.memory_space<smem>>
    %1375 = vector.broadcast %1374 : f32 to vector<65x66xf32>
    %1376 = arith.addf %1373, %1375 : vector<65x66xf32>
    %cst_698 = arith.constant 2.000000e+00 : f32
    %1377 = vector.broadcast %cst_698 : f32 to vector<65x66xf32>
    %1378 = arith.mulf %1377, %1376 : vector<65x66xf32>
    %cst_699 = arith.constant 0.000000e+00 : f32
    %1379 = vector.broadcast %cst_699 : f32 to vector<65x66xf32>
    %1380 = arith.maximumf %1378, %1379 : vector<65x66xf32>
    %c7_700 = arith.constant 7 : index
    %c0_701 = arith.constant 0 : index
    %c0_702 = arith.constant 0 : index
    %1381 = vector.load %arg3[%c7_700, %c0_701, %c0_702] : memref<8x65x66xf32, #tpu.memory_space<vmem>>, vector<1x65x66xf32>
    %1382 = vector.shape_cast %1381 : vector<1x65x66xf32> to vector<65x66xf32>
    %1383 = vector.shape_cast %1380 : vector<65x66xf32> to vector<1x65x66xf32>
    tpu.vector_store %arg3[%c7_700, %c0_701, %c0_702], %1383 {strides = array<i32>} : memref<8x65x66xf32, #tpu.memory_space<vmem>>, vector<1x65x66xf32>,
    return
  }
}

</mosaic_0001>

<llo_original>
// kernel: _conv_double_relu_impl.1
$region0: #{_conv_double_relu_impl.1}
  #allocation0 [shape = 'u32[]', space=smem, size = 0x4, offset = 0x4, fixed_abs, tag = 'smem constant byte address 0x4 - core index']
  #allocation1 [shape = 'u32[144,128]{1,0:T(1,128)}', space=vmem, size = 0x12000, scoped, tag = 'internal scratch']
  %s0 = inlined_call_operand.vmem [shape: f32[216], index: 0, kind: input, shape index: {}]
  %s1 = inlined_call_operand.vmem [shape: f32[8], index: 1, kind: input, shape index: {}]
  %s2 = inlined_call_operand.vmem [shape: f32[3,67,68], index: 2, kind: input, shape index: {}]
  %s3 = inlined_call_operand.vmem [shape: f32[8,65,66], index: 3, kind: output, shape index: {}]
  %s4 = sld [smem:[#allocation0]]
  $region30: #{_conv_double_relu_impl.1} parent=0
    _
  %s6 = ssub.s32 1, %s4
  %s7 = scalar_select 0, %s6, %s4
  $region1: #{_conv_double_relu_impl.1} parent=0
    #allocation2 [shape = 'u8[1024]{0}', space=smem, size = 0x400, scoped, tag = 'input window, operand 0, single buffered']
    #allocation3 [shape = 's32[1]{0}', space=sflag, size = 0x4, scoped, tag = 'scoped memory for _conv_double_relu_impl.1']
    #allocation4 [shape = 'u8[512]{0}', space=smem, size = 0x200, scoped, tag = 'input window, operand 1, single buffered']
    #allocation5 [shape = 's32[1]{0}', space=sflag, size = 0x4, scoped, tag = 'scoped memory for _conv_double_relu_impl.1']
    %8 = vsyncpa [#allocation3], 0
    %9 = vsyncpa [#allocation5], 0
    // Predicated region
    $region2: #{_conv_double_relu_impl.1} parent=1 // pred_check
      _
    $region3: #{_conv_double_relu_impl.1} parent=1 // pred_check_branch
      %11 = sbr.rel (0) target = $region5
    $region4: #{_conv_double_relu_impl.1} parent=1 // pred_region
      %s13 = ssub.s32 32, 32
      %14 = vsyncadd [#allocation3], %s13
      %s16 = sshll.u32 %s0, 4
      %s17 = int_to_ptr.vmem [resolvable:$true] %s16
      %19 = dma.vmem_to_smem %s17, 32, [#allocation2], [#allocation3]
    $region5: #{_conv_double_relu_impl.1} parent=1 // pred_fallthru
      _
    // Predicated region
    $region6: #{_conv_double_relu_impl.1} parent=1 // pred_check
      _
    $region7: #{_conv_double_relu_impl.1} parent=1 // pred_check_branch
      %21 = sbr.rel (0) target = $region9
    $region8: #{_conv_double_relu_impl.1} parent=1 // pred_region
      %s23 = ssub.s32 16, 16
      %24 = vsyncadd [#allocation5], %s23
      %s26 = sshll.u32 %s1, 4
      %s27 = int_to_ptr.vmem [resolvable:$true] %s26
      %29 = dma.vmem_to_smem %s27, 16, [#allocation4], [#allocation5]
    $region9: #{_conv_double_relu_impl.1} parent=1 // pred_fallthru
      _
    // Predicated region
    $region10: #{_conv_double_relu_impl.1} parent=1 // pred_check
      _
    $region11: #{_conv_double_relu_impl.1} parent=1 // pred_check_branch
      %31 = sbr.rel (0) target = $region13
    $region12: #{_conv_double_relu_impl.1} parent=1 // pred_region
      _
    $region13: #{_conv_double_relu_impl.1} parent=1 // pred_fallthru
      _
    // Predicated region
    $region14: #{_conv_double_relu_impl.1} parent=1 // pred_check
      _
    $region15: #{_conv_double_relu_impl.1} parent=1 // pred_check_branch
      %33 = sbr.rel (0) target = $region17
    $region16: #{_conv_double_relu_impl.1} parent=1 // pred_region
      %34 = dma.done [#allocation3], 32
    $region17: #{_conv_double_relu_impl.1} parent=1 // pred_fallthru
      _
    // Predicated region
    $region18: #{_conv_double_relu_impl.1} parent=1 // pred_check
      _
    $region19: #{_conv_double_relu_impl.1} parent=1 // pred_check_branch
      %36 = sbr.rel (0) target = $region21
    $region20: #{_conv_double_relu_impl.1} parent=1 // pred_region
      %37 = dma.done [#allocation5], 16
    $region21: #{_conv_double_relu_impl.1} parent=1 // pred_fallthru
      _
    %38 = sfence
    %v39 = vld [vmem:[%s2] sm:$0xff]
    %v40 = vld [vmem:[%s2 + $0x8] sm:$0xff]
    %v41 = vld [vmem:[%s2 + $0x10] sm:$0xff]
    %v42 = vld [vmem:[%s2 + $0x18] sm:$0xff]
    %v43 = vld [vmem:[%s2 + $0x20] sm:$0xff]
    %v44 = vld [vmem:[%s2 + $0x28] sm:$0xff]
    %v45 = vld [vmem:[%s2 + $0x30] sm:$0xff]
    %v46 = vld [vmem:[%s2 + $0x38] sm:$0xff]
    %v47 = vld [vmem:[%s2 + $0x40] sm:$0x1]
    %s48 = sld [smem:[#allocation2]]
    %v49 = vstv %s48
    %v50 = vmul.f32 %v49, %v39
    %v51 = vmul.f32 %v49, %v40
    %v52 = vmul.f32 %v49, %v41
    %v53 = vmul.f32 %v49, %v42
    %v54 = vmul.f32 %v49, %v43
    %v55 = vmul.f32 %v49, %v44
    %v56 = vmul.f32 %v49, %v45
    %v57 = vmul.f32 %v49, %v46
    %v58 = vmul.f32 %v49, %v47
    %v59 = vadd.f32 %v50, 0.0
    %v60 = vadd.f32 %v51, 0.0
    %v61 = vadd.f32 %v52, 0.0
    %v62 = vadd.f32 %v53, 0.0
    %v63 = vadd.f32 %v54, 0.0
    %v64 = vadd.f32 %v55, 0.0
    %v65 = vadd.f32 %v56, 0.0
    %v66 = vadd.f32 %v57, 0.0
    %v67 = vadd.f32 %v58, 0.0
    %s68 = sld [smem:[#allocation2 + $0x1]]
    %v69 = vstv %s68
    %v70 = vmul.f32 %v69, %v39
    %v71 = vmul.f32 %v69, %v40
    %v72 = vmul.f32 %v69, %v41
    %v73 = vmul.f32 %v69, %v42
    %v74 = vmul.f32 %v69, %v43
    %v75 = vmul.f32 %v69, %v44
    %v76 = vmul.f32 %v69, %v45
    %v77 = vmul.f32 %v69, %v46
    %v78 = vmul.f32 %v69, %v47
    %88 = vrot.lane.b32.xlu0 %v70, 127
    %v89 = vpop.permute.xlu0 %88
    %90 = vrot.lane.b32.xlu0 %v71, 127
    %v91 = vpop.permute.xlu0 %90
    %92 = vrot.lane.b32.xlu0 %v72, 127
    %v93 = vpop.permute.xlu0 %92
    %94 = vrot.lane.b32.xlu0 %v73, 127
    %v95 = vpop.permute.xlu0 %94
    %96 = vrot.lane.b32.xlu0 %v74, 127
    %v97 = vpop.permute.xlu0 %96
    %98 = vrot.lane.b32.xlu0 %v75, 127
    %v99 = vpop.permute.xlu0 %98
    %100 = vrot.lane.b32.xlu0 %v76, 127
    %v101 = vpop.permute.xlu0 %100
    %102 = vrot.lane.b32.xlu0 %v77, 127
    %v103 = vpop.permute.xlu0 %102
    %104 = vrot.lane.b32.xlu0 %v78, 127
    %v105 = vpop.permute.xlu0 %104
    %v115 = vadd.f32 %v59, %v89
    %v116 = vadd.f32 %v60, %v91
    %v117 = vadd.f32 %v61, %v93
    %v118 = vadd.f32 %v62, %v95
    %v119 = vadd.f32 %v63, %v97
    %v120 = vadd.f32 %v64, %v99
    %v121 = vadd.f32 %v65, %v101
    %v122 = vadd.f32 %v66, %v103
    %v123 = vadd.f32 %v67, %v105
    %s124 = sld [smem:[#allocation2 + $0x2]]
    %v125 = vstv %s124
    %v126 = vmul.f32 %v125, %v39
    %v127 = vmul.f32 %v125, %v40
    %v128 = vmul.f32 %v125, %v41
    %v129 = vmul.f32 %v125, %v42
    %v130 = vmul.f32 %v125, %v43
    %v131 = vmul.f32 %v125, %v44
    %v132 = vmul.f32 %v125, %v45
    %v133 = vmul.f32 %v125, %v46
    %v134 = vmul.f32 %v125, %v47
    %144 = vrot.lane.b32.xlu0 %v126, 126
    %v145 = vpop.permute.xlu0 %144
    %146 = vrot.lane.b32.xlu0 %v127, 126
    %v147 = vpop.permute.xlu0 %146
    %148 = vrot.lane.b32.xlu0 %v128, 126
    %v149 = vpop.permute.xlu0 %148
    %150 = vrot.lane.b32.xlu0 %v129, 126
    %v151 = vpop.permute.xlu0 %150
    %152 = vrot.lane.b32.xlu0 %v130, 126
    %v153 = vpop.permute.xlu0 %152
    %154 = vrot.lane.b32.xlu0 %v131, 126
    %v155 = vpop.permute.xlu0 %154
    %156 = vrot.lane.b32.xlu0 %v132, 126
    %v157 = vpop.permute.xlu0 %156
    %158 = vrot.lane.b32.xlu0 %v133, 126
    %v159 = vpop.permute.xlu0 %158
    %160 = vrot.lane.b32.xlu0 %v134, 126
    %v161 = vpop.permute.xlu0 %160
    %v171 = vadd.f32 %v115, %v145
    %v172 = vadd.f32 %v116, %v147
    %v173 = vadd.f32 %v117, %v149
    %v174 = vadd.f32 %v118, %v151
    %v175 = vadd.f32 %v119, %v153
    %v176 = vadd.f32 %v120, %v155
    %v177 = vadd.f32 %v121, %v157
    %v178 = vadd.f32 %v122, %v159
    %v179 = vadd.f32 %v123, %v161
    %v180 = vld [vmem:[%s2 + $0x1] sm:$0xff]
    %v181 = vld [vmem:[%s2 + $0x9] sm:$0xff]
    %v182 = vld [vmem:[%s2 + $0x11] sm:$0xff]
    %v183 = vld [vmem:[%s2 + $0x19] sm:$0xff]
    %v184 = vld [vmem:[%s2 + $0x21] sm:$0xff]
    %v185 = vld [vmem:[%s2 + $0x29] sm:$0xff]
    %v186 = vld [vmem:[%s2 + $0x31] sm:$0xff]
    %v187 = vld [vmem:[%s2 + $0x39] sm:$0xff]
    %v188 = vld [vmem:[%s2 + $0x41] sm:$0x1]
    %s189 = sld [smem:[#allocation2 + $0x3]]
    %v190 = vstv %s189
    %v191 = vmul.f32 %v190, %v180
    %v192 = vmul.f32 %v190, %v181
    %v193 = vmul.f32 %v190, %v182
    %v194 = vmul.f32 %v190, %v183
    %v195 = vmul.f32 %v190, %v184
    %v196 = vmul.f32 %v190, %v185
    %v197 = vmul.f32 %v190, %v186
    %v198 = vmul.f32 %v190, %v187
    %v199 = vmul.f32 %v190, %v188
    %v200 = vadd.f32 %v171, %v191
    %v201 = vadd.f32 %v172, %v192
    %v202 = vadd.f32 %v173, %v193
    %v203 = vadd.f32 %v174, %v194
    %v204 = vadd.f32 %v175, %v195
    %v205 = vadd.f32 %v176, %v196
    %v206 = vadd.f32 %v177, %v197
    %v207 = vadd.f32 %v178, %v198
    %v208 = vadd.f32 %v179, %v199
    %s209 = sld [smem:[#allocation2 + $0x4]]
    %v210 = vstv %s209
    %v211 = vmul.f32 %v210, %v180
    %v212 = vmul.f32 %v210, %v181
    %v213 = vmul.f32 %v210, %v182
    %v214 = vmul.f32 %v210, %v183
    %v215 = vmul.f32 %v210, %v184
    %v216 = vmul.f32 %v210, %v185
    %v217 = vmul.f32 %v210, %v186
    %v218 = vmul.f32 %v210, %v187
    %v219 = vmul.f32 %v210, %v188
    %229 = vrot.lane.b32.xlu0 %v211, 127
    %v230 = vpop.permute.xlu0 %229
    %231 = vrot.lane.b32.xlu0 %v212, 127
    %v232 = vpop.permute.xlu0 %231
    %233 = vrot.lane.b32.xlu0 %v213, 127
    %v234 = vpop.permute.xlu0 %233
    %235 = vrot.lane.b32.xlu0 %v214, 127
    %v236 = vpop.permute.xlu0 %235
    %237 = vrot.lane.b32.xlu0 %v215, 127
    %v238 = vpop.permute.xlu0 %237
    %239 = vrot.lane.b32.xlu0 %v216, 127
    %v240 = vpop.permute.xlu0 %239
    %241 = vrot.lane.b32.xlu0 %v217, 127
    %v242 = vpop.permute.xlu0 %241
    %243 = vrot.lane.b32.xlu0 %v218, 127
    %v244 = vpop.permute.xlu0 %243
    %245 = vrot.lane.b32.xlu0 %v219, 127
    %v246 = vpop.permute.xlu0 %245
    %v256 = vadd.f32 %v200, %v230
    %v257 = vadd.f32 %v201, %v232
    %v258 = vadd.f32 %v202, %v234
    %v259 = vadd.f32 %v203, %v236
    %v260 = vadd.f32 %v204, %v238
    %v261 = vadd.f32 %v205, %v240
    %v262 = vadd.f32 %v206, %v242
    %v263 = vadd.f32 %v207, %v244
    %v264 = vadd.f32 %v208, %v246
    %s265 = sld [smem:[#allocation2 + $0x5]]
    %v266 = vstv %s265
    %v267 = vmul.f32 %v266, %v180
    %v268 = vmul.f32 %v266, %v181
    %v269 = vmul.f32 %v266, %v182
    %v270 = vmul.f32 %v266, %v183
    %v271 = vmul.f32 %v266, %v184
    %v272 = vmul.f32 %v266, %v185
    %v273 = vmul.f32 %v266, %v186
    %v274 = vmul.f32 %v266, %v187
    %v275 = vmul.f32 %v266, %v188
    %285 = vrot.lane.b32.xlu0 %v267, 126
    %v286 = vpop.permute.xlu0 %285
    %287 = vrot.lane.b32.xlu0 %v268, 126
    %v288 = vpop.permute.xlu0 %287
    %289 = vrot.lane.b32.xlu0 %v269, 126
    %v290 = vpop.permute.xlu0 %289
    %291 = vrot.lane.b32.xlu0 %v270, 126
    %v292 = vpop.permute.xlu0 %291
    %293 = vrot.lane.b32.xlu0 %v271, 126
    %v294 = vpop.permute.xlu0 %293
    %295 = vrot.lane.b32.xlu0 %v272, 126
    %v296 = vpop.permute.xlu0 %295
    %297 = vrot.lane.b32.xlu0 %v273, 126
    %v298 = vpop.permute.xlu0 %297
    %299 = vrot.lane.b32.xlu0 %v274, 126
    %v300 = vpop.permute.xlu0 %299
    %301 = vrot.lane.b32.xlu0 %v275, 126
    %v302 = vpop.permute.xlu0 %301
    %v312 = vadd.f32 %v256, %v286
    %v313 = vadd.f32 %v257, %v288
    %v314 = vadd.f32 %v258, %v290
    %v315 = vadd.f32 %v259, %v292
    %v316 = vadd.f32 %v260, %v294
    %v317 = vadd.f32 %v261, %v296
    %v318 = vadd.f32 %v262, %v298
    %v319 = vadd.f32 %v263, %v300
    %v320 = vadd.f32 %v264, %v302
    %v321 = vld [vmem:[%s2 + $0x2] sm:$0xff]
    %v322 = vld [vmem:[%s2 + $0xa] sm:$0xff]
    %v323 = vld [vmem:[%s2 + $0x12] sm:$0xff]
    %v324 = vld [vmem:[%s2 + $0x1a] sm:$0xff]
    %v325 = vld [vmem:[%s2 + $0x22] sm:$0xff]
    %v326 = vld [vmem:[%s2 + $0x2a] sm:$0xff]
    %v327 = vld [vmem:[%s2 + $0x32] sm:$0xff]
    %v328 = vld [vmem:[%s2 + $0x3a] sm:$0xff]
    %v329 = vld [vmem:[%s2 + $0x42] sm:$0x1]
    %s330 = sld [smem:[#allocation2 + $0x6]]
    %v331 = vstv %s330
    %v332 = vmul.f32 %v331, %v321
    %v333 = vmul.f32 %v331, %v322
    %v334 = vmul.f32 %v331, %v323
    %v335 = vmul.f32 %v331, %v324
    %v336 = vmul.f32 %v331, %v325
    %v337 = vmul.f32 %v331, %v326
    %v338 = vmul.f32 %v331, %v327
    %v339 = vmul.f32 %v331, %v328
    %v340 = vmul.f32 %v331, %v329
    %v341 = vadd.f32 %v312, %v332
    %v342 = vadd.f32 %v313, %v333
    %v343 = vadd.f32 %v314, %v334
    %v344 = vadd.f32 %v315, %v335
    %v345 = vadd.f32 %v316, %v336
    %v346 = vadd.f32 %v317, %v337
    %v347 = vadd.f32 %v318, %v338
    %v348 = vadd.f32 %v319, %v339
    %v349 = vadd.f32 %v320, %v340
    %s350 = sld [smem:[#allocation2 + $0x7]]
    %v351 = vstv %s350
    %v352 = vmul.f32 %v351, %v321
    %v353 = vmul.f32 %v351, %v322
    %v354 = vmul.f32 %v351, %v323
    %v355 = vmul.f32 %v351, %v324
    %v356 = vmul.f32 %v351, %v325
    %v357 = vmul.f32 %v351, %v326
    %v358 = vmul.f32 %v351, %v327
    %v359 = vmul.f32 %v351, %v328
    %v360 = vmul.f32 %v351, %v329
    %370 = vrot.lane.b32.xlu0 %v352, 127
    %v371 = vpop.permute.xlu0 %370
    %372 = vrot.lane.b32.xlu0 %v353, 127
    %v373 = vpop.permute.xlu0 %372
    %374 = vrot.lane.b32.xlu0 %v354, 127
    %v375 = vpop.permute.xlu0 %374
    %376 = vrot.lane.b32.xlu0 %v355, 127
    %v377 = vpop.permute.xlu0 %376
    %378 = vrot.lane.b32.xlu0 %v356, 127
    %v379 = vpop.permute.xlu0 %378
    %380 = vrot.lane.b32.xlu0 %v357, 127
    %v381 = vpop.permute.xlu0 %380
    %382 = vrot.lane.b32.xlu0 %v358, 127
    %v383 = vpop.permute.xlu0 %382
    %384 = vrot.lane.b32.xlu0 %v359, 127
    %v385 = vpop.permute.xlu0 %384
    %386 = vrot.lane.b32.xlu0 %v360, 127
    %v387 = vpop.permute.xlu0 %386
    %v397 = vadd.f32 %v341, %v371
    %v398 = vadd.f32 %v342, %v373
    %v399 = vadd.f32 %v343, %v375
    %v400 = vadd.f32 %v344, %v377
    %v401 = vadd.f32 %v345, %v379
    %v402 = vadd.f32 %v346, %v381
    %v403 = vadd.f32 %v347, %v383
    %v404 = vadd.f32 %v348, %v385
    %v405 = vadd.f32 %v349, %v387
    %s406 = sld [smem:[#allocation2 + $0x8]]
    %v407 = vstv %s406
    %v408 = vmul.f32 %v407, %v321
    %v409 = vmul.f32 %v407, %v322
    %v410 = vmul.f32 %v407, %v323
    %v411 = vmul.f32 %v407, %v324
    %v412 = vmul.f32 %v407, %v325
    %v413 = vmul.f32 %v407, %v326
    %v414 = vmul.f32 %v407, %v327
    %v415 = vmul.f32 %v407, %v328
    %v416 = vmul.f32 %v407, %v329
    %426 = vrot.lane.b32.xlu0 %v408, 126
    %v427 = vpop.permute.xlu0 %426
    %428 = vrot.lane.b32.xlu0 %v409, 126
    %v429 = vpop.permute.xlu0 %428
    %430 = vrot.lane.b32.xlu0 %v410, 126
    %v431 = vpop.permute.xlu0 %430
    %432 = vrot.lane.b32.xlu0 %v411, 126
    %v433 = vpop.permute.xlu0 %432
    %434 = vrot.lane.b32.xlu0 %v412, 126
    %v435 = vpop.permute.xlu0 %434
    %436 = vrot.lane.b32.xlu0 %v413, 126
    %v437 = vpop.permute.xlu0 %436
    %438 = vrot.lane.b32.xlu0 %v414, 126
    %v439 = vpop.permute.xlu0 %438
    %440 = vrot.lane.b32.xlu0 %v415, 126
    %v441 = vpop.permute.xlu0 %440
    %442 = vrot.lane.b32.xlu0 %v416, 126
    %v443 = vpop.permute.xlu0 %442
    %v453 = vadd.f32 %v397, %v427
    %v454 = vadd.f32 %v398, %v429
    %v455 = vadd.f32 %v399, %v431
    %v456 = vadd.f32 %v400, %v433
    %v457 = vadd.f32 %v401, %v435
    %v458 = vadd.f32 %v402, %v437
    %v459 = vadd.f32 %v403, %v439
    %v460 = vadd.f32 %v404, %v441
    %v461 = vadd.f32 %v405, %v443
    %s462 = scalar_lea.vmem %s2, 72
    %v463 = vld [vmem:[%s462] sm:$0xff]
    %v464 = vld [vmem:[%s462 + $0x8] sm:$0xff]
    %v465 = vld [vmem:[%s462 + $0x10] sm:$0xff]
    %v466 = vld [vmem:[%s462 + $0x18] sm:$0xff]
    %v467 = vld [vmem:[%s462 + $0x20] sm:$0xff]
    %v468 = vld [vmem:[%s462 + $0x28] sm:$0xff]
    %v469 = vld [vmem:[%s462 + $0x30] sm:$0xff]
    %v470 = vld [vmem:[%s462 + $0x38] sm:$0xff]
    %v471 = vld [vmem:[%s462 + $0x40] sm:$0x1]
    %s472 = sld [smem:[#allocation2 + $0x9]]
    %v473 = vstv %s472
    %v474 = vmul.f32 %v473, %v463
    %v475 = vmul.f32 %v473, %v464
    %v476 = vmul.f32 %v473, %v465
    %v477 = vmul.f32 %v473, %v466
    %v478 = vmul.f32 %v473, %v467
    %v479 = vmul.f32 %v473, %v468
    %v480 = vmul.f32 %v473, %v469
    %v481 = vmul.f32 %v473, %v470
    %v482 = vmul.f32 %v473, %v471
    %v483 = vadd.f32 %v453, %v474
    %v484 = vadd.f32 %v454, %v475
    %v485 = vadd.f32 %v455, %v476
    %v486 = vadd.f32 %v456, %v477
    %v487 = vadd.f32 %v457, %v478
    %v488 = vadd.f32 %v458, %v479
    %v489 = vadd.f32 %v459, %v480
    %v490 = vadd.f32 %v460, %v481
    %v491 = vadd.f32 %v461, %v482
    %s492 = sld [smem:[#allocation2 + $0xa]]
    %v493 = vstv %s492
    %v494 = vmul.f32 %v493, %v463
    %v495 = vmul.f32 %v493, %v464
    %v496 = vmul.f32 %v493, %v465
    %v497 = vmul.f32 %v493, %v466
    %v498 = vmul.f32 %v493, %v467
    %v499 = vmul.f32 %v493, %v468
    %v500 = vmul.f32 %v493, %v469
    %v501 = vmul.f32 %v493, %v470
    %v502 = vmul.f32 %v493, %v471
    %512 = vrot.lane.b32.xlu0 %v494, 127
    %v513 = vpop.permute.xlu0 %512
    %514 = vrot.lane.b32.xlu0 %v495, 127
    %v515 = vpop.permute.xlu0 %514
    %516 = vrot.lane.b32.xlu0 %v496, 127
    %v517 = vpop.permute.xlu0 %516
    %518 = vrot.lane.b32.xlu0 %v497, 127
    %v519 = vpop.permute.xlu0 %518
    %520 = vrot.lane.b32.xlu0 %v498, 127
    %v521 = vpop.permute.xlu0 %520
    %522 = vrot.lane.b32.xlu0 %v499, 127
    %v523 = vpop.permute.xlu0 %522
    %524 = vrot.lane.b32.xlu0 %v500, 127
    %v525 = vpop.permute.xlu0 %524
    %526 = vrot.lane.b32.xlu0 %v501, 127
    %v527 = vpop.permute.xlu0 %526
    %528 = vrot.lane.b32.xlu0 %v502, 127
    %v529 = vpop.permute.xlu0 %528
    %v539 = vadd.f32 %v483, %v513
    %v540 = vadd.f32 %v484, %v515
    %v541 = vadd.f32 %v485, %v517
    %v542 = vadd.f32 %v486, %v519
    %v543 = vadd.f32 %v487, %v521
    %v544 = vadd.f32 %v488, %v523
    %v545 = vadd.f32 %v489, %v525
    %v546 = vadd.f32 %v490, %v527
    %v547 = vadd.f32 %v491, %v529
    %s548 = sld [smem:[#allocation2 + $0xb]]
    %v549 = vstv %s548
    %v550 = vmul.f32 %v549, %v463
    %v551 = vmul.f32 %v549, %v464
    %v552 = vmul.f32 %v549, %v465
    %v553 = vmul.f32 %v549, %v466
    %v554 = vmul.f32 %v549, %v467
    %v555 = vmul.f32 %v549, %v468
    %v556 = vmul.f32 %v549, %v469
    %v557 = vmul.f32 %v549, %v470
    %v558 = vmul.f32 %v549, %v471
    %568 = vrot.lane.b32.xlu0 %v550, 126
    %v569 = vpop.permute.xlu0 %568
    %570 = vrot.lane.b32.xlu0 %v551, 126
    %v571 = vpop.permute.xlu0 %570
    %572 = vrot.lane.b32.xlu0 %v552, 126
    %v573 = vpop.permute.xlu0 %572
    %574 = vrot.lane.b32.xlu0 %v553, 126
    %v575 = vpop.permute.xlu0 %574
    %576 = vrot.lane.b32.xlu0 %v554, 126
    %v577 = vpop.permute.xlu0 %576
    %578 = vrot.lane.b32.xlu0 %v555, 126
    %v579 = vpop.permute.xlu0 %578
    %580 = vrot.lane.b32.xlu0 %v556, 126
    %v581 = vpop.permute.xlu0 %580
    %582 = vrot.lane.b32.xlu0 %v557, 126
    %v583 = vpop.permute.xlu0 %582
    %584 = vrot.lane.b32.xlu0 %v558, 126
    %v585 = vpop.permute.xlu0 %584
    %v595 = vadd.f32 %v539, %v569
    %v596 = vadd.f32 %v540, %v571
    %v597 = vadd.f32 %v541, %v573
    %v598 = vadd.f32 %v542, %v575
    %v599 = vadd.f32 %v543, %v577
    %v600 = vadd.f32 %v544, %v579
    %v601 = vadd.f32 %v545, %v581
    %v602 = vadd.f32 %v546, %v583
    %v603 = vadd.f32 %v547, %v585
    %v604 = vld [vmem:[%s462 + $0x1] sm:$0xff]
    %v605 = vld [vmem:[%s462 + $0x9] sm:$0xff]
    %v606 = vld [vmem:[%s462 + $0x11] sm:$0xff]
    %v607 = vld [vmem:[%s462 + $0x19] sm:$0xff]
    %v608 = vld [vmem:[%s462 + $0x21] sm:$0xff]
    %v609 = vld [vmem:[%s462 + $0x29] sm:$0xff]
    %v610 = vld [vmem:[%s462 + $0x31] sm:$0xff]
    %v611 = vld [vmem:[%s462 + $0x39] sm:$0xff]
    %v612 = vld [vmem:[%s462 + $0x41] sm:$0x1]
    %s613 = sld [smem:[#allocation2 + $0xc]]
    %v614 = vstv %s613
    %v615 = vmul.f32 %v614, %v604
    %v616 = vmul.f32 %v614, %v605
    %v617 = vmul.f32 %v614, %v606
    %v618 = vmul.f32 %v614, %v607
    %v619 = vmul.f32 %v614, %v608
    %v620 = vmul.f32 %v614, %v609
    %v621 = vmul.f32 %v614, %v610
    %v622 = vmul.f32 %v614, %v611
    %v623 = vmul.f32 %v614, %v612
    %v624 = vadd.f32 %v595, %v615
    %v625 = vadd.f32 %v596, %v616
    %v626 = vadd.f32 %v597, %v617
    %v627 = vadd.f32 %v598, %v618
    %v628 = vadd.f32 %v599, %v619
    %v629 = vadd.f32 %v600, %v620
    %v630 = vadd.f32 %v601, %v621
    %v631 = vadd.f32 %v602, %v622
    %v632 = vadd.f32 %v603, %v623
    %s633 = sld [smem:[#allocation2 + $0xd]]
    %v634 = vstv %s633
    %v635 = vmul.f32 %v634, %v604
    %v636 = vmul.f32 %v634, %v605
    %v637 = vmul.f32 %v634, %v606
    %v638 = vmul.f32 %v634, %v607
    %v639 = vmul.f32 %v634, %v608
    %v640 = vmul.f32 %v634, %v609
    %v641 = vmul.f32 %v634, %v610
    %v642 = vmul.f32 %v634, %v611
    %v643 = vmul.f32 %v634, %v612
    %653 = vrot.lane.b32.xlu0 %v635, 127
    %v654 = vpop.permute.xlu0 %653
    %655 = vrot.lane.b32.xlu0 %v636, 127
    %v656 = vpop.permute.xlu0 %655
    %657 = vrot.lane.b32.xlu0 %v637, 127
    %v658 = vpop.permute.xlu0 %657
    %659 = vrot.lane.b32.xlu0 %v638, 127
    %v660 = vpop.permute.xlu0 %659
    %661 = vrot.lane.b32.xlu0 %v639, 127
    %v662 = vpop.permute.xlu0 %661
    %663 = vrot.lane.b32.xlu0 %v640, 127
    %v664 = vpop.permute.xlu0 %663
    %665 = vrot.lane.b32.xlu0 %v641, 127
    %v666 = vpop.permute.xlu0 %665
    %667 = vrot.lane.b32.xlu0 %v642, 127
    %v668 = vpop.permute.xlu0 %667
    %669 = vrot.lane.b32.xlu0 %v643, 127
    %v670 = vpop.permute.xlu0 %669
    %v680 = vadd.f32 %v624, %v654
    %v681 = vadd.f32 %v625, %v656
    %v682 = vadd.f32 %v626, %v658
    %v683 = vadd.f32 %v627, %v660
    %v684 = vadd.f32 %v628, %v662
    %v685 = vadd.f32 %v629, %v664
    %v686 = vadd.f32 %v630, %v666
    %v687 = vadd.f32 %v631, %v668
    %v688 = vadd.f32 %v632, %v670
    %s689 = sld [smem:[#allocation2 + $0xe]]
    %v690 = vstv %s689
    %v691 = vmul.f32 %v690, %v604
    %v692 = vmul.f32 %v690, %v605
    %v693 = vmul.f32 %v690, %v606
    %v694 = vmul.f32 %v690, %v607
    %v695 = vmul.f32 %v690, %v608
    %v696 = vmul.f32 %v690, %v609
    %v697 = vmul.f32 %v690, %v610
    %v698 = vmul.f32 %v690, %v611
    %v699 = vmul.f32 %v690, %v612
    %709 = vrot.lane.b32.xlu0 %v691, 126
    %v710 = vpop.permute.xlu0 %709
    %711 = vrot.lane.b32.xlu0 %v692, 126
    %v712 = vpop.permute.xlu0 %711
    %713 = vrot.lane.b32.xlu0 %v693, 126
    %v714 = vpop.permute.xlu0 %713
    %715 = vrot.lane.b32.xlu0 %v694, 126
    %v716 = vpop.permute.xlu0 %715
    %717 = vrot.lane.b32.xlu0 %v695, 126
    %v718 = vpop.permute.xlu0 %717
    %719 = vrot.lane.b32.xlu0 %v696, 126
    %v720 = vpop.permute.xlu0 %719
    %721 = vrot.lane.b32.xlu0 %v697, 126
    %v722 = vpop.permute.xlu0 %721
    %723 = vrot.lane.b32.xlu0 %v698, 126
    %v724 = vpop.permute.xlu0 %723
    %725 = vrot.lane.b32.xlu0 %v699, 126
    %v726 = vpop.permute.xlu0 %725
    %v736 = vadd.f32 %v680, %v710
    %v737 = vadd.f32 %v681, %v712
    %v738 = vadd.f32 %v682, %v714
    %v739 = vadd.f32 %v683, %v716
    %v740 = vadd.f32 %v684, %v718
    %v741 = vadd.f32 %v685, %v720
    %v742 = vadd.f32 %v686, %v722
    %v743 = vadd.f32 %v687, %v724
    %v744 = vadd.f32 %v688, %v726
    %v745 = vld [vmem:[%s462 + $0x2] sm:$0xff]
    %v746 = vld [vmem:[%s462 + $0xa] sm:$0xff]
    %v747 = vld [vmem:[%s462 + $0x12] sm:$0xff]
    %v748 = vld [vmem:[%s462 + $0x1a] sm:$0xff]
    %v749 = vld [vmem:[%s462 + $0x22] sm:$0xff]
    %v750 = vld [vmem:[%s462 + $0x2a] sm:$0xff]
    %v751 = vld [vmem:[%s462 + $0x32] sm:$0xff]
    %v752 = vld [vmem:[%s462 + $0x3a] sm:$0xff]
    %v753 = vld [vmem:[%s462 + $0x42] sm:$0x1]
    %s754 = sld [smem:[#allocation2 + $0xf]]
    %v755 = vstv %s754
    %v756 = vmul.f32 %v755, %v745
    %v757 = vmul.f32 %v755, %v746
    %v758 = vmul.f32 %v755, %v747
    %v759 = vmul.f32 %v755, %v748
    %v760 = vmul.f32 %v755, %v749
    %v761 = vmul.f32 %v755, %v750
    %v762 = vmul.f32 %v755, %v751
    %v763 = vmul.f32 %v755, %v752
    %v764 = vmul.f32 %v755, %v753
    %v765 = vadd.f32 %v736, %v756
    %v766 = vadd.f32 %v737, %v757
    %v767 = vadd.f32 %v738, %v758
    %v768 = vadd.f32 %v739, %v759
    %v769 = vadd.f32 %v740, %v760
    %v770 = vadd.f32 %v741, %v761
    %v771 = vadd.f32 %v742, %v762
    %v772 = vadd.f32 %v743, %v763
    %v773 = vadd.f32 %v744, %v764
    %s774 = sld [smem:[#allocation2 + $0x10]]
    %v775 = vstv %s774
    %v776 = vmul.f32 %v775, %v745
    %v777 = vmul.f32 %v775, %v746
    %v778 = vmul.f32 %v775, %v747
    %v779 = vmul.f32 %v775, %v748
    %v780 = vmul.f32 %v775, %v749
    %v781 = vmul.f32 %v775, %v750
    %v782 = vmul.f32 %v775, %v751
    %v783 = vmul.f32 %v775, %v752
    %v784 = vmul.f32 %v775, %v753
    %794 = vrot.lane.b32.xlu0 %v776, 127
    %v795 = vpop.permute.xlu0 %794
    %796 = vrot.lane.b32.xlu0 %v777, 127
    %v797 = vpop.permute.xlu0 %796
    %798 = vrot.lane.b32.xlu0 %v778, 127
    %v799 = vpop.permute.xlu0 %798
    %800 = vrot.lane.b32.xlu0 %v779, 127
    %v801 = vpop.permute.xlu0 %800
    %802 = vrot.lane.b32.xlu0 %v780, 127
    %v803 = vpop.permute.xlu0 %802
    %804 = vrot.lane.b32.xlu0 %v781, 127
    %v805 = vpop.permute.xlu0 %804
    %806 = vrot.lane.b32.xlu0 %v782, 127
    %v807 = vpop.permute.xlu0 %806
    %808 = vrot.lane.b32.xlu0 %v783, 127
    %v809 = vpop.permute.xlu0 %808
    %810 = vrot.lane.b32.xlu0 %v784, 127
    %v811 = vpop.permute.xlu0 %810
    %v821 = vadd.f32 %v765, %v795
    %v822 = vadd.f32 %v766, %v797
    %v823 = vadd.f32 %v767, %v799
    %v824 = vadd.f32 %v768, %v801
    %v825 = vadd.f32 %v769, %v803
    %v826 = vadd.f32 %v770, %v805
    %v827 = vadd.f32 %v771, %v807
    %v828 = vadd.f32 %v772, %v809
    %v829 = vadd.f32 %v773, %v811
    %s830 = sld [smem:[#allocation2 + $0x11]]
    %v831 = vstv %s830
    %v832 = vmul.f32 %v831, %v745
    %v833 = vmul.f32 %v831, %v746
    %v834 = vmul.f32 %v831, %v747
    %v835 = vmul.f32 %v831, %v748
    %v836 = vmul.f32 %v831, %v749
    %v837 = vmul.f32 %v831, %v750
    %v838 = vmul.f32 %v831, %v751
    %v839 = vmul.f32 %v831, %v752
    %v840 = vmul.f32 %v831, %v753
    %850 = vrot.lane.b32.xlu0 %v832, 126
    %v851 = vpop.permute.xlu0 %850
    %852 = vrot.lane.b32.xlu0 %v833, 126
    %v853 = vpop.permute.xlu0 %852
    %854 = vrot.lane.b32.xlu0 %v834, 126
    %v855 = vpop.permute.xlu0 %854
    %856 = vrot.lane.b32.xlu0 %v835, 126
    %v857 = vpop.permute.xlu0 %856
    %858 = vrot.lane.b32.xlu0 %v836, 126
    %v859 = vpop.permute.xlu0 %858
    %860 = vrot.lane.b32.xlu0 %v837, 126
    %v861 = vpop.permute.xlu0 %860
    %862 = vrot.lane.b32.xlu0 %v838, 126
    %v863 = vpop.permute.xlu0 %862
    %864 = vrot.lane.b32.xlu0 %v839, 126
    %v865 = vpop.permute.xlu0 %864
    %866 = vrot.lane.b32.xlu0 %v840, 126
    %v867 = vpop.permute.xlu0 %866
    %v877 = vadd.f32 %v821, %v851
    %v878 = vadd.f32 %v822, %v853
    %v879 = vadd.f32 %v823, %v855
    %v880 = vadd.f32 %v824, %v857
    %v881 = vadd.f32 %v825, %v859
    %v882 = vadd.f32 %v826, %v861
    %v883 = vadd.f32 %v827, %v863
    %v884 = vadd.f32 %v828, %v865
    %v885 = vadd.f32 %v829, %v867
    %s886 = scalar_lea.vmem %s2, 144
    %v887 = vld [vmem:[%s886] sm:$0xff]
    %v888 = vld [vmem:[%s886 + $0x8] sm:$0xff]
    %v889 = vld [vmem:[%s886 + $0x10] sm:$0xff]
    %v890 = vld [vmem:[%s886 + $0x18] sm:$0xff]
    %v891 = vld [vmem:[%s886 + $0x20] sm:$0xff]
    %v892 = vld [vmem:[%s886 + $0x28] sm:$0xff]
    %v893 = vld [vmem:[%s886 + $0x30] sm:$0xff]
    %v894 = vld [vmem:[%s886 + $0x38] sm:$0xff]
    %v895 = vld [vmem:[%s886 + $0x40] sm:$0x1]
    %s896 = sld [smem:[#allocation2 + $0x12]]
    %v897 = vstv %s896
    %v898 = vmul.f32 %v897, %v887
    %v899 = vmul.f32 %v897, %v888
    %v900 = vmul.f32 %v897, %v889
    %v901 = vmul.f32 %v897, %v890
    %v902 = vmul.f32 %v897, %v891
    %v903 = vmul.f32 %v897, %v892
    %v904 = vmul.f32 %v897, %v893
    %v905 = vmul.f32 %v897, %v894
    %v906 = vmul.f32 %v897, %v895
    %v907 = vadd.f32 %v877, %v898
    %v908 = vadd.f32 %v878, %v899
    %v909 = vadd.f32 %v879, %v900
    %v910 = vadd.f32 %v880, %v901
    %v911 = vadd.f32 %v881, %v902
    %v912 = vadd.f32 %v882, %v903
    %v913 = vadd.f32 %v883, %v904
    %v914 = vadd.f32 %v884, %v905
    %v915 = vadd.f32 %v885, %v906
    %s916 = sld [smem:[#allocation2 + $0x13]]
    %v917 = vstv %s916
    %v918 = vmul.f32 %v917, %v887
    %v919 = vmul.f32 %v917, %v888
    %v920 = vmul.f32 %v917, %v889
    %v921 = vmul.f32 %v917, %v890
    %v922 = vmul.f32 %v917, %v891
    %v923 = vmul.f32 %v917, %v892
    %v924 = vmul.f32 %v917, %v893
    %v925 = vmul.f32 %v917, %v894
    %v926 = vmul.f32 %v917, %v895
    %936 = vrot.lane.b32.xlu0 %v918, 127
    %v937 = vpop.permute.xlu0 %936
    %938 = vrot.lane.b32.xlu0 %v919, 127
    %v939 = vpop.permute.xlu0 %938
    %940 = vrot.lane.b32.xlu0 %v920, 127
    %v941 = vpop.permute.xlu0 %940
    %942 = vrot.lane.b32.xlu0 %v921, 127
    %v943 = vpop.permute.xlu0 %942
    %944 = vrot.lane.b32.xlu0 %v922, 127
    %v945 = vpop.permute.xlu0 %944
    %946 = vrot.lane.b32.xlu0 %v923, 127
    %v947 = vpop.permute.xlu0 %946
    %948 = vrot.lane.b32.xlu0 %v924, 127
    %v949 = vpop.permute.xlu0 %948
    %950 = vrot.lane.b32.xlu0 %v925, 127
    %v951 = vpop.permute.xlu0 %950
    %952 = vrot.lane.b32.xlu0 %v926, 127
    %v953 = vpop.permute.xlu0 %952
    %v963 = vadd.f32 %v907, %v937
    %v964 = vadd.f32 %v908, %v939
    %v965 = vadd.f32 %v909, %v941
    %v966 = vadd.f32 %v910, %v943
    %v967 = vadd.f32 %v911, %v945
    %v968 = vadd.f32 %v912, %v947
    %v969 = vadd.f32 %v913, %v949
    %v970 = vadd.f32 %v914, %v951
    %v971 = vadd.f32 %v915, %v953
    %s972 = sld [smem:[#allocation2 + $0x14]]
    %v973 = vstv %s972
    %v974 = vmul.f32 %v973, %v887
    %v975 = vmul.f32 %v973, %v888
    %v976 = vmul.f32 %v973, %v889
    %v977 = vmul.f32 %v973, %v890
    %v978 = vmul.f32 %v973, %v891
    %v979 = vmul.f32 %v973, %v892
    %v980 = vmul.f32 %v973, %v893
    %v981 = vmul.f32 %v973, %v894
    %v982 = vmul.f32 %v973, %v895
    %992 = vrot.lane.b32.xlu0 %v974, 126
    %v993 = vpop.permute.xlu0 %992
    %994 = vrot.lane.b32.xlu0 %v975, 126
    %v995 = vpop.permute.xlu0 %994
    %996 = vrot.lane.b32.xlu0 %v976, 126
    %v997 = vpop.permute.xlu0 %996
    %998 = vrot.lane.b32.xlu0 %v977, 126
    %v999 = vpop.permute.xlu0 %998
    %1000 = vrot.lane.b32.xlu0 %v978, 126
    %v1001 = vpop.permute.xlu0 %1000
    %1002 = vrot.lane.b32.xlu0 %v979, 126
    %v1003 = vpop.permute.xlu0 %1002
    %1004 = vrot.lane.b32.xlu0 %v980, 126
    %v1005 = vpop.permute.xlu0 %1004
    %1006 = vrot.lane.b32.xlu0 %v981, 126
    %v1007 = vpop.permute.xlu0 %1006
    %1008 = vrot.lane.b32.xlu0 %v982, 126
    %v1009 = vpop.permute.xlu0 %1008
    %v1019 = vadd.f32 %v963, %v993
    %v1020 = vadd.f32 %v964, %v995
    %v1021 = vadd.f32 %v965, %v997
    %v1022 = vadd.f32 %v966, %v999
    %v1023 = vadd.f32 %v967, %v1001
    %v1024 = vadd.f32 %v968, %v1003
    %v1025 = vadd.f32 %v969, %v1005
    %v1026 = vadd.f32 %v970, %v1007
    %v1027 = vadd.f32 %v971, %v1009
    %v1028 = vld [vmem:[%s886 + $0x1] sm:$0xff]
    %v1029 = vld [vmem:[%s886 + $0x9] sm:$0xff]
    %v1030 = vld [vmem:[%s886 + $0x11] sm:$0xff]
    %v1031 = vld [vmem:[%s886 + $0x19] sm:$0xff]
    %v1032 = vld [vmem:[%s886 + $0x21] sm:$0xff]
    %v1033 = vld [vmem:[%s886 + $0x29] sm:$0xff]
    %v1034 = vld [vmem:[%s886 + $0x31] sm:$0xff]
    %v1035 = vld [vmem:[%s886 + $0x39] sm:$0xff]
    %v1036 = vld [vmem:[%s886 + $0x41] sm:$0x1]
    %s1037 = sld [smem:[#allocation2 + $0x15]]
    %v1038 = vstv %s1037
    %v1039 = vmul.f32 %v1038, %v1028
    %v1040 = vmul.f32 %v1038, %v1029
    %v1041 = vmul.f32 %v1038, %v1030
    %v1042 = vmul.f32 %v1038, %v1031
    %v1043 = vmul.f32 %v1038, %v1032
    %v1044 = vmul.f32 %v1038, %v1033
    %v1045 = vmul.f32 %v1038, %v1034
    %v1046 = vmul.f32 %v1038, %v1035
    %v1047 = vmul.f32 %v1038, %v1036
    %v1048 = vadd.f32 %v1019, %v1039
    %v1049 = vadd.f32 %v1020, %v1040
    %v1050 = vadd.f32 %v1021, %v1041
    %v1051 = vadd.f32 %v1022, %v1042
    %v1052 = vadd.f32 %v1023, %v1043
    %v1053 = vadd.f32 %v1024, %v1044
    %v1054 = vadd.f32 %v1025, %v1045
    %v1055 = vadd.f32 %v1026, %v1046
    %v1056 = vadd.f32 %v1027, %v1047
    %s1057 = sld [smem:[#allocation2 + $0x16]]
    %v1058 = vstv %s1057
    %v1059 = vmul.f32 %v1058, %v1028
    %v1060 = vmul.f32 %v1058, %v1029
    %v1061 = vmul.f32 %v1058, %v1030
    %v1062 = vmul.f32 %v1058, %v1031
    %v1063 = vmul.f32 %v1058, %v1032
    %v1064 = vmul.f32 %v1058, %v1033
    %v1065 = vmul.f32 %v1058, %v1034
    %v1066 = vmul.f32 %v1058, %v1035
    %v1067 = vmul.f32 %v1058, %v1036
    %1077 = vrot.lane.b32.xlu0 %v1059, 127
    %v1078 = vpop.permute.xlu0 %1077
    %1079 = vrot.lane.b32.xlu0 %v1060, 127
    %v1080 = vpop.permute.xlu0 %1079
    %1081 = vrot.lane.b32.xlu0 %v1061, 127
    %v1082 = vpop.permute.xlu0 %1081
    %1083 = vrot.lane.b32.xlu0 %v1062, 127
    %v1084 = vpop.permute.xlu0 %1083
    %1085 = vrot.lane.b32.xlu0 %v1063, 127
    %v1086 = vpop.permute.xlu0 %1085
    %1087 = vrot.lane.b32.xlu0 %v1064, 127
    %v1088 = vpop.permute.xlu0 %1087
    %1089 = vrot.lane.b32.xlu0 %v1065, 127
    %v1090 = vpop.permute.xlu0 %1089
    %1091 = vrot.lane.b32.xlu0 %v1066, 127
    %v1092 = vpop.permute.xlu0 %1091
    %1093 = vrot.lane.b32.xlu0 %v1067, 127
    %v1094 = vpop.permute.xlu0 %1093
    %v1104 = vadd.f32 %v1048, %v1078
    %v1105 = vadd.f32 %v1049, %v1080
    %v1106 = vadd.f32 %v1050, %v1082
    %v1107 = vadd.f32 %v1051, %v1084
    %v1108 = vadd.f32 %v1052, %v1086
    %v1109 = vadd.f32 %v1053, %v1088
    %v1110 = vadd.f32 %v1054, %v1090
    %v1111 = vadd.f32 %v1055, %v1092
    %v1112 = vadd.f32 %v1056, %v1094
    %s1113 = sld [smem:[#allocation2 + $0x17]]
    %v1114 = vstv %s1113
    %v1115 = vmul.f32 %v1114, %v1028
    %v1116 = vmul.f32 %v1114, %v1029
    %v1117 = vmul.f32 %v1114, %v1030
    %v1118 = vmul.f32 %v1114, %v1031
    %v1119 = vmul.f32 %v1114, %v1032
    %v1120 = vmul.f32 %v1114, %v1033
    %v1121 = vmul.f32 %v1114, %v1034
    %v1122 = vmul.f32 %v1114, %v1035
    %v1123 = vmul.f32 %v1114, %v1036
    %1133 = vrot.lane.b32.xlu0 %v1115, 126
    %v1134 = vpop.permute.xlu0 %1133
    %1135 = vrot.lane.b32.xlu0 %v1116, 126
    %v1136 = vpop.permute.xlu0 %1135
    %1137 = vrot.lane.b32.xlu0 %v1117, 126
    %v1138 = vpop.permute.xlu0 %1137
    %1139 = vrot.lane.b32.xlu0 %v1118, 126
    %v1140 = vpop.permute.xlu0 %1139
    %1141 = vrot.lane.b32.xlu0 %v1119, 126
    %v1142 = vpop.permute.xlu0 %1141
    %1143 = vrot.lane.b32.xlu0 %v1120, 126
    %v1144 = vpop.permute.xlu0 %1143
    %1145 = vrot.lane.b32.xlu0 %v1121, 126
    %v1146 = vpop.permute.xlu0 %1145
    %1147 = vrot.lane.b32.xlu0 %v1122, 126
    %v1148 = vpop.permute.xlu0 %1147
    %1149 = vrot.lane.b32.xlu0 %v1123, 126
    %v1150 = vpop.permute.xlu0 %1149
    %v1160 = vadd.f32 %v1104, %v1134
    %v1161 = vadd.f32 %v1105, %v1136
    %v1162 = vadd.f32 %v1106, %v1138
    %v1163 = vadd.f32 %v1107, %v1140
    %v1164 = vadd.f32 %v1108, %v1142
    %v1165 = vadd.f32 %v1109, %v1144
    %v1166 = vadd.f32 %v1110, %v1146
    %v1167 = vadd.f32 %v1111, %v1148
    %v1168 = vadd.f32 %v1112, %v1150
    %v1169 = vld [vmem:[%s886 + $0x2] sm:$0xff]
    %v1170 = vld [vmem:[%s886 + $0xa] sm:$0xff]
    %v1171 = vld [vmem:[%s886 + $0x12] sm:$0xff]
    %v1172 = vld [vmem:[%s886 + $0x1a] sm:$0xff]
    %v1173 = vld [vmem:[%s886 + $0x22] sm:$0xff]
    %v1174 = vld [vmem:[%s886 + $0x2a] sm:$0xff]
    %v1175 = vld [vmem:[%s886 + $0x32] sm:$0xff]
    %v1176 = vld [vmem:[%s886 + $0x3a] sm:$0xff]
    %v1177 = vld [vmem:[%s886 + $0x42] sm:$0x1]
    %s1178 = sld [smem:[#allocation2 + $0x18]]
    %v1179 = vstv %s1178
    %v1180 = vmul.f32 %v1179, %v1169
    %v1181 = vmul.f32 %v1179, %v1170
    %v1182 = vmul.f32 %v1179, %v1171
    %v1183 = vmul.f32 %v1179, %v1172
    %v1184 = vmul.f32 %v1179, %v1173
    %v1185 = vmul.f32 %v1179, %v1174
    %v1186 = vmul.f32 %v1179, %v1175
    %v1187 = vmul.f32 %v1179, %v1176
    %v1188 = vmul.f32 %v1179, %v1177
    %v1189 = vadd.f32 %v1160, %v1180
    %v1190 = vadd.f32 %v1161, %v1181
    %v1191 = vadd.f32 %v1162, %v1182
    %v1192 = vadd.f32 %v1163, %v1183
    %v1193 = vadd.f32 %v1164, %v1184
    %v1194 = vadd.f32 %v1165, %v1185
    %v1195 = vadd.f32 %v1166, %v1186
    %v1196 = vadd.f32 %v1167, %v1187
    %v1197 = vadd.f32 %v1168, %v1188
    %s1198 = sld [smem:[#allocation2 + $0x19]]
    %v1199 = vstv %s1198
    %v1200 = vmul.f32 %v1199, %v1169
    %v1201 = vmul.f32 %v1199, %v1170
    %v1202 = vmul.f32 %v1199, %v1171
    %v1203 = vmul.f32 %v1199, %v1172
    %v1204 = vmul.f32 %v1199, %v1173
    %v1205 = vmul.f32 %v1199, %v1174
    %v1206 = vmul.f32 %v1199, %v1175
    %v1207 = vmul.f32 %v1199, %v1176
    %v1208 = vmul.f32 %v1199, %v1177
    %1218 = vrot.lane.b32.xlu0 %v1200, 127
    %v1219 = vpop.permute.xlu0 %1218
    %1220 = vrot.lane.b32.xlu0 %v1201, 127
    %v1221 = vpop.permute.xlu0 %1220
    %1222 = vrot.lane.b32.xlu0 %v1202, 127
    %v1223 = vpop.permute.xlu0 %1222
    %1224 = vrot.lane.b32.xlu0 %v1203, 127
    %v1225 = vpop.permute.xlu0 %1224
    %1226 = vrot.lane.b32.xlu0 %v1204, 127
    %v1227 = vpop.permute.xlu0 %1226
    %1228 = vrot.lane.b32.xlu0 %v1205, 127
    %v1229 = vpop.permute.xlu0 %1228
    %1230 = vrot.lane.b32.xlu0 %v1206, 127
    %v1231 = vpop.permute.xlu0 %1230
    %1232 = vrot.lane.b32.xlu0 %v1207, 127
    %v1233 = vpop.permute.xlu0 %1232
    %1234 = vrot.lane.b32.xlu0 %v1208, 127
    %v1235 = vpop.permute.xlu0 %1234
    %v1245 = vadd.f32 %v1189, %v1219
    %v1246 = vadd.f32 %v1190, %v1221
    %v1247 = vadd.f32 %v1191, %v1223
    %v1248 = vadd.f32 %v1192, %v1225
    %v1249 = vadd.f32 %v1193, %v1227
    %v1250 = vadd.f32 %v1194, %v1229
    %v1251 = vadd.f32 %v1195, %v1231
    %v1252 = vadd.f32 %v1196, %v1233
    %v1253 = vadd.f32 %v1197, %v1235
    %s1254 = sld [smem:[#allocation2 + $0x1a]]
    %v1255 = vstv %s1254
    %v1256 = vmul.f32 %v1255, %v1169
    %v1257 = vmul.f32 %v1255, %v1170
    %v1258 = vmul.f32 %v1255, %v1171
    %v1259 = vmul.f32 %v1255, %v1172
    %v1260 = vmul.f32 %v1255, %v1173
    %v1261 = vmul.f32 %v1255, %v1174
    %v1262 = vmul.f32 %v1255, %v1175
    %v1263 = vmul.f32 %v1255, %v1176
    %v1264 = vmul.f32 %v1255, %v1177
    %1274 = vrot.lane.b32.xlu0 %v1256, 126
    %v1275 = vpop.permute.xlu0 %1274
    %1276 = vrot.lane.b32.xlu0 %v1257, 126
    %v1277 = vpop.permute.xlu0 %1276
    %1278 = vrot.lane.b32.xlu0 %v1258, 126
    %v1279 = vpop.permute.xlu0 %1278
    %1280 = vrot.lane.b32.xlu0 %v1259, 126
    %v1281 = vpop.permute.xlu0 %1280
    %1282 = vrot.lane.b32.xlu0 %v1260, 126
    %v1283 = vpop.permute.xlu0 %1282
    %1284 = vrot.lane.b32.xlu0 %v1261, 126
    %v1285 = vpop.permute.xlu0 %1284
    %1286 = vrot.lane.b32.xlu0 %v1262, 126
    %v1287 = vpop.permute.xlu0 %1286
    %1288 = vrot.lane.b32.xlu0 %v1263, 126
    %v1289 = vpop.permute.xlu0 %1288
    %1290 = vrot.lane.b32.xlu0 %v1264, 126
    %v1291 = vpop.permute.xlu0 %1290
    %v1301 = vadd.f32 %v1245, %v1275
    %v1302 = vadd.f32 %v1246, %v1277
    %v1303 = vadd.f32 %v1247, %v1279
    %v1304 = vadd.f32 %v1248, %v1281
    %v1305 = vadd.f32 %v1249, %v1283
    %v1306 = vadd.f32 %v1250, %v1285
    %v1307 = vadd.f32 %v1251, %v1287
    %v1308 = vadd.f32 %v1252, %v1289
    %v1309 = vadd.f32 %v1253, %v1291
    %s1310 = sld [smem:[#allocation4]]
    %v1311 = vstv %s1310
    %v1312 = vadd.f32 %v1301, %v1311
    %v1313 = vadd.f32 %v1302, %v1311
    %v1314 = vadd.f32 %v1303, %v1311
    %v1315 = vadd.f32 %v1304, %v1311
    %v1316 = vadd.f32 %v1305, %v1311
    %v1317 = vadd.f32 %v1306, %v1311
    %v1318 = vadd.f32 %v1307, %v1311
    %v1319 = vadd.f32 %v1308, %v1311
    %v1320 = vadd.f32 %v1309, %v1311
    %v1321 = vmul.f32 %v1312, 2.0
    %v1322 = vmul.f32 %v1313, 2.0
    %v1323 = vmul.f32 %v1314, 2.0
    %v1324 = vmul.f32 %v1315, 2.0
    %v1325 = vmul.f32 %v1316, 2.0
    %v1326 = vmul.f32 %v1317, 2.0
    %v1327 = vmul.f32 %v1318, 2.0
    %v1328 = vmul.f32 %v1319, 2.0
    %v1329 = vmul.f32 %v1320, 2.0
    %v1330 = vmax.f32 %v1321, 0.0
    %v1331 = vmax.f32 %v1322, 0.0
    %v1332 = vmax.f32 %v1323, 0.0
    %v1333 = vmax.f32 %v1324, 0.0
    %v1334 = vmax.f32 %v1325, 0.0
    %v1335 = vmax.f32 %v1326, 0.0
    %v1336 = vmax.f32 %v1327, 0.0
    %v1337 = vmax.f32 %v1328, 0.0
    %v1338 = vmax.f32 %v1329, 0.0
    %vm1339 = vcmask 539648
    %1340 = vst.msk [vmem:[%s3] sm:$0xff] %vm1339, %v1330
    %1341 = vst.msk [vmem:[%s3 + $0x8] sm:$0xff] %vm1339, %v1331
    %1342 = vst.msk [vmem:[%s3 + $0x10] sm:$0xff] %vm1339, %v1332
    %1343 = vst.msk [vmem:[%s3 + $0x18] sm:$0xff] %vm1339, %v1333
    %1344 = vst.msk [vmem:[%s3 + $0x20] sm:$0xff] %vm1339, %v1334
    %1345 = vst.msk [vmem:[%s3 + $0x28] sm:$0xff] %vm1339, %v1335
    %1346 = vst.msk [vmem:[%s3 + $0x30] sm:$0xff] %vm1339, %v1336
    %1347 = vst.msk [vmem:[%s3 + $0x38] sm:$0xff] %vm1339, %v1337
    %vm1348 = vcmask 532480
    %1349 = vst.msk [vmem:[%s3 + $0x40] sm:$0x1] %vm1348, %v1338
    %v1350 = vld [vmem:[%s2] sm:$0xff]
    %v1351 = vld [vmem:[%s2 + $0x8] sm:$0xff]
    %v1352 = vld [vmem:[%s2 + $0x10] sm:$0xff]
    %v1353 = vld [vmem:[%s2 + $0x18] sm:$0xff]
    %v1354 = vld [vmem:[%s2 + $0x20] sm:$0xff]
    %v1355 = vld [vmem:[%s2 + $0x28] sm:$0xff]
    %v1356 = vld [vmem:[%s2 + $0x30] sm:$0xff]
    %v1357 = vld [vmem:[%s2 + $0x38] sm:$0xff]
    %v1358 = vld [vmem:[%s2 + $0x40] sm:$0x1]
    %s1359 = sld [smem:[#allocation2 + $0x1b]]
    %v1360 = vstv %s1359
    %v1361 = vmul.f32 %v1360, %v1350
    %v1362 = vmul.f32 %v1360, %v1351
    %v1363 = vmul.f32 %v1360, %v1352
    %v1364 = vmul.f32 %v1360, %v1353
    %v1365 = vmul.f32 %v1360, %v1354
    %v1366 = vmul.f32 %v1360, %v1355
    %v1367 = vmul.f32 %v1360, %v1356
    %v1368 = vmul.f32 %v1360, %v1357
    %v1369 = vmul.f32 %v1360, %v1358
    %v1370 = vadd.f32 %v1361, 0.0
    %v1371 = vadd.f32 %v1362, 0.0
    %v1372 = vadd.f32 %v1363, 0.0
    %v1373 = vadd.f32 %v1364, 0.0
    %v1374 = vadd.f32 %v1365, 0.0
    %v1375 = vadd.f32 %v1366, 0.0
    %v1376 = vadd.f32 %v1367, 0.0
    %v1377 = vadd.f32 %v1368, 0.0
    %v1378 = vadd.f32 %v1369, 0.0
    %s1379 = sld [smem:[#allocation2 + $0x1c]]
    %v1380 = vstv %s1379
    %v1381 = vmul.f32 %v1380, %v1350
    %v1382 = vmul.f32 %v1380, %v1351
    %v1383 = vmul.f32 %v1380, %v1352
    %v1384 = vmul.f32 %v1380, %v1353
    %v1385 = vmul.f32 %v1380, %v1354
    %v1386 = vmul.f32 %v1380, %v1355
    %v1387 = vmul.f32 %v1380, %v1356
    %v1388 = vmul.f32 %v1380, %v1357
    %v1389 = vmul.f32 %v1380, %v1358
    %1399 = vrot.lane.b32.xlu0 %v1381, 127
    %v1400 = vpop.permute.xlu0 %1399
    %1401 = vrot.lane.b32.xlu0 %v1382, 127
    %v1402 = vpop.permute.xlu0 %1401
    %1403 = vrot.lane.b32.xlu0 %v1383, 127
    %v1404 = vpop.permute.xlu0 %1403
    %1405 = vrot.lane.b32.xlu0 %v1384, 127
    %v1406 = vpop.permute.xlu0 %1405
    %1407 = vrot.lane.b32.xlu0 %v1385, 127
    %v1408 = vpop.permute.xlu0 %1407
    %1409 = vrot.lane.b32.xlu0 %v1386, 127
    %v1410 = vpop.permute.xlu0 %1409
    %1411 = vrot.lane.b32.xlu0 %v1387, 127
    %v1412 = vpop.permute.xlu0 %1411
    %1413 = vrot.lane.b32.xlu0 %v1388, 127
    %v1414 = vpop.permute.xlu0 %1413
    %1415 = vrot.lane.b32.xlu0 %v1389, 127
    %v1416 = vpop.permute.xlu0 %1415
    %v1426 = vadd.f32 %v1370, %v1400
    %v1427 = vadd.f32 %v1371, %v1402
    %v1428 = vadd.f32 %v1372, %v1404
    %v1429 = vadd.f32 %v1373, %v1406
    %v1430 = vadd.f32 %v1374, %v1408
    %v1431 = vadd.f32 %v1375, %v1410
    %v1432 = vadd.f32 %v1376, %v1412
    %v1433 = vadd.f32 %v1377, %v1414
    %v1434 = vadd.f32 %v1378, %v1416
    %s1435 = sld [smem:[#allocation2 + $0x1d]]
    %v1436 = vstv %s1435
    %v1437 = vmul.f32 %v1436, %v1350
    %v1438 = vmul.f32 %v1436, %v1351
    %v1439 = vmul.f32 %v1436, %v1352
    %v1440 = vmul.f32 %v1436, %v1353
    %v1441 = vmul.f32 %v1436, %v1354
    %v1442 = vmul.f32 %v1436, %v1355
    %v1443 = vmul.f32 %v1436, %v1356
    %v1444 = vmul.f32 %v1436, %v1357
    %v1445 = vmul.f32 %v1436, %v1358
    %1455 = vrot.lane.b32.xlu0 %v1437, 126
    %v1456 = vpop.permute.xlu0 %1455
    %1457 = vrot.lane.b32.xlu0 %v1438, 126
    %v1458 = vpop.permute.xlu0 %1457
    %1459 = vrot.lane.b32.xlu0 %v1439, 126
    %v1460 = vpop.permute.xlu0 %1459
    %1461 = vrot.lane.b32.xlu0 %v1440, 126
    %v1462 = vpop.permute.xlu0 %1461
    %1463 = vrot.lane.b32.xlu0 %v1441, 126
    %v1464 = vpop.permute.xlu0 %1463
    %1465 = vrot.lane.b32.xlu0 %v1442, 126
    %v1466 = vpop.permute.xlu0 %1465
    %1467 = vrot.lane.b32.xlu0 %v1443, 126
    %v1468 = vpop.permute.xlu0 %1467
    %1469 = vrot.lane.b32.xlu0 %v1444, 126
    %v1470 = vpop.permute.xlu0 %1469
    %1471 = vrot.lane.b32.xlu0 %v1445, 126
    %v1472 = vpop.permute.xlu0 %1471
    %v1482 = vadd.f32 %v1426, %v1456
    %v1483 = vadd.f32 %v1427, %v1458
    %v1484 = vadd.f32 %v1428, %v1460
    %v1485 = vadd.f32 %v1429, %v1462
    %v1486 = vadd.f32 %v1430, %v1464
    %v1487 = vadd.f32 %v1431, %v1466
    %v1488 = vadd.f32 %v1432, %v1468
    %v1489 = vadd.f32 %v1433, %v1470
    %v1490 = vadd.f32 %v1434, %v1472
    %v1491 = vld [vmem:[%s2 + $0x1] sm:$0xff]
    %v1492 = vld [vmem:[%s2 + $0x9] sm:$0xff]
    %v1493 = vld [vmem:[%s2 + $0x11] sm:$0xff]
    %v1494 = vld [vmem:[%s2 + $0x19] sm:$0xff]
    %v1495 = vld [vmem:[%s2 + $0x21] sm:$0xff]
    %v1496 = vld [vmem:[%s2 + $0x29] sm:$0xff]
    %v1497 = vld [vmem:[%s2 + $0x31] sm:$0xff]
    %v1498 = vld [vmem:[%s2 + $0x39] sm:$0xff]
    %v1499 = vld [vmem:[%s2 + $0x41] sm:$0x1]
    %s1500 = sld [smem:[#allocation2 + $0x1e]]
    %v1501 = vstv %s1500
    %v1502 = vmul.f32 %v1501, %v1491
    %v1503 = vmul.f32 %v1501, %v1492
    %v1504 = vmul.f32 %v1501, %v1493
    %v1505 = vmul.f32 %v1501, %v1494
    %v1506 = vmul.f32 %v1501, %v1495
    %v1507 = vmul.f32 %v1501, %v1496
    %v1508 = vmul.f32 %v1501, %v1497
    %v1509 = vmul.f32 %v1501, %v1498
    %v1510 = vmul.f32 %v1501, %v1499
    %v1511 = vadd.f32 %v1482, %v1502
    %v1512 = vadd.f32 %v1483, %v1503
    %v1513 = vadd.f32 %v1484, %v1504
    %v1514 = vadd.f32 %v1485, %v1505
    %v1515 = vadd.f32 %v1486, %v1506
    %v1516 = vadd.f32 %v1487, %v1507
    %v1517 = vadd.f32 %v1488, %v1508
    %v1518 = vadd.f32 %v1489, %v1509
    %v1519 = vadd.f32 %v1490, %v1510
    %s1520 = sld [smem:[#allocation2 + $0x1f]]
    %v1521 = vstv %s1520
    %v1522 = vmul.f32 %v1521, %v1491
    %v1523 = vmul.f32 %v1521, %v1492
    %v1524 = vmul.f32 %v1521, %v1493
    %v1525 = vmul.f32 %v1521, %v1494
    %v1526 = vmul.f32 %v1521, %v1495
    %v1527 = vmul.f32 %v1521, %v1496
    %v1528 = vmul.f32 %v1521, %v1497
    %v1529 = vmul.f32 %v1521, %v1498
    %v1530 = vmul.f32 %v1521, %v1499
    %1540 = vrot.lane.b32.xlu0 %v1522, 127
    %v1541 = vpop.permute.xlu0 %1540
    %1542 = vrot.lane.b32.xlu0 %v1523, 127
    %v1543 = vpop.permute.xlu0 %1542
    %1544 = vrot.lane.b32.xlu0 %v1524, 127
    %v1545 = vpop.permute.xlu0 %1544
    %1546 = vrot.lane.b32.xlu0 %v1525, 127
    %v1547 = vpop.permute.xlu0 %1546
    %1548 = vrot.lane.b32.xlu0 %v1526, 127
    %v1549 = vpop.permute.xlu0 %1548
    %1550 = vrot.lane.b32.xlu0 %v1527, 127
    %v1551 = vpop.permute.xlu0 %1550
    %1552 = vrot.lane.b32.xlu0 %v1528, 127
    %v1553 = vpop.permute.xlu0 %1552
    %1554 = vrot.lane.b32.xlu0 %v1529, 127
    %v1555 = vpop.permute.xlu0 %1554
    %1556 = vrot.lane.b32.xlu0 %v1530, 127
    %v1557 = vpop.permute.xlu0 %1556
    %v1567 = vadd.f32 %v1511, %v1541
    %v1568 = vadd.f32 %v1512, %v1543
    %v1569 = vadd.f32 %v1513, %v1545
    %v1570 = vadd.f32 %v1514, %v1547
    %v1571 = vadd.f32 %v1515, %v1549
    %v1572 = vadd.f32 %v1516, %v1551
    %v1573 = vadd.f32 %v1517, %v1553
    %v1574 = vadd.f32 %v1518, %v1555
    %v1575 = vadd.f32 %v1519, %v1557
    %s1576 = sld [smem:[#allocation2 + $0x20]]
    %v1577 = vstv %s1576
    %v1578 = vmul.f32 %v1577, %v1491
    %v1579 = vmul.f32 %v1577, %v1492
    %v1580 = vmul.f32 %v1577, %v1493
    %v1581 = vmul.f32 %v1577, %v1494
    %v1582 = vmul.f32 %v1577, %v1495
    %v1583 = vmul.f32 %v1577, %v1496
    %v1584 = vmul.f32 %v1577, %v1497
    %v1585 = vmul.f32 %v1577, %v1498
    %v1586 = vmul.f32 %v1577, %v1499
    %1596 = vrot.lane.b32.xlu0 %v1578, 126
    %v1597 = vpop.permute.xlu0 %1596
    %1598 = vrot.lane.b32.xlu0 %v1579, 126
    %v1599 = vpop.permute.xlu0 %1598
    %1600 = vrot.lane.b32.xlu0 %v1580, 126
    %v1601 = vpop.permute.xlu0 %1600
    %1602 = vrot.lane.b32.xlu0 %v1581, 126
    %v1603 = vpop.permute.xlu0 %1602
    %1604 = vrot.lane.b32.xlu0 %v1582, 126
    %v1605 = vpop.permute.xlu0 %1604
    %1606 = vrot.lane.b32.xlu0 %v1583, 126
    %v1607 = vpop.permute.xlu0 %1606
    %1608 = vrot.lane.b32.xlu0 %v1584, 126
    %v1609 = vpop.permute.xlu0 %1608
    %1610 = vrot.lane.b32.xlu0 %v1585, 126
    %v1611 = vpop.permute.xlu0 %1610
    %1612 = vrot.lane.b32.xlu0 %v1586, 126
    %v1613 = vpop.permute.xlu0 %1612
    %v1623 = vadd.f32 %v1567, %v1597
    %v1624 = vadd.f32 %v1568, %v1599
    %v1625 = vadd.f32 %v1569, %v1601
    %v1626 = vadd.f32 %v1570, %v1603
    %v1627 = vadd.f32 %v1571, %v1605
    %v1628 = vadd.f32 %v1572, %v1607
    %v1629 = vadd.f32 %v1573, %v1609
    %v1630 = vadd.f32 %v1574, %v1611
    %v1631 = vadd.f32 %v1575, %v1613
    %v1632 = vld [vmem:[%s2 + $0x2] sm:$0xff]
    %v1633 = vld [vmem:[%s2 + $0xa] sm:$0xff]
    %v1634 = vld [vmem:[%s2 + $0x12] sm:$0xff]
    %v1635 = vld [vmem:[%s2 + $0x1a] sm:$0xff]
    %v1636 = vld [vmem:[%s2 + $0x22] sm:$0xff]
    %v1637 = vld [vmem:[%s2 + $0x2a] sm:$0xff]
    %v1638 = vld [vmem:[%s2 + $0x32] sm:$0xff]
    %v1639 = vld [vmem:[%s2 + $0x3a] sm:$0xff]
    %v1640 = vld [vmem:[%s2 + $0x42] sm:$0x1]
    %s1641 = sld [smem:[#allocation2 + $0x21]]
    %v1642 = vstv %s1641
    %v1643 = vmul.f32 %v1642, %v1632
    %v1644 = vmul.f32 %v1642, %v1633
    %v1645 = vmul.f32 %v1642, %v1634
    %v1646 = vmul.f32 %v1642, %v1635
    %v1647 = vmul.f32 %v1642, %v1636
    %v1648 = vmul.f32 %v1642, %v1637
    %v1649 = vmul.f32 %v1642, %v1638
    %v1650 = vmul.f32 %v1642, %v1639
    %v1651 = vmul.f32 %v1642, %v1640
    %v1652 = vadd.f32 %v1623, %v1643
    %v1653 = vadd.f32 %v1624, %v1644
    %v1654 = vadd.f32 %v1625, %v1645
    %v1655 = vadd.f32 %v1626, %v1646
    %v1656 = vadd.f32 %v1627, %v1647
    %v1657 = vadd.f32 %v1628, %v1648
    %v1658 = vadd.f32 %v1629, %v1649
    %v1659 = vadd.f32 %v1630, %v1650
    %v1660 = vadd.f32 %v1631, %v1651
    %s1661 = sld [smem:[#allocation2 + $0x22]]
    %v1662 = vstv %s1661
    %v1663 = vmul.f32 %v1662, %v1632
    %v1664 = vmul.f32 %v1662, %v1633
    %v1665 = vmul.f32 %v1662, %v1634
    %v1666 = vmul.f32 %v1662, %v1635
    %v1667 = vmul.f32 %v1662, %v1636
    %v1668 = vmul.f32 %v1662, %v1637
    %v1669 = vmul.f32 %v1662, %v1638
    %v1670 = vmul.f32 %v1662, %v1639
    %v1671 = vmul.f32 %v1662, %v1640
    %1681 = vrot.lane.b32.xlu0 %v1663, 127
    %v1682 = vpop.permute.xlu0 %1681
    %1683 = vrot.lane.b32.xlu0 %v1664, 127
    %v1684 = vpop.permute.xlu0 %1683
    %1685 = vrot.lane.b32.xlu0 %v1665, 127
    %v1686 = vpop.permute.xlu0 %1685
    %1687 = vrot.lane.b32.xlu0 %v1666, 127
    %v1688 = vpop.permute.xlu0 %1687
    %1689 = vrot.lane.b32.xlu0 %v1667, 127
    %v1690 = vpop.permute.xlu0 %1689
    %1691 = vrot.lane.b32.xlu0 %v1668, 127
    %v1692 = vpop.permute.xlu0 %1691
    %1693 = vrot.lane.b32.xlu0 %v1669, 127
    %v1694 = vpop.permute.xlu0 %1693
    %1695 = vrot.lane.b32.xlu0 %v1670, 127
    %v1696 = vpop.permute.xlu0 %1695
    %1697 = vrot.lane.b32.xlu0 %v1671, 127
    %v1698 = vpop.permute.xlu0 %1697
    %v1708 = vadd.f32 %v1652, %v1682
    %v1709 = vadd.f32 %v1653, %v1684
    %v1710 = vadd.f32 %v1654, %v1686
    %v1711 = vadd.f32 %v1655, %v1688
    %v1712 = vadd.f32 %v1656, %v1690
    %v1713 = vadd.f32 %v1657, %v1692
    %v1714 = vadd.f32 %v1658, %v1694
    %v1715 = vadd.f32 %v1659, %v1696
    %v1716 = vadd.f32 %v1660, %v1698
    %s1717 = sld [smem:[#allocation2 + $0x23]]
    %v1718 = vstv %s1717
    %v1719 = vmul.f32 %v1718, %v1632
    %v1720 = vmul.f32 %v1718, %v1633
    %v1721 = vmul.f32 %v1718, %v1634
    %v1722 = vmul.f32 %v1718, %v1635
    %v1723 = vmul.f32 %v1718, %v1636
    %v1724 = vmul.f32 %v1718, %v1637
    %v1725 = vmul.f32 %v1718, %v1638
    %v1726 = vmul.f32 %v1718, %v1639
    %v1727 = vmul.f32 %v1718, %v1640
    %1737 = vrot.lane.b32.xlu0 %v1719, 126
    %v1738 = vpop.permute.xlu0 %1737
    %1739 = vrot.lane.b32.xlu0 %v1720, 126
    %v1740 = vpop.permute.xlu0 %1739
    %1741 = vrot.lane.b32.xlu0 %v1721, 126
    %v1742 = vpop.permute.xlu0 %1741
    %1743 = vrot.lane.b32.xlu0 %v1722, 126
    %v1744 = vpop.permute.xlu0 %1743
    %1745 = vrot.lane.b32.xlu0 %v1723, 126
    %v1746 = vpop.permute.xlu0 %1745
    %1747 = vrot.lane.b32.xlu0 %v1724, 126
    %v1748 = vpop.permute.xlu0 %1747
    %1749 = vrot.lane.b32.xlu0 %v1725, 126
    %v1750 = vpop.permute.xlu0 %1749
    %1751 = vrot.lane.b32.xlu0 %v1726, 126
    %v1752 = vpop.permute.xlu0 %1751
    %1753 = vrot.lane.b32.xlu0 %v1727, 126
    %v1754 = vpop.permute.xlu0 %1753
    %v1764 = vadd.f32 %v1708, %v1738
    %v1765 = vadd.f32 %v1709, %v1740
    %v1766 = vadd.f32 %v1710, %v1742
    %v1767 = vadd.f32 %v1711, %v1744
    %v1768 = vadd.f32 %v1712, %v1746
    %v1769 = vadd.f32 %v1713, %v1748
    %v1770 = vadd.f32 %v1714, %v1750
    %v1771 = vadd.f32 %v1715, %v1752
    %v1772 = vadd.f32 %v1716, %v1754
    %v1773 = vld [vmem:[%s462] sm:$0xff]
    %v1774 = vld [vmem:[%s462 + $0x8] sm:$0xff]
    %v1775 = vld [vmem:[%s462 + $0x10] sm:$0xff]
    %v1776 = vld [vmem:[%s462 + $0x18] sm:$0xff]
    %v1777 = vld [vmem:[%s462 + $0x20] sm:$0xff]
    %v1778 = vld [vmem:[%s462 + $0x28] sm:$0xff]
    %v1779 = vld [vmem:[%s462 + $0x30] sm:$0xff]
    %v1780 = vld [vmem:[%s462 + $0x38] sm:$0xff]
    %v1781 = vld [vmem:[%s462 + $0x40] sm:$0x1]
    %s1782 = sld [smem:[#allocation2 + $0x24]]
    %v1783 = vstv %s1782
    %v1784 = vmul.f32 %v1783, %v1773
    %v1785 = vmul.f32 %v1783, %v1774
    %v1786 = vmul.f32 %v1783, %v1775
    %v1787 = vmul.f32 %v1783, %v1776
    %v1788 = vmul.f32 %v1783, %v1777
    %v1789 = vmul.f32 %v1783, %v1778
    %v1790 = vmul.f32 %v1783, %v1779
    %v1791 = vmul.f32 %v1783, %v1780
    %v1792 = vmul.f32 %v1783, %v1781
    %v1793 = vadd.f32 %v1764, %v1784
    %v1794 = vadd.f32 %v1765, %v1785
    %v1795 = vadd.f32 %v1766, %v1786
    %v1796 = vadd.f32 %v1767, %v1787
    %v1797 = vadd.f32 %v1768, %v1788
    %v1798 = vadd.f32 %v1769, %v1789
    %v1799 = vadd.f32 %v1770, %v1790
    %v1800 = vadd.f32 %v1771, %v1791
    %v1801 = vadd.f32 %v1772, %v1792
    %s1802 = sld [smem:[#allocation2 + $0x25]]
    %v1803 = vstv %s1802
    %v1804 = vmul.f32 %v1803, %v1773
    %v1805 = vmul.f32 %v1803, %v1774
    %v1806 = vmul.f32 %v1803, %v1775
    %v1807 = vmul.f32 %v1803, %v1776
    %v1808 = vmul.f32 %v1803, %v1777
    %v1809 = vmul.f32 %v1803, %v1778
    %v1810 = vmul.f32 %v1803, %v1779
    %v1811 = vmul.f32 %v1803, %v1780
    %v1812 = vmul.f32 %v1803, %v1781
    %1822 = vrot.lane.b32.xlu0 %v1804, 127
    %v1823 = vpop.permute.xlu0 %1822
    %1824 = vrot.lane.b32.xlu0 %v1805, 127
    %v1825 = vpop.permute.xlu0 %1824
    %1826 = vrot.lane.b32.xlu0 %v1806, 127
    %v1827 = vpop.permute.xlu0 %1826
    %1828 = vrot.lane.b32.xlu0 %v1807, 127
    %v1829 = vpop.permute.xlu0 %1828
    %1830 = vrot.lane.b32.xlu0 %v1808, 127
    %v1831 = vpop.permute.xlu0 %1830
    %1832 = vrot.lane.b32.xlu0 %v1809, 127
    %v1833 = vpop.permute.xlu0 %1832
    %1834 = vrot.lane.b32.xlu0 %v1810, 127
    %v1835 = vpop.permute.xlu0 %1834
    %1836 = vrot.lane.b32.xlu0 %v1811, 127
    %v1837 = vpop.permute.xlu0 %1836
    %1838 = vrot.lane.b32.xlu0 %v1812, 127
    %v1839 = vpop.permute.xlu0 %1838
    %v1849 = vadd.f32 %v1793, %v1823
    %v1850 = vadd.f32 %v1794, %v1825
    %v1851 = vadd.f32 %v1795, %v1827
    %v1852 = vadd.f32 %v1796, %v1829
    %v1853 = vadd.f32 %v1797, %v1831
    %v1854 = vadd.f32 %v1798, %v1833
    %v1855 = vadd.f32 %v1799, %v1835
    %v1856 = vadd.f32 %v1800, %v1837
    %v1857 = vadd.f32 %v1801, %v1839
    %s1858 = sld [smem:[#allocation2 + $0x26]]
    %v1859 = vstv %s1858
    %v1860 = vmul.f32 %v1859, %v1773
    %v1861 = vmul.f32 %v1859, %v1774
    %v1862 = vmul.f32 %v1859, %v1775
    %v1863 = vmul.f32 %v1859, %v1776
    %v1864 = vmul.f32 %v1859, %v1777
    %v1865 = vmul.f32 %v1859, %v1778
    %v1866 = vmul.f32 %v1859, %v1779
    %v1867 = vmul.f32 %v1859, %v1780
    %v1868 = vmul.f32 %v1859, %v1781
    %1878 = vrot.lane.b32.xlu0 %v1860, 126
    %v1879 = vpop.permute.xlu0 %1878
    %1880 = vrot.lane.b32.xlu0 %v1861, 126
    %v1881 = vpop.permute.xlu0 %1880
    %1882 = vrot.lane.b32.xlu0 %v1862, 126
    %v1883 = vpop.permute.xlu0 %1882
    %1884 = vrot.lane.b32.xlu0 %v1863, 126
    %v1885 = vpop.permute.xlu0 %1884
    %1886 = vrot.lane.b32.xlu0 %v1864, 126
    %v1887 = vpop.permute.xlu0 %1886
    %1888 = vrot.lane.b32.xlu0 %v1865, 126
    %v1889 = vpop.permute.xlu0 %1888
    %1890 = vrot.lane.b32.xlu0 %v1866, 126
    %v1891 = vpop.permute.xlu0 %1890
    %1892 = vrot.lane.b32.xlu0 %v1867, 126
    %v1893 = vpop.permute.xlu0 %1892
    %1894 = vrot.lane.b32.xlu0 %v1868, 126
    %v1895 = vpop.permute.xlu0 %1894
    %v1905 = vadd.f32 %v1849, %v1879
    %v1906 = vadd.f32 %v1850, %v1881
    %v1907 = vadd.f32 %v1851, %v1883
    %v1908 = vadd.f32 %v1852, %v1885
    %v1909 = vadd.f32 %v1853, %v1887
    %v1910 = vadd.f32 %v1854, %v1889
    %v1911 = vadd.f32 %v1855, %v1891
    %v1912 = vadd.f32 %v1856, %v1893
    %v1913 = vadd.f32 %v1857, %v1895
    %v1914 = vld [vmem:[%s462 + $0x1] sm:$0xff]
    %v1915 = vld [vmem:[%s462 + $0x9] sm:$0xff]
    %v1916 = vld [vmem:[%s462 + $0x11] sm:$0xff]
    %v1917 = vld [vmem:[%s462 + $0x19] sm:$0xff]
    %v1918 = vld [vmem:[%s462 + $0x21] sm:$0xff]
    %v1919 = vld [vmem:[%s462 + $0x29] sm:$0xff]
    %v1920 = vld [vmem:[%s462 + $0x31] sm:$0xff]
    %v1921 = vld [vmem:[%s462 + $0x39] sm:$0xff]
    %v1922 = vld [vmem:[%s462 + $0x41] sm:$0x1]
    %s1923 = sld [smem:[#allocation2 + $0x27]]
    %v1924 = vstv %s1923
    %v1925 = vmul.f32 %v1924, %v1914
    %v1926 = vmul.f32 %v1924, %v1915
    %v1927 = vmul.f32 %v1924, %v1916
    %v1928 = vmul.f32 %v1924, %v1917
    %v1929 = vmul.f32 %v1924, %v1918
    %v1930 = vmul.f32 %v1924, %v1919
    %v1931 = vmul.f32 %v1924, %v1920
    %v1932 = vmul.f32 %v1924, %v1921
    %v1933 = vmul.f32 %v1924, %v1922
    %v1934 = vadd.f32 %v1905, %v1925
    %v1935 = vadd.f32 %v1906, %v1926
    %v1936 = vadd.f32 %v1907, %v1927
    %v1937 = vadd.f32 %v1908, %v1928
    %v1938 = vadd.f32 %v1909, %v1929
    %v1939 = vadd.f32 %v1910, %v1930
    %v1940 = vadd.f32 %v1911, %v1931
    %v1941 = vadd.f32 %v1912, %v1932
    %v1942 = vadd.f32 %v1913, %v1933
    %s1943 = sld [smem:[#allocation2 + $0x28]]
    %v1944 = vstv %s1943
    %v1945 = vmul.f32 %v1944, %v1914
    %v1946 = vmul.f32 %v1944, %v1915
    %v1947 = vmul.f32 %v1944, %v1916
    %v1948 = vmul.f32 %v1944, %v1917
    %v1949 = vmul.f32 %v1944, %v1918
    %v1950 = vmul.f32 %v1944, %v1919
    %v1951 = vmul.f32 %v1944, %v1920
    %v1952 = vmul.f32 %v1944, %v1921
    %v1953 = vmul.f32 %v1944, %v1922
    %1963 = vrot.lane.b32.xlu0 %v1945, 127
    %v1964 = vpop.permute.xlu0 %1963
    %1965 = vrot.lane.b32.xlu0 %v1946, 127
    %v1966 = vpop.permute.xlu0 %1965
    %1967 = vrot.lane.b32.xlu0 %v1947, 127
    %v1968 = vpop.permute.xlu0 %1967
    %1969 = vrot.lane.b32.xlu0 %v1948, 127
    %v1970 = vpop.permute.xlu0 %1969
    %1971 = vrot.lane.b32.xlu0 %v1949, 127
    %v1972 = vpop.permute.xlu0 %1971
    %1973 = vrot.lane.b32.xlu0 %v1950, 127
    %v1974 = vpop.permute.xlu0 %1973
    %1975 = vrot.lane.b32.xlu0 %v1951, 127
    %v1976 = vpop.permute.xlu0 %1975
    %1977 = vrot.lane.b32.xlu0 %v1952, 127
    %v1978 = vpop.permute.xlu0 %1977
    %1979 = vrot.lane.b32.xlu0 %v1953, 127
    %v1980 = vpop.permute.xlu0 %1979
    %v1990 = vadd.f32 %v1934, %v1964
    %v1991 = vadd.f32 %v1935, %v1966
    %v1992 = vadd.f32 %v1936, %v1968
    %v1993 = vadd.f32 %v1937, %v1970
    %v1994 = vadd.f32 %v1938, %v1972
    %v1995 = vadd.f32 %v1939, %v1974
    %v1996 = vadd.f32 %v1940, %v1976
    %v1997 = vadd.f32 %v1941, %v1978
    %v1998 = vadd.f32 %v1942, %v1980
    %s1999 = sld [smem:[#allocation2 + $0x29]]
    %v2000 = vstv %s1999
    %v2001 = vmul.f32 %v2000, %v1914
    %v2002 = vmul.f32 %v2000, %v1915
    %v2003 = vmul.f32 %v2000, %v1916
    %v2004 = vmul.f32 %v2000, %v1917
    %v2005 = vmul.f32 %v2000, %v1918
    %v2006 = vmul.f32 %v2000, %v1919
    %v2007 = vmul.f32 %v2000, %v1920
    %v2008 = vmul.f32 %v2000, %v1921
    %v2009 = vmul.f32 %v2000, %v1922
    %2019 = vrot.lane.b32.xlu0 %v2001, 126
    %v2020 = vpop.permute.xlu0 %2019
    %2021 = vrot.lane.b32.xlu0 %v2002, 126
    %v2022 = vpop.permute.xlu0 %2021
    %2023 = vrot.lane.b32.xlu0 %v2003, 126
    %v2024 = vpop.permute.xlu0 %2023
    %2025 = vrot.lane.b32.xlu0 %v2004, 126
    %v2026 = vpop.permute.xlu0 %2025
    %2027 = vrot.lane.b32.xlu0 %v2005, 126
    %v2028 = vpop.permute.xlu0 %2027
    %2029 = vrot.lane.b32.xlu0 %v2006, 126
    %v2030 = vpop.permute.xlu0 %2029
    %2031 = vrot.lane.b32.xlu0 %v2007, 126
    %v2032 = vpop.permute.xlu0 %2031
    %2033 = vrot.lane.b32.xlu0 %v2008, 126
    %v2034 = vpop.permute.xlu0 %2033
    %2035 = vrot.lane.b32.xlu0 %v2009, 126
    %v2036 = vpop.permute.xlu0 %2035
    %v2046 = vadd.f32 %v1990, %v2020
    %v2047 = vadd.f32 %v1991, %v2022
    %v2048 = vadd.f32 %v1992, %v2024
    %v2049 = vadd.f32 %v1993, %v2026
    %v2050 = vadd.f32 %v1994, %v2028
    %v2051 = vadd.f32 %v1995, %v2030
    %v2052 = vadd.f32 %v1996, %v2032
    %v2053 = vadd.f32 %v1997, %v2034
    %v2054 = vadd.f32 %v1998, %v2036
    %v2055 = vld [vmem:[%s462 + $0x2] sm:$0xff]
    %v2056 = vld [vmem:[%s462 + $0xa] sm:$0xff]
    %v2057 = vld [vmem:[%s462 + $0x12] sm:$0xff]
    %v2058 = vld [vmem:[%s462 + $0x1a] sm:$0xff]
    %v2059 = vld [vmem:[%s462 + $0x22] sm:$0xff]
    %v2060 = vld [vmem:[%s462 + $0x2a] sm:$0xff]
    %v2061 = vld [vmem:[%s462 + $0x32] sm:$0xff]
    %v2062 = vld [vmem:[%s462 + $0x3a] sm:$0xff]
    %v2063 = vld [vmem:[%s462 + $0x42] sm:$0x1]
    %s2064 = sld [smem:[#allocation2 + $0x2a]]
    %v2065 = vstv %s2064
    %v2066 = vmul.f32 %v2065, %v2055
    %v2067 = vmul.f32 %v2065, %v2056
    %v2068 = vmul.f32 %v2065, %v2057
    %v2069 = vmul.f32 %v2065, %v2058
    %v2070 = vmul.f32 %v2065, %v2059
    %v2071 = vmul.f32 %v2065, %v2060
    %v2072 = vmul.f32 %v2065, %v2061
    %v2073 = vmul.f32 %v2065, %v2062
    %v2074 = vmul.f32 %v2065, %v2063
    %v2075 = vadd.f32 %v2046, %v2066
    %v2076 = vadd.f32 %v2047, %v2067
    %v2077 = vadd.f32 %v2048, %v2068
    %v2078 = vadd.f32 %v2049, %v2069
    %v2079 = vadd.f32 %v2050, %v2070
    %v2080 = vadd.f32 %v2051, %v2071
    %v2081 = vadd.f32 %v2052, %v2072
    %v2082 = vadd.f32 %v2053, %v2073
    %v2083 = vadd.f32 %v2054, %v2074
    %s2084 = sld [smem:[#allocation2 + $0x2b]]
    %v2085 = vstv %s2084
    %v2086 = vmul.f32 %v2085, %v2055
    %v2087 = vmul.f32 %v2085, %v2056
    %v2088 = vmul.f32 %v2085, %v2057
    %v2089 = vmul.f32 %v2085, %v2058
    %v2090 = vmul.f32 %v2085, %v2059
    %v2091 = vmul.f32 %v2085, %v2060
    %v2092 = vmul.f32 %v2085, %v2061
    %v2093 = vmul.f32 %v2085, %v2062
    %v2094 = vmul.f32 %v2085, %v2063
    %2104 = vrot.lane.b32.xlu0 %v2086, 127
    %v2105 = vpop.permute.xlu0 %2104
    %2106 = vrot.lane.b32.xlu0 %v2087, 127
    %v2107 = vpop.permute.xlu0 %2106
    %2108 = vrot.lane.b32.xlu0 %v2088, 127
    %v2109 = vpop.permute.xlu0 %2108
    %2110 = vrot.lane.b32.xlu0 %v2089, 127
    %v2111 = vpop.permute.xlu0 %2110
    %2112 = vrot.lane.b32.xlu0 %v2090, 127
    %v2113 = vpop.permute.xlu0 %2112
    %2114 = vrot.lane.b32.xlu0 %v2091, 127
    %v2115 = vpop.permute.xlu0 %2114
    %2116 = vrot.lane.b32.xlu0 %v2092, 127
    %v2117 = vpop.permute.xlu0 %2116
    %2118 = vrot.lane.b32.xlu0 %v2093, 127
    %v2119 = vpop.permute.xlu0 %2118
    %2120 = vrot.lane.b32.xlu0 %v2094, 127
    %v2121 = vpop.permute.xlu0 %2120
    %v2131 = vadd.f32 %v2075, %v2105
    %v2132 = vadd.f32 %v2076, %v2107
    %v2133 = vadd.f32 %v2077, %v2109
    %v2134 = vadd.f32 %v2078, %v2111
    %v2135 = vadd.f32 %v2079, %v2113
    %v2136 = vadd.f32 %v2080, %v2115
    %v2137 = vadd.f32 %v2081, %v2117
    %v2138 = vadd.f32 %v2082, %v2119
    %v2139 = vadd.f32 %v2083, %v2121
    %s2140 = sld [smem:[#allocation2 + $0x2c]]
    %v2141 = vstv %s2140
    %v2142 = vmul.f32 %v2141, %v2055
    %v2143 = vmul.f32 %v2141, %v2056
    %v2144 = vmul.f32 %v2141, %v2057
    %v2145 = vmul.f32 %v2141, %v2058
    %v2146 = vmul.f32 %v2141, %v2059
    %v2147 = vmul.f32 %v2141, %v2060
    %v2148 = vmul.f32 %v2141, %v2061
    %v2149 = vmul.f32 %v2141, %v2062
    %v2150 = vmul.f32 %v2141, %v2063
    %2160 = vrot.lane.b32.xlu0 %v2142, 126
    %v2161 = vpop.permute.xlu0 %2160
    %2162 = vrot.lane.b32.xlu0 %v2143, 126
    %v2163 = vpop.permute.xlu0 %2162
    %2164 = vrot.lane.b32.xlu0 %v2144, 126
    %v2165 = vpop.permute.xlu0 %2164
    %2166 = vrot.lane.b32.xlu0 %v2145, 126
    %v2167 = vpop.permute.xlu0 %2166
    %2168 = vrot.lane.b32.xlu0 %v2146, 126
    %v2169 = vpop.permute.xlu0 %2168
    %2170 = vrot.lane.b32.xlu0 %v2147, 126
    %v2171 = vpop.permute.xlu0 %2170
    %2172 = vrot.lane.b32.xlu0 %v2148, 126
    %v2173 = vpop.permute.xlu0 %2172
    %2174 = vrot.lane.b32.xlu0 %v2149, 126
    %v2175 = vpop.permute.xlu0 %2174
    %2176 = vrot.lane.b32.xlu0 %v2150, 126
    %v2177 = vpop.permute.xlu0 %2176
    %v2187 = vadd.f32 %v2131, %v2161
    %v2188 = vadd.f32 %v2132, %v2163
    %v2189 = vadd.f32 %v2133, %v2165
    %v2190 = vadd.f32 %v2134, %v2167
    %v2191 = vadd.f32 %v2135, %v2169
    %v2192 = vadd.f32 %v2136, %v2171
    %v2193 = vadd.f32 %v2137, %v2173
    %v2194 = vadd.f32 %v2138, %v2175
    %v2195 = vadd.f32 %v2139, %v2177
    %v2196 = vld [vmem:[%s886] sm:$0xff]
    %v2197 = vld [vmem:[%s886 + $0x8] sm:$0xff]
    %v2198 = vld [vmem:[%s886 + $0x10] sm:$0xff]
    %v2199 = vld [vmem:[%s886 + $0x18] sm:$0xff]
    %v2200 = vld [vmem:[%s886 + $0x20] sm:$0xff]
    %v2201 = vld [vmem:[%s886 + $0x28] sm:$0xff]
    %v2202 = vld [vmem:[%s886 + $0x30] sm:$0xff]
    %v2203 = vld [vmem:[%s886 + $0x38] sm:$0xff]
    %v2204 = vld [vmem:[%s886 + $0x40] sm:$0x1]
    %s2205 = sld [smem:[#allocation2 + $0x2d]]
    %v2206 = vstv %s2205
    %v2207 = vmul.f32 %v2206, %v2196
    %v2208 = vmul.f32 %v2206, %v2197
    %v2209 = vmul.f32 %v2206, %v2198
    %v2210 = vmul.f32 %v2206, %v2199
    %v2211 = vmul.f32 %v2206, %v2200
    %v2212 = vmul.f32 %v2206, %v2201
    %v2213 = vmul.f32 %v2206, %v2202
    %v2214 = vmul.f32 %v2206, %v2203
    %v2215 = vmul.f32 %v2206, %v2204
    %v2216 = vadd.f32 %v2187, %v2207
    %v2217 = vadd.f32 %v2188, %v2208
    %v2218 = vadd.f32 %v2189, %v2209
    %v2219 = vadd.f32 %v2190, %v2210
    %v2220 = vadd.f32 %v2191, %v2211
    %v2221 = vadd.f32 %v2192, %v2212
    %v2222 = vadd.f32 %v2193, %v2213
    %v2223 = vadd.f32 %v2194, %v2214
    %v2224 = vadd.f32 %v2195, %v2215
    %s2225 = sld [smem:[#allocation2 + $0x2e]]
    %v2226 = vstv %s2225
    %v2227 = vmul.f32 %v2226, %v2196
    %v2228 = vmul.f32 %v2226, %v2197
    %v2229 = vmul.f32 %v2226, %v2198
    %v2230 = vmul.f32 %v2226, %v2199
    %v2231 = vmul.f32 %v2226, %v2200
    %v2232 = vmul.f32 %v2226, %v2201
    %v2233 = vmul.f32 %v2226, %v2202
    %v2234 = vmul.f32 %v2226, %v2203
    %v2235 = vmul.f32 %v2226, %v2204
    %2245 = vrot.lane.b32.xlu0 %v2227, 127
    %v2246 = vpop.permute.xlu0 %2245
    %2247 = vrot.lane.b32.xlu0 %v2228, 127
    %v2248 = vpop.permute.xlu0 %2247
    %2249 = vrot.lane.b32.xlu0 %v2229, 127
    %v2250 = vpop.permute.xlu0 %2249
    %2251 = vrot.lane.b32.xlu0 %v2230, 127
    %v2252 = vpop.permute.xlu0 %2251
    %2253 = vrot.lane.b32.xlu0 %v2231, 127
    %v2254 = vpop.permute.xlu0 %2253
    %2255 = vrot.lane.b32.xlu0 %v2232, 127
    %v2256 = vpop.permute.xlu0 %2255
    %2257 = vrot.lane.b32.xlu0 %v2233, 127
    %v2258 = vpop.permute.xlu0 %2257
    %2259 = vrot.lane.b32.xlu0 %v2234, 127
    %v2260 = vpop.permute.xlu0 %2259
    %2261 = vrot.lane.b32.xlu0 %v2235, 127
    %v2262 = vpop.permute.xlu0 %2261
    %v2272 = vadd.f32 %v2216, %v2246
    %v2273 = vadd.f32 %v2217, %v2248
    %v2274 = vadd.f32 %v2218, %v2250
    %v2275 = vadd.f32 %v2219, %v2252
    %v2276 = vadd.f32 %v2220, %v2254
    %v2277 = vadd.f32 %v2221, %v2256
    %v2278 = vadd.f32 %v2222, %v2258
    %v2279 = vadd.f32 %v2223, %v2260
    %v2280 = vadd.f32 %v2224, %v2262
    %s2281 = sld [smem:[#allocation2 + $0x2f]]
    %v2282 = vstv %s2281
    %v2283 = vmul.f32 %v2282, %v2196
    %v2284 = vmul.f32 %v2282, %v2197
    %v2285 = vmul.f32 %v2282, %v2198
    %v2286 = vmul.f32 %v2282, %v2199
    %v2287 = vmul.f32 %v2282, %v2200
    %v2288 = vmul.f32 %v2282, %v2201
    %v2289 = vmul.f32 %v2282, %v2202
    %v2290 = vmul.f32 %v2282, %v2203
    %v2291 = vmul.f32 %v2282, %v2204
    %2301 = vrot.lane.b32.xlu0 %v2283, 126
    %v2302 = vpop.permute.xlu0 %2301
    %2303 = vrot.lane.b32.xlu0 %v2284, 126
    %v2304 = vpop.permute.xlu0 %2303
    %2305 = vrot.lane.b32.xlu0 %v2285, 126
    %v2306 = vpop.permute.xlu0 %2305
    %2307 = vrot.lane.b32.xlu0 %v2286, 126
    %v2308 = vpop.permute.xlu0 %2307
    %2309 = vrot.lane.b32.xlu0 %v2287, 126
    %v2310 = vpop.permute.xlu0 %2309
    %2311 = vrot.lane.b32.xlu0 %v2288, 126
    %v2312 = vpop.permute.xlu0 %2311
    %2313 = vrot.lane.b32.xlu0 %v2289, 126
    %v2314 = vpop.permute.xlu0 %2313
    %2315 = vrot.lane.b32.xlu0 %v2290, 126
    %v2316 = vpop.permute.xlu0 %2315
    %2317 = vrot.lane.b32.xlu0 %v2291, 126
    %v2318 = vpop.permute.xlu0 %2317
    %v2328 = vadd.f32 %v2272, %v2302
    %v2329 = vadd.f32 %v2273, %v2304
    %v2330 = vadd.f32 %v2274, %v2306
    %v2331 = vadd.f32 %v2275, %v2308
    %v2332 = vadd.f32 %v2276, %v2310
    %v2333 = vadd.f32 %v2277, %v2312
    %v2334 = vadd.f32 %v2278, %v2314
    %v2335 = vadd.f32 %v2279, %v2316
    %v2336 = vadd.f32 %v2280, %v2318
    %v2337 = vld [vmem:[%s886 + $0x1] sm:$0xff]
    %v2338 = vld [vmem:[%s886 + $0x9] sm:$0xff]
    %v2339 = vld [vmem:[%s886 + $0x11] sm:$0xff]
    %v2340 = vld [vmem:[%s886 + $0x19] sm:$0xff]
    %v2341 = vld [vmem:[%s886 + $0x21] sm:$0xff]
    %v2342 = vld [vmem:[%s886 + $0x29] sm:$0xff]
    %v2343 = vld [vmem:[%s886 + $0x31] sm:$0xff]
    %v2344 = vld [vmem:[%s886 + $0x39] sm:$0xff]
    %v2345 = vld [vmem:[%s886 + $0x41] sm:$0x1]
    %s2346 = sld [smem:[#allocation2 + $0x30]]
    %v2347 = vstv %s2346
    %v2348 = vmul.f32 %v2347, %v2337
    %v2349 = vmul.f32 %v2347, %v2338
    %v2350 = vmul.f32 %v2347, %v2339
    %v2351 = vmul.f32 %v2347, %v2340
    %v2352 = vmul.f32 %v2347, %v2341
    %v2353 = vmul.f32 %v2347, %v2342
    %v2354 = vmul.f32 %v2347, %v2343
    %v2355 = vmul.f32 %v2347, %v2344
    %v2356 = vmul.f32 %v2347, %v2345
    %v2357 = vadd.f32 %v2328, %v2348
    %v2358 = vadd.f32 %v2329, %v2349
    %v2359 = vadd.f32 %v2330, %v2350
    %v2360 = vadd.f32 %v2331, %v2351
    %v2361 = vadd.f32 %v2332, %v2352
    %v2362 = vadd.f32 %v2333, %v2353
    %v2363 = vadd.f32 %v2334, %v2354
    %v2364 = vadd.f32 %v2335, %v2355
    %v2365 = vadd.f32 %v2336, %v2356
    %s2366 = sld [smem:[#allocation2 + $0x31]]
    %v2367 = vstv %s2366
    %v2368 = vmul.f32 %v2367, %v2337
    %v2369 = vmul.f32 %v2367, %v2338
    %v2370 = vmul.f32 %v2367, %v2339
    %v2371 = vmul.f32 %v2367, %v2340
    %v2372 = vmul.f32 %v2367, %v2341
    %v2373 = vmul.f32 %v2367, %v2342
    %v2374 = vmul.f32 %v2367, %v2343
    %v2375 = vmul.f32 %v2367, %v2344
    %v2376 = vmul.f32 %v2367, %v2345
    %2386 = vrot.lane.b32.xlu0 %v2368, 127
    %v2387 = vpop.permute.xlu0 %2386
    %2388 = vrot.lane.b32.xlu0 %v2369, 127
    %v2389 = vpop.permute.xlu0 %2388
    %2390 = vrot.lane.b32.xlu0 %v2370, 127
    %v2391 = vpop.permute.xlu0 %2390
    %2392 = vrot.lane.b32.xlu0 %v2371, 127
    %v2393 = vpop.permute.xlu0 %2392
    %2394 = vrot.lane.b32.xlu0 %v2372, 127
    %v2395 = vpop.permute.xlu0 %2394
    %2396 = vrot.lane.b32.xlu0 %v2373, 127
    %v2397 = vpop.permute.xlu0 %2396
    %2398 = vrot.lane.b32.xlu0 %v2374, 127
    %v2399 = vpop.permute.xlu0 %2398
    %2400 = vrot.lane.b32.xlu0 %v2375, 127
    %v2401 = vpop.permute.xlu0 %2400
    %2402 = vrot.lane.b32.xlu0 %v2376, 127
    %v2403 = vpop.permute.xlu0 %2402
    %v2413 = vadd.f32 %v2357, %v2387
    %v2414 = vadd.f32 %v2358, %v2389
    %v2415 = vadd.f32 %v2359, %v2391
    %v2416 = vadd.f32 %v2360, %v2393
    %v2417 = vadd.f32 %v2361, %v2395
    %v2418 = vadd.f32 %v2362, %v2397
    %v2419 = vadd.f32 %v2363, %v2399
    %v2420 = vadd.f32 %v2364, %v2401
    %v2421 = vadd.f32 %v2365, %v2403
    %s2422 = sld [smem:[#allocation2 + $0x32]]
    %v2423 = vstv %s2422
    %v2424 = vmul.f32 %v2423, %v2337
    %v2425 = vmul.f32 %v2423, %v2338
    %v2426 = vmul.f32 %v2423, %v2339
    %v2427 = vmul.f32 %v2423, %v2340
    %v2428 = vmul.f32 %v2423, %v2341
    %v2429 = vmul.f32 %v2423, %v2342
    %v2430 = vmul.f32 %v2423, %v2343
    %v2431 = vmul.f32 %v2423, %v2344
    %v2432 = vmul.f32 %v2423, %v2345
    %2442 = vrot.lane.b32.xlu0 %v2424, 126
    %v2443 = vpop.permute.xlu0 %2442
    %2444 = vrot.lane.b32.xlu0 %v2425, 126
    %v2445 = vpop.permute.xlu0 %2444
    %2446 = vrot.lane.b32.xlu0 %v2426, 126
    %v2447 = vpop.permute.xlu0 %2446
    %2448 = vrot.lane.b32.xlu0 %v2427, 126
    %v2449 = vpop.permute.xlu0 %2448
    %2450 = vrot.lane.b32.xlu0 %v2428, 126
    %v2451 = vpop.permute.xlu0 %2450
    %2452 = vrot.lane.b32.xlu0 %v2429, 126
    %v2453 = vpop.permute.xlu0 %2452
    %2454 = vrot.lane.b32.xlu0 %v2430, 126
    %v2455 = vpop.permute.xlu0 %2454
    %2456 = vrot.lane.b32.xlu0 %v2431, 126
    %v2457 = vpop.permute.xlu0 %2456
    %2458 = vrot.lane.b32.xlu0 %v2432, 126
    %v2459 = vpop.permute.xlu0 %2458
    %v2469 = vadd.f32 %v2413, %v2443
    %v2470 = vadd.f32 %v2414, %v2445
    %v2471 = vadd.f32 %v2415, %v2447
    %v2472 = vadd.f32 %v2416, %v2449
    %v2473 = vadd.f32 %v2417, %v2451
    %v2474 = vadd.f32 %v2418, %v2453
    %v2475 = vadd.f32 %v2419, %v2455
    %v2476 = vadd.f32 %v2420, %v2457
    %v2477 = vadd.f32 %v2421, %v2459
    %v2478 = vld [vmem:[%s886 + $0x2] sm:$0xff]
    %v2479 = vld [vmem:[%s886 + $0xa] sm:$0xff]
    %v2480 = vld [vmem:[%s886 + $0x12] sm:$0xff]
    %v2481 = vld [vmem:[%s886 + $0x1a] sm:$0xff]
    %v2482 = vld [vmem:[%s886 + $0x22] sm:$0xff]
    %v2483 = vld [vmem:[%s886 + $0x2a] sm:$0xff]
    %v2484 = vld [vmem:[%s886 + $0x32] sm:$0xff]
    %v2485 = vld [vmem:[%s886 + $0x3a] sm:$0xff]
    %v2486 = vld [vmem:[%s886 + $0x42] sm:$0x1]
    %s2487 = sld [smem:[#allocation2 + $0x33]]
    %v2488 = vstv %s2487
    %v2489 = vmul.f32 %v2488, %v2478
    %v2490 = vmul.f32 %v2488, %v2479
    %v2491 = vmul.f32 %v2488, %v2480
    %v2492 = vmul.f32 %v2488, %v2481
    %v2493 = vmul.f32 %v2488, %v2482
    %v2494 = vmul.f32 %v2488, %v2483
    %v2495 = vmul.f32 %v2488, %v2484
    %v2496 = vmul.f32 %v2488, %v2485
    %v2497 = vmul.f32 %v2488, %v2486
    %v2498 = vadd.f32 %v2469, %v2489
    %v2499 = vadd.f32 %v2470, %v2490
    %v2500 = vadd.f32 %v2471, %v2491
    %v2501 = vadd.f32 %v2472, %v2492
    %v2502 = vadd.f32 %v2473, %v2493
    %v2503 = vadd.f32 %v2474, %v2494
    %v2504 = vadd.f32 %v2475, %v2495
    %v2505 = vadd.f32 %v2476, %v2496
    %v2506 = vadd.f32 %v2477, %v2497
    %s2507 = sld [smem:[#allocation2 + $0x34]]
    %v2508 = vstv %s2507
    %v2509 = vmul.f32 %v2508, %v2478
    %v2510 = vmul.f32 %v2508, %v2479
    %v2511 = vmul.f32 %v2508, %v2480
    %v2512 = vmul.f32 %v2508, %v2481
    %v2513 = vmul.f32 %v2508, %v2482
    %v2514 = vmul.f32 %v2508, %v2483
    %v2515 = vmul.f32 %v2508, %v2484
    %v2516 = vmul.f32 %v2508, %v2485
    %v2517 = vmul.f32 %v2508, %v2486
    %2527 = vrot.lane.b32.xlu0 %v2509, 127
    %v2528 = vpop.permute.xlu0 %2527
    %2529 = vrot.lane.b32.xlu0 %v2510, 127
    %v2530 = vpop.permute.xlu0 %2529
    %2531 = vrot.lane.b32.xlu0 %v2511, 127
    %v2532 = vpop.permute.xlu0 %2531
    %2533 = vrot.lane.b32.xlu0 %v2512, 127
    %v2534 = vpop.permute.xlu0 %2533
    %2535 = vrot.lane.b32.xlu0 %v2513, 127
    %v2536 = vpop.permute.xlu0 %2535
    %2537 = vrot.lane.b32.xlu0 %v2514, 127
    %v2538 = vpop.permute.xlu0 %2537
    %2539 = vrot.lane.b32.xlu0 %v2515, 127
    %v2540 = vpop.permute.xlu0 %2539
    %2541 = vrot.lane.b32.xlu0 %v2516, 127
    %v2542 = vpop.permute.xlu0 %2541
    %2543 = vrot.lane.b32.xlu0 %v2517, 127
    %v2544 = vpop.permute.xlu0 %2543
    %v2554 = vadd.f32 %v2498, %v2528
    %v2555 = vadd.f32 %v2499, %v2530
    %v2556 = vadd.f32 %v2500, %v2532
    %v2557 = vadd.f32 %v2501, %v2534
    %v2558 = vadd.f32 %v2502, %v2536
    %v2559 = vadd.f32 %v2503, %v2538
    %v2560 = vadd.f32 %v2504, %v2540
    %v2561 = vadd.f32 %v2505, %v2542
    %v2562 = vadd.f32 %v2506, %v2544
    %s2563 = sld [smem:[#allocation2 + $0x35]]
    %v2564 = vstv %s2563
    %v2565 = vmul.f32 %v2564, %v2478
    %v2566 = vmul.f32 %v2564, %v2479
    %v2567 = vmul.f32 %v2564, %v2480
    %v2568 = vmul.f32 %v2564, %v2481
    %v2569 = vmul.f32 %v2564, %v2482
    %v2570 = vmul.f32 %v2564, %v2483
    %v2571 = vmul.f32 %v2564, %v2484
    %v2572 = vmul.f32 %v2564, %v2485
    %v2573 = vmul.f32 %v2564, %v2486
    %2583 = vrot.lane.b32.xlu0 %v2565, 126
    %v2584 = vpop.permute.xlu0 %2583
    %2585 = vrot.lane.b32.xlu0 %v2566, 126
    %v2586 = vpop.permute.xlu0 %2585
    %2587 = vrot.lane.b32.xlu0 %v2567, 126
    %v2588 = vpop.permute.xlu0 %2587
    %2589 = vrot.lane.b32.xlu0 %v2568, 126
    %v2590 = vpop.permute.xlu0 %2589
    %2591 = vrot.lane.b32.xlu0 %v2569, 126
    %v2592 = vpop.permute.xlu0 %2591
    %2593 = vrot.lane.b32.xlu0 %v2570, 126
    %v2594 = vpop.permute.xlu0 %2593
    %2595 = vrot.lane.b32.xlu0 %v2571, 126
    %v2596 = vpop.permute.xlu0 %2595
    %2597 = vrot.lane.b32.xlu0 %v2572, 126
    %v2598 = vpop.permute.xlu0 %2597
    %2599 = vrot.lane.b32.xlu0 %v2573, 126
    %v2600 = vpop.permute.xlu0 %2599
    %v2610 = vadd.f32 %v2554, %v2584
    %v2611 = vadd.f32 %v2555, %v2586
    %v2612 = vadd.f32 %v2556, %v2588
    %v2613 = vadd.f32 %v2557, %v2590
    %v2614 = vadd.f32 %v2558, %v2592
    %v2615 = vadd.f32 %v2559, %v2594
    %v2616 = vadd.f32 %v2560, %v2596
    %v2617 = vadd.f32 %v2561, %v2598
    %v2618 = vadd.f32 %v2562, %v2600
    %s2619 = sld [smem:[#allocation4 + $0x1]]
    %v2620 = vstv %s2619
    %v2621 = vadd.f32 %v2610, %v2620
    %v2622 = vadd.f32 %v2611, %v2620
    %v2623 = vadd.f32 %v2612, %v2620
    %v2624 = vadd.f32 %v2613, %v2620
    %v2625 = vadd.f32 %v2614, %v2620
    %v2626 = vadd.f32 %v2615, %v2620
    %v2627 = vadd.f32 %v2616, %v2620
    %v2628 = vadd.f32 %v2617, %v2620
    %v2629 = vadd.f32 %v2618, %v2620
    %v2630 = vmul.f32 %v2621, 2.0
    %v2631 = vmul.f32 %v2622, 2.0
    %v2632 = vmul.f32 %v2623, 2.0
    %v2633 = vmul.f32 %v2624, 2.0
    %v2634 = vmul.f32 %v2625, 2.0
    %v2635 = vmul.f32 %v2626, 2.0
    %v2636 = vmul.f32 %v2627, 2.0
    %v2637 = vmul.f32 %v2628, 2.0
    %v2638 = vmul.f32 %v2629, 2.0
    %v2639 = vmax.f32 %v2630, 0.0
    %v2640 = vmax.f32 %v2631, 0.0
    %v2641 = vmax.f32 %v2632, 0.0
    %v2642 = vmax.f32 %v2633, 0.0
    %v2643 = vmax.f32 %v2634, 0.0
    %v2644 = vmax.f32 %v2635, 0.0
    %v2645 = vmax.f32 %v2636, 0.0
    %v2646 = vmax.f32 %v2637, 0.0
    %v2647 = vmax.f32 %v2638, 0.0
    %s2648 = scalar_lea.vmem %s3, 72
    %2649 = vst.msk [vmem:[%s2648] sm:$0xff] %vm1339, %v2639
    %2650 = vst.msk [vmem:[%s2648 + $0x8] sm:$0xff] %vm1339, %v2640
    %2651 = vst.msk [vmem:[%s2648 + $0x10] sm:$0xff] %vm1339, %v2641
    %2652 = vst.msk [vmem:[%s2648 + $0x18] sm:$0xff] %vm1339, %v2642
    %2653 = vst.msk [vmem:[%s2648 + $0x20] sm:$0xff] %vm1339, %v2643
    %2654 = vst.msk [vmem:[%s2648 + $0x28] sm:$0xff] %vm1339, %v2644
    %2655 = vst.msk [vmem:[%s2648 + $0x30] sm:$0xff] %vm1339, %v2645
    %2656 = vst.msk [vmem:[%s2648 + $0x38] sm:$0xff] %vm1339, %v2646
    %2657 = vst.msk [vmem:[%s2648 + $0x40] sm:$0x1] %vm1348, %v2647
    %v2658 = vld [vmem:[%s2] sm:$0xff]
    %v2659 = vld [vmem:[%s2 + $0x8] sm:$0xff]
    %v2660 = vld [vmem:[%s2 + $0x10] sm:$0xff]
    %v2661 = vld [vmem:[%s2 + $0x18] sm:$0xff]
    %v2662 = vld [vmem:[%s2 + $0x20] sm:$0xff]
    %v2663 = vld [vmem:[%s2 + $0x28] sm:$0xff]
    %v2664 = vld [vmem:[%s2 + $0x30] sm:$0xff]
    %v2665 = vld [vmem:[%s2 + $0x38] sm:$0xff]
    %v2666 = vld [vmem:[%s2 + $0x40] sm:$0x1]
    %s2667 = sld [smem:[#allocation2 + $0x36]]
    %v2668 = vstv %s2667
    %v2669 = vmul.f32 %v2668, %v2658
    %v2670 = vmul.f32 %v2668, %v2659
    %v2671 = vmul.f32 %v2668, %v2660
    %v2672 = vmul.f32 %v2668, %v2661
    %v2673 = vmul.f32 %v2668, %v2662
    %v2674 = vmul.f32 %v2668, %v2663
    %v2675 = vmul.f32 %v2668, %v2664
    %v2676 = vmul.f32 %v2668, %v2665
    %v2677 = vmul.f32 %v2668, %v2666
    %v2678 = vadd.f32 %v2669, 0.0
    %v2679 = vadd.f32 %v2670, 0.0
    %v2680 = vadd.f32 %v2671, 0.0
    %v2681 = vadd.f32 %v2672, 0.0
    %v2682 = vadd.f32 %v2673, 0.0
    %v2683 = vadd.f32 %v2674, 0.0
    %v2684 = vadd.f32 %v2675, 0.0
    %v2685 = vadd.f32 %v2676, 0.0
    %v2686 = vadd.f32 %v2677, 0.0
    %s2687 = sld [smem:[#allocation2 + $0x37]]
    %v2688 = vstv %s2687
    %v2689 = vmul.f32 %v2688, %v2658
    %v2690 = vmul.f32 %v2688, %v2659
    %v2691 = vmul.f32 %v2688, %v2660
    %v2692 = vmul.f32 %v2688, %v2661
    %v2693 = vmul.f32 %v2688, %v2662
    %v2694 = vmul.f32 %v2688, %v2663
    %v2695 = vmul.f32 %v2688, %v2664
    %v2696 = vmul.f32 %v2688, %v2665
    %v2697 = vmul.f32 %v2688, %v2666
    %2707 = vrot.lane.b32.xlu0 %v2689, 127
    %v2708 = vpop.permute.xlu0 %2707
    %2709 = vrot.lane.b32.xlu0 %v2690, 127
    %v2710 = vpop.permute.xlu0 %2709
    %2711 = vrot.lane.b32.xlu0 %v2691, 127
    %v2712 = vpop.permute.xlu0 %2711
    %2713 = vrot.lane.b32.xlu0 %v2692, 127
    %v2714 = vpop.permute.xlu0 %2713
    %2715 = vrot.lane.b32.xlu0 %v2693, 127
    %v2716 = vpop.permute.xlu0 %2715
    %2717 = vrot.lane.b32.xlu0 %v2694, 127
    %v2718 = vpop.permute.xlu0 %2717
    %2719 = vrot.lane.b32.xlu0 %v2695, 127
    %v2720 = vpop.permute.xlu0 %2719
    %2721 = vrot.lane.b32.xlu0 %v2696, 127
    %v2722 = vpop.permute.xlu0 %2721
    %2723 = vrot.lane.b32.xlu0 %v2697, 127
    %v2724 = vpop.permute.xlu0 %2723
    %v2734 = vadd.f32 %v2678, %v2708
    %v2735 = vadd.f32 %v2679, %v2710
    %v2736 = vadd.f32 %v2680, %v2712
    %v2737 = vadd.f32 %v2681, %v2714
    %v2738 = vadd.f32 %v2682, %v2716
    %v2739 = vadd.f32 %v2683, %v2718
    %v2740 = vadd.f32 %v2684, %v2720
    %v2741 = vadd.f32 %v2685, %v2722
    %v2742 = vadd.f32 %v2686, %v2724
    %s2743 = sld [smem:[#allocation2 + $0x38]]
    %v2744 = vstv %s2743
    %v2745 = vmul.f32 %v2744, %v2658
    %v2746 = vmul.f32 %v2744, %v2659
    %v2747 = vmul.f32 %v2744, %v2660
    %v2748 = vmul.f32 %v2744, %v2661
    %v2749 = vmul.f32 %v2744, %v2662
    %v2750 = vmul.f32 %v2744, %v2663
    %v2751 = vmul.f32 %v2744, %v2664
    %v2752 = vmul.f32 %v2744, %v2665
    %v2753 = vmul.f32 %v2744, %v2666
    %2763 = vrot.lane.b32.xlu0 %v2745, 126
    %v2764 = vpop.permute.xlu0 %2763
    %2765 = vrot.lane.b32.xlu0 %v2746, 126
    %v2766 = vpop.permute.xlu0 %2765
    %2767 = vrot.lane.b32.xlu0 %v2747, 126
    %v2768 = vpop.permute.xlu0 %2767
    %2769 = vrot.lane.b32.xlu0 %v2748, 126
    %v2770 = vpop.permute.xlu0 %2769
    %2771 = vrot.lane.b32.xlu0 %v2749, 126
    %v2772 = vpop.permute.xlu0 %2771
    %2773 = vrot.lane.b32.xlu0 %v2750, 126
    %v2774 = vpop.permute.xlu0 %2773
    %2775 = vrot.lane.b32.xlu0 %v2751, 126
    %v2776 = vpop.permute.xlu0 %2775
    %2777 = vrot.lane.b32.xlu0 %v2752, 126
    %v2778 = vpop.permute.xlu0 %2777
    %2779 = vrot.lane.b32.xlu0 %v2753, 126
    %v2780 = vpop.permute.xlu0 %2779
    %v2790 = vadd.f32 %v2734, %v2764
    %v2791 = vadd.f32 %v2735, %v2766
    %v2792 = vadd.f32 %v2736, %v2768
    %v2793 = vadd.f32 %v2737, %v2770
    %v2794 = vadd.f32 %v2738, %v2772
    %v2795 = vadd.f32 %v2739, %v2774
    %v2796 = vadd.f32 %v2740, %v2776
    %v2797 = vadd.f32 %v2741, %v2778
    %v2798 = vadd.f32 %v2742, %v2780
    %v2799 = vld [vmem:[%s2 + $0x1] sm:$0xff]
    %v2800 = vld [vmem:[%s2 + $0x9] sm:$0xff]
    %v2801 = vld [vmem:[%s2 + $0x11] sm:$0xff]
    %v2802 = vld [vmem:[%s2 + $0x19] sm:$0xff]
    %v2803 = vld [vmem:[%s2 + $0x21] sm:$0xff]
    %v2804 = vld [vmem:[%s2 + $0x29] sm:$0xff]
    %v2805 = vld [vmem:[%s2 + $0x31] sm:$0xff]
    %v2806 = vld [vmem:[%s2 + $0x39] sm:$0xff]
    %v2807 = vld [vmem:[%s2 + $0x41] sm:$0x1]
    %s2808 = sld [smem:[#allocation2 + $0x39]]
    %v2809 = vstv %s2808
    %v2810 = vmul.f32 %v2809, %v2799
    %v2811 = vmul.f32 %v2809, %v2800
    %v2812 = vmul.f32 %v2809, %v2801
    %v2813 = vmul.f32 %v2809, %v2802
    %v2814 = vmul.f32 %v2809, %v2803
    %v2815 = vmul.f32 %v2809, %v2804
    %v2816 = vmul.f32 %v2809, %v2805
    %v2817 = vmul.f32 %v2809, %v2806
    %v2818 = vmul.f32 %v2809, %v2807
    %v2819 = vadd.f32 %v2790, %v2810
    %v2820 = vadd.f32 %v2791, %v2811
    %v2821 = vadd.f32 %v2792, %v2812
    %v2822 = vadd.f32 %v2793, %v2813
    %v2823 = vadd.f32 %v2794, %v2814
    %v2824 = vadd.f32 %v2795, %v2815
    %v2825 = vadd.f32 %v2796, %v2816
    %v2826 = vadd.f32 %v2797, %v2817
    %v2827 = vadd.f32 %v2798, %v2818
    %s2828 = sld [smem:[#allocation2 + $0x3a]]
    %v2829 = vstv %s2828
    %v2830 = vmul.f32 %v2829, %v2799
    %v2831 = vmul.f32 %v2829, %v2800
    %v2832 = vmul.f32 %v2829, %v2801
    %v2833 = vmul.f32 %v2829, %v2802
    %v2834 = vmul.f32 %v2829, %v2803
    %v2835 = vmul.f32 %v2829, %v2804
    %v2836 = vmul.f32 %v2829, %v2805
    %v2837 = vmul.f32 %v2829, %v2806
    %v2838 = vmul.f32 %v2829, %v2807
    %2848 = vrot.lane.b32.xlu0 %v2830, 127
    %v2849 = vpop.permute.xlu0 %2848
    %2850 = vrot.lane.b32.xlu0 %v2831, 127
    %v2851 = vpop.permute.xlu0 %2850
    %2852 = vrot.lane.b32.xlu0 %v2832, 127
    %v2853 = vpop.permute.xlu0 %2852
    %2854 = vrot.lane.b32.xlu0 %v2833, 127
    %v2855 = vpop.permute.xlu0 %2854
    %2856 = vrot.lane.b32.xlu0 %v2834, 127
    %v2857 = vpop.permute.xlu0 %2856
    %2858 = vrot.lane.b32.xlu0 %v2835, 127
    %v2859 = vpop.permute.xlu0 %2858
    %2860 = vrot.lane.b32.xlu0 %v2836, 127
    %v2861 = vpop.permute.xlu0 %2860
    %2862 = vrot.lane.b32.xlu0 %v2837, 127
    %v2863 = vpop.permute.xlu0 %2862
    %2864 = vrot.lane.b32.xlu0 %v2838, 127
    %v2865 = vpop.permute.xlu0 %2864
    %v2875 = vadd.f32 %v2819, %v2849
    %v2876 = vadd.f32 %v2820, %v2851
    %v2877 = vadd.f32 %v2821, %v2853
    %v2878 = vadd.f32 %v2822, %v2855
    %v2879 = vadd.f32 %v2823, %v2857
    %v2880 = vadd.f32 %v2824, %v2859
    %v2881 = vadd.f32 %v2825, %v2861
    %v2882 = vadd.f32 %v2826, %v2863
    %v2883 = vadd.f32 %v2827, %v2865
    %s2884 = sld [smem:[#allocation2 + $0x3b]]
    %v2885 = vstv %s2884
    %v2886 = vmul.f32 %v2885, %v2799
    %v2887 = vmul.f32 %v2885, %v2800
    %v2888 = vmul.f32 %v2885, %v2801
    %v2889 = vmul.f32 %v2885, %v2802
    %v2890 = vmul.f32 %v2885, %v2803
    %v2891 = vmul.f32 %v2885, %v2804
    %v2892 = vmul.f32 %v2885, %v2805
    %v2893 = vmul.f32 %v2885, %v2806
    %v2894 = vmul.f32 %v2885, %v2807
    %2904 = vrot.lane.b32.xlu0 %v2886, 126
    %v2905 = vpop.permute.xlu0 %2904
    %2906 = vrot.lane.b32.xlu0 %v2887, 126
    %v2907 = vpop.permute.xlu0 %2906
    %2908 = vrot.lane.b32.xlu0 %v2888, 126
    %v2909 = vpop.permute.xlu0 %2908
    %2910 = vrot.lane.b32.xlu0 %v2889, 126
    %v2911 = vpop.permute.xlu0 %2910
    %2912 = vrot.lane.b32.xlu0 %v2890, 126
    %v2913 = vpop.permute.xlu0 %2912
    %2914 = vrot.lane.b32.xlu0 %v2891, 126
    %v2915 = vpop.permute.xlu0 %2914
    %2916 = vrot.lane.b32.xlu0 %v2892, 126
    %v2917 = vpop.permute.xlu0 %2916
    %2918 = vrot.lane.b32.xlu0 %v2893, 126
    %v2919 = vpop.permute.xlu0 %2918
    %2920 = vrot.lane.b32.xlu0 %v2894, 126
    %v2921 = vpop.permute.xlu0 %2920
    %v2931 = vadd.f32 %v2875, %v2905
    %v2932 = vadd.f32 %v2876, %v2907
    %v2933 = vadd.f32 %v2877, %v2909
    %v2934 = vadd.f32 %v2878, %v2911
    %v2935 = vadd.f32 %v2879, %v2913
    %v2936 = vadd.f32 %v2880, %v2915
    %v2937 = vadd.f32 %v2881, %v2917
    %v2938 = vadd.f32 %v2882, %v2919
    %v2939 = vadd.f32 %v2883, %v2921
    %v2940 = vld [vmem:[%s2 + $0x2] sm:$0xff]
    %v2941 = vld [vmem:[%s2 + $0xa] sm:$0xff]
    %v2942 = vld [vmem:[%s2 + $0x12] sm:$0xff]
    %v2943 = vld [vmem:[%s2 + $0x1a] sm:$0xff]
    %v2944 = vld [vmem:[%s2 + $0x22] sm:$0xff]
    %v2945 = vld [vmem:[%s2 + $0x2a] sm:$0xff]
    %v2946 = vld [vmem:[%s2 + $0x32] sm:$0xff]
    %v2947 = vld [vmem:[%s2 + $0x3a] sm:$0xff]
    %v2948 = vld [vmem:[%s2 + $0x42] sm:$0x1]
    %s2949 = sld [smem:[#allocation2 + $0x3c]]
    %v2950 = vstv %s2949
    %v2951 = vmul.f32 %v2950, %v2940
    %v2952 = vmul.f32 %v2950, %v2941
    %v2953 = vmul.f32 %v2950, %v2942
    %v2954 = vmul.f32 %v2950, %v2943
    %v2955 = vmul.f32 %v2950, %v2944
    %v2956 = vmul.f32 %v2950, %v2945
    %v2957 = vmul.f32 %v2950, %v2946
    %v2958 = vmul.f32 %v2950, %v2947
    %v2959 = vmul.f32 %v2950, %v2948
    %v2960 = vadd.f32 %v2931, %v2951
    %v2961 = vadd.f32 %v2932, %v2952
    %v2962 = vadd.f32 %v2933, %v2953
    %v2963 = vadd.f32 %v2934, %v2954
    %v2964 = vadd.f32 %v2935, %v2955
    %v2965 = vadd.f32 %v2936, %v2956
    %v2966 = vadd.f32 %v2937, %v2957
    %v2967 = vadd.f32 %v2938, %v2958
    %v2968 = vadd.f32 %v2939, %v2959
    %s2969 = sld [smem:[#allocation2 + $0x3d]]
    %v2970 = vstv %s2969
    %v2971 = vmul.f32 %v2970, %v2940
    %v2972 = vmul.f32 %v2970, %v2941
    %v2973 = vmul.f32 %v2970, %v2942
    %v2974 = vmul.f32 %v2970, %v2943
    %v2975 = vmul.f32 %v2970, %v2944
    %v2976 = vmul.f32 %v2970, %v2945
    %v2977 = vmul.f32 %v2970, %v2946
    %v2978 = vmul.f32 %v2970, %v2947
    %v2979 = vmul.f32 %v2970, %v2948
    %2989 = vrot.lane.b32.xlu0 %v2971, 127
    %v2990 = vpop.permute.xlu0 %2989
    %2991 = vrot.lane.b32.xlu0 %v2972, 127
    %v2992 = vpop.permute.xlu0 %2991
    %2993 = vrot.lane.b32.xlu0 %v2973, 127
    %v2994 = vpop.permute.xlu0 %2993
    %2995 = vrot.lane.b32.xlu0 %v2974, 127
    %v2996 = vpop.permute.xlu0 %2995
    %2997 = vrot.lane.b32.xlu0 %v2975, 127
    %v2998 = vpop.permute.xlu0 %2997
    %2999 = vrot.lane.b32.xlu0 %v2976, 127
    %v3000 = vpop.permute.xlu0 %2999
    %3001 = vrot.lane.b32.xlu0 %v2977, 127
    %v3002 = vpop.permute.xlu0 %3001
    %3003 = vrot.lane.b32.xlu0 %v2978, 127
    %v3004 = vpop.permute.xlu0 %3003
    %3005 = vrot.lane.b32.xlu0 %v2979, 127
    %v3006 = vpop.permute.xlu0 %3005
    %v3016 = vadd.f32 %v2960, %v2990
    %v3017 = vadd.f32 %v2961, %v2992
    %v3018 = vadd.f32 %v2962, %v2994
    %v3019 = vadd.f32 %v2963, %v2996
    %v3020 = vadd.f32 %v2964, %v2998
    %v3021 = vadd.f32 %v2965, %v3000
    %v3022 = vadd.f32 %v2966, %v3002
    %v3023 = vadd.f32 %v2967, %v3004
    %v3024 = vadd.f32 %v2968, %v3006
    %s3025 = sld [smem:[#allocation2 + $0x3e]]
    %v3026 = vstv %s3025
    %v3027 = vmul.f32 %v3026, %v2940
    %v3028 = vmul.f32 %v3026, %v2941
    %v3029 = vmul.f32 %v3026, %v2942
    %v3030 = vmul.f32 %v3026, %v2943
    %v3031 = vmul.f32 %v3026, %v2944
    %v3032 = vmul.f32 %v3026, %v2945
    %v3033 = vmul.f32 %v3026, %v2946
    %v3034 = vmul.f32 %v3026, %v2947
    %v3035 = vmul.f32 %v3026, %v2948
    %3045 = vrot.lane.b32.xlu0 %v3027, 126
    %v3046 = vpop.permute.xlu0 %3045
    %3047 = vrot.lane.b32.xlu0 %v3028, 126
    %v3048 = vpop.permute.xlu0 %3047
    %3049 = vrot.lane.b32.xlu0 %v3029, 126
    %v3050 = vpop.permute.xlu0 %3049
    %3051 = vrot.lane.b32.xlu0 %v3030, 126
    %v3052 = vpop.permute.xlu0 %3051
    %3053 = vrot.lane.b32.xlu0 %v3031, 126
    %v3054 = vpop.permute.xlu0 %3053
    %3055 = vrot.lane.b32.xlu0 %v3032, 126
    %v3056 = vpop.permute.xlu0 %3055
    %3057 = vrot.lane.b32.xlu0 %v3033, 126
    %v3058 = vpop.permute.xlu0 %3057
    %3059 = vrot.lane.b32.xlu0 %v3034, 126
    %v3060 = vpop.permute.xlu0 %3059
    %3061 = vrot.lane.b32.xlu0 %v3035, 126
    %v3062 = vpop.permute.xlu0 %3061
    %v3072 = vadd.f32 %v3016, %v3046
    %v3073 = vadd.f32 %v3017, %v3048
    %v3074 = vadd.f32 %v3018, %v3050
    %v3075 = vadd.f32 %v3019, %v3052
    %v3076 = vadd.f32 %v3020, %v3054
    %v3077 = vadd.f32 %v3021, %v3056
    %v3078 = vadd.f32 %v3022, %v3058
    %v3079 = vadd.f32 %v3023, %v3060
    %v3080 = vadd.f32 %v3024, %v3062
    %v3081 = vld [vmem:[%s462] sm:$0xff]
    %v3082 = vld [vmem:[%s462 + $0x8] sm:$0xff]
    %v3083 = vld [vmem:[%s462 + $0x10] sm:$0xff]
    %v3084 = vld [vmem:[%s462 + $0x18] sm:$0xff]
    %v3085 = vld [vmem:[%s462 + $0x20] sm:$0xff]
    %v3086 = vld [vmem:[%s462 + $0x28] sm:$0xff]
    %v3087 = vld [vmem:[%s462 + $0x30] sm:$0xff]
    %v3088 = vld [vmem:[%s462 + $0x38] sm:$0xff]
    %v3089 = vld [vmem:[%s462 + $0x40] sm:$0x1]
    %s3090 = sld [smem:[#allocation2 + $0x3f]]
    %v3091 = vstv %s3090
    %v3092 = vmul.f32 %v3091, %v3081
    %v3093 = vmul.f32 %v3091, %v3082
    %v3094 = vmul.f32 %v3091, %v3083
    %v3095 = vmul.f32 %v3091, %v3084
    %v3096 = vmul.f32 %v3091, %v3085
    %v3097 = vmul.f32 %v3091, %v3086
    %v3098 = vmul.f32 %v3091, %v3087
    %v3099 = vmul.f32 %v3091, %v3088
    %v3100 = vmul.f32 %v3091, %v3089
    %v3101 = vadd.f32 %v3072, %v3092
    %v3102 = vadd.f32 %v3073, %v3093
    %v3103 = vadd.f32 %v3074, %v3094
    %v3104 = vadd.f32 %v3075, %v3095
    %v3105 = vadd.f32 %v3076, %v3096
    %v3106 = vadd.f32 %v3077, %v3097
    %v3107 = vadd.f32 %v3078, %v3098
    %v3108 = vadd.f32 %v3079, %v3099
    %v3109 = vadd.f32 %v3080, %v3100
    %s3110 = sld [smem:[#allocation2 + $0x40]]
    %v3111 = vstv %s3110
    %v3112 = vmul.f32 %v3111, %v3081
    %v3113 = vmul.f32 %v3111, %v3082
    %v3114 = vmul.f32 %v3111, %v3083
    %v3115 = vmul.f32 %v3111, %v3084
    %v3116 = vmul.f32 %v3111, %v3085
    %v3117 = vmul.f32 %v3111, %v3086
    %v3118 = vmul.f32 %v3111, %v3087
    %v3119 = vmul.f32 %v3111, %v3088
    %v3120 = vmul.f32 %v3111, %v3089
    %3130 = vrot.lane.b32.xlu0 %v3112, 127
    %v3131 = vpop.permute.xlu0 %3130
    %3132 = vrot.lane.b32.xlu0 %v3113, 127
    %v3133 = vpop.permute.xlu0 %3132
    %3134 = vrot.lane.b32.xlu0 %v3114, 127
    %v3135 = vpop.permute.xlu0 %3134
    %3136 = vrot.lane.b32.xlu0 %v3115, 127
    %v3137 = vpop.permute.xlu0 %3136
    %3138 = vrot.lane.b32.xlu0 %v3116, 127
    %v3139 = vpop.permute.xlu0 %3138
    %3140 = vrot.lane.b32.xlu0 %v3117, 127
    %v3141 = vpop.permute.xlu0 %3140
    %3142 = vrot.lane.b32.xlu0 %v3118, 127
    %v3143 = vpop.permute.xlu0 %3142
    %3144 = vrot.lane.b32.xlu0 %v3119, 127
    %v3145 = vpop.permute.xlu0 %3144
    %3146 = vrot.lane.b32.xlu0 %v3120, 127
    %v3147 = vpop.permute.xlu0 %3146
    %v3157 = vadd.f32 %v3101, %v3131
    %v3158 = vadd.f32 %v3102, %v3133
    %v3159 = vadd.f32 %v3103, %v3135
    %v3160 = vadd.f32 %v3104, %v3137
    %v3161 = vadd.f32 %v3105, %v3139
    %v3162 = vadd.f32 %v3106, %v3141
    %v3163 = vadd.f32 %v3107, %v3143
    %v3164 = vadd.f32 %v3108, %v3145
    %v3165 = vadd.f32 %v3109, %v3147
    %s3166 = sld [smem:[#allocation2 + $0x41]]
    %v3167 = vstv %s3166
    %v3168 = vmul.f32 %v3167, %v3081
    %v3169 = vmul.f32 %v3167, %v3082
    %v3170 = vmul.f32 %v3167, %v3083
    %v3171 = vmul.f32 %v3167, %v3084
    %v3172 = vmul.f32 %v3167, %v3085
    %v3173 = vmul.f32 %v3167, %v3086
    %v3174 = vmul.f32 %v3167, %v3087
    %v3175 = vmul.f32 %v3167, %v3088
    %v3176 = vmul.f32 %v3167, %v3089
    %3186 = vrot.lane.b32.xlu0 %v3168, 126
    %v3187 = vpop.permute.xlu0 %3186
    %3188 = vrot.lane.b32.xlu0 %v3169, 126
    %v3189 = vpop.permute.xlu0 %3188
    %3190 = vrot.lane.b32.xlu0 %v3170, 126
    %v3191 = vpop.permute.xlu0 %3190
    %3192 = vrot.lane.b32.xlu0 %v3171, 126
    %v3193 = vpop.permute.xlu0 %3192
    %3194 = vrot.lane.b32.xlu0 %v3172, 126
    %v3195 = vpop.permute.xlu0 %3194
    %3196 = vrot.lane.b32.xlu0 %v3173, 126
    %v3197 = vpop.permute.xlu0 %3196
    %3198 = vrot.lane.b32.xlu0 %v3174, 126
    %v3199 = vpop.permute.xlu0 %3198
    %3200 = vrot.lane.b32.xlu0 %v3175, 126
    %v3201 = vpop.permute.xlu0 %3200
    %3202 = vrot.lane.b32.xlu0 %v3176, 126
    %v3203 = vpop.permute.xlu0 %3202
    %v3213 = vadd.f32 %v3157, %v3187
    %v3214 = vadd.f32 %v3158, %v3189
    %v3215 = vadd.f32 %v3159, %v3191
    %v3216 = vadd.f32 %v3160, %v3193
    %v3217 = vadd.f32 %v3161, %v3195
    %v3218 = vadd.f32 %v3162, %v3197
    %v3219 = vadd.f32 %v3163, %v3199
    %v3220 = vadd.f32 %v3164, %v3201
    %v3221 = vadd.f32 %v3165, %v3203
    %v3222 = vld [vmem:[%s462 + $0x1] sm:$0xff]
    %v3223 = vld [vmem:[%s462 + $0x9] sm:$0xff]
    %v3224 = vld [vmem:[%s462 + $0x11] sm:$0xff]
    %v3225 = vld [vmem:[%s462 + $0x19] sm:$0xff]
    %v3226 = vld [vmem:[%s462 + $0x21] sm:$0xff]
    %v3227 = vld [vmem:[%s462 + $0x29] sm:$0xff]
    %v3228 = vld [vmem:[%s462 + $0x31] sm:$0xff]
    %v3229 = vld [vmem:[%s462 + $0x39] sm:$0xff]
    %v3230 = vld [vmem:[%s462 + $0x41] sm:$0x1]
    %s3231 = sld [smem:[#allocation2 + $0x42]]
    %v3232 = vstv %s3231
    %v3233 = vmul.f32 %v3232, %v3222
    %v3234 = vmul.f32 %v3232, %v3223
    %v3235 = vmul.f32 %v3232, %v3224
    %v3236 = vmul.f32 %v3232, %v3225
    %v3237 = vmul.f32 %v3232, %v3226
    %v3238 = vmul.f32 %v3232, %v3227
    %v3239 = vmul.f32 %v3232, %v3228
    %v3240 = vmul.f32 %v3232, %v3229
    %v3241 = vmul.f32 %v3232, %v3230
    %v3242 = vadd.f32 %v3213, %v3233
    %v3243 = vadd.f32 %v3214, %v3234
    %v3244 = vadd.f32 %v3215, %v3235
    %v3245 = vadd.f32 %v3216, %v3236
    %v3246 = vadd.f32 %v3217, %v3237
    %v3247 = vadd.f32 %v3218, %v3238
    %v3248 = vadd.f32 %v3219, %v3239
    %v3249 = vadd.f32 %v3220, %v3240
    %v3250 = vadd.f32 %v3221, %v3241
    %s3251 = sld [smem:[#allocation2 + $0x43]]
    %v3252 = vstv %s3251
    %v3253 = vmul.f32 %v3252, %v3222
    %v3254 = vmul.f32 %v3252, %v3223
    %v3255 = vmul.f32 %v3252, %v3224
    %v3256 = vmul.f32 %v3252, %v3225
    %v3257 = vmul.f32 %v3252, %v3226
    %v3258 = vmul.f32 %v3252, %v3227
    %v3259 = vmul.f32 %v3252, %v3228
    %v3260 = vmul.f32 %v3252, %v3229
    %v3261 = vmul.f32 %v3252, %v3230
    %3271 = vrot.lane.b32.xlu0 %v3253, 127
    %v3272 = vpop.permute.xlu0 %3271
    %3273 = vrot.lane.b32.xlu0 %v3254, 127
    %v3274 = vpop.permute.xlu0 %3273
    %3275 = vrot.lane.b32.xlu0 %v3255, 127
    %v3276 = vpop.permute.xlu0 %3275
    %3277 = vrot.lane.b32.xlu0 %v3256, 127
    %v3278 = vpop.permute.xlu0 %3277
    %3279 = vrot.lane.b32.xlu0 %v3257, 127
    %v3280 = vpop.permute.xlu0 %3279
    %3281 = vrot.lane.b32.xlu0 %v3258, 127
    %v3282 = vpop.permute.xlu0 %3281
    %3283 = vrot.lane.b32.xlu0 %v3259, 127
    %v3284 = vpop.permute.xlu0 %3283
    %3285 = vrot.lane.b32.xlu0 %v3260, 127
    %v3286 = vpop.permute.xlu0 %3285
    %3287 = vrot.lane.b32.xlu0 %v3261, 127
    %v3288 = vpop.permute.xlu0 %3287
    %v3298 = vadd.f32 %v3242, %v3272
    %v3299 = vadd.f32 %v3243, %v3274
    %v3300 = vadd.f32 %v3244, %v3276
    %v3301 = vadd.f32 %v3245, %v3278
    %v3302 = vadd.f32 %v3246, %v3280
    %v3303 = vadd.f32 %v3247, %v3282
    %v3304 = vadd.f32 %v3248, %v3284
    %v3305 = vadd.f32 %v3249, %v3286
    %v3306 = vadd.f32 %v3250, %v3288
    %s3307 = sld [smem:[#allocation2 + $0x44]]
    %v3308 = vstv %s3307
    %v3309 = vmul.f32 %v3308, %v3222
    %v3310 = vmul.f32 %v3308, %v3223
    %v3311 = vmul.f32 %v3308, %v3224
    %v3312 = vmul.f32 %v3308, %v3225
    %v3313 = vmul.f32 %v3308, %v3226
    %v3314 = vmul.f32 %v3308, %v3227
    %v3315 = vmul.f32 %v3308, %v3228
    %v3316 = vmul.f32 %v3308, %v3229
    %v3317 = vmul.f32 %v3308, %v3230
    %3327 = vrot.lane.b32.xlu0 %v3309, 126
    %v3328 = vpop.permute.xlu0 %3327
    %3329 = vrot.lane.b32.xlu0 %v3310, 126
    %v3330 = vpop.permute.xlu0 %3329
    %3331 = vrot.lane.b32.xlu0 %v3311, 126
    %v3332 = vpop.permute.xlu0 %3331
    %3333 = vrot.lane.b32.xlu0 %v3312, 126
    %v3334 = vpop.permute.xlu0 %3333
    %3335 = vrot.lane.b32.xlu0 %v3313, 126
    %v3336 = vpop.permute.xlu0 %3335
    %3337 = vrot.lane.b32.xlu0 %v3314, 126
    %v3338 = vpop.permute.xlu0 %3337
    %3339 = vrot.lane.b32.xlu0 %v3315, 126
    %v3340 = vpop.permute.xlu0 %3339
    %3341 = vrot.lane.b32.xlu0 %v3316, 126
    %v3342 = vpop.permute.xlu0 %3341
    %3343 = vrot.lane.b32.xlu0 %v3317, 126
    %v3344 = vpop.permute.xlu0 %3343
    %v3354 = vadd.f32 %v3298, %v3328
    %v3355 = vadd.f32 %v3299, %v3330
    %v3356 = vadd.f32 %v3300, %v3332
    %v3357 = vadd.f32 %v3301, %v3334
    %v3358 = vadd.f32 %v3302, %v3336
    %v3359 = vadd.f32 %v3303, %v3338
    %v3360 = vadd.f32 %v3304, %v3340
    %v3361 = vadd.f32 %v3305, %v3342
    %v3362 = vadd.f32 %v3306, %v3344
    %v3363 = vld [vmem:[%s462 + $0x2] sm:$0xff]
    %v3364 = vld [vmem:[%s462 + $0xa] sm:$0xff]
    %v3365 = vld [vmem:[%s462 + $0x12] sm:$0xff]
    %v3366 = vld [vmem:[%s462 + $0x1a] sm:$0xff]
    %v3367 = vld [vmem:[%s462 + $0x22] sm:$0xff]
    %v3368 = vld [vmem:[%s462 + $0x2a] sm:$0xff]
    %v3369 = vld [vmem:[%s462 + $0x32] sm:$0xff]
    %v3370 = vld [vmem:[%s462 + $0x3a] sm:$0xff]
    %v3371 = vld [vmem:[%s462 + $0x42] sm:$0x1]
    %s3372 = sld [smem:[#allocation2 + $0x45]]
    %v3373 = vstv %s3372
    %v3374 = vmul.f32 %v3373, %v3363
    %v3375 = vmul.f32 %v3373, %v3364
    %v3376 = vmul.f32 %v3373, %v3365
    %v3377 = vmul.f32 %v3373, %v3366
    %v3378 = vmul.f32 %v3373, %v3367
    %v3379 = vmul.f32 %v3373, %v3368
    %v3380 = vmul.f32 %v3373, %v3369
    %v3381 = vmul.f32 %v3373, %v3370
    %v3382 = vmul.f32 %v3373, %v3371
    %v3383 = vadd.f32 %v3354, %v3374
    %v3384 = vadd.f32 %v3355, %v3375
    %v3385 = vadd.f32 %v3356, %v3376
    %v3386 = vadd.f32 %v3357, %v3377
    %v3387 = vadd.f32 %v3358, %v3378
    %v3388 = vadd.f32 %v3359, %v3379
    %v3389 = vadd.f32 %v3360, %v3380
    %v3390 = vadd.f32 %v3361, %v3381
    %v3391 = vadd.f32 %v3362, %v3382
    %s3392 = sld [smem:[#allocation2 + $0x46]]
    %v3393 = vstv %s3392
    %v3394 = vmul.f32 %v3393, %v3363
    %v3395 = vmul.f32 %v3393, %v3364
    %v3396 = vmul.f32 %v3393, %v3365
    %v3397 = vmul.f32 %v3393, %v3366
    %v3398 = vmul.f32 %v3393, %v3367
    %v3399 = vmul.f32 %v3393, %v3368
    %v3400 = vmul.f32 %v3393, %v3369
    %v3401 = vmul.f32 %v3393, %v3370
    %v3402 = vmul.f32 %v3393, %v3371
    %3412 = vrot.lane.b32.xlu0 %v3394, 127
    %v3413 = vpop.permute.xlu0 %3412
    %3414 = vrot.lane.b32.xlu0 %v3395, 127
    %v3415 = vpop.permute.xlu0 %3414
    %3416 = vrot.lane.b32.xlu0 %v3396, 127
    %v3417 = vpop.permute.xlu0 %3416
    %3418 = vrot.lane.b32.xlu0 %v3397, 127
    %v3419 = vpop.permute.xlu0 %3418
    %3420 = vrot.lane.b32.xlu0 %v3398, 127
    %v3421 = vpop.permute.xlu0 %3420
    %3422 = vrot.lane.b32.xlu0 %v3399, 127
    %v3423 = vpop.permute.xlu0 %3422
    %3424 = vrot.lane.b32.xlu0 %v3400, 127
    %v3425 = vpop.permute.xlu0 %3424
    %3426 = vrot.lane.b32.xlu0 %v3401, 127
    %v3427 = vpop.permute.xlu0 %3426
    %3428 = vrot.lane.b32.xlu0 %v3402, 127
    %v3429 = vpop.permute.xlu0 %3428
    %v3439 = vadd.f32 %v3383, %v3413
    %v3440 = vadd.f32 %v3384, %v3415
    %v3441 = vadd.f32 %v3385, %v3417
    %v3442 = vadd.f32 %v3386, %v3419
    %v3443 = vadd.f32 %v3387, %v3421
    %v3444 = vadd.f32 %v3388, %v3423
    %v3445 = vadd.f32 %v3389, %v3425
    %v3446 = vadd.f32 %v3390, %v3427
    %v3447 = vadd.f32 %v3391, %v3429
    %s3448 = sld [smem:[#allocation2 + $0x47]]
    %v3449 = vstv %s3448
    %v3450 = vmul.f32 %v3449, %v3363
    %v3451 = vmul.f32 %v3449, %v3364
    %v3452 = vmul.f32 %v3449, %v3365
    %v3453 = vmul.f32 %v3449, %v3366
    %v3454 = vmul.f32 %v3449, %v3367
    %v3455 = vmul.f32 %v3449, %v3368
    %v3456 = vmul.f32 %v3449, %v3369
    %v3457 = vmul.f32 %v3449, %v3370
    %v3458 = vmul.f32 %v3449, %v3371
    %3468 = vrot.lane.b32.xlu0 %v3450, 126
    %v3469 = vpop.permute.xlu0 %3468
    %3470 = vrot.lane.b32.xlu0 %v3451, 126
    %v3471 = vpop.permute.xlu0 %3470
    %3472 = vrot.lane.b32.xlu0 %v3452, 126
    %v3473 = vpop.permute.xlu0 %3472
    %3474 = vrot.lane.b32.xlu0 %v3453, 126
    %v3475 = vpop.permute.xlu0 %3474
    %3476 = vrot.lane.b32.xlu0 %v3454, 126
    %v3477 = vpop.permute.xlu0 %3476
    %3478 = vrot.lane.b32.xlu0 %v3455, 126
    %v3479 = vpop.permute.xlu0 %3478
    %3480 = vrot.lane.b32.xlu0 %v3456, 126
    %v3481 = vpop.permute.xlu0 %3480
    %3482 = vrot.lane.b32.xlu0 %v3457, 126
    %v3483 = vpop.permute.xlu0 %3482
    %3484 = vrot.lane.b32.xlu0 %v3458, 126
    %v3485 = vpop.permute.xlu0 %3484
    %v3495 = vadd.f32 %v3439, %v3469
    %v3496 = vadd.f32 %v3440, %v3471
    %v3497 = vadd.f32 %v3441, %v3473
    %v3498 = vadd.f32 %v3442, %v3475
    %v3499 = vadd.f32 %v3443, %v3477
    %v3500 = vadd.f32 %v3444, %v3479
    %v3501 = vadd.f32 %v3445, %v3481
    %v3502 = vadd.f32 %v3446, %v3483
    %v3503 = vadd.f32 %v3447, %v3485
    %v3504 = vld [vmem:[%s886] sm:$0xff]
    %v3505 = vld [vmem:[%s886 + $0x8] sm:$0xff]
    %v3506 = vld [vmem:[%s886 + $0x10] sm:$0xff]
    %v3507 = vld [vmem:[%s886 + $0x18] sm:$0xff]
    %v3508 = vld [vmem:[%s886 + $0x20] sm:$0xff]
    %v3509 = vld [vmem:[%s886 + $0x28] sm:$0xff]
    %v3510 = vld [vmem:[%s886 + $0x30] sm:$0xff]
    %v3511 = vld [vmem:[%s886 + $0x38] sm:$0xff]
    %v3512 = vld [vmem:[%s886 + $0x40] sm:$0x1]
    %s3513 = sld [smem:[#allocation2 + $0x48]]
    %v3514 = vstv %s3513
    %v3515 = vmul.f32 %v3514, %v3504
    %v3516 = vmul.f32 %v3514, %v3505
    %v3517 = vmul.f32 %v3514, %v3506
    %v3518 = vmul.f32 %v3514, %v3507
    %v3519 = vmul.f32 %v3514, %v3508
    %v3520 = vmul.f32 %v3514, %v3509
    %v3521 = vmul.f32 %v3514, %v3510
    %v3522 = vmul.f32 %v3514, %v3511
    %v3523 = vmul.f32 %v3514, %v3512
    %v3524 = vadd.f32 %v3495, %v3515
    %v3525 = vadd.f32 %v3496, %v3516
    %v3526 = vadd.f32 %v3497, %v3517
    %v3527 = vadd.f32 %v3498, %v3518
    %v3528 = vadd.f32 %v3499, %v3519
    %v3529 = vadd.f32 %v3500, %v3520
    %v3530 = vadd.f32 %v3501, %v3521
    %v3531 = vadd.f32 %v3502, %v3522
    %v3532 = vadd.f32 %v3503, %v3523
    %s3533 = sld [smem:[#allocation2 + $0x49]]
    %v3534 = vstv %s3533
    %v3535 = vmul.f32 %v3534, %v3504
    %v3536 = vmul.f32 %v3534, %v3505
    %v3537 = vmul.f32 %v3534, %v3506
    %v3538 = vmul.f32 %v3534, %v3507
    %v3539 = vmul.f32 %v3534, %v3508
    %v3540 = vmul.f32 %v3534, %v3509
    %v3541 = vmul.f32 %v3534, %v3510
    %v3542 = vmul.f32 %v3534, %v3511
    %v3543 = vmul.f32 %v3534, %v3512
    %3553 = vrot.lane.b32.xlu0 %v3535, 127
    %v3554 = vpop.permute.xlu0 %3553
    %3555 = vrot.lane.b32.xlu0 %v3536, 127
    %v3556 = vpop.permute.xlu0 %3555
    %3557 = vrot.lane.b32.xlu0 %v3537, 127
    %v3558 = vpop.permute.xlu0 %3557
    %3559 = vrot.lane.b32.xlu0 %v3538, 127
    %v3560 = vpop.permute.xlu0 %3559
    %3561 = vrot.lane.b32.xlu0 %v3539, 127
    %v3562 = vpop.permute.xlu0 %3561
    %3563 = vrot.lane.b32.xlu0 %v3540, 127
    %v3564 = vpop.permute.xlu0 %3563
    %3565 = vrot.lane.b32.xlu0 %v3541, 127
    %v3566 = vpop.permute.xlu0 %3565
    %3567 = vrot.lane.b32.xlu0 %v3542, 127
    %v3568 = vpop.permute.xlu0 %3567
    %3569 = vrot.lane.b32.xlu0 %v3543, 127
    %v3570 = vpop.permute.xlu0 %3569
    %v3580 = vadd.f32 %v3524, %v3554
    %v3581 = vadd.f32 %v3525, %v3556
    %v3582 = vadd.f32 %v3526, %v3558
    %v3583 = vadd.f32 %v3527, %v3560
    %v3584 = vadd.f32 %v3528, %v3562
    %v3585 = vadd.f32 %v3529, %v3564
    %v3586 = vadd.f32 %v3530, %v3566
    %v3587 = vadd.f32 %v3531, %v3568
    %v3588 = vadd.f32 %v3532, %v3570
    %s3589 = sld [smem:[#allocation2 + $0x4a]]
    %v3590 = vstv %s3589
    %v3591 = vmul.f32 %v3590, %v3504
    %v3592 = vmul.f32 %v3590, %v3505
    %v3593 = vmul.f32 %v3590, %v3506
    %v3594 = vmul.f32 %v3590, %v3507
    %v3595 = vmul.f32 %v3590, %v3508
    %v3596 = vmul.f32 %v3590, %v3509
    %v3597 = vmul.f32 %v3590, %v3510
    %v3598 = vmul.f32 %v3590, %v3511
    %v3599 = vmul.f32 %v3590, %v3512
    %3609 = vrot.lane.b32.xlu0 %v3591, 126
    %v3610 = vpop.permute.xlu0 %3609
    %3611 = vrot.lane.b32.xlu0 %v3592, 126
    %v3612 = vpop.permute.xlu0 %3611
    %3613 = vrot.lane.b32.xlu0 %v3593, 126
    %v3614 = vpop.permute.xlu0 %3613
    %3615 = vrot.lane.b32.xlu0 %v3594, 126
    %v3616 = vpop.permute.xlu0 %3615
    %3617 = vrot.lane.b32.xlu0 %v3595, 126
    %v3618 = vpop.permute.xlu0 %3617
    %3619 = vrot.lane.b32.xlu0 %v3596, 126
    %v3620 = vpop.permute.xlu0 %3619
    %3621 = vrot.lane.b32.xlu0 %v3597, 126
    %v3622 = vpop.permute.xlu0 %3621
    %3623 = vrot.lane.b32.xlu0 %v3598, 126
    %v3624 = vpop.permute.xlu0 %3623
    %3625 = vrot.lane.b32.xlu0 %v3599, 126
    %v3626 = vpop.permute.xlu0 %3625
    %v3636 = vadd.f32 %v3580, %v3610
    %v3637 = vadd.f32 %v3581, %v3612
    %v3638 = vadd.f32 %v3582, %v3614
    %v3639 = vadd.f32 %v3583, %v3616
    %v3640 = vadd.f32 %v3584, %v3618
    %v3641 = vadd.f32 %v3585, %v3620
    %v3642 = vadd.f32 %v3586, %v3622
    %v3643 = vadd.f32 %v3587, %v3624
    %v3644 = vadd.f32 %v3588, %v3626
    %v3645 = vld [vmem:[%s886 + $0x1] sm:$0xff]
    %v3646 = vld [vmem:[%s886 + $0x9] sm:$0xff]
    %v3647 = vld [vmem:[%s886 + $0x11] sm:$0xff]
    %v3648 = vld [vmem:[%s886 + $0x19] sm:$0xff]
    %v3649 = vld [vmem:[%s886 + $0x21] sm:$0xff]
    %v3650 = vld [vmem:[%s886 + $0x29] sm:$0xff]
    %v3651 = vld [vmem:[%s886 + $0x31] sm:$0xff]
    %v3652 = vld [vmem:[%s886 + $0x39] sm:$0xff]
    %v3653 = vld [vmem:[%s886 + $0x41] sm:$0x1]
    %s3654 = sld [smem:[#allocation2 + $0x4b]]
    %v3655 = vstv %s3654
    %v3656 = vmul.f32 %v3655, %v3645
    %v3657 = vmul.f32 %v3655, %v3646
    %v3658 = vmul.f32 %v3655, %v3647
    %v3659 = vmul.f32 %v3655, %v3648
    %v3660 = vmul.f32 %v3655, %v3649
    %v3661 = vmul.f32 %v3655, %v3650
    %v3662 = vmul.f32 %v3655, %v3651
    %v3663 = vmul.f32 %v3655, %v3652
    %v3664 = vmul.f32 %v3655, %v3653
    %v3665 = vadd.f32 %v3636, %v3656
    %v3666 = vadd.f32 %v3637, %v3657
    %v3667 = vadd.f32 %v3638, %v3658
    %v3668 = vadd.f32 %v3639, %v3659
    %v3669 = vadd.f32 %v3640, %v3660
    %v3670 = vadd.f32 %v3641, %v3661
    %v3671 = vadd.f32 %v3642, %v3662
    %v3672 = vadd.f32 %v3643, %v3663
    %v3673 = vadd.f32 %v3644, %v3664
    %s3674 = sld [smem:[#allocation2 + $0x4c]]
    %v3675 = vstv %s3674
    %v3676 = vmul.f32 %v3675, %v3645
    %v3677 = vmul.f32 %v3675, %v3646
    %v3678 = vmul.f32 %v3675, %v3647
    %v3679 = vmul.f32 %v3675, %v3648
    %v3680 = vmul.f32 %v3675, %v3649
    %v3681 = vmul.f32 %v3675, %v3650
    %v3682 = vmul.f32 %v3675, %v3651
    %v3683 = vmul.f32 %v3675, %v3652
    %v3684 = vmul.f32 %v3675, %v3653
    %3694 = vrot.lane.b32.xlu0 %v3676, 127
    %v3695 = vpop.permute.xlu0 %3694
    %3696 = vrot.lane.b32.xlu0 %v3677, 127
    %v3697 = vpop.permute.xlu0 %3696
    %3698 = vrot.lane.b32.xlu0 %v3678, 127
    %v3699 = vpop.permute.xlu0 %3698
    %3700 = vrot.lane.b32.xlu0 %v3679, 127
    %v3701 = vpop.permute.xlu0 %3700
    %3702 = vrot.lane.b32.xlu0 %v3680, 127
    %v3703 = vpop.permute.xlu0 %3702
    %3704 = vrot.lane.b32.xlu0 %v3681, 127
    %v3705 = vpop.permute.xlu0 %3704
    %3706 = vrot.lane.b32.xlu0 %v3682, 127
    %v3707 = vpop.permute.xlu0 %3706
    %3708 = vrot.lane.b32.xlu0 %v3683, 127
    %v3709 = vpop.permute.xlu0 %3708
    %3710 = vrot.lane.b32.xlu0 %v3684, 127
    %v3711 = vpop.permute.xlu0 %3710
    %v3721 = vadd.f32 %v3665, %v3695
    %v3722 = vadd.f32 %v3666, %v3697
    %v3723 = vadd.f32 %v3667, %v3699
    %v3724 = vadd.f32 %v3668, %v3701
    %v3725 = vadd.f32 %v3669, %v3703
    %v3726 = vadd.f32 %v3670, %v3705
    %v3727 = vadd.f32 %v3671, %v3707
    %v3728 = vadd.f32 %v3672, %v3709
    %v3729 = vadd.f32 %v3673, %v3711
    %s3730 = sld [smem:[#allocation2 + $0x4d]]
    %v3731 = vstv %s3730
    %v3732 = vmul.f32 %v3731, %v3645
    %v3733 = vmul.f32 %v3731, %v3646
    %v3734 = vmul.f32 %v3731, %v3647
    %v3735 = vmul.f32 %v3731, %v3648
    %v3736 = vmul.f32 %v3731, %v3649
    %v3737 = vmul.f32 %v3731, %v3650
    %v3738 = vmul.f32 %v3731, %v3651
    %v3739 = vmul.f32 %v3731, %v3652
    %v3740 = vmul.f32 %v3731, %v3653
    %3750 = vrot.lane.b32.xlu0 %v3732, 126
    %v3751 = vpop.permute.xlu0 %3750
    %3752 = vrot.lane.b32.xlu0 %v3733, 126
    %v3753 = vpop.permute.xlu0 %3752
    %3754 = vrot.lane.b32.xlu0 %v3734, 126
    %v3755 = vpop.permute.xlu0 %3754
    %3756 = vrot.lane.b32.xlu0 %v3735, 126
    %v3757 = vpop.permute.xlu0 %3756
    %3758 = vrot.lane.b32.xlu0 %v3736, 126
    %v3759 = vpop.permute.xlu0 %3758
    %3760 = vrot.lane.b32.xlu0 %v3737, 126
    %v3761 = vpop.permute.xlu0 %3760
    %3762 = vrot.lane.b32.xlu0 %v3738, 126
    %v3763 = vpop.permute.xlu0 %3762
    %3764 = vrot.lane.b32.xlu0 %v3739, 126
    %v3765 = vpop.permute.xlu0 %3764
    %3766 = vrot.lane.b32.xlu0 %v3740, 126
    %v3767 = vpop.permute.xlu0 %3766
    %v3777 = vadd.f32 %v3721, %v3751
    %v3778 = vadd.f32 %v3722, %v3753
    %v3779 = vadd.f32 %v3723, %v3755
    %v3780 = vadd.f32 %v3724, %v3757
    %v3781 = vadd.f32 %v3725, %v3759
    %v3782 = vadd.f32 %v3726, %v3761
    %v3783 = vadd.f32 %v3727, %v3763
    %v3784 = vadd.f32 %v3728, %v3765
    %v3785 = vadd.f32 %v3729, %v3767
    %v3786 = vld [vmem:[%s886 + $0x2] sm:$0xff]
    %v3787 = vld [vmem:[%s886 + $0xa] sm:$0xff]
    %v3788 = vld [vmem:[%s886 + $0x12] sm:$0xff]
    %v3789 = vld [vmem:[%s886 + $0x1a] sm:$0xff]
    %v3790 = vld [vmem:[%s886 + $0x22] sm:$0xff]
    %v3791 = vld [vmem:[%s886 + $0x2a] sm:$0xff]
    %v3792 = vld [vmem:[%s886 + $0x32] sm:$0xff]
    %v3793 = vld [vmem:[%s886 + $0x3a] sm:$0xff]
    %v3794 = vld [vmem:[%s886 + $0x42] sm:$0x1]
    %s3795 = sld [smem:[#allocation2 + $0x4e]]
    %v3796 = vstv %s3795
    %v3797 = vmul.f32 %v3796, %v3786
    %v3798 = vmul.f32 %v3796, %v3787
    %v3799 = vmul.f32 %v3796, %v3788
    %v3800 = vmul.f32 %v3796, %v3789
    %v3801 = vmul.f32 %v3796, %v3790
    %v3802 = vmul.f32 %v3796, %v3791
    %v3803 = vmul.f32 %v3796, %v3792
    %v3804 = vmul.f32 %v3796, %v3793
    %v3805 = vmul.f32 %v3796, %v3794
    %v3806 = vadd.f32 %v3777, %v3797
    %v3807 = vadd.f32 %v3778, %v3798
    %v3808 = vadd.f32 %v3779, %v3799
    %v3809 = vadd.f32 %v3780, %v3800
    %v3810 = vadd.f32 %v3781, %v3801
    %v3811 = vadd.f32 %v3782, %v3802
    %v3812 = vadd.f32 %v3783, %v3803
    %v3813 = vadd.f32 %v3784, %v3804
    %v3814 = vadd.f32 %v3785, %v3805
    %s3815 = sld [smem:[#allocation2 + $0x4f]]
    %v3816 = vstv %s3815
    %v3817 = vmul.f32 %v3816, %v3786
    %v3818 = vmul.f32 %v3816, %v3787
    %v3819 = vmul.f32 %v3816, %v3788
    %v3820 = vmul.f32 %v3816, %v3789
    %v3821 = vmul.f32 %v3816, %v3790
    %v3822 = vmul.f32 %v3816, %v3791
    %v3823 = vmul.f32 %v3816, %v3792
    %v3824 = vmul.f32 %v3816, %v3793
    %v3825 = vmul.f32 %v3816, %v3794
    %3835 = vrot.lane.b32.xlu0 %v3817, 127
    %v3836 = vpop.permute.xlu0 %3835
    %3837 = vrot.lane.b32.xlu0 %v3818, 127
    %v3838 = vpop.permute.xlu0 %3837
    %3839 = vrot.lane.b32.xlu0 %v3819, 127
    %v3840 = vpop.permute.xlu0 %3839
    %3841 = vrot.lane.b32.xlu0 %v3820, 127
    %v3842 = vpop.permute.xlu0 %3841
    %3843 = vrot.lane.b32.xlu0 %v3821, 127
    %v3844 = vpop.permute.xlu0 %3843
    %3845 = vrot.lane.b32.xlu0 %v3822, 127
    %v3846 = vpop.permute.xlu0 %3845
    %3847 = vrot.lane.b32.xlu0 %v3823, 127
    %v3848 = vpop.permute.xlu0 %3847
    %3849 = vrot.lane.b32.xlu0 %v3824, 127
    %v3850 = vpop.permute.xlu0 %3849
    %3851 = vrot.lane.b32.xlu0 %v3825, 127
    %v3852 = vpop.permute.xlu0 %3851
    %v3862 = vadd.f32 %v3806, %v3836
    %v3863 = vadd.f32 %v3807, %v3838
    %v3864 = vadd.f32 %v3808, %v3840
    %v3865 = vadd.f32 %v3809, %v3842
    %v3866 = vadd.f32 %v3810, %v3844
    %v3867 = vadd.f32 %v3811, %v3846
    %v3868 = vadd.f32 %v3812, %v3848
    %v3869 = vadd.f32 %v3813, %v3850
    %v3870 = vadd.f32 %v3814, %v3852
    %s3871 = sld [smem:[#allocation2 + $0x50]]
    %v3872 = vstv %s3871
    %v3873 = vmul.f32 %v3872, %v3786
    %v3874 = vmul.f32 %v3872, %v3787
    %v3875 = vmul.f32 %v3872, %v3788
    %v3876 = vmul.f32 %v3872, %v3789
    %v3877 = vmul.f32 %v3872, %v3790
    %v3878 = vmul.f32 %v3872, %v3791
    %v3879 = vmul.f32 %v3872, %v3792
    %v3880 = vmul.f32 %v3872, %v3793
    %v3881 = vmul.f32 %v3872, %v3794
    %3891 = vrot.lane.b32.xlu0 %v3873, 126
    %v3892 = vpop.permute.xlu0 %3891
    %3893 = vrot.lane.b32.xlu0 %v3874, 126
    %v3894 = vpop.permute.xlu0 %3893
    %3895 = vrot.lane.b32.xlu0 %v3875, 126
    %v3896 = vpop.permute.xlu0 %3895
    %3897 = vrot.lane.b32.xlu0 %v3876, 126
    %v3898 = vpop.permute.xlu0 %3897
    %3899 = vrot.lane.b32.xlu0 %v3877, 126
    %v3900 = vpop.permute.xlu0 %3899
    %3901 = vrot.lane.b32.xlu0 %v3878, 126
    %v3902 = vpop.permute.xlu0 %3901
    %3903 = vrot.lane.b32.xlu0 %v3879, 126
    %v3904 = vpop.permute.xlu0 %3903
    %3905 = vrot.lane.b32.xlu0 %v3880, 126
    %v3906 = vpop.permute.xlu0 %3905
    %3907 = vrot.lane.b32.xlu0 %v3881, 126
    %v3908 = vpop.permute.xlu0 %3907
    %v3918 = vadd.f32 %v3862, %v3892
    %v3919 = vadd.f32 %v3863, %v3894
    %v3920 = vadd.f32 %v3864, %v3896
    %v3921 = vadd.f32 %v3865, %v3898
    %v3922 = vadd.f32 %v3866, %v3900
    %v3923 = vadd.f32 %v3867, %v3902
    %v3924 = vadd.f32 %v3868, %v3904
    %v3925 = vadd.f32 %v3869, %v3906
    %v3926 = vadd.f32 %v3870, %v3908
    %s3927 = sld [smem:[#allocation4 + $0x2]]
    %v3928 = vstv %s3927
    %v3929 = vadd.f32 %v3918, %v3928
    %v3930 = vadd.f32 %v3919, %v3928
    %v3931 = vadd.f32 %v3920, %v3928
    %v3932 = vadd.f32 %v3921, %v3928
    %v3933 = vadd.f32 %v3922, %v3928
    %v3934 = vadd.f32 %v3923, %v3928
    %v3935 = vadd.f32 %v3924, %v3928
    %v3936 = vadd.f32 %v3925, %v3928
    %v3937 = vadd.f32 %v3926, %v3928
    %v3938 = vmul.f32 %v3929, 2.0
    %v3939 = vmul.f32 %v3930, 2.0
    %v3940 = vmul.f32 %v3931, 2.0
    %v3941 = vmul.f32 %v3932, 2.0
    %v3942 = vmul.f32 %v3933, 2.0
    %v3943 = vmul.f32 %v3934, 2.0
    %v3944 = vmul.f32 %v3935, 2.0
    %v3945 = vmul.f32 %v3936, 2.0
    %v3946 = vmul.f32 %v3937, 2.0
    %v3947 = vmax.f32 %v3938, 0.0
    %v3948 = vmax.f32 %v3939, 0.0
    %v3949 = vmax.f32 %v3940, 0.0
    %v3950 = vmax.f32 %v3941, 0.0
    %v3951 = vmax.f32 %v3942, 0.0
    %v3952 = vmax.f32 %v3943, 0.0
    %v3953 = vmax.f32 %v3944, 0.0
    %v3954 = vmax.f32 %v3945, 0.0
    %v3955 = vmax.f32 %v3946, 0.0
    %s3956 = scalar_lea.vmem %s3, 144
    %3957 = vst.msk [vmem:[%s3956] sm:$0xff] %vm1339, %v3947
    %3958 = vst.msk [vmem:[%s3956 + $0x8] sm:$0xff] %vm1339, %v3948
    %3959 = vst.msk [vmem:[%s3956 + $0x10] sm:$0xff] %vm1339, %v3949
    %3960 = vst.msk [vmem:[%s3956 + $0x18] sm:$0xff] %vm1339, %v3950
    %3961 = vst.msk [vmem:[%s3956 + $0x20] sm:$0xff] %vm1339, %v3951
    %3962 = vst.msk [vmem:[%s3956 + $0x28] sm:$0xff] %vm1339, %v3952
    %3963 = vst.msk [vmem:[%s3956 + $0x30] sm:$0xff] %vm1339, %v3953
    %3964 = vst.msk [vmem:[%s3956 + $0x38] sm:$0xff] %vm1339, %v3954
    %3965 = vst.msk [vmem:[%s3956 + $0x40] sm:$0x1] %vm1348, %v3955
    %v3966 = vld [vmem:[%s2] sm:$0xff]
    %v3967 = vld [vmem:[%s2 + $0x8] sm:$0xff]
    %v3968 = vld [vmem:[%s2 + $0x10] sm:$0xff]
    %v3969 = vld [vmem:[%s2 + $0x18] sm:$0xff]
    %v3970 = vld [vmem:[%s2 + $0x20] sm:$0xff]
    %v3971 = vld [vmem:[%s2 + $0x28] sm:$0xff]
    %v3972 = vld [vmem:[%s2 + $0x30] sm:$0xff]
    %v3973 = vld [vmem:[%s2 + $0x38] sm:$0xff]
    %v3974 = vld [vmem:[%s2 + $0x40] sm:$0x1]
    %s3975 = sld [smem:[#allocation2 + $0x51]]
    %v3976 = vstv %s3975
    %v3977 = vmul.f32 %v3976, %v3966
    %v3978 = vmul.f32 %v3976, %v3967
    %v3979 = vmul.f32 %v3976, %v3968
    %v3980 = vmul.f32 %v3976, %v3969
    %v3981 = vmul.f32 %v3976, %v3970
    %v3982 = vmul.f32 %v3976, %v3971
    %v3983 = vmul.f32 %v3976, %v3972
    %v3984 = vmul.f32 %v3976, %v3973
    %v3985 = vmul.f32 %v3976, %v3974
    %v3986 = vadd.f32 %v3977, 0.0
    %v3987 = vadd.f32 %v3978, 0.0
    %v3988 = vadd.f32 %v3979, 0.0
    %v3989 = vadd.f32 %v3980, 0.0
    %v3990 = vadd.f32 %v3981, 0.0
    %v3991 = vadd.f32 %v3982, 0.0
    %v3992 = vadd.f32 %v3983, 0.0
    %v3993 = vadd.f32 %v3984, 0.0
    %v3994 = vadd.f32 %v3985, 0.0
    %s3995 = sld [smem:[#allocation2 + $0x52]]
    %v3996 = vstv %s3995
    %v3997 = vmul.f32 %v3996, %v3966
    %v3998 = vmul.f32 %v3996, %v3967
    %v3999 = vmul.f32 %v3996, %v3968
    %v4000 = vmul.f32 %v3996, %v3969
    %v4001 = vmul.f32 %v3996, %v3970
    %v4002 = vmul.f32 %v3996, %v3971
    %v4003 = vmul.f32 %v3996, %v3972
    %v4004 = vmul.f32 %v3996, %v3973
    %v4005 = vmul.f32 %v3996, %v3974
    %4015 = vrot.lane.b32.xlu0 %v3997, 127
    %v4016 = vpop.permute.xlu0 %4015
    %4017 = vrot.lane.b32.xlu0 %v3998, 127
    %v4018 = vpop.permute.xlu0 %4017
    %4019 = vrot.lane.b32.xlu0 %v3999, 127
    %v4020 = vpop.permute.xlu0 %4019
    %4021 = vrot.lane.b32.xlu0 %v4000, 127
    %v4022 = vpop.permute.xlu0 %4021
    %4023 = vrot.lane.b32.xlu0 %v4001, 127
    %v4024 = vpop.permute.xlu0 %4023
    %4025 = vrot.lane.b32.xlu0 %v4002, 127
    %v4026 = vpop.permute.xlu0 %4025
    %4027 = vrot.lane.b32.xlu0 %v4003, 127
    %v4028 = vpop.permute.xlu0 %4027
    %4029 = vrot.lane.b32.xlu0 %v4004, 127
    %v4030 = vpop.permute.xlu0 %4029
    %4031 = vrot.lane.b32.xlu0 %v4005, 127
    %v4032 = vpop.permute.xlu0 %4031
    %v4042 = vadd.f32 %v3986, %v4016
    %v4043 = vadd.f32 %v3987, %v4018
    %v4044 = vadd.f32 %v3988, %v4020
    %v4045 = vadd.f32 %v3989, %v4022
    %v4046 = vadd.f32 %v3990, %v4024
    %v4047 = vadd.f32 %v3991, %v4026
    %v4048 = vadd.f32 %v3992, %v4028
    %v4049 = vadd.f32 %v3993, %v4030
    %v4050 = vadd.f32 %v3994, %v4032
    %s4051 = sld [smem:[#allocation2 + $0x53]]
    %v4052 = vstv %s4051
    %v4053 = vmul.f32 %v4052, %v3966
    %v4054 = vmul.f32 %v4052, %v3967
    %v4055 = vmul.f32 %v4052, %v3968
    %v4056 = vmul.f32 %v4052, %v3969
    %v4057 = vmul.f32 %v4052, %v3970
    %v4058 = vmul.f32 %v4052, %v3971
    %v4059 = vmul.f32 %v4052, %v3972
    %v4060 = vmul.f32 %v4052, %v3973
    %v4061 = vmul.f32 %v4052, %v3974
    %4071 = vrot.lane.b32.xlu0 %v4053, 126
    %v4072 = vpop.permute.xlu0 %4071
    %4073 = vrot.lane.b32.xlu0 %v4054, 126
    %v4074 = vpop.permute.xlu0 %4073
    %4075 = vrot.lane.b32.xlu0 %v4055, 126
    %v4076 = vpop.permute.xlu0 %4075
    %4077 = vrot.lane.b32.xlu0 %v4056, 126
    %v4078 = vpop.permute.xlu0 %4077
    %4079 = vrot.lane.b32.xlu0 %v4057, 126
    %v4080 = vpop.permute.xlu0 %4079
    %4081 = vrot.lane.b32.xlu0 %v4058, 126
    %v4082 = vpop.permute.xlu0 %4081
    %4083 = vrot.lane.b32.xlu0 %v4059, 126
    %v4084 = vpop.permute.xlu0 %4083
    %4085 = vrot.lane.b32.xlu0 %v4060, 126
    %v4086 = vpop.permute.xlu0 %4085
    %4087 = vrot.lane.b32.xlu0 %v4061, 126
    %v4088 = vpop.permute.xlu0 %4087
    %v4098 = vadd.f32 %v4042, %v4072
    %v4099 = vadd.f32 %v4043, %v4074
    %v4100 = vadd.f32 %v4044, %v4076
    %v4101 = vadd.f32 %v4045, %v4078
    %v4102 = vadd.f32 %v4046, %v4080
    %v4103 = vadd.f32 %v4047, %v4082
    %v4104 = vadd.f32 %v4048, %v4084
    %v4105 = vadd.f32 %v4049, %v4086
    %v4106 = vadd.f32 %v4050, %v4088
    %v4107 = vld [vmem:[%s2 + $0x1] sm:$0xff]
    %v4108 = vld [vmem:[%s2 + $0x9] sm:$0xff]
    %v4109 = vld [vmem:[%s2 + $0x11] sm:$0xff]
    %v4110 = vld [vmem:[%s2 + $0x19] sm:$0xff]
    %v4111 = vld [vmem:[%s2 + $0x21] sm:$0xff]
    %v4112 = vld [vmem:[%s2 + $0x29] sm:$0xff]
    %v4113 = vld [vmem:[%s2 + $0x31] sm:$0xff]
    %v4114 = vld [vmem:[%s2 + $0x39] sm:$0xff]
    %v4115 = vld [vmem:[%s2 + $0x41] sm:$0x1]
    %s4116 = sld [smem:[#allocation2 + $0x54]]
    %v4117 = vstv %s4116
    %v4118 = vmul.f32 %v4117, %v4107
    %v4119 = vmul.f32 %v4117, %v4108
    %v4120 = vmul.f32 %v4117, %v4109
    %v4121 = vmul.f32 %v4117, %v4110
    %v4122 = vmul.f32 %v4117, %v4111
    %v4123 = vmul.f32 %v4117, %v4112
    %v4124 = vmul.f32 %v4117, %v4113
    %v4125 = vmul.f32 %v4117, %v4114
    %v4126 = vmul.f32 %v4117, %v4115
    %v4127 = vadd.f32 %v4098, %v4118
    %v4128 = vadd.f32 %v4099, %v4119
    %v4129 = vadd.f32 %v4100, %v4120
    %v4130 = vadd.f32 %v4101, %v4121
    %v4131 = vadd.f32 %v4102, %v4122
    %v4132 = vadd.f32 %v4103, %v4123
    %v4133 = vadd.f32 %v4104, %v4124
    %v4134 = vadd.f32 %v4105, %v4125
    %v4135 = vadd.f32 %v4106, %v4126
    %s4136 = sld [smem:[#allocation2 + $0x55]]
    %v4137 = vstv %s4136
    %v4138 = vmul.f32 %v4137, %v4107
    %v4139 = vmul.f32 %v4137, %v4108
    %v4140 = vmul.f32 %v4137, %v4109
    %v4141 = vmul.f32 %v4137, %v4110
    %v4142 = vmul.f32 %v4137, %v4111
    %v4143 = vmul.f32 %v4137, %v4112
    %v4144 = vmul.f32 %v4137, %v4113
    %v4145 = vmul.f32 %v4137, %v4114
    %v4146 = vmul.f32 %v4137, %v4115
    %4156 = vrot.lane.b32.xlu0 %v4138, 127
    %v4157 = vpop.permute.xlu0 %4156
    %4158 = vrot.lane.b32.xlu0 %v4139, 127
    %v4159 = vpop.permute.xlu0 %4158
    %4160 = vrot.lane.b32.xlu0 %v4140, 127
    %v4161 = vpop.permute.xlu0 %4160
    %4162 = vrot.lane.b32.xlu0 %v4141, 127
    %v4163 = vpop.permute.xlu0 %4162
    %4164 = vrot.lane.b32.xlu0 %v4142, 127
    %v4165 = vpop.permute.xlu0 %4164
    %4166 = vrot.lane.b32.xlu0 %v4143, 127
    %v4167 = vpop.permute.xlu0 %4166
    %4168 = vrot.lane.b32.xlu0 %v4144, 127
    %v4169 = vpop.permute.xlu0 %4168
    %4170 = vrot.lane.b32.xlu0 %v4145, 127
    %v4171 = vpop.permute.xlu0 %4170
    %4172 = vrot.lane.b32.xlu0 %v4146, 127
    %v4173 = vpop.permute.xlu0 %4172
    %v4183 = vadd.f32 %v4127, %v4157
    %v4184 = vadd.f32 %v4128, %v4159
    %v4185 = vadd.f32 %v4129, %v4161
    %v4186 = vadd.f32 %v4130, %v4163
    %v4187 = vadd.f32 %v4131, %v4165
    %v4188 = vadd.f32 %v4132, %v4167
    %v4189 = vadd.f32 %v4133, %v4169
    %v4190 = vadd.f32 %v4134, %v4171
    %v4191 = vadd.f32 %v4135, %v4173
    %s4192 = sld [smem:[#allocation2 + $0x56]]
    %v4193 = vstv %s4192
    %v4194 = vmul.f32 %v4193, %v4107
    %v4195 = vmul.f32 %v4193, %v4108
    %v4196 = vmul.f32 %v4193, %v4109
    %v4197 = vmul.f32 %v4193, %v4110
    %v4198 = vmul.f32 %v4193, %v4111
    %v4199 = vmul.f32 %v4193, %v4112
    %v4200 = vmul.f32 %v4193, %v4113
    %v4201 = vmul.f32 %v4193, %v4114
    %v4202 = vmul.f32 %v4193, %v4115
    %4212 = vrot.lane.b32.xlu0 %v4194, 126
    %v4213 = vpop.permute.xlu0 %4212
    %4214 = vrot.lane.b32.xlu0 %v4195, 126
    %v4215 = vpop.permute.xlu0 %4214
    %4216 = vrot.lane.b32.xlu0 %v4196, 126
    %v4217 = vpop.permute.xlu0 %4216
    %4218 = vrot.lane.b32.xlu0 %v4197, 126
    %v4219 = vpop.permute.xlu0 %4218
    %4220 = vrot.lane.b32.xlu0 %v4198, 126
    %v4221 = vpop.permute.xlu0 %4220
    %4222 = vrot.lane.b32.xlu0 %v4199, 126
    %v4223 = vpop.permute.xlu0 %4222
    %4224 = vrot.lane.b32.xlu0 %v4200, 126
    %v4225 = vpop.permute.xlu0 %4224
    %4226 = vrot.lane.b32.xlu0 %v4201, 126
    %v4227 = vpop.permute.xlu0 %4226
    %4228 = vrot.lane.b32.xlu0 %v4202, 126
    %v4229 = vpop.permute.xlu0 %4228
    %v4239 = vadd.f32 %v4183, %v4213
    %v4240 = vadd.f32 %v4184, %v4215
    %v4241 = vadd.f32 %v4185, %v4217
    %v4242 = vadd.f32 %v4186, %v4219
    %v4243 = vadd.f32 %v4187, %v4221
    %v4244 = vadd.f32 %v4188, %v4223
    %v4245 = vadd.f32 %v4189, %v4225
    %v4246 = vadd.f32 %v4190, %v4227
    %v4247 = vadd.f32 %v4191, %v4229
    %v4248 = vld [vmem:[%s2 + $0x2] sm:$0xff]
    %v4249 = vld [vmem:[%s2 + $0xa] sm:$0xff]
    %v4250 = vld [vmem:[%s2 + $0x12] sm:$0xff]
    %v4251 = vld [vmem:[%s2 + $0x1a] sm:$0xff]
    %v4252 = vld [vmem:[%s2 + $0x22] sm:$0xff]
    %v4253 = vld [vmem:[%s2 + $0x2a] sm:$0xff]
    %v4254 = vld [vmem:[%s2 + $0x32] sm:$0xff]
    %v4255 = vld [vmem:[%s2 + $0x3a] sm:$0xff]
    %v4256 = vld [vmem:[%s2 + $0x42] sm:$0x1]
    %s4257 = sld [smem:[#allocation2 + $0x57]]
    %v4258 = vstv %s4257
    %v4259 = vmul.f32 %v4258, %v4248
    %v4260 = vmul.f32 %v4258, %v4249
    %v4261 = vmul.f32 %v4258, %v4250
    %v4262 = vmul.f32 %v4258, %v4251
    %v4263 = vmul.f32 %v4258, %v4252
    %v4264 = vmul.f32 %v4258, %v4253
    %v4265 = vmul.f32 %v4258, %v4254
    %v4266 = vmul.f32 %v4258, %v4255
    %v4267 = vmul.f32 %v4258, %v4256
    %v4268 = vadd.f32 %v4239, %v4259
    %v4269 = vadd.f32 %v4240, %v4260
    %v4270 = vadd.f32 %v4241, %v4261
    %v4271 = vadd.f32 %v4242, %v4262
    %v4272 = vadd.f32 %v4243, %v4263
    %v4273 = vadd.f32 %v4244, %v4264
    %v4274 = vadd.f32 %v4245, %v4265
    %v4275 = vadd.f32 %v4246, %v4266
    %v4276 = vadd.f32 %v4247, %v4267
    %s4277 = sld [smem:[#allocation2 + $0x58]]
    %v4278 = vstv %s4277
    %v4279 = vmul.f32 %v4278, %v4248
    %v4280 = vmul.f32 %v4278, %v4249
    %v4281 = vmul.f32 %v4278, %v4250
    %v4282 = vmul.f32 %v4278, %v4251
    %v4283 = vmul.f32 %v4278, %v4252
    %v4284 = vmul.f32 %v4278, %v4253
    %v4285 = vmul.f32 %v4278, %v4254
    %v4286 = vmul.f32 %v4278, %v4255
    %v4287 = vmul.f32 %v4278, %v4256
    %4297 = vrot.lane.b32.xlu0 %v4279, 127
    %v4298 = vpop.permute.xlu0 %4297
    %4299 = vrot.lane.b32.xlu0 %v4280, 127
    %v4300 = vpop.permute.xlu0 %4299
    %4301 = vrot.lane.b32.xlu0 %v4281, 127
    %v4302 = vpop.permute.xlu0 %4301
    %4303 = vrot.lane.b32.xlu0 %v4282, 127
    %v4304 = vpop.permute.xlu0 %4303
    %4305 = vrot.lane.b32.xlu0 %v4283, 127
    %v4306 = vpop.permute.xlu0 %4305
    %4307 = vrot.lane.b32.xlu0 %v4284, 127
    %v4308 = vpop.permute.xlu0 %4307
    %4309 = vrot.lane.b32.xlu0 %v4285, 127
    %v4310 = vpop.permute.xlu0 %4309
    %4311 = vrot.lane.b32.xlu0 %v4286, 127
    %v4312 = vpop.permute.xlu0 %4311
    %4313 = vrot.lane.b32.xlu0 %v4287, 127
    %v4314 = vpop.permute.xlu0 %4313
    %v4324 = vadd.f32 %v4268, %v4298
    %v4325 = vadd.f32 %v4269, %v4300
    %v4326 = vadd.f32 %v4270, %v4302
    %v4327 = vadd.f32 %v4271, %v4304
    %v4328 = vadd.f32 %v4272, %v4306
    %v4329 = vadd.f32 %v4273, %v4308
    %v4330 = vadd.f32 %v4274, %v4310
    %v4331 = vadd.f32 %v4275, %v4312
    %v4332 = vadd.f32 %v4276, %v4314
    %s4333 = sld [smem:[#allocation2 + $0x59]]
    %v4334 = vstv %s4333
    %v4335 = vmul.f32 %v4334, %v4248
    %v4336 = vmul.f32 %v4334, %v4249
    %v4337 = vmul.f32 %v4334, %v4250
    %v4338 = vmul.f32 %v4334, %v4251
    %v4339 = vmul.f32 %v4334, %v4252
    %v4340 = vmul.f32 %v4334, %v4253
    %v4341 = vmul.f32 %v4334, %v4254
    %v4342 = vmul.f32 %v4334, %v4255
    %v4343 = vmul.f32 %v4334, %v4256
    %4353 = vrot.lane.b32.xlu0 %v4335, 126
    %v4354 = vpop.permute.xlu0 %4353
    %4355 = vrot.lane.b32.xlu0 %v4336, 126
    %v4356 = vpop.permute.xlu0 %4355
    %4357 = vrot.lane.b32.xlu0 %v4337, 126
    %v4358 = vpop.permute.xlu0 %4357
    %4359 = vrot.lane.b32.xlu0 %v4338, 126
    %v4360 = vpop.permute.xlu0 %4359
    %4361 = vrot.lane.b32.xlu0 %v4339, 126
    %v4362 = vpop.permute.xlu0 %4361
    %4363 = vrot.lane.b32.xlu0 %v4340, 126
    %v4364 = vpop.permute.xlu0 %4363
    %4365 = vrot.lane.b32.xlu0 %v4341, 126
    %v4366 = vpop.permute.xlu0 %4365
    %4367 = vrot.lane.b32.xlu0 %v4342, 126
    %v4368 = vpop.permute.xlu0 %4367
    %4369 = vrot.lane.b32.xlu0 %v4343, 126
    %v4370 = vpop.permute.xlu0 %4369
    %v4380 = vadd.f32 %v4324, %v4354
    %v4381 = vadd.f32 %v4325, %v4356
    %v4382 = vadd.f32 %v4326, %v4358
    %v4383 = vadd.f32 %v4327, %v4360
    %v4384 = vadd.f32 %v4328, %v4362
    %v4385 = vadd.f32 %v4329, %v4364
    %v4386 = vadd.f32 %v4330, %v4366
    %v4387 = vadd.f32 %v4331, %v4368
    %v4388 = vadd.f32 %v4332, %v4370
    %v4389 = vld [vmem:[%s462] sm:$0xff]
    %v4390 = vld [vmem:[%s462 + $0x8] sm:$0xff]
    %v4391 = vld [vmem:[%s462 + $0x10] sm:$0xff]
    %v4392 = vld [vmem:[%s462 + $0x18] sm:$0xff]
    %v4393 = vld [vmem:[%s462 + $0x20] sm:$0xff]
    %v4394 = vld [vmem:[%s462 + $0x28] sm:$0xff]
    %v4395 = vld [vmem:[%s462 + $0x30] sm:$0xff]
    %v4396 = vld [vmem:[%s462 + $0x38] sm:$0xff]
    %v4397 = vld [vmem:[%s462 + $0x40] sm:$0x1]
    %s4398 = sld [smem:[#allocation2 + $0x5a]]
    %v4399 = vstv %s4398
    %v4400 = vmul.f32 %v4399, %v4389
    %v4401 = vmul.f32 %v4399, %v4390
    %v4402 = vmul.f32 %v4399, %v4391
    %v4403 = vmul.f32 %v4399, %v4392
    %v4404 = vmul.f32 %v4399, %v4393
    %v4405 = vmul.f32 %v4399, %v4394
    %v4406 = vmul.f32 %v4399, %v4395
    %v4407 = vmul.f32 %v4399, %v4396
    %v4408 = vmul.f32 %v4399, %v4397
    %v4409 = vadd.f32 %v4380, %v4400
    %v4410 = vadd.f32 %v4381, %v4401
    %v4411 = vadd.f32 %v4382, %v4402
    %v4412 = vadd.f32 %v4383, %v4403
    %v4413 = vadd.f32 %v4384, %v4404
    %v4414 = vadd.f32 %v4385, %v4405
    %v4415 = vadd.f32 %v4386, %v4406
    %v4416 = vadd.f32 %v4387, %v4407
    %v4417 = vadd.f32 %v4388, %v4408
    %s4418 = sld [smem:[#allocation2 + $0x5b]]
    %v4419 = vstv %s4418
    %v4420 = vmul.f32 %v4419, %v4389
    %v4421 = vmul.f32 %v4419, %v4390
    %v4422 = vmul.f32 %v4419, %v4391
    %v4423 = vmul.f32 %v4419, %v4392
    %v4424 = vmul.f32 %v4419, %v4393
    %v4425 = vmul.f32 %v4419, %v4394
    %v4426 = vmul.f32 %v4419, %v4395
    %v4427 = vmul.f32 %v4419, %v4396
    %v4428 = vmul.f32 %v4419, %v4397
    %4438 = vrot.lane.b32.xlu0 %v4420, 127
    %v4439 = vpop.permute.xlu0 %4438
    %4440 = vrot.lane.b32.xlu0 %v4421, 127
    %v4441 = vpop.permute.xlu0 %4440
    %4442 = vrot.lane.b32.xlu0 %v4422, 127
    %v4443 = vpop.permute.xlu0 %4442
    %4444 = vrot.lane.b32.xlu0 %v4423, 127
    %v4445 = vpop.permute.xlu0 %4444
    %4446 = vrot.lane.b32.xlu0 %v4424, 127
    %v4447 = vpop.permute.xlu0 %4446
    %4448 = vrot.lane.b32.xlu0 %v4425, 127
    %v4449 = vpop.permute.xlu0 %4448
    %4450 = vrot.lane.b32.xlu0 %v4426, 127
    %v4451 = vpop.permute.xlu0 %4450
    %4452 = vrot.lane.b32.xlu0 %v4427, 127
    %v4453 = vpop.permute.xlu0 %4452
    %4454 = vrot.lane.b32.xlu0 %v4428, 127
    %v4455 = vpop.permute.xlu0 %4454
    %v4465 = vadd.f32 %v4409, %v4439
    %v4466 = vadd.f32 %v4410, %v4441
    %v4467 = vadd.f32 %v4411, %v4443
    %v4468 = vadd.f32 %v4412, %v4445
    %v4469 = vadd.f32 %v4413, %v4447
    %v4470 = vadd.f32 %v4414, %v4449
    %v4471 = vadd.f32 %v4415, %v4451
    %v4472 = vadd.f32 %v4416, %v4453
    %v4473 = vadd.f32 %v4417, %v4455
    %s4474 = sld [smem:[#allocation2 + $0x5c]]
    %v4475 = vstv %s4474
    %v4476 = vmul.f32 %v4475, %v4389
    %v4477 = vmul.f32 %v4475, %v4390
    %v4478 = vmul.f32 %v4475, %v4391
    %v4479 = vmul.f32 %v4475, %v4392
    %v4480 = vmul.f32 %v4475, %v4393
    %v4481 = vmul.f32 %v4475, %v4394
    %v4482 = vmul.f32 %v4475, %v4395
    %v4483 = vmul.f32 %v4475, %v4396
    %v4484 = vmul.f32 %v4475, %v4397
    %4494 = vrot.lane.b32.xlu0 %v4476, 126
    %v4495 = vpop.permute.xlu0 %4494
    %4496 = vrot.lane.b32.xlu0 %v4477, 126
    %v4497 = vpop.permute.xlu0 %4496
    %4498 = vrot.lane.b32.xlu0 %v4478, 126
    %v4499 = vpop.permute.xlu0 %4498
    %4500 = vrot.lane.b32.xlu0 %v4479, 126
    %v4501 = vpop.permute.xlu0 %4500
    %4502 = vrot.lane.b32.xlu0 %v4480, 126
    %v4503 = vpop.permute.xlu0 %4502
    %4504 = vrot.lane.b32.xlu0 %v4481, 126
    %v4505 = vpop.permute.xlu0 %4504
    %4506 = vrot.lane.b32.xlu0 %v4482, 126
    %v4507 = vpop.permute.xlu0 %4506
    %4508 = vrot.lane.b32.xlu0 %v4483, 126
    %v4509 = vpop.permute.xlu0 %4508
    %4510 = vrot.lane.b32.xlu0 %v4484, 126
    %v4511 = vpop.permute.xlu0 %4510
    %v4521 = vadd.f32 %v4465, %v4495
    %v4522 = vadd.f32 %v4466, %v4497
    %v4523 = vadd.f32 %v4467, %v4499
    %v4524 = vadd.f32 %v4468, %v4501
    %v4525 = vadd.f32 %v4469, %v4503
    %v4526 = vadd.f32 %v4470, %v4505
    %v4527 = vadd.f32 %v4471, %v4507
    %v4528 = vadd.f32 %v4472, %v4509
    %v4529 = vadd.f32 %v4473, %v4511
    %v4530 = vld [vmem:[%s462 + $0x1] sm:$0xff]
    %v4531 = vld [vmem:[%s462 + $0x9] sm:$0xff]
    %v4532 = vld [vmem:[%s462 + $0x11] sm:$0xff]
    %v4533 = vld [vmem:[%s462 + $0x19] sm:$0xff]
    %v4534 = vld [vmem:[%s462 + $0x21] sm:$0xff]
    %v4535 = vld [vmem:[%s462 + $0x29] sm:$0xff]
    %v4536 = vld [vmem:[%s462 + $0x31] sm:$0xff]
    %v4537 = vld [vmem:[%s462 + $0x39] sm:$0xff]
    %v4538 = vld [vmem:[%s462 + $0x41] sm:$0x1]
    %s4539 = sld [smem:[#allocation2 + $0x5d]]
    %v4540 = vstv %s4539
    %v4541 = vmul.f32 %v4540, %v4530
    %v4542 = vmul.f32 %v4540, %v4531
    %v4543 = vmul.f32 %v4540, %v4532
    %v4544 = vmul.f32 %v4540, %v4533
    %v4545 = vmul.f32 %v4540, %v4534
    %v4546 = vmul.f32 %v4540, %v4535
    %v4547 = vmul.f32 %v4540, %v4536
    %v4548 = vmul.f32 %v4540, %v4537
    %v4549 = vmul.f32 %v4540, %v4538
    %v4550 = vadd.f32 %v4521, %v4541
    %v4551 = vadd.f32 %v4522, %v4542
    %v4552 = vadd.f32 %v4523, %v4543
    %v4553 = vadd.f32 %v4524, %v4544
    %v4554 = vadd.f32 %v4525, %v4545
    %v4555 = vadd.f32 %v4526, %v4546
    %v4556 = vadd.f32 %v4527, %v4547
    %v4557 = vadd.f32 %v4528, %v4548
    %v4558 = vadd.f32 %v4529, %v4549
    %s4559 = sld [smem:[#allocation2 + $0x5e]]
    %v4560 = vstv %s4559
    %v4561 = vmul.f32 %v4560, %v4530
    %v4562 = vmul.f32 %v4560, %v4531
    %v4563 = vmul.f32 %v4560, %v4532
    %v4564 = vmul.f32 %v4560, %v4533
    %v4565 = vmul.f32 %v4560, %v4534
    %v4566 = vmul.f32 %v4560, %v4535
    %v4567 = vmul.f32 %v4560, %v4536
    %v4568 = vmul.f32 %v4560, %v4537
    %v4569 = vmul.f32 %v4560, %v4538
    %4579 = vrot.lane.b32.xlu0 %v4561, 127
    %v4580 = vpop.permute.xlu0 %4579
    %4581 = vrot.lane.b32.xlu0 %v4562, 127
    %v4582 = vpop.permute.xlu0 %4581
    %4583 = vrot.lane.b32.xlu0 %v4563, 127
    %v4584 = vpop.permute.xlu0 %4583
    %4585 = vrot.lane.b32.xlu0 %v4564, 127
    %v4586 = vpop.permute.xlu0 %4585
    %4587 = vrot.lane.b32.xlu0 %v4565, 127
    %v4588 = vpop.permute.xlu0 %4587
    %4589 = vrot.lane.b32.xlu0 %v4566, 127
    %v4590 = vpop.permute.xlu0 %4589
    %4591 = vrot.lane.b32.xlu0 %v4567, 127
    %v4592 = vpop.permute.xlu0 %4591
    %4593 = vrot.lane.b32.xlu0 %v4568, 127
    %v4594 = vpop.permute.xlu0 %4593
    %4595 = vrot.lane.b32.xlu0 %v4569, 127
    %v4596 = vpop.permute.xlu0 %4595
    %v4606 = vadd.f32 %v4550, %v4580
    %v4607 = vadd.f32 %v4551, %v4582
    %v4608 = vadd.f32 %v4552, %v4584
    %v4609 = vadd.f32 %v4553, %v4586
    %v4610 = vadd.f32 %v4554, %v4588
    %v4611 = vadd.f32 %v4555, %v4590
    %v4612 = vadd.f32 %v4556, %v4592
    %v4613 = vadd.f32 %v4557, %v4594
    %v4614 = vadd.f32 %v4558, %v4596
    %s4615 = sld [smem:[#allocation2 + $0x5f]]
    %v4616 = vstv %s4615
    %v4617 = vmul.f32 %v4616, %v4530
    %v4618 = vmul.f32 %v4616, %v4531
    %v4619 = vmul.f32 %v4616, %v4532
    %v4620 = vmul.f32 %v4616, %v4533
    %v4621 = vmul.f32 %v4616, %v4534
    %v4622 = vmul.f32 %v4616, %v4535
    %v4623 = vmul.f32 %v4616, %v4536
    %v4624 = vmul.f32 %v4616, %v4537
    %v4625 = vmul.f32 %v4616, %v4538
    %4635 = vrot.lane.b32.xlu0 %v4617, 126
    %v4636 = vpop.permute.xlu0 %4635
    %4637 = vrot.lane.b32.xlu0 %v4618, 126
    %v4638 = vpop.permute.xlu0 %4637
    %4639 = vrot.lane.b32.xlu0 %v4619, 126
    %v4640 = vpop.permute.xlu0 %4639
    %4641 = vrot.lane.b32.xlu0 %v4620, 126
    %v4642 = vpop.permute.xlu0 %4641
    %4643 = vrot.lane.b32.xlu0 %v4621, 126
    %v4644 = vpop.permute.xlu0 %4643
    %4645 = vrot.lane.b32.xlu0 %v4622, 126
    %v4646 = vpop.permute.xlu0 %4645
    %4647 = vrot.lane.b32.xlu0 %v4623, 126
    %v4648 = vpop.permute.xlu0 %4647
    %4649 = vrot.lane.b32.xlu0 %v4624, 126
    %v4650 = vpop.permute.xlu0 %4649
    %4651 = vrot.lane.b32.xlu0 %v4625, 126
    %v4652 = vpop.permute.xlu0 %4651
    %v4662 = vadd.f32 %v4606, %v4636
    %v4663 = vadd.f32 %v4607, %v4638
    %v4664 = vadd.f32 %v4608, %v4640
    %v4665 = vadd.f32 %v4609, %v4642
    %v4666 = vadd.f32 %v4610, %v4644
    %v4667 = vadd.f32 %v4611, %v4646
    %v4668 = vadd.f32 %v4612, %v4648
    %v4669 = vadd.f32 %v4613, %v4650
    %v4670 = vadd.f32 %v4614, %v4652
    %v4671 = vld [vmem:[%s462 + $0x2] sm:$0xff]
    %v4672 = vld [vmem:[%s462 + $0xa] sm:$0xff]
    %v4673 = vld [vmem:[%s462 + $0x12] sm:$0xff]
    %v4674 = vld [vmem:[%s462 + $0x1a] sm:$0xff]
    %v4675 = vld [vmem:[%s462 + $0x22] sm:$0xff]
    %v4676 = vld [vmem:[%s462 + $0x2a] sm:$0xff]
    %v4677 = vld [vmem:[%s462 + $0x32] sm:$0xff]
    %v4678 = vld [vmem:[%s462 + $0x3a] sm:$0xff]
    %v4679 = vld [vmem:[%s462 + $0x42] sm:$0x1]
    %s4680 = sld [smem:[#allocation2 + $0x60]]
    %v4681 = vstv %s4680
    %v4682 = vmul.f32 %v4681, %v4671
    %v4683 = vmul.f32 %v4681, %v4672
    %v4684 = vmul.f32 %v4681, %v4673
    %v4685 = vmul.f32 %v4681, %v4674
    %v4686 = vmul.f32 %v4681, %v4675
    %v4687 = vmul.f32 %v4681, %v4676
    %v4688 = vmul.f32 %v4681, %v4677
    %v4689 = vmul.f32 %v4681, %v4678
    %v4690 = vmul.f32 %v4681, %v4679
    %v4691 = vadd.f32 %v4662, %v4682
    %v4692 = vadd.f32 %v4663, %v4683
    %v4693 = vadd.f32 %v4664, %v4684
    %v4694 = vadd.f32 %v4665, %v4685
    %v4695 = vadd.f32 %v4666, %v4686
    %v4696 = vadd.f32 %v4667, %v4687
    %v4697 = vadd.f32 %v4668, %v4688
    %v4698 = vadd.f32 %v4669, %v4689
    %v4699 = vadd.f32 %v4670, %v4690
    %s4700 = sld [smem:[#allocation2 + $0x61]]
    %v4701 = vstv %s4700
    %v4702 = vmul.f32 %v4701, %v4671
    %v4703 = vmul.f32 %v4701, %v4672
    %v4704 = vmul.f32 %v4701, %v4673
    %v4705 = vmul.f32 %v4701, %v4674
    %v4706 = vmul.f32 %v4701, %v4675
    %v4707 = vmul.f32 %v4701, %v4676
    %v4708 = vmul.f32 %v4701, %v4677
    %v4709 = vmul.f32 %v4701, %v4678
    %v4710 = vmul.f32 %v4701, %v4679
    %4720 = vrot.lane.b32.xlu0 %v4702, 127
    %v4721 = vpop.permute.xlu0 %4720
    %4722 = vrot.lane.b32.xlu0 %v4703, 127
    %v4723 = vpop.permute.xlu0 %4722
    %4724 = vrot.lane.b32.xlu0 %v4704, 127
    %v4725 = vpop.permute.xlu0 %4724
    %4726 = vrot.lane.b32.xlu0 %v4705, 127
    %v4727 = vpop.permute.xlu0 %4726
    %4728 = vrot.lane.b32.xlu0 %v4706, 127
    %v4729 = vpop.permute.xlu0 %4728
    %4730 = vrot.lane.b32.xlu0 %v4707, 127
    %v4731 = vpop.permute.xlu0 %4730
    %4732 = vrot.lane.b32.xlu0 %v4708, 127
    %v4733 = vpop.permute.xlu0 %4732
    %4734 = vrot.lane.b32.xlu0 %v4709, 127
    %v4735 = vpop.permute.xlu0 %4734
    %4736 = vrot.lane.b32.xlu0 %v4710, 127
    %v4737 = vpop.permute.xlu0 %4736
    %v4747 = vadd.f32 %v4691, %v4721
    %v4748 = vadd.f32 %v4692, %v4723
    %v4749 = vadd.f32 %v4693, %v4725
    %v4750 = vadd.f32 %v4694, %v4727
    %v4751 = vadd.f32 %v4695, %v4729
    %v4752 = vadd.f32 %v4696, %v4731
    %v4753 = vadd.f32 %v4697, %v4733
    %v4754 = vadd.f32 %v4698, %v4735
    %v4755 = vadd.f32 %v4699, %v4737
    %s4756 = sld [smem:[#allocation2 + $0x62]]
    %v4757 = vstv %s4756
    %v4758 = vmul.f32 %v4757, %v4671
    %v4759 = vmul.f32 %v4757, %v4672
    %v4760 = vmul.f32 %v4757, %v4673
    %v4761 = vmul.f32 %v4757, %v4674
    %v4762 = vmul.f32 %v4757, %v4675
    %v4763 = vmul.f32 %v4757, %v4676
    %v4764 = vmul.f32 %v4757, %v4677
    %v4765 = vmul.f32 %v4757, %v4678
    %v4766 = vmul.f32 %v4757, %v4679
    %4776 = vrot.lane.b32.xlu0 %v4758, 126
    %v4777 = vpop.permute.xlu0 %4776
    %4778 = vrot.lane.b32.xlu0 %v4759, 126
    %v4779 = vpop.permute.xlu0 %4778
    %4780 = vrot.lane.b32.xlu0 %v4760, 126
    %v4781 = vpop.permute.xlu0 %4780
    %4782 = vrot.lane.b32.xlu0 %v4761, 126
    %v4783 = vpop.permute.xlu0 %4782
    %4784 = vrot.lane.b32.xlu0 %v4762, 126
    %v4785 = vpop.permute.xlu0 %4784
    %4786 = vrot.lane.b32.xlu0 %v4763, 126
    %v4787 = vpop.permute.xlu0 %4786
    %4788 = vrot.lane.b32.xlu0 %v4764, 126
    %v4789 = vpop.permute.xlu0 %4788
    %4790 = vrot.lane.b32.xlu0 %v4765, 126
    %v4791 = vpop.permute.xlu0 %4790
    %4792 = vrot.lane.b32.xlu0 %v4766, 126
    %v4793 = vpop.permute.xlu0 %4792
    %v4803 = vadd.f32 %v4747, %v4777
    %v4804 = vadd.f32 %v4748, %v4779
    %v4805 = vadd.f32 %v4749, %v4781
    %v4806 = vadd.f32 %v4750, %v4783
    %v4807 = vadd.f32 %v4751, %v4785
    %v4808 = vadd.f32 %v4752, %v4787
    %v4809 = vadd.f32 %v4753, %v4789
    %v4810 = vadd.f32 %v4754, %v4791
    %v4811 = vadd.f32 %v4755, %v4793
    %v4812 = vld [vmem:[%s886] sm:$0xff]
    %v4813 = vld [vmem:[%s886 + $0x8] sm:$0xff]
    %v4814 = vld [vmem:[%s886 + $0x10] sm:$0xff]
    %v4815 = vld [vmem:[%s886 + $0x18] sm:$0xff]
    %v4816 = vld [vmem:[%s886 + $0x20] sm:$0xff]
    %v4817 = vld [vmem:[%s886 + $0x28] sm:$0xff]
    %v4818 = vld [vmem:[%s886 + $0x30] sm:$0xff]
    %v4819 = vld [vmem:[%s886 + $0x38] sm:$0xff]
    %v4820 = vld [vmem:[%s886 + $0x40] sm:$0x1]
    %s4821 = sld [smem:[#allocation2 + $0x63]]
    %v4822 = vstv %s4821
    %v4823 = vmul.f32 %v4822, %v4812
    %v4824 = vmul.f32 %v4822, %v4813
    %v4825 = vmul.f32 %v4822, %v4814
    %v4826 = vmul.f32 %v4822, %v4815
    %v4827 = vmul.f32 %v4822, %v4816
    %v4828 = vmul.f32 %v4822, %v4817
    %v4829 = vmul.f32 %v4822, %v4818
    %v4830 = vmul.f32 %v4822, %v4819
    %v4831 = vmul.f32 %v4822, %v4820
    %v4832 = vadd.f32 %v4803, %v4823
    %v4833 = vadd.f32 %v4804, %v4824
    %v4834 = vadd.f32 %v4805, %v4825
    %v4835 = vadd.f32 %v4806, %v4826
    %v4836 = vadd.f32 %v4807, %v4827
    %v4837 = vadd.f32 %v4808, %v4828
    %v4838 = vadd.f32 %v4809, %v4829
    %v4839 = vadd.f32 %v4810, %v4830
    %v4840 = vadd.f32 %v4811, %v4831
    %s4841 = sld [smem:[#allocation2 + $0x64]]
    %v4842 = vstv %s4841
    %v4843 = vmul.f32 %v4842, %v4812
    %v4844 = vmul.f32 %v4842, %v4813
    %v4845 = vmul.f32 %v4842, %v4814
    %v4846 = vmul.f32 %v4842, %v4815
    %v4847 = vmul.f32 %v4842, %v4816
    %v4848 = vmul.f32 %v4842, %v4817
    %v4849 = vmul.f32 %v4842, %v4818
    %v4850 = vmul.f32 %v4842, %v4819
    %v4851 = vmul.f32 %v4842, %v4820
    %4861 = vrot.lane.b32.xlu0 %v4843, 127
    %v4862 = vpop.permute.xlu0 %4861
    %4863 = vrot.lane.b32.xlu0 %v4844, 127
    %v4864 = vpop.permute.xlu0 %4863
    %4865 = vrot.lane.b32.xlu0 %v4845, 127
    %v4866 = vpop.permute.xlu0 %4865
    %4867 = vrot.lane.b32.xlu0 %v4846, 127
    %v4868 = vpop.permute.xlu0 %4867
    %4869 = vrot.lane.b32.xlu0 %v4847, 127
    %v4870 = vpop.permute.xlu0 %4869
    %4871 = vrot.lane.b32.xlu0 %v4848, 127
    %v4872 = vpop.permute.xlu0 %4871
    %4873 = vrot.lane.b32.xlu0 %v4849, 127
    %v4874 = vpop.permute.xlu0 %4873
    %4875 = vrot.lane.b32.xlu0 %v4850, 127
    %v4876 = vpop.permute.xlu0 %4875
    %4877 = vrot.lane.b32.xlu0 %v4851, 127
    %v4878 = vpop.permute.xlu0 %4877
    %v4888 = vadd.f32 %v4832, %v4862
    %v4889 = vadd.f32 %v4833, %v4864
    %v4890 = vadd.f32 %v4834, %v4866
    %v4891 = vadd.f32 %v4835, %v4868
    %v4892 = vadd.f32 %v4836, %v4870
    %v4893 = vadd.f32 %v4837, %v4872
    %v4894 = vadd.f32 %v4838, %v4874
    %v4895 = vadd.f32 %v4839, %v4876
    %v4896 = vadd.f32 %v4840, %v4878
    %s4897 = sld [smem:[#allocation2 + $0x65]]
    %v4898 = vstv %s4897
    %v4899 = vmul.f32 %v4898, %v4812
    %v4900 = vmul.f32 %v4898, %v4813
    %v4901 = vmul.f32 %v4898, %v4814
    %v4902 = vmul.f32 %v4898, %v4815
    %v4903 = vmul.f32 %v4898, %v4816
    %v4904 = vmul.f32 %v4898, %v4817
    %v4905 = vmul.f32 %v4898, %v4818
    %v4906 = vmul.f32 %v4898, %v4819
    %v4907 = vmul.f32 %v4898, %v4820
    %4917 = vrot.lane.b32.xlu0 %v4899, 126
    %v4918 = vpop.permute.xlu0 %4917
    %4919 = vrot.lane.b32.xlu0 %v4900, 126
    %v4920 = vpop.permute.xlu0 %4919
    %4921 = vrot.lane.b32.xlu0 %v4901, 126
    %v4922 = vpop.permute.xlu0 %4921
    %4923 = vrot.lane.b32.xlu0 %v4902, 126
    %v4924 = vpop.permute.xlu0 %4923
    %4925 = vrot.lane.b32.xlu0 %v4903, 126
    %v4926 = vpop.permute.xlu0 %4925
    %4927 = vrot.lane.b32.xlu0 %v4904, 126
    %v4928 = vpop.permute.xlu0 %4927
    %4929 = vrot.lane.b32.xlu0 %v4905, 126
    %v4930 = vpop.permute.xlu0 %4929
    %4931 = vrot.lane.b32.xlu0 %v4906, 126
    %v4932 = vpop.permute.xlu0 %4931
    %4933 = vrot.lane.b32.xlu0 %v4907, 126
    %v4934 = vpop.permute.xlu0 %4933
    %v4944 = vadd.f32 %v4888, %v4918
    %v4945 = vadd.f32 %v4889, %v4920
    %v4946 = vadd.f32 %v4890, %v4922
    %v4947 = vadd.f32 %v4891, %v4924
    %v4948 = vadd.f32 %v4892, %v4926
    %v4949 = vadd.f32 %v4893, %v4928
    %v4950 = vadd.f32 %v4894, %v4930
    %v4951 = vadd.f32 %v4895, %v4932
    %v4952 = vadd.f32 %v4896, %v4934
    %v4953 = vld [vmem:[%s886 + $0x1] sm:$0xff]
    %v4954 = vld [vmem:[%s886 + $0x9] sm:$0xff]
    %v4955 = vld [vmem:[%s886 + $0x11] sm:$0xff]
    %v4956 = vld [vmem:[%s886 + $0x19] sm:$0xff]
    %v4957 = vld [vmem:[%s886 + $0x21] sm:$0xff]
    %v4958 = vld [vmem:[%s886 + $0x29] sm:$0xff]
    %v4959 = vld [vmem:[%s886 + $0x31] sm:$0xff]
    %v4960 = vld [vmem:[%s886 + $0x39] sm:$0xff]
    %v4961 = vld [vmem:[%s886 + $0x41] sm:$0x1]
    %s4962 = sld [smem:[#allocation2 + $0x66]]
    %v4963 = vstv %s4962
    %v4964 = vmul.f32 %v4963, %v4953
    %v4965 = vmul.f32 %v4963, %v4954
    %v4966 = vmul.f32 %v4963, %v4955
    %v4967 = vmul.f32 %v4963, %v4956
    %v4968 = vmul.f32 %v4963, %v4957
    %v4969 = vmul.f32 %v4963, %v4958
    %v4970 = vmul.f32 %v4963, %v4959
    %v4971 = vmul.f32 %v4963, %v4960
    %v4972 = vmul.f32 %v4963, %v4961
    %v4973 = vadd.f32 %v4944, %v4964
    %v4974 = vadd.f32 %v4945, %v4965
    %v4975 = vadd.f32 %v4946, %v4966
    %v4976 = vadd.f32 %v4947, %v4967
    %v4977 = vadd.f32 %v4948, %v4968
    %v4978 = vadd.f32 %v4949, %v4969
    %v4979 = vadd.f32 %v4950, %v4970
    %v4980 = vadd.f32 %v4951, %v4971
    %v4981 = vadd.f32 %v4952, %v4972
    %s4982 = sld [smem:[#allocation2 + $0x67]]
    %v4983 = vstv %s4982
    %v4984 = vmul.f32 %v4983, %v4953
    %v4985 = vmul.f32 %v4983, %v4954
    %v4986 = vmul.f32 %v4983, %v4955
    %v4987 = vmul.f32 %v4983, %v4956
    %v4988 = vmul.f32 %v4983, %v4957
    %v4989 = vmul.f32 %v4983, %v4958
    %v4990 = vmul.f32 %v4983, %v4959
    %v4991 = vmul.f32 %v4983, %v4960
    %v4992 = vmul.f32 %v4983, %v4961
    %5002 = vrot.lane.b32.xlu0 %v4984, 127
    %v5003 = vpop.permute.xlu0 %5002
    %5004 = vrot.lane.b32.xlu0 %v4985, 127
    %v5005 = vpop.permute.xlu0 %5004
    %5006 = vrot.lane.b32.xlu0 %v4986, 127
    %v5007 = vpop.permute.xlu0 %5006
    %5008 = vrot.lane.b32.xlu0 %v4987, 127
    %v5009 = vpop.permute.xlu0 %5008
    %5010 = vrot.lane.b32.xlu0 %v4988, 127
    %v5011 = vpop.permute.xlu0 %5010
    %5012 = vrot.lane.b32.xlu0 %v4989, 127
    %v5013 = vpop.permute.xlu0 %5012
    %5014 = vrot.lane.b32.xlu0 %v4990, 127
    %v5015 = vpop.permute.xlu0 %5014
    %5016 = vrot.lane.b32.xlu0 %v4991, 127
    %v5017 = vpop.permute.xlu0 %5016
    %5018 = vrot.lane.b32.xlu0 %v4992, 127
    %v5019 = vpop.permute.xlu0 %5018
    %v5029 = vadd.f32 %v4973, %v5003
    %v5030 = vadd.f32 %v4974, %v5005
    %v5031 = vadd.f32 %v4975, %v5007
    %v5032 = vadd.f32 %v4976, %v5009
    %v5033 = vadd.f32 %v4977, %v5011
    %v5034 = vadd.f32 %v4978, %v5013
    %v5035 = vadd.f32 %v4979, %v5015
    %v5036 = vadd.f32 %v4980, %v5017
    %v5037 = vadd.f32 %v4981, %v5019
    %s5038 = sld [smem:[#allocation2 + $0x68]]
    %v5039 = vstv %s5038
    %v5040 = vmul.f32 %v5039, %v4953
    %v5041 = vmul.f32 %v5039, %v4954
    %v5042 = vmul.f32 %v5039, %v4955
    %v5043 = vmul.f32 %v5039, %v4956
    %v5044 = vmul.f32 %v5039, %v4957
    %v5045 = vmul.f32 %v5039, %v4958
    %v5046 = vmul.f32 %v5039, %v4959
    %v5047 = vmul.f32 %v5039, %v4960
    %v5048 = vmul.f32 %v5039, %v4961
    %5058 = vrot.lane.b32.xlu0 %v5040, 126
    %v5059 = vpop.permute.xlu0 %5058
    %5060 = vrot.lane.b32.xlu0 %v5041, 126
    %v5061 = vpop.permute.xlu0 %5060
    %5062 = vrot.lane.b32.xlu0 %v5042, 126
    %v5063 = vpop.permute.xlu0 %5062
    %5064 = vrot.lane.b32.xlu0 %v5043, 126
    %v5065 = vpop.permute.xlu0 %5064
    %5066 = vrot.lane.b32.xlu0 %v5044, 126
    %v5067 = vpop.permute.xlu0 %5066
    %5068 = vrot.lane.b32.xlu0 %v5045, 126
    %v5069 = vpop.permute.xlu0 %5068
    %5070 = vrot.lane.b32.xlu0 %v5046, 126
    %v5071 = vpop.permute.xlu0 %5070
    %5072 = vrot.lane.b32.xlu0 %v5047, 126
    %v5073 = vpop.permute.xlu0 %5072
    %5074 = vrot.lane.b32.xlu0 %v5048, 126
    %v5075 = vpop.permute.xlu0 %5074
    %v5085 = vadd.f32 %v5029, %v5059
    %v5086 = vadd.f32 %v5030, %v5061
    %v5087 = vadd.f32 %v5031, %v5063
    %v5088 = vadd.f32 %v5032, %v5065
    %v5089 = vadd.f32 %v5033, %v5067
    %v5090 = vadd.f32 %v5034, %v5069
    %v5091 = vadd.f32 %v5035, %v5071
    %v5092 = vadd.f32 %v5036, %v5073
    %v5093 = vadd.f32 %v5037, %v5075
    %v5094 = vld [vmem:[%s886 + $0x2] sm:$0xff]
    %v5095 = vld [vmem:[%s886 + $0xa] sm:$0xff]
    %v5096 = vld [vmem:[%s886 + $0x12] sm:$0xff]
    %v5097 = vld [vmem:[%s886 + $0x1a] sm:$0xff]
    %v5098 = vld [vmem:[%s886 + $0x22] sm:$0xff]
    %v5099 = vld [vmem:[%s886 + $0x2a] sm:$0xff]
    %v5100 = vld [vmem:[%s886 + $0x32] sm:$0xff]
    %v5101 = vld [vmem:[%s886 + $0x3a] sm:$0xff]
    %v5102 = vld [vmem:[%s886 + $0x42] sm:$0x1]
    %s5103 = sld [smem:[#allocation2 + $0x69]]
    %v5104 = vstv %s5103
    %v5105 = vmul.f32 %v5104, %v5094
    %v5106 = vmul.f32 %v5104, %v5095
    %v5107 = vmul.f32 %v5104, %v5096
    %v5108 = vmul.f32 %v5104, %v5097
    %v5109 = vmul.f32 %v5104, %v5098
    %v5110 = vmul.f32 %v5104, %v5099
    %v5111 = vmul.f32 %v5104, %v5100
    %v5112 = vmul.f32 %v5104, %v5101
    %v5113 = vmul.f32 %v5104, %v5102
    %v5114 = vadd.f32 %v5085, %v5105
    %v5115 = vadd.f32 %v5086, %v5106
    %v5116 = vadd.f32 %v5087, %v5107
    %v5117 = vadd.f32 %v5088, %v5108
    %v5118 = vadd.f32 %v5089, %v5109
    %v5119 = vadd.f32 %v5090, %v5110
    %v5120 = vadd.f32 %v5091, %v5111
    %v5121 = vadd.f32 %v5092, %v5112
    %v5122 = vadd.f32 %v5093, %v5113
    %s5123 = sld [smem:[#allocation2 + $0x6a]]
    %v5124 = vstv %s5123
    %v5125 = vmul.f32 %v5124, %v5094
    %v5126 = vmul.f32 %v5124, %v5095
    %v5127 = vmul.f32 %v5124, %v5096
    %v5128 = vmul.f32 %v5124, %v5097
    %v5129 = vmul.f32 %v5124, %v5098
    %v5130 = vmul.f32 %v5124, %v5099
    %v5131 = vmul.f32 %v5124, %v5100
    %v5132 = vmul.f32 %v5124, %v5101
    %v5133 = vmul.f32 %v5124, %v5102
    %5143 = vrot.lane.b32.xlu0 %v5125, 127
    %v5144 = vpop.permute.xlu0 %5143
    %5145 = vrot.lane.b32.xlu0 %v5126, 127
    %v5146 = vpop.permute.xlu0 %5145
    %5147 = vrot.lane.b32.xlu0 %v5127, 127
    %v5148 = vpop.permute.xlu0 %5147
    %5149 = vrot.lane.b32.xlu0 %v5128, 127
    %v5150 = vpop.permute.xlu0 %5149
    %5151 = vrot.lane.b32.xlu0 %v5129, 127
    %v5152 = vpop.permute.xlu0 %5151
    %5153 = vrot.lane.b32.xlu0 %v5130, 127
    %v5154 = vpop.permute.xlu0 %5153
    %5155 = vrot.lane.b32.xlu0 %v5131, 127
    %v5156 = vpop.permute.xlu0 %5155
    %5157 = vrot.lane.b32.xlu0 %v5132, 127
    %v5158 = vpop.permute.xlu0 %5157
    %5159 = vrot.lane.b32.xlu0 %v5133, 127
    %v5160 = vpop.permute.xlu0 %5159
    %v5170 = vadd.f32 %v5114, %v5144
    %v5171 = vadd.f32 %v5115, %v5146
    %v5172 = vadd.f32 %v5116, %v5148
    %v5173 = vadd.f32 %v5117, %v5150
    %v5174 = vadd.f32 %v5118, %v5152
    %v5175 = vadd.f32 %v5119, %v5154
    %v5176 = vadd.f32 %v5120, %v5156
    %v5177 = vadd.f32 %v5121, %v5158
    %v5178 = vadd.f32 %v5122, %v5160
    %s5179 = sld [smem:[#allocation2 + $0x6b]]
    %v5180 = vstv %s5179
    %v5181 = vmul.f32 %v5180, %v5094
    %v5182 = vmul.f32 %v5180, %v5095
    %v5183 = vmul.f32 %v5180, %v5096
    %v5184 = vmul.f32 %v5180, %v5097
    %v5185 = vmul.f32 %v5180, %v5098
    %v5186 = vmul.f32 %v5180, %v5099
    %v5187 = vmul.f32 %v5180, %v5100
    %v5188 = vmul.f32 %v5180, %v5101
    %v5189 = vmul.f32 %v5180, %v5102
    %5199 = vrot.lane.b32.xlu0 %v5181, 126
    %v5200 = vpop.permute.xlu0 %5199
    %5201 = vrot.lane.b32.xlu0 %v5182, 126
    %v5202 = vpop.permute.xlu0 %5201
    %5203 = vrot.lane.b32.xlu0 %v5183, 126
    %v5204 = vpop.permute.xlu0 %5203
    %5205 = vrot.lane.b32.xlu0 %v5184, 126
    %v5206 = vpop.permute.xlu0 %5205
    %5207 = vrot.lane.b32.xlu0 %v5185, 126
    %v5208 = vpop.permute.xlu0 %5207
    %5209 = vrot.lane.b32.xlu0 %v5186, 126
    %v5210 = vpop.permute.xlu0 %5209
    %5211 = vrot.lane.b32.xlu0 %v5187, 126
    %v5212 = vpop.permute.xlu0 %5211
    %5213 = vrot.lane.b32.xlu0 %v5188, 126
    %v5214 = vpop.permute.xlu0 %5213
    %5215 = vrot.lane.b32.xlu0 %v5189, 126
    %v5216 = vpop.permute.xlu0 %5215
    %v5226 = vadd.f32 %v5170, %v5200
    %v5227 = vadd.f32 %v5171, %v5202
    %v5228 = vadd.f32 %v5172, %v5204
    %v5229 = vadd.f32 %v5173, %v5206
    %v5230 = vadd.f32 %v5174, %v5208
    %v5231 = vadd.f32 %v5175, %v5210
    %v5232 = vadd.f32 %v5176, %v5212
    %v5233 = vadd.f32 %v5177, %v5214
    %v5234 = vadd.f32 %v5178, %v5216
    %s5235 = sld [smem:[#allocation4 + $0x3]]
    %v5236 = vstv %s5235
    %v5237 = vadd.f32 %v5226, %v5236
    %v5238 = vadd.f32 %v5227, %v5236
    %v5239 = vadd.f32 %v5228, %v5236
    %v5240 = vadd.f32 %v5229, %v5236
    %v5241 = vadd.f32 %v5230, %v5236
    %v5242 = vadd.f32 %v5231, %v5236
    %v5243 = vadd.f32 %v5232, %v5236
    %v5244 = vadd.f32 %v5233, %v5236
    %v5245 = vadd.f32 %v5234, %v5236
    %v5246 = vmul.f32 %v5237, 2.0
    %v5247 = vmul.f32 %v5238, 2.0
    %v5248 = vmul.f32 %v5239, 2.0
    %v5249 = vmul.f32 %v5240, 2.0
    %v5250 = vmul.f32 %v5241, 2.0
    %v5251 = vmul.f32 %v5242, 2.0
    %v5252 = vmul.f32 %v5243, 2.0
    %v5253 = vmul.f32 %v5244, 2.0
    %v5254 = vmul.f32 %v5245, 2.0
    %v5255 = vmax.f32 %v5246, 0.0
    %v5256 = vmax.f32 %v5247, 0.0
    %v5257 = vmax.f32 %v5248, 0.0
    %v5258 = vmax.f32 %v5249, 0.0
    %v5259 = vmax.f32 %v5250, 0.0
    %v5260 = vmax.f32 %v5251, 0.0
    %v5261 = vmax.f32 %v5252, 0.0
    %v5262 = vmax.f32 %v5253, 0.0
    %v5263 = vmax.f32 %v5254, 0.0
    %s5264 = scalar_lea.vmem %s3, 216
    %5265 = vst.msk [vmem:[%s5264] sm:$0xff] %vm1339, %v5255
    %5266 = vst.msk [vmem:[%s5264 + $0x8] sm:$0xff] %vm1339, %v5256
    %5267 = vst.msk [vmem:[%s5264 + $0x10] sm:$0xff] %vm1339, %v5257
    %5268 = vst.msk [vmem:[%s5264 + $0x18] sm:$0xff] %vm1339, %v5258
    %5269 = vst.msk [vmem:[%s5264 + $0x20] sm:$0xff] %vm1339, %v5259
    %5270 = vst.msk [vmem:[%s5264 + $0x28] sm:$0xff] %vm1339, %v5260
    %5271 = vst.msk [vmem:[%s5264 + $0x30] sm:$0xff] %vm1339, %v5261
    %5272 = vst.msk [vmem:[%s5264 + $0x38] sm:$0xff] %vm1339, %v5262
    %5273 = vst.msk [vmem:[%s5264 + $0x40] sm:$0x1] %vm1348, %v5263
    %v5274 = vld [vmem:[%s2] sm:$0xff]
    %v5275 = vld [vmem:[%s2 + $0x8] sm:$0xff]
    %v5276 = vld [vmem:[%s2 + $0x10] sm:$0xff]
    %v5277 = vld [vmem:[%s2 + $0x18] sm:$0xff]
    %v5278 = vld [vmem:[%s2 + $0x20] sm:$0xff]
    %v5279 = vld [vmem:[%s2 + $0x28] sm:$0xff]
    %v5280 = vld [vmem:[%s2 + $0x30] sm:$0xff]
    %v5281 = vld [vmem:[%s2 + $0x38] sm:$0xff]
    %v5282 = vld [vmem:[%s2 + $0x40] sm:$0x1]
    %s5283 = sld [smem:[#allocation2 + $0x6c]]
    %v5284 = vstv %s5283
    %v5285 = vmul.f32 %v5284, %v5274
    %v5286 = vmul.f32 %v5284, %v5275
    %v5287 = vmul.f32 %v5284, %v5276
    %v5288 = vmul.f32 %v5284, %v5277
    %v5289 = vmul.f32 %v5284, %v5278
    %v5290 = vmul.f32 %v5284, %v5279
    %v5291 = vmul.f32 %v5284, %v5280
    %v5292 = vmul.f32 %v5284, %v5281
    %v5293 = vmul.f32 %v5284, %v5282
    %v5294 = vadd.f32 %v5285, 0.0
    %v5295 = vadd.f32 %v5286, 0.0
    %v5296 = vadd.f32 %v5287, 0.0
    %v5297 = vadd.f32 %v5288, 0.0
    %v5298 = vadd.f32 %v5289, 0.0
    %v5299 = vadd.f32 %v5290, 0.0
    %v5300 = vadd.f32 %v5291, 0.0
    %v5301 = vadd.f32 %v5292, 0.0
    %v5302 = vadd.f32 %v5293, 0.0
    %s5303 = sld [smem:[#allocation2 + $0x6d]]
    %v5304 = vstv %s5303
    %v5305 = vmul.f32 %v5304, %v5274
    %v5306 = vmul.f32 %v5304, %v5275
    %v5307 = vmul.f32 %v5304, %v5276
    %v5308 = vmul.f32 %v5304, %v5277
    %v5309 = vmul.f32 %v5304, %v5278
    %v5310 = vmul.f32 %v5304, %v5279
    %v5311 = vmul.f32 %v5304, %v5280
    %v5312 = vmul.f32 %v5304, %v5281
    %v5313 = vmul.f32 %v5304, %v5282
    %5323 = vrot.lane.b32.xlu0 %v5305, 127
    %v5324 = vpop.permute.xlu0 %5323
    %5325 = vrot.lane.b32.xlu0 %v5306, 127
    %v5326 = vpop.permute.xlu0 %5325
    %5327 = vrot.lane.b32.xlu0 %v5307, 127
    %v5328 = vpop.permute.xlu0 %5327
    %5329 = vrot.lane.b32.xlu0 %v5308, 127
    %v5330 = vpop.permute.xlu0 %5329
    %5331 = vrot.lane.b32.xlu0 %v5309, 127
    %v5332 = vpop.permute.xlu0 %5331
    %5333 = vrot.lane.b32.xlu0 %v5310, 127
    %v5334 = vpop.permute.xlu0 %5333
    %5335 = vrot.lane.b32.xlu0 %v5311, 127
    %v5336 = vpop.permute.xlu0 %5335
    %5337 = vrot.lane.b32.xlu0 %v5312, 127
    %v5338 = vpop.permute.xlu0 %5337
    %5339 = vrot.lane.b32.xlu0 %v5313, 127
    %v5340 = vpop.permute.xlu0 %5339
    %v5350 = vadd.f32 %v5294, %v5324
    %v5351 = vadd.f32 %v5295, %v5326
    %v5352 = vadd.f32 %v5296, %v5328
    %v5353 = vadd.f32 %v5297, %v5330
    %v5354 = vadd.f32 %v5298, %v5332
    %v5355 = vadd.f32 %v5299, %v5334
    %v5356 = vadd.f32 %v5300, %v5336
    %v5357 = vadd.f32 %v5301, %v5338
    %v5358 = vadd.f32 %v5302, %v5340
    %s5359 = sld [smem:[#allocation2 + $0x6e]]
    %v5360 = vstv %s5359
    %v5361 = vmul.f32 %v5360, %v5274
    %v5362 = vmul.f32 %v5360, %v5275
    %v5363 = vmul.f32 %v5360, %v5276
    %v5364 = vmul.f32 %v5360, %v5277
    %v5365 = vmul.f32 %v5360, %v5278
    %v5366 = vmul.f32 %v5360, %v5279
    %v5367 = vmul.f32 %v5360, %v5280
    %v5368 = vmul.f32 %v5360, %v5281
    %v5369 = vmul.f32 %v5360, %v5282
    %5379 = vrot.lane.b32.xlu0 %v5361, 126
    %v5380 = vpop.permute.xlu0 %5379
    %5381 = vrot.lane.b32.xlu0 %v5362, 126
    %v5382 = vpop.permute.xlu0 %5381
    %5383 = vrot.lane.b32.xlu0 %v5363, 126
    %v5384 = vpop.permute.xlu0 %5383
    %5385 = vrot.lane.b32.xlu0 %v5364, 126
    %v5386 = vpop.permute.xlu0 %5385
    %5387 = vrot.lane.b32.xlu0 %v5365, 126
    %v5388 = vpop.permute.xlu0 %5387
    %5389 = vrot.lane.b32.xlu0 %v5366, 126
    %v5390 = vpop.permute.xlu0 %5389
    %5391 = vrot.lane.b32.xlu0 %v5367, 126
    %v5392 = vpop.permute.xlu0 %5391
    %5393 = vrot.lane.b32.xlu0 %v5368, 126
    %v5394 = vpop.permute.xlu0 %5393
    %5395 = vrot.lane.b32.xlu0 %v5369, 126
    %v5396 = vpop.permute.xlu0 %5395
    %v5406 = vadd.f32 %v5350, %v5380
    %v5407 = vadd.f32 %v5351, %v5382
    %v5408 = vadd.f32 %v5352, %v5384
    %v5409 = vadd.f32 %v5353, %v5386
    %v5410 = vadd.f32 %v5354, %v5388
    %v5411 = vadd.f32 %v5355, %v5390
    %v5412 = vadd.f32 %v5356, %v5392
    %v5413 = vadd.f32 %v5357, %v5394
    %v5414 = vadd.f32 %v5358, %v5396
    %v5415 = vld [vmem:[%s2 + $0x1] sm:$0xff]
    %v5416 = vld [vmem:[%s2 + $0x9] sm:$0xff]
    %v5417 = vld [vmem:[%s2 + $0x11] sm:$0xff]
    %v5418 = vld [vmem:[%s2 + $0x19] sm:$0xff]
    %v5419 = vld [vmem:[%s2 + $0x21] sm:$0xff]
    %v5420 = vld [vmem:[%s2 + $0x29] sm:$0xff]
    %v5421 = vld [vmem:[%s2 + $0x31] sm:$0xff]
    %v5422 = vld [vmem:[%s2 + $0x39] sm:$0xff]
    %v5423 = vld [vmem:[%s2 + $0x41] sm:$0x1]
    %s5424 = sld [smem:[#allocation2 + $0x6f]]
    %v5425 = vstv %s5424
    %v5426 = vmul.f32 %v5425, %v5415
    %v5427 = vmul.f32 %v5425, %v5416
    %v5428 = vmul.f32 %v5425, %v5417
    %v5429 = vmul.f32 %v5425, %v5418
    %v5430 = vmul.f32 %v5425, %v5419
    %v5431 = vmul.f32 %v5425, %v5420
    %v5432 = vmul.f32 %v5425, %v5421
    %v5433 = vmul.f32 %v5425, %v5422
    %v5434 = vmul.f32 %v5425, %v5423
    %v5435 = vadd.f32 %v5406, %v5426
    %v5436 = vadd.f32 %v5407, %v5427
    %v5437 = vadd.f32 %v5408, %v5428
    %v5438 = vadd.f32 %v5409, %v5429
    %v5439 = vadd.f32 %v5410, %v5430
    %v5440 = vadd.f32 %v5411, %v5431
    %v5441 = vadd.f32 %v5412, %v5432
    %v5442 = vadd.f32 %v5413, %v5433
    %v5443 = vadd.f32 %v5414, %v5434
    %s5444 = sld [smem:[#allocation2 + $0x70]]
    %v5445 = vstv %s5444
    %v5446 = vmul.f32 %v5445, %v5415
    %v5447 = vmul.f32 %v5445, %v5416
    %v5448 = vmul.f32 %v5445, %v5417
    %v5449 = vmul.f32 %v5445, %v5418
    %v5450 = vmul.f32 %v5445, %v5419
    %v5451 = vmul.f32 %v5445, %v5420
    %v5452 = vmul.f32 %v5445, %v5421
    %v5453 = vmul.f32 %v5445, %v5422
    %v5454 = vmul.f32 %v5445, %v5423
    %5464 = vrot.lane.b32.xlu0 %v5446, 127
    %v5465 = vpop.permute.xlu0 %5464
    %5466 = vrot.lane.b32.xlu0 %v5447, 127
    %v5467 = vpop.permute.xlu0 %5466
    %5468 = vrot.lane.b32.xlu0 %v5448, 127
    %v5469 = vpop.permute.xlu0 %5468
    %5470 = vrot.lane.b32.xlu0 %v5449, 127
    %v5471 = vpop.permute.xlu0 %5470
    %5472 = vrot.lane.b32.xlu0 %v5450, 127
    %v5473 = vpop.permute.xlu0 %5472
    %5474 = vrot.lane.b32.xlu0 %v5451, 127
    %v5475 = vpop.permute.xlu0 %5474
    %5476 = vrot.lane.b32.xlu0 %v5452, 127
    %v5477 = vpop.permute.xlu0 %5476
    %5478 = vrot.lane.b32.xlu0 %v5453, 127
    %v5479 = vpop.permute.xlu0 %5478
    %5480 = vrot.lane.b32.xlu0 %v5454, 127
    %v5481 = vpop.permute.xlu0 %5480
    %v5491 = vadd.f32 %v5435, %v5465
    %v5492 = vadd.f32 %v5436, %v5467
    %v5493 = vadd.f32 %v5437, %v5469
    %v5494 = vadd.f32 %v5438, %v5471
    %v5495 = vadd.f32 %v5439, %v5473
    %v5496 = vadd.f32 %v5440, %v5475
    %v5497 = vadd.f32 %v5441, %v5477
    %v5498 = vadd.f32 %v5442, %v5479
    %v5499 = vadd.f32 %v5443, %v5481
    %s5500 = sld [smem:[#allocation2 + $0x71]]
    %v5501 = vstv %s5500
    %v5502 = vmul.f32 %v5501, %v5415
    %v5503 = vmul.f32 %v5501, %v5416
    %v5504 = vmul.f32 %v5501, %v5417
    %v5505 = vmul.f32 %v5501, %v5418
    %v5506 = vmul.f32 %v5501, %v5419
    %v5507 = vmul.f32 %v5501, %v5420
    %v5508 = vmul.f32 %v5501, %v5421
    %v5509 = vmul.f32 %v5501, %v5422
    %v5510 = vmul.f32 %v5501, %v5423
    %5520 = vrot.lane.b32.xlu0 %v5502, 126
    %v5521 = vpop.permute.xlu0 %5520
    %5522 = vrot.lane.b32.xlu0 %v5503, 126
    %v5523 = vpop.permute.xlu0 %5522
    %5524 = vrot.lane.b32.xlu0 %v5504, 126
    %v5525 = vpop.permute.xlu0 %5524
    %5526 = vrot.lane.b32.xlu0 %v5505, 126
    %v5527 = vpop.permute.xlu0 %5526
    %5528 = vrot.lane.b32.xlu0 %v5506, 126
    %v5529 = vpop.permute.xlu0 %5528
    %5530 = vrot.lane.b32.xlu0 %v5507, 126
    %v5531 = vpop.permute.xlu0 %5530
    %5532 = vrot.lane.b32.xlu0 %v5508, 126
    %v5533 = vpop.permute.xlu0 %5532
    %5534 = vrot.lane.b32.xlu0 %v5509, 126
    %v5535 = vpop.permute.xlu0 %5534
    %5536 = vrot.lane.b32.xlu0 %v5510, 126
    %v5537 = vpop.permute.xlu0 %5536
    %v5547 = vadd.f32 %v5491, %v5521
    %v5548 = vadd.f32 %v5492, %v5523
    %v5549 = vadd.f32 %v5493, %v5525
    %v5550 = vadd.f32 %v5494, %v5527
    %v5551 = vadd.f32 %v5495, %v5529
    %v5552 = vadd.f32 %v5496, %v5531
    %v5553 = vadd.f32 %v5497, %v5533
    %v5554 = vadd.f32 %v5498, %v5535
    %v5555 = vadd.f32 %v5499, %v5537
    %v5556 = vld [vmem:[%s2 + $0x2] sm:$0xff]
    %v5557 = vld [vmem:[%s2 + $0xa] sm:$0xff]
    %v5558 = vld [vmem:[%s2 + $0x12] sm:$0xff]
    %v5559 = vld [vmem:[%s2 + $0x1a] sm:$0xff]
    %v5560 = vld [vmem:[%s2 + $0x22] sm:$0xff]
    %v5561 = vld [vmem:[%s2 + $0x2a] sm:$0xff]
    %v5562 = vld [vmem:[%s2 + $0x32] sm:$0xff]
    %v5563 = vld [vmem:[%s2 + $0x3a] sm:$0xff]
    %v5564 = vld [vmem:[%s2 + $0x42] sm:$0x1]
    %s5565 = sld [smem:[#allocation2 + $0x72]]
    %v5566 = vstv %s5565
    %v5567 = vmul.f32 %v5566, %v5556
    %v5568 = vmul.f32 %v5566, %v5557
    %v5569 = vmul.f32 %v5566, %v5558
    %v5570 = vmul.f32 %v5566, %v5559
    %v5571 = vmul.f32 %v5566, %v5560
    %v5572 = vmul.f32 %v5566, %v5561
    %v5573 = vmul.f32 %v5566, %v5562
    %v5574 = vmul.f32 %v5566, %v5563
    %v5575 = vmul.f32 %v5566, %v5564
    %v5576 = vadd.f32 %v5547, %v5567
    %v5577 = vadd.f32 %v5548, %v5568
    %v5578 = vadd.f32 %v5549, %v5569
    %v5579 = vadd.f32 %v5550, %v5570
    %v5580 = vadd.f32 %v5551, %v5571
    %v5581 = vadd.f32 %v5552, %v5572
    %v5582 = vadd.f32 %v5553, %v5573
    %v5583 = vadd.f32 %v5554, %v5574
    %v5584 = vadd.f32 %v5555, %v5575
    %s5585 = sld [smem:[#allocation2 + $0x73]]
    %v5586 = vstv %s5585
    %v5587 = vmul.f32 %v5586, %v5556
    %v5588 = vmul.f32 %v5586, %v5557
    %v5589 = vmul.f32 %v5586, %v5558
    %v5590 = vmul.f32 %v5586, %v5559
    %v5591 = vmul.f32 %v5586, %v5560
    %v5592 = vmul.f32 %v5586, %v5561
    %v5593 = vmul.f32 %v5586, %v5562
    %v5594 = vmul.f32 %v5586, %v5563
    %v5595 = vmul.f32 %v5586, %v5564
    %5605 = vrot.lane.b32.xlu0 %v5587, 127
    %v5606 = vpop.permute.xlu0 %5605
    %5607 = vrot.lane.b32.xlu0 %v5588, 127
    %v5608 = vpop.permute.xlu0 %5607
    %5609 = vrot.lane.b32.xlu0 %v5589, 127
    %v5610 = vpop.permute.xlu0 %5609
    %5611 = vrot.lane.b32.xlu0 %v5590, 127
    %v5612 = vpop.permute.xlu0 %5611
    %5613 = vrot.lane.b32.xlu0 %v5591, 127
    %v5614 = vpop.permute.xlu0 %5613
    %5615 = vrot.lane.b32.xlu0 %v5592, 127
    %v5616 = vpop.permute.xlu0 %5615
    %5617 = vrot.lane.b32.xlu0 %v5593, 127
    %v5618 = vpop.permute.xlu0 %5617
    %5619 = vrot.lane.b32.xlu0 %v5594, 127
    %v5620 = vpop.permute.xlu0 %5619
    %5621 = vrot.lane.b32.xlu0 %v5595, 127
    %v5622 = vpop.permute.xlu0 %5621
    %v5632 = vadd.f32 %v5576, %v5606
    %v5633 = vadd.f32 %v5577, %v5608
    %v5634 = vadd.f32 %v5578, %v5610
    %v5635 = vadd.f32 %v5579, %v5612
    %v5636 = vadd.f32 %v5580, %v5614
    %v5637 = vadd.f32 %v5581, %v5616
    %v5638 = vadd.f32 %v5582, %v5618
    %v5639 = vadd.f32 %v5583, %v5620
    %v5640 = vadd.f32 %v5584, %v5622
    %s5641 = sld [smem:[#allocation2 + $0x74]]
    %v5642 = vstv %s5641
    %v5643 = vmul.f32 %v5642, %v5556
    %v5644 = vmul.f32 %v5642, %v5557
    %v5645 = vmul.f32 %v5642, %v5558
    %v5646 = vmul.f32 %v5642, %v5559
    %v5647 = vmul.f32 %v5642, %v5560
    %v5648 = vmul.f32 %v5642, %v5561
    %v5649 = vmul.f32 %v5642, %v5562
    %v5650 = vmul.f32 %v5642, %v5563
    %v5651 = vmul.f32 %v5642, %v5564
    %5661 = vrot.lane.b32.xlu0 %v5643, 126
    %v5662 = vpop.permute.xlu0 %5661
    %5663 = vrot.lane.b32.xlu0 %v5644, 126
    %v5664 = vpop.permute.xlu0 %5663
    %5665 = vrot.lane.b32.xlu0 %v5645, 126
    %v5666 = vpop.permute.xlu0 %5665
    %5667 = vrot.lane.b32.xlu0 %v5646, 126
    %v5668 = vpop.permute.xlu0 %5667
    %5669 = vrot.lane.b32.xlu0 %v5647, 126
    %v5670 = vpop.permute.xlu0 %5669
    %5671 = vrot.lane.b32.xlu0 %v5648, 126
    %v5672 = vpop.permute.xlu0 %5671
    %5673 = vrot.lane.b32.xlu0 %v5649, 126
    %v5674 = vpop.permute.xlu0 %5673
    %5675 = vrot.lane.b32.xlu0 %v5650, 126
    %v5676 = vpop.permute.xlu0 %5675
    %5677 = vrot.lane.b32.xlu0 %v5651, 126
    %v5678 = vpop.permute.xlu0 %5677
    %v5688 = vadd.f32 %v5632, %v5662
    %v5689 = vadd.f32 %v5633, %v5664
    %v5690 = vadd.f32 %v5634, %v5666
    %v5691 = vadd.f32 %v5635, %v5668
    %v5692 = vadd.f32 %v5636, %v5670
    %v5693 = vadd.f32 %v5637, %v5672
    %v5694 = vadd.f32 %v5638, %v5674
    %v5695 = vadd.f32 %v5639, %v5676
    %v5696 = vadd.f32 %v5640, %v5678
    %v5697 = vld [vmem:[%s462] sm:$0xff]
    %v5698 = vld [vmem:[%s462 + $0x8] sm:$0xff]
    %v5699 = vld [vmem:[%s462 + $0x10] sm:$0xff]
    %v5700 = vld [vmem:[%s462 + $0x18] sm:$0xff]
    %v5701 = vld [vmem:[%s462 + $0x20] sm:$0xff]
    %v5702 = vld [vmem:[%s462 + $0x28] sm:$0xff]
    %v5703 = vld [vmem:[%s462 + $0x30] sm:$0xff]
    %v5704 = vld [vmem:[%s462 + $0x38] sm:$0xff]
    %v5705 = vld [vmem:[%s462 + $0x40] sm:$0x1]
    %s5706 = sld [smem:[#allocation2 + $0x75]]
    %v5707 = vstv %s5706
    %v5708 = vmul.f32 %v5707, %v5697
    %v5709 = vmul.f32 %v5707, %v5698
    %v5710 = vmul.f32 %v5707, %v5699
    %v5711 = vmul.f32 %v5707, %v5700
    %v5712 = vmul.f32 %v5707, %v5701
    %v5713 = vmul.f32 %v5707, %v5702
    %v5714 = vmul.f32 %v5707, %v5703
    %v5715 = vmul.f32 %v5707, %v5704
    %v5716 = vmul.f32 %v5707, %v5705
    %v5717 = vadd.f32 %v5688, %v5708
    %v5718 = vadd.f32 %v5689, %v5709
    %v5719 = vadd.f32 %v5690, %v5710
    %v5720 = vadd.f32 %v5691, %v5711
    %v5721 = vadd.f32 %v5692, %v5712
    %v5722 = vadd.f32 %v5693, %v5713
    %v5723 = vadd.f32 %v5694, %v5714
    %v5724 = vadd.f32 %v5695, %v5715
    %v5725 = vadd.f32 %v5696, %v5716
    %s5726 = sld [smem:[#allocation2 + $0x76]]
    %v5727 = vstv %s5726
    %v5728 = vmul.f32 %v5727, %v5697
    %v5729 = vmul.f32 %v5727, %v5698
    %v5730 = vmul.f32 %v5727, %v5699
    %v5731 = vmul.f32 %v5727, %v5700
    %v5732 = vmul.f32 %v5727, %v5701
    %v5733 = vmul.f32 %v5727, %v5702
    %v5734 = vmul.f32 %v5727, %v5703
    %v5735 = vmul.f32 %v5727, %v5704
    %v5736 = vmul.f32 %v5727, %v5705
    %5746 = vrot.lane.b32.xlu0 %v5728, 127
    %v5747 = vpop.permute.xlu0 %5746
    %5748 = vrot.lane.b32.xlu0 %v5729, 127
    %v5749 = vpop.permute.xlu0 %5748
    %5750 = vrot.lane.b32.xlu0 %v5730, 127
    %v5751 = vpop.permute.xlu0 %5750
    %5752 = vrot.lane.b32.xlu0 %v5731, 127
    %v5753 = vpop.permute.xlu0 %5752
    %5754 = vrot.lane.b32.xlu0 %v5732, 127
    %v5755 = vpop.permute.xlu0 %5754
    %5756 = vrot.lane.b32.xlu0 %v5733, 127
    %v5757 = vpop.permute.xlu0 %5756
    %5758 = vrot.lane.b32.xlu0 %v5734, 127
    %v5759 = vpop.permute.xlu0 %5758
    %5760 = vrot.lane.b32.xlu0 %v5735, 127
    %v5761 = vpop.permute.xlu0 %5760
    %5762 = vrot.lane.b32.xlu0 %v5736, 127
    %v5763 = vpop.permute.xlu0 %5762
    %v5773 = vadd.f32 %v5717, %v5747
    %v5774 = vadd.f32 %v5718, %v5749
    %v5775 = vadd.f32 %v5719, %v5751
    %v5776 = vadd.f32 %v5720, %v5753
    %v5777 = vadd.f32 %v5721, %v5755
    %v5778 = vadd.f32 %v5722, %v5757
    %v5779 = vadd.f32 %v5723, %v5759
    %v5780 = vadd.f32 %v5724, %v5761
    %v5781 = vadd.f32 %v5725, %v5763
    %s5782 = sld [smem:[#allocation2 + $0x77]]
    %v5783 = vstv %s5782
    %v5784 = vmul.f32 %v5783, %v5697
    %v5785 = vmul.f32 %v5783, %v5698
    %v5786 = vmul.f32 %v5783, %v5699
    %v5787 = vmul.f32 %v5783, %v5700
    %v5788 = vmul.f32 %v5783, %v5701
    %v5789 = vmul.f32 %v5783, %v5702
    %v5790 = vmul.f32 %v5783, %v5703
    %v5791 = vmul.f32 %v5783, %v5704
    %v5792 = vmul.f32 %v5783, %v5705
    %5802 = vrot.lane.b32.xlu0 %v5784, 126
    %v5803 = vpop.permute.xlu0 %5802
    %5804 = vrot.lane.b32.xlu0 %v5785, 126
    %v5805 = vpop.permute.xlu0 %5804
    %5806 = vrot.lane.b32.xlu0 %v5786, 126
    %v5807 = vpop.permute.xlu0 %5806
    %5808 = vrot.lane.b32.xlu0 %v5787, 126
    %v5809 = vpop.permute.xlu0 %5808
    %5810 = vrot.lane.b32.xlu0 %v5788, 126
    %v5811 = vpop.permute.xlu0 %5810
    %5812 = vrot.lane.b32.xlu0 %v5789, 126
    %v5813 = vpop.permute.xlu0 %5812
    %5814 = vrot.lane.b32.xlu0 %v5790, 126
    %v5815 = vpop.permute.xlu0 %5814
    %5816 = vrot.lane.b32.xlu0 %v5791, 126
    %v5817 = vpop.permute.xlu0 %5816
    %5818 = vrot.lane.b32.xlu0 %v5792, 126
    %v5819 = vpop.permute.xlu0 %5818
    %v5829 = vadd.f32 %v5773, %v5803
    %v5830 = vadd.f32 %v5774, %v5805
    %v5831 = vadd.f32 %v5775, %v5807
    %v5832 = vadd.f32 %v5776, %v5809
    %v5833 = vadd.f32 %v5777, %v5811
    %v5834 = vadd.f32 %v5778, %v5813
    %v5835 = vadd.f32 %v5779, %v5815
    %v5836 = vadd.f32 %v5780, %v5817
    %v5837 = vadd.f32 %v5781, %v5819
    %v5838 = vld [vmem:[%s462 + $0x1] sm:$0xff]
    %v5839 = vld [vmem:[%s462 + $0x9] sm:$0xff]
    %v5840 = vld [vmem:[%s462 + $0x11] sm:$0xff]
    %v5841 = vld [vmem:[%s462 + $0x19] sm:$0xff]
    %v5842 = vld [vmem:[%s462 + $0x21] sm:$0xff]
    %v5843 = vld [vmem:[%s462 + $0x29] sm:$0xff]
    %v5844 = vld [vmem:[%s462 + $0x31] sm:$0xff]
    %v5845 = vld [vmem:[%s462 + $0x39] sm:$0xff]
    %v5846 = vld [vmem:[%s462 + $0x41] sm:$0x1]
    %s5847 = sld [smem:[#allocation2 + $0x78]]
    %v5848 = vstv %s5847
    %v5849 = vmul.f32 %v5848, %v5838
    %v5850 = vmul.f32 %v5848, %v5839
    %v5851 = vmul.f32 %v5848, %v5840
    %v5852 = vmul.f32 %v5848, %v5841
    %v5853 = vmul.f32 %v5848, %v5842
    %v5854 = vmul.f32 %v5848, %v5843
    %v5855 = vmul.f32 %v5848, %v5844
    %v5856 = vmul.f32 %v5848, %v5845
    %v5857 = vmul.f32 %v5848, %v5846
    %v5858 = vadd.f32 %v5829, %v5849
    %v5859 = vadd.f32 %v5830, %v5850
    %v5860 = vadd.f32 %v5831, %v5851
    %v5861 = vadd.f32 %v5832, %v5852
    %v5862 = vadd.f32 %v5833, %v5853
    %v5863 = vadd.f32 %v5834, %v5854
    %v5864 = vadd.f32 %v5835, %v5855
    %v5865 = vadd.f32 %v5836, %v5856
    %v5866 = vadd.f32 %v5837, %v5857
    %s5867 = sld [smem:[#allocation2 + $0x79]]
    %v5868 = vstv %s5867
    %v5869 = vmul.f32 %v5868, %v5838
    %v5870 = vmul.f32 %v5868, %v5839
    %v5871 = vmul.f32 %v5868, %v5840
    %v5872 = vmul.f32 %v5868, %v5841
    %v5873 = vmul.f32 %v5868, %v5842
    %v5874 = vmul.f32 %v5868, %v5843
    %v5875 = vmul.f32 %v5868, %v5844
    %v5876 = vmul.f32 %v5868, %v5845
    %v5877 = vmul.f32 %v5868, %v5846
    %5887 = vrot.lane.b32.xlu0 %v5869, 127
    %v5888 = vpop.permute.xlu0 %5887
    %5889 = vrot.lane.b32.xlu0 %v5870, 127
    %v5890 = vpop.permute.xlu0 %5889
    %5891 = vrot.lane.b32.xlu0 %v5871, 127
    %v5892 = vpop.permute.xlu0 %5891
    %5893 = vrot.lane.b32.xlu0 %v5872, 127
    %v5894 = vpop.permute.xlu0 %5893
    %5895 = vrot.lane.b32.xlu0 %v5873, 127
    %v5896 = vpop.permute.xlu0 %5895
    %5897 = vrot.lane.b32.xlu0 %v5874, 127
    %v5898 = vpop.permute.xlu0 %5897
    %5899 = vrot.lane.b32.xlu0 %v5875, 127
    %v5900 = vpop.permute.xlu0 %5899
    %5901 = vrot.lane.b32.xlu0 %v5876, 127
    %v5902 = vpop.permute.xlu0 %5901
    %5903 = vrot.lane.b32.xlu0 %v5877, 127
    %v5904 = vpop.permute.xlu0 %5903
    %v5914 = vadd.f32 %v5858, %v5888
    %v5915 = vadd.f32 %v5859, %v5890
    %v5916 = vadd.f32 %v5860, %v5892
    %v5917 = vadd.f32 %v5861, %v5894
    %v5918 = vadd.f32 %v5862, %v5896
    %v5919 = vadd.f32 %v5863, %v5898
    %v5920 = vadd.f32 %v5864, %v5900
    %v5921 = vadd.f32 %v5865, %v5902
    %v5922 = vadd.f32 %v5866, %v5904
    %s5923 = sld [smem:[#allocation2 + $0x7a]]
    %v5924 = vstv %s5923
    %v5925 = vmul.f32 %v5924, %v5838
    %v5926 = vmul.f32 %v5924, %v5839
    %v5927 = vmul.f32 %v5924, %v5840
    %v5928 = vmul.f32 %v5924, %v5841
    %v5929 = vmul.f32 %v5924, %v5842
    %v5930 = vmul.f32 %v5924, %v5843
    %v5931 = vmul.f32 %v5924, %v5844
    %v5932 = vmul.f32 %v5924, %v5845
    %v5933 = vmul.f32 %v5924, %v5846
    %5943 = vrot.lane.b32.xlu0 %v5925, 126
    %v5944 = vpop.permute.xlu0 %5943
    %5945 = vrot.lane.b32.xlu0 %v5926, 126
    %v5946 = vpop.permute.xlu0 %5945
    %5947 = vrot.lane.b32.xlu0 %v5927, 126
    %v5948 = vpop.permute.xlu0 %5947
    %5949 = vrot.lane.b32.xlu0 %v5928, 126
    %v5950 = vpop.permute.xlu0 %5949
    %5951 = vrot.lane.b32.xlu0 %v5929, 126
    %v5952 = vpop.permute.xlu0 %5951
    %5953 = vrot.lane.b32.xlu0 %v5930, 126
    %v5954 = vpop.permute.xlu0 %5953
    %5955 = vrot.lane.b32.xlu0 %v5931, 126
    %v5956 = vpop.permute.xlu0 %5955
    %5957 = vrot.lane.b32.xlu0 %v5932, 126
    %v5958 = vpop.permute.xlu0 %5957
    %5959 = vrot.lane.b32.xlu0 %v5933, 126
    %v5960 = vpop.permute.xlu0 %5959
    %v5970 = vadd.f32 %v5914, %v5944
    %v5971 = vadd.f32 %v5915, %v5946
    %v5972 = vadd.f32 %v5916, %v5948
    %v5973 = vadd.f32 %v5917, %v5950
    %v5974 = vadd.f32 %v5918, %v5952
    %v5975 = vadd.f32 %v5919, %v5954
    %v5976 = vadd.f32 %v5920, %v5956
    %v5977 = vadd.f32 %v5921, %v5958
    %v5978 = vadd.f32 %v5922, %v5960
    %v5979 = vld [vmem:[%s462 + $0x2] sm:$0xff]
    %v5980 = vld [vmem:[%s462 + $0xa] sm:$0xff]
    %v5981 = vld [vmem:[%s462 + $0x12] sm:$0xff]
    %v5982 = vld [vmem:[%s462 + $0x1a] sm:$0xff]
    %v5983 = vld [vmem:[%s462 + $0x22] sm:$0xff]
    %v5984 = vld [vmem:[%s462 + $0x2a] sm:$0xff]
    %v5985 = vld [vmem:[%s462 + $0x32] sm:$0xff]
    %v5986 = vld [vmem:[%s462 + $0x3a] sm:$0xff]
    %v5987 = vld [vmem:[%s462 + $0x42] sm:$0x1]
    %s5988 = sld [smem:[#allocation2 + $0x7b]]
    %v5989 = vstv %s5988
    %v5990 = vmul.f32 %v5989, %v5979
    %v5991 = vmul.f32 %v5989, %v5980
    %v5992 = vmul.f32 %v5989, %v5981
    %v5993 = vmul.f32 %v5989, %v5982
    %v5994 = vmul.f32 %v5989, %v5983
    %v5995 = vmul.f32 %v5989, %v5984
    %v5996 = vmul.f32 %v5989, %v5985
    %v5997 = vmul.f32 %v5989, %v5986
    %v5998 = vmul.f32 %v5989, %v5987
    %v5999 = vadd.f32 %v5970, %v5990
    %v6000 = vadd.f32 %v5971, %v5991
    %v6001 = vadd.f32 %v5972, %v5992
    %v6002 = vadd.f32 %v5973, %v5993
    %v6003 = vadd.f32 %v5974, %v5994
    %v6004 = vadd.f32 %v5975, %v5995
    %v6005 = vadd.f32 %v5976, %v5996
    %v6006 = vadd.f32 %v5977, %v5997
    %v6007 = vadd.f32 %v5978, %v5998
    %s6008 = sld [smem:[#allocation2 + $0x7c]]
    %v6009 = vstv %s6008
    %v6010 = vmul.f32 %v6009, %v5979
    %v6011 = vmul.f32 %v6009, %v5980
    %v6012 = vmul.f32 %v6009, %v5981
    %v6013 = vmul.f32 %v6009, %v5982
    %v6014 = vmul.f32 %v6009, %v5983
    %v6015 = vmul.f32 %v6009, %v5984
    %v6016 = vmul.f32 %v6009, %v5985
    %v6017 = vmul.f32 %v6009, %v5986
    %v6018 = vmul.f32 %v6009, %v5987
    %6028 = vrot.lane.b32.xlu0 %v6010, 127
    %v6029 = vpop.permute.xlu0 %6028
    %6030 = vrot.lane.b32.xlu0 %v6011, 127
    %v6031 = vpop.permute.xlu0 %6030
    %6032 = vrot.lane.b32.xlu0 %v6012, 127
    %v6033 = vpop.permute.xlu0 %6032
    %6034 = vrot.lane.b32.xlu0 %v6013, 127
    %v6035 = vpop.permute.xlu0 %6034
    %6036 = vrot.lane.b32.xlu0 %v6014, 127
    %v6037 = vpop.permute.xlu0 %6036
    %6038 = vrot.lane.b32.xlu0 %v6015, 127
    %v6039 = vpop.permute.xlu0 %6038
    %6040 = vrot.lane.b32.xlu0 %v6016, 127
    %v6041 = vpop.permute.xlu0 %6040
    %6042 = vrot.lane.b32.xlu0 %v6017, 127
    %v6043 = vpop.permute.xlu0 %6042
    %6044 = vrot.lane.b32.xlu0 %v6018, 127
    %v6045 = vpop.permute.xlu0 %6044
    %v6055 = vadd.f32 %v5999, %v6029
    %v6056 = vadd.f32 %v6000, %v6031
    %v6057 = vadd.f32 %v6001, %v6033
    %v6058 = vadd.f32 %v6002, %v6035
    %v6059 = vadd.f32 %v6003, %v6037
    %v6060 = vadd.f32 %v6004, %v6039
    %v6061 = vadd.f32 %v6005, %v6041
    %v6062 = vadd.f32 %v6006, %v6043
    %v6063 = vadd.f32 %v6007, %v6045
    %s6064 = sld [smem:[#allocation2 + $0x7d]]
    %v6065 = vstv %s6064
    %v6066 = vmul.f32 %v6065, %v5979
    %v6067 = vmul.f32 %v6065, %v5980
    %v6068 = vmul.f32 %v6065, %v5981
    %v6069 = vmul.f32 %v6065, %v5982
    %v6070 = vmul.f32 %v6065, %v5983
    %v6071 = vmul.f32 %v6065, %v5984
    %v6072 = vmul.f32 %v6065, %v5985
    %v6073 = vmul.f32 %v6065, %v5986
    %v6074 = vmul.f32 %v6065, %v5987
    %6084 = vrot.lane.b32.xlu0 %v6066, 126
    %v6085 = vpop.permute.xlu0 %6084
    %6086 = vrot.lane.b32.xlu0 %v6067, 126
    %v6087 = vpop.permute.xlu0 %6086
    %6088 = vrot.lane.b32.xlu0 %v6068, 126
    %v6089 = vpop.permute.xlu0 %6088
    %6090 = vrot.lane.b32.xlu0 %v6069, 126
    %v6091 = vpop.permute.xlu0 %6090
    %6092 = vrot.lane.b32.xlu0 %v6070, 126
    %v6093 = vpop.permute.xlu0 %6092
    %6094 = vrot.lane.b32.xlu0 %v6071, 126
    %v6095 = vpop.permute.xlu0 %6094
    %6096 = vrot.lane.b32.xlu0 %v6072, 126
    %v6097 = vpop.permute.xlu0 %6096
    %6098 = vrot.lane.b32.xlu0 %v6073, 126
    %v6099 = vpop.permute.xlu0 %6098
    %6100 = vrot.lane.b32.xlu0 %v6074, 126
    %v6101 = vpop.permute.xlu0 %6100
    %v6111 = vadd.f32 %v6055, %v6085
    %v6112 = vadd.f32 %v6056, %v6087
    %v6113 = vadd.f32 %v6057, %v6089
    %v6114 = vadd.f32 %v6058, %v6091
    %v6115 = vadd.f32 %v6059, %v6093
    %v6116 = vadd.f32 %v6060, %v6095
    %v6117 = vadd.f32 %v6061, %v6097
    %v6118 = vadd.f32 %v6062, %v6099
    %v6119 = vadd.f32 %v6063, %v6101
    %v6120 = vld [vmem:[%s886] sm:$0xff]
    %v6121 = vld [vmem:[%s886 + $0x8] sm:$0xff]
    %v6122 = vld [vmem:[%s886 + $0x10] sm:$0xff]
    %v6123 = vld [vmem:[%s886 + $0x18] sm:$0xff]
    %v6124 = vld [vmem:[%s886 + $0x20] sm:$0xff]
    %v6125 = vld [vmem:[%s886 + $0x28] sm:$0xff]
    %v6126 = vld [vmem:[%s886 + $0x30] sm:$0xff]
    %v6127 = vld [vmem:[%s886 + $0x38] sm:$0xff]
    %v6128 = vld [vmem:[%s886 + $0x40] sm:$0x1]
    %s6129 = sld [smem:[#allocation2 + $0x7e]]
    %v6130 = vstv %s6129
    %v6131 = vmul.f32 %v6130, %v6120
    %v6132 = vmul.f32 %v6130, %v6121
    %v6133 = vmul.f32 %v6130, %v6122
    %v6134 = vmul.f32 %v6130, %v6123
    %v6135 = vmul.f32 %v6130, %v6124
    %v6136 = vmul.f32 %v6130, %v6125
    %v6137 = vmul.f32 %v6130, %v6126
    %v6138 = vmul.f32 %v6130, %v6127
    %v6139 = vmul.f32 %v6130, %v6128
    %v6140 = vadd.f32 %v6111, %v6131
    %v6141 = vadd.f32 %v6112, %v6132
    %v6142 = vadd.f32 %v6113, %v6133
    %v6143 = vadd.f32 %v6114, %v6134
    %v6144 = vadd.f32 %v6115, %v6135
    %v6145 = vadd.f32 %v6116, %v6136
    %v6146 = vadd.f32 %v6117, %v6137
    %v6147 = vadd.f32 %v6118, %v6138
    %v6148 = vadd.f32 %v6119, %v6139
    %s6149 = sld [smem:[#allocation2 + $0x7f]]
    %v6150 = vstv %s6149
    %v6151 = vmul.f32 %v6150, %v6120
    %v6152 = vmul.f32 %v6150, %v6121
    %v6153 = vmul.f32 %v6150, %v6122
    %v6154 = vmul.f32 %v6150, %v6123
    %v6155 = vmul.f32 %v6150, %v6124
    %v6156 = vmul.f32 %v6150, %v6125
    %v6157 = vmul.f32 %v6150, %v6126
    %v6158 = vmul.f32 %v6150, %v6127
    %v6159 = vmul.f32 %v6150, %v6128
    %6169 = vrot.lane.b32.xlu0 %v6151, 127
    %v6170 = vpop.permute.xlu0 %6169
    %6171 = vrot.lane.b32.xlu0 %v6152, 127
    %v6172 = vpop.permute.xlu0 %6171
    %6173 = vrot.lane.b32.xlu0 %v6153, 127
    %v6174 = vpop.permute.xlu0 %6173
    %6175 = vrot.lane.b32.xlu0 %v6154, 127
    %v6176 = vpop.permute.xlu0 %6175
    %6177 = vrot.lane.b32.xlu0 %v6155, 127
    %v6178 = vpop.permute.xlu0 %6177
    %6179 = vrot.lane.b32.xlu0 %v6156, 127
    %v6180 = vpop.permute.xlu0 %6179
    %6181 = vrot.lane.b32.xlu0 %v6157, 127
    %v6182 = vpop.permute.xlu0 %6181
    %6183 = vrot.lane.b32.xlu0 %v6158, 127
    %v6184 = vpop.permute.xlu0 %6183
    %6185 = vrot.lane.b32.xlu0 %v6159, 127
    %v6186 = vpop.permute.xlu0 %6185
    %v6196 = vadd.f32 %v6140, %v6170
    %v6197 = vadd.f32 %v6141, %v6172
    %v6198 = vadd.f32 %v6142, %v6174
    %v6199 = vadd.f32 %v6143, %v6176
    %v6200 = vadd.f32 %v6144, %v6178
    %v6201 = vadd.f32 %v6145, %v6180
    %v6202 = vadd.f32 %v6146, %v6182
    %v6203 = vadd.f32 %v6147, %v6184
    %v6204 = vadd.f32 %v6148, %v6186
    %s6205 = sld [smem:[#allocation2 + $0x80]]
    %v6206 = vstv %s6205
    %v6207 = vmul.f32 %v6206, %v6120
    %v6208 = vmul.f32 %v6206, %v6121
    %v6209 = vmul.f32 %v6206, %v6122
    %v6210 = vmul.f32 %v6206, %v6123
    %v6211 = vmul.f32 %v6206, %v6124
    %v6212 = vmul.f32 %v6206, %v6125
    %v6213 = vmul.f32 %v6206, %v6126
    %v6214 = vmul.f32 %v6206, %v6127
    %v6215 = vmul.f32 %v6206, %v6128
    %6225 = vrot.lane.b32.xlu0 %v6207, 126
    %v6226 = vpop.permute.xlu0 %6225
    %6227 = vrot.lane.b32.xlu0 %v6208, 126
    %v6228 = vpop.permute.xlu0 %6227
    %6229 = vrot.lane.b32.xlu0 %v6209, 126
    %v6230 = vpop.permute.xlu0 %6229
    %6231 = vrot.lane.b32.xlu0 %v6210, 126
    %v6232 = vpop.permute.xlu0 %6231
    %6233 = vrot.lane.b32.xlu0 %v6211, 126
    %v6234 = vpop.permute.xlu0 %6233
    %6235 = vrot.lane.b32.xlu0 %v6212, 126
    %v6236 = vpop.permute.xlu0 %6235
    %6237 = vrot.lane.b32.xlu0 %v6213, 126
    %v6238 = vpop.permute.xlu0 %6237
    %6239 = vrot.lane.b32.xlu0 %v6214, 126
    %v6240 = vpop.permute.xlu0 %6239
    %6241 = vrot.lane.b32.xlu0 %v6215, 126
    %v6242 = vpop.permute.xlu0 %6241
    %v6252 = vadd.f32 %v6196, %v6226
    %v6253 = vadd.f32 %v6197, %v6228
    %v6254 = vadd.f32 %v6198, %v6230
    %v6255 = vadd.f32 %v6199, %v6232
    %v6256 = vadd.f32 %v6200, %v6234
    %v6257 = vadd.f32 %v6201, %v6236
    %v6258 = vadd.f32 %v6202, %v6238
    %v6259 = vadd.f32 %v6203, %v6240
    %v6260 = vadd.f32 %v6204, %v6242
    %v6261 = vld [vmem:[%s886 + $0x1] sm:$0xff]
    %v6262 = vld [vmem:[%s886 + $0x9] sm:$0xff]
    %v6263 = vld [vmem:[%s886 + $0x11] sm:$0xff]
    %v6264 = vld [vmem:[%s886 + $0x19] sm:$0xff]
    %v6265 = vld [vmem:[%s886 + $0x21] sm:$0xff]
    %v6266 = vld [vmem:[%s886 + $0x29] sm:$0xff]
    %v6267 = vld [vmem:[%s886 + $0x31] sm:$0xff]
    %v6268 = vld [vmem:[%s886 + $0x39] sm:$0xff]
    %v6269 = vld [vmem:[%s886 + $0x41] sm:$0x1]
    %s6270 = sld [smem:[#allocation2 + $0x81]]
    %v6271 = vstv %s6270
    %v6272 = vmul.f32 %v6271, %v6261
    %v6273 = vmul.f32 %v6271, %v6262
    %v6274 = vmul.f32 %v6271, %v6263
    %v6275 = vmul.f32 %v6271, %v6264
    %v6276 = vmul.f32 %v6271, %v6265
    %v6277 = vmul.f32 %v6271, %v6266
    %v6278 = vmul.f32 %v6271, %v6267
    %v6279 = vmul.f32 %v6271, %v6268
    %v6280 = vmul.f32 %v6271, %v6269
    %v6281 = vadd.f32 %v6252, %v6272
    %v6282 = vadd.f32 %v6253, %v6273
    %v6283 = vadd.f32 %v6254, %v6274
    %v6284 = vadd.f32 %v6255, %v6275
    %v6285 = vadd.f32 %v6256, %v6276
    %v6286 = vadd.f32 %v6257, %v6277
    %v6287 = vadd.f32 %v6258, %v6278
    %v6288 = vadd.f32 %v6259, %v6279
    %v6289 = vadd.f32 %v6260, %v6280
    %s6290 = sld [smem:[#allocation2 + $0x82]]
    %v6291 = vstv %s6290
    %v6292 = vmul.f32 %v6291, %v6261
    %v6293 = vmul.f32 %v6291, %v6262
    %v6294 = vmul.f32 %v6291, %v6263
    %v6295 = vmul.f32 %v6291, %v6264
    %v6296 = vmul.f32 %v6291, %v6265
    %v6297 = vmul.f32 %v6291, %v6266
    %v6298 = vmul.f32 %v6291, %v6267
    %v6299 = vmul.f32 %v6291, %v6268
    %v6300 = vmul.f32 %v6291, %v6269
    %6310 = vrot.lane.b32.xlu0 %v6292, 127
    %v6311 = vpop.permute.xlu0 %6310
    %6312 = vrot.lane.b32.xlu0 %v6293, 127
    %v6313 = vpop.permute.xlu0 %6312
    %6314 = vrot.lane.b32.xlu0 %v6294, 127
    %v6315 = vpop.permute.xlu0 %6314
    %6316 = vrot.lane.b32.xlu0 %v6295, 127
    %v6317 = vpop.permute.xlu0 %6316
    %6318 = vrot.lane.b32.xlu0 %v6296, 127
    %v6319 = vpop.permute.xlu0 %6318
    %6320 = vrot.lane.b32.xlu0 %v6297, 127
    %v6321 = vpop.permute.xlu0 %6320
    %6322 = vrot.lane.b32.xlu0 %v6298, 127
    %v6323 = vpop.permute.xlu0 %6322
    %6324 = vrot.lane.b32.xlu0 %v6299, 127
    %v6325 = vpop.permute.xlu0 %6324
    %6326 = vrot.lane.b32.xlu0 %v6300, 127
    %v6327 = vpop.permute.xlu0 %6326
    %v6337 = vadd.f32 %v6281, %v6311
    %v6338 = vadd.f32 %v6282, %v6313
    %v6339 = vadd.f32 %v6283, %v6315
    %v6340 = vadd.f32 %v6284, %v6317
    %v6341 = vadd.f32 %v6285, %v6319
    %v6342 = vadd.f32 %v6286, %v6321
    %v6343 = vadd.f32 %v6287, %v6323
    %v6344 = vadd.f32 %v6288, %v6325
    %v6345 = vadd.f32 %v6289, %v6327
    %s6346 = sld [smem:[#allocation2 + $0x83]]
    %v6347 = vstv %s6346
    %v6348 = vmul.f32 %v6347, %v6261
    %v6349 = vmul.f32 %v6347, %v6262
    %v6350 = vmul.f32 %v6347, %v6263
    %v6351 = vmul.f32 %v6347, %v6264
    %v6352 = vmul.f32 %v6347, %v6265
    %v6353 = vmul.f32 %v6347, %v6266
    %v6354 = vmul.f32 %v6347, %v6267
    %v6355 = vmul.f32 %v6347, %v6268
    %v6356 = vmul.f32 %v6347, %v6269
    %6366 = vrot.lane.b32.xlu0 %v6348, 126
    %v6367 = vpop.permute.xlu0 %6366
    %6368 = vrot.lane.b32.xlu0 %v6349, 126
    %v6369 = vpop.permute.xlu0 %6368
    %6370 = vrot.lane.b32.xlu0 %v6350, 126
    %v6371 = vpop.permute.xlu0 %6370
    %6372 = vrot.lane.b32.xlu0 %v6351, 126
    %v6373 = vpop.permute.xlu0 %6372
    %6374 = vrot.lane.b32.xlu0 %v6352, 126
    %v6375 = vpop.permute.xlu0 %6374
    %6376 = vrot.lane.b32.xlu0 %v6353, 126
    %v6377 = vpop.permute.xlu0 %6376
    %6378 = vrot.lane.b32.xlu0 %v6354, 126
    %v6379 = vpop.permute.xlu0 %6378
    %6380 = vrot.lane.b32.xlu0 %v6355, 126
    %v6381 = vpop.permute.xlu0 %6380
    %6382 = vrot.lane.b32.xlu0 %v6356, 126
    %v6383 = vpop.permute.xlu0 %6382
    %v6393 = vadd.f32 %v6337, %v6367
    %v6394 = vadd.f32 %v6338, %v6369
    %v6395 = vadd.f32 %v6339, %v6371
    %v6396 = vadd.f32 %v6340, %v6373
    %v6397 = vadd.f32 %v6341, %v6375
    %v6398 = vadd.f32 %v6342, %v6377
    %v6399 = vadd.f32 %v6343, %v6379
    %v6400 = vadd.f32 %v6344, %v6381
    %v6401 = vadd.f32 %v6345, %v6383
    %v6402 = vld [vmem:[%s886 + $0x2] sm:$0xff]
    %v6403 = vld [vmem:[%s886 + $0xa] sm:$0xff]
    %v6404 = vld [vmem:[%s886 + $0x12] sm:$0xff]
    %v6405 = vld [vmem:[%s886 + $0x1a] sm:$0xff]
    %v6406 = vld [vmem:[%s886 + $0x22] sm:$0xff]
    %v6407 = vld [vmem:[%s886 + $0x2a] sm:$0xff]
    %v6408 = vld [vmem:[%s886 + $0x32] sm:$0xff]
    %v6409 = vld [vmem:[%s886 + $0x3a] sm:$0xff]
    %v6410 = vld [vmem:[%s886 + $0x42] sm:$0x1]
    %s6411 = sld [smem:[#allocation2 + $0x84]]
    %v6412 = vstv %s6411
    %v6413 = vmul.f32 %v6412, %v6402
    %v6414 = vmul.f32 %v6412, %v6403
    %v6415 = vmul.f32 %v6412, %v6404
    %v6416 = vmul.f32 %v6412, %v6405
    %v6417 = vmul.f32 %v6412, %v6406
    %v6418 = vmul.f32 %v6412, %v6407
    %v6419 = vmul.f32 %v6412, %v6408
    %v6420 = vmul.f32 %v6412, %v6409
    %v6421 = vmul.f32 %v6412, %v6410
    %v6422 = vadd.f32 %v6393, %v6413
    %v6423 = vadd.f32 %v6394, %v6414
    %v6424 = vadd.f32 %v6395, %v6415
    %v6425 = vadd.f32 %v6396, %v6416
    %v6426 = vadd.f32 %v6397, %v6417
    %v6427 = vadd.f32 %v6398, %v6418
    %v6428 = vadd.f32 %v6399, %v6419
    %v6429 = vadd.f32 %v6400, %v6420
    %v6430 = vadd.f32 %v6401, %v6421
    %s6431 = sld [smem:[#allocation2 + $0x85]]
    %v6432 = vstv %s6431
    %v6433 = vmul.f32 %v6432, %v6402
    %v6434 = vmul.f32 %v6432, %v6403
    %v6435 = vmul.f32 %v6432, %v6404
    %v6436 = vmul.f32 %v6432, %v6405
    %v6437 = vmul.f32 %v6432, %v6406
    %v6438 = vmul.f32 %v6432, %v6407
    %v6439 = vmul.f32 %v6432, %v6408
    %v6440 = vmul.f32 %v6432, %v6409
    %v6441 = vmul.f32 %v6432, %v6410
    %6451 = vrot.lane.b32.xlu0 %v6433, 127
    %v6452 = vpop.permute.xlu0 %6451
    %6453 = vrot.lane.b32.xlu0 %v6434, 127
    %v6454 = vpop.permute.xlu0 %6453
    %6455 = vrot.lane.b32.xlu0 %v6435, 127
    %v6456 = vpop.permute.xlu0 %6455
    %6457 = vrot.lane.b32.xlu0 %v6436, 127
    %v6458 = vpop.permute.xlu0 %6457
    %6459 = vrot.lane.b32.xlu0 %v6437, 127
    %v6460 = vpop.permute.xlu0 %6459
    %6461 = vrot.lane.b32.xlu0 %v6438, 127
    %v6462 = vpop.permute.xlu0 %6461
    %6463 = vrot.lane.b32.xlu0 %v6439, 127
    %v6464 = vpop.permute.xlu0 %6463
    %6465 = vrot.lane.b32.xlu0 %v6440, 127
    %v6466 = vpop.permute.xlu0 %6465
    %6467 = vrot.lane.b32.xlu0 %v6441, 127
    %v6468 = vpop.permute.xlu0 %6467
    %v6478 = vadd.f32 %v6422, %v6452
    %v6479 = vadd.f32 %v6423, %v6454
    %v6480 = vadd.f32 %v6424, %v6456
    %v6481 = vadd.f32 %v6425, %v6458
    %v6482 = vadd.f32 %v6426, %v6460
    %v6483 = vadd.f32 %v6427, %v6462
    %v6484 = vadd.f32 %v6428, %v6464
    %v6485 = vadd.f32 %v6429, %v6466
    %v6486 = vadd.f32 %v6430, %v6468
    %s6487 = sld [smem:[#allocation2 + $0x86]]
    %v6488 = vstv %s6487
    %v6489 = vmul.f32 %v6488, %v6402
    %v6490 = vmul.f32 %v6488, %v6403
    %v6491 = vmul.f32 %v6488, %v6404
    %v6492 = vmul.f32 %v6488, %v6405
    %v6493 = vmul.f32 %v6488, %v6406
    %v6494 = vmul.f32 %v6488, %v6407
    %v6495 = vmul.f32 %v6488, %v6408
    %v6496 = vmul.f32 %v6488, %v6409
    %v6497 = vmul.f32 %v6488, %v6410
    %6507 = vrot.lane.b32.xlu0 %v6489, 126
    %v6508 = vpop.permute.xlu0 %6507
    %6509 = vrot.lane.b32.xlu0 %v6490, 126
    %v6510 = vpop.permute.xlu0 %6509
    %6511 = vrot.lane.b32.xlu0 %v6491, 126
    %v6512 = vpop.permute.xlu0 %6511
    %6513 = vrot.lane.b32.xlu0 %v6492, 126
    %v6514 = vpop.permute.xlu0 %6513
    %6515 = vrot.lane.b32.xlu0 %v6493, 126
    %v6516 = vpop.permute.xlu0 %6515
    %6517 = vrot.lane.b32.xlu0 %v6494, 126
    %v6518 = vpop.permute.xlu0 %6517
    %6519 = vrot.lane.b32.xlu0 %v6495, 126
    %v6520 = vpop.permute.xlu0 %6519
    %6521 = vrot.lane.b32.xlu0 %v6496, 126
    %v6522 = vpop.permute.xlu0 %6521
    %6523 = vrot.lane.b32.xlu0 %v6497, 126
    %v6524 = vpop.permute.xlu0 %6523
    %v6534 = vadd.f32 %v6478, %v6508
    %v6535 = vadd.f32 %v6479, %v6510
    %v6536 = vadd.f32 %v6480, %v6512
    %v6537 = vadd.f32 %v6481, %v6514
    %v6538 = vadd.f32 %v6482, %v6516
    %v6539 = vadd.f32 %v6483, %v6518
    %v6540 = vadd.f32 %v6484, %v6520
    %v6541 = vadd.f32 %v6485, %v6522
    %v6542 = vadd.f32 %v6486, %v6524
    %s6543 = sld [smem:[#allocation4 + $0x4]]
    %v6544 = vstv %s6543
    %v6545 = vadd.f32 %v6534, %v6544
    %v6546 = vadd.f32 %v6535, %v6544
    %v6547 = vadd.f32 %v6536, %v6544
    %v6548 = vadd.f32 %v6537, %v6544
    %v6549 = vadd.f32 %v6538, %v6544
    %v6550 = vadd.f32 %v6539, %v6544
    %v6551 = vadd.f32 %v6540, %v6544
    %v6552 = vadd.f32 %v6541, %v6544
    %v6553 = vadd.f32 %v6542, %v6544
    %v6554 = vmul.f32 %v6545, 2.0
    %v6555 = vmul.f32 %v6546, 2.0
    %v6556 = vmul.f32 %v6547, 2.0
    %v6557 = vmul.f32 %v6548, 2.0
    %v6558 = vmul.f32 %v6549, 2.0
    %v6559 = vmul.f32 %v6550, 2.0
    %v6560 = vmul.f32 %v6551, 2.0
    %v6561 = vmul.f32 %v6552, 2.0
    %v6562 = vmul.f32 %v6553, 2.0
    %v6563 = vmax.f32 %v6554, 0.0
    %v6564 = vmax.f32 %v6555, 0.0
    %v6565 = vmax.f32 %v6556, 0.0
    %v6566 = vmax.f32 %v6557, 0.0
    %v6567 = vmax.f32 %v6558, 0.0
    %v6568 = vmax.f32 %v6559, 0.0
    %v6569 = vmax.f32 %v6560, 0.0
    %v6570 = vmax.f32 %v6561, 0.0
    %v6571 = vmax.f32 %v6562, 0.0
    %s6572 = scalar_lea.vmem %s3, 288
    %6573 = vst.msk [vmem:[%s6572] sm:$0xff] %vm1339, %v6563
    %6574 = vst.msk [vmem:[%s6572 + $0x8] sm:$0xff] %vm1339, %v6564
    %6575 = vst.msk [vmem:[%s6572 + $0x10] sm:$0xff] %vm1339, %v6565
    %6576 = vst.msk [vmem:[%s6572 + $0x18] sm:$0xff] %vm1339, %v6566
    %6577 = vst.msk [vmem:[%s6572 + $0x20] sm:$0xff] %vm1339, %v6567
    %6578 = vst.msk [vmem:[%s6572 + $0x28] sm:$0xff] %vm1339, %v6568
    %6579 = vst.msk [vmem:[%s6572 + $0x30] sm:$0xff] %vm1339, %v6569
    %6580 = vst.msk [vmem:[%s6572 + $0x38] sm:$0xff] %vm1339, %v6570
    %6581 = vst.msk [vmem:[%s6572 + $0x40] sm:$0x1] %vm1348, %v6571
    %v6582 = vld [vmem:[%s2] sm:$0xff]
    %v6583 = vld [vmem:[%s2 + $0x8] sm:$0xff]
    %v6584 = vld [vmem:[%s2 + $0x10] sm:$0xff]
    %v6585 = vld [vmem:[%s2 + $0x18] sm:$0xff]
    %v6586 = vld [vmem:[%s2 + $0x20] sm:$0xff]
    %v6587 = vld [vmem:[%s2 + $0x28] sm:$0xff]
    %v6588 = vld [vmem:[%s2 + $0x30] sm:$0xff]
    %v6589 = vld [vmem:[%s2 + $0x38] sm:$0xff]
    %v6590 = vld [vmem:[%s2 + $0x40] sm:$0x1]
    %s6591 = sld [smem:[#allocation2 + $0x87]]
    %v6592 = vstv %s6591
    %v6593 = vmul.f32 %v6592, %v6582
    %v6594 = vmul.f32 %v6592, %v6583
    %v6595 = vmul.f32 %v6592, %v6584
    %v6596 = vmul.f32 %v6592, %v6585
    %v6597 = vmul.f32 %v6592, %v6586
    %v6598 = vmul.f32 %v6592, %v6587
    %v6599 = vmul.f32 %v6592, %v6588
    %v6600 = vmul.f32 %v6592, %v6589
    %v6601 = vmul.f32 %v6592, %v6590
    %v6602 = vadd.f32 %v6593, 0.0
    %v6603 = vadd.f32 %v6594, 0.0
    %v6604 = vadd.f32 %v6595, 0.0
    %v6605 = vadd.f32 %v6596, 0.0
    %v6606 = vadd.f32 %v6597, 0.0
    %v6607 = vadd.f32 %v6598, 0.0
    %v6608 = vadd.f32 %v6599, 0.0
    %v6609 = vadd.f32 %v6600, 0.0
    %v6610 = vadd.f32 %v6601, 0.0
    %s6611 = sld [smem:[#allocation2 + $0x88]]
    %v6612 = vstv %s6611
    %v6613 = vmul.f32 %v6612, %v6582
    %v6614 = vmul.f32 %v6612, %v6583
    %v6615 = vmul.f32 %v6612, %v6584
    %v6616 = vmul.f32 %v6612, %v6585
    %v6617 = vmul.f32 %v6612, %v6586
    %v6618 = vmul.f32 %v6612, %v6587
    %v6619 = vmul.f32 %v6612, %v6588
    %v6620 = vmul.f32 %v6612, %v6589
    %v6621 = vmul.f32 %v6612, %v6590
    %6631 = vrot.lane.b32.xlu0 %v6613, 127
    %v6632 = vpop.permute.xlu0 %6631
    %6633 = vrot.lane.b32.xlu0 %v6614, 127
    %v6634 = vpop.permute.xlu0 %6633
    %6635 = vrot.lane.b32.xlu0 %v6615, 127
    %v6636 = vpop.permute.xlu0 %6635
    %6637 = vrot.lane.b32.xlu0 %v6616, 127
    %v6638 = vpop.permute.xlu0 %6637
    %6639 = vrot.lane.b32.xlu0 %v6617, 127
    %v6640 = vpop.permute.xlu0 %6639
    %6641 = vrot.lane.b32.xlu0 %v6618, 127
    %v6642 = vpop.permute.xlu0 %6641
    %6643 = vrot.lane.b32.xlu0 %v6619, 127
    %v6644 = vpop.permute.xlu0 %6643
    %6645 = vrot.lane.b32.xlu0 %v6620, 127
    %v6646 = vpop.permute.xlu0 %6645
    %6647 = vrot.lane.b32.xlu0 %v6621, 127
    %v6648 = vpop.permute.xlu0 %6647
    %v6658 = vadd.f32 %v6602, %v6632
    %v6659 = vadd.f32 %v6603, %v6634
    %v6660 = vadd.f32 %v6604, %v6636
    %v6661 = vadd.f32 %v6605, %v6638
    %v6662 = vadd.f32 %v6606, %v6640
    %v6663 = vadd.f32 %v6607, %v6642
    %v6664 = vadd.f32 %v6608, %v6644
    %v6665 = vadd.f32 %v6609, %v6646
    %v6666 = vadd.f32 %v6610, %v6648
    %s6667 = sld [smem:[#allocation2 + $0x89]]
    %v6668 = vstv %s6667
    %v6669 = vmul.f32 %v6668, %v6582
    %v6670 = vmul.f32 %v6668, %v6583
    %v6671 = vmul.f32 %v6668, %v6584
    %v6672 = vmul.f32 %v6668, %v6585
    %v6673 = vmul.f32 %v6668, %v6586
    %v6674 = vmul.f32 %v6668, %v6587
    %v6675 = vmul.f32 %v6668, %v6588
    %v6676 = vmul.f32 %v6668, %v6589
    %v6677 = vmul.f32 %v6668, %v6590
    %6687 = vrot.lane.b32.xlu0 %v6669, 126
    %v6688 = vpop.permute.xlu0 %6687
    %6689 = vrot.lane.b32.xlu0 %v6670, 126
    %v6690 = vpop.permute.xlu0 %6689
    %6691 = vrot.lane.b32.xlu0 %v6671, 126
    %v6692 = vpop.permute.xlu0 %6691
    %6693 = vrot.lane.b32.xlu0 %v6672, 126
    %v6694 = vpop.permute.xlu0 %6693
    %6695 = vrot.lane.b32.xlu0 %v6673, 126
    %v6696 = vpop.permute.xlu0 %6695
    %6697 = vrot.lane.b32.xlu0 %v6674, 126
    %v6698 = vpop.permute.xlu0 %6697
    %6699 = vrot.lane.b32.xlu0 %v6675, 126
    %v6700 = vpop.permute.xlu0 %6699
    %6701 = vrot.lane.b32.xlu0 %v6676, 126
    %v6702 = vpop.permute.xlu0 %6701
    %6703 = vrot.lane.b32.xlu0 %v6677, 126
    %v6704 = vpop.permute.xlu0 %6703
    %v6714 = vadd.f32 %v6658, %v6688
    %v6715 = vadd.f32 %v6659, %v6690
    %v6716 = vadd.f32 %v6660, %v6692
    %v6717 = vadd.f32 %v6661, %v6694
    %v6718 = vadd.f32 %v6662, %v6696
    %v6719 = vadd.f32 %v6663, %v6698
    %v6720 = vadd.f32 %v6664, %v6700
    %v6721 = vadd.f32 %v6665, %v6702
    %v6722 = vadd.f32 %v6666, %v6704
    %v6723 = vld [vmem:[%s2 + $0x1] sm:$0xff]
    %v6724 = vld [vmem:[%s2 + $0x9] sm:$0xff]
    %v6725 = vld [vmem:[%s2 + $0x11] sm:$0xff]
    %v6726 = vld [vmem:[%s2 + $0x19] sm:$0xff]
    %v6727 = vld [vmem:[%s2 + $0x21] sm:$0xff]
    %v6728 = vld [vmem:[%s2 + $0x29] sm:$0xff]
    %v6729 = vld [vmem:[%s2 + $0x31] sm:$0xff]
    %v6730 = vld [vmem:[%s2 + $0x39] sm:$0xff]
    %v6731 = vld [vmem:[%s2 + $0x41] sm:$0x1]
    %s6732 = sld [smem:[#allocation2 + $0x8a]]
    %v6733 = vstv %s6732
    %v6734 = vmul.f32 %v6733, %v6723
    %v6735 = vmul.f32 %v6733, %v6724
    %v6736 = vmul.f32 %v6733, %v6725
    %v6737 = vmul.f32 %v6733, %v6726
    %v6738 = vmul.f32 %v6733, %v6727
    %v6739 = vmul.f32 %v6733, %v6728
    %v6740 = vmul.f32 %v6733, %v6729
    %v6741 = vmul.f32 %v6733, %v6730
    %v6742 = vmul.f32 %v6733, %v6731
    %v6743 = vadd.f32 %v6714, %v6734
    %v6744 = vadd.f32 %v6715, %v6735
    %v6745 = vadd.f32 %v6716, %v6736
    %v6746 = vadd.f32 %v6717, %v6737
    %v6747 = vadd.f32 %v6718, %v6738
    %v6748 = vadd.f32 %v6719, %v6739
    %v6749 = vadd.f32 %v6720, %v6740
    %v6750 = vadd.f32 %v6721, %v6741
    %v6751 = vadd.f32 %v6722, %v6742
    %s6752 = sld [smem:[#allocation2 + $0x8b]]
    %v6753 = vstv %s6752
    %v6754 = vmul.f32 %v6753, %v6723
    %v6755 = vmul.f32 %v6753, %v6724
    %v6756 = vmul.f32 %v6753, %v6725
    %v6757 = vmul.f32 %v6753, %v6726
    %v6758 = vmul.f32 %v6753, %v6727
    %v6759 = vmul.f32 %v6753, %v6728
    %v6760 = vmul.f32 %v6753, %v6729
    %v6761 = vmul.f32 %v6753, %v6730
    %v6762 = vmul.f32 %v6753, %v6731
    %6772 = vrot.lane.b32.xlu0 %v6754, 127
    %v6773 = vpop.permute.xlu0 %6772
    %6774 = vrot.lane.b32.xlu0 %v6755, 127
    %v6775 = vpop.permute.xlu0 %6774
    %6776 = vrot.lane.b32.xlu0 %v6756, 127
    %v6777 = vpop.permute.xlu0 %6776
    %6778 = vrot.lane.b32.xlu0 %v6757, 127
    %v6779 = vpop.permute.xlu0 %6778
    %6780 = vrot.lane.b32.xlu0 %v6758, 127
    %v6781 = vpop.permute.xlu0 %6780
    %6782 = vrot.lane.b32.xlu0 %v6759, 127
    %v6783 = vpop.permute.xlu0 %6782
    %6784 = vrot.lane.b32.xlu0 %v6760, 127
    %v6785 = vpop.permute.xlu0 %6784
    %6786 = vrot.lane.b32.xlu0 %v6761, 127
    %v6787 = vpop.permute.xlu0 %6786
    %6788 = vrot.lane.b32.xlu0 %v6762, 127
    %v6789 = vpop.permute.xlu0 %6788
    %v6799 = vadd.f32 %v6743, %v6773
    %v6800 = vadd.f32 %v6744, %v6775
    %v6801 = vadd.f32 %v6745, %v6777
    %v6802 = vadd.f32 %v6746, %v6779
    %v6803 = vadd.f32 %v6747, %v6781
    %v6804 = vadd.f32 %v6748, %v6783
    %v6805 = vadd.f32 %v6749, %v6785
    %v6806 = vadd.f32 %v6750, %v6787
    %v6807 = vadd.f32 %v6751, %v6789
    %s6808 = sld [smem:[#allocation2 + $0x8c]]
    %v6809 = vstv %s6808
    %v6810 = vmul.f32 %v6809, %v6723
    %v6811 = vmul.f32 %v6809, %v6724
    %v6812 = vmul.f32 %v6809, %v6725
    %v6813 = vmul.f32 %v6809, %v6726
    %v6814 = vmul.f32 %v6809, %v6727
    %v6815 = vmul.f32 %v6809, %v6728
    %v6816 = vmul.f32 %v6809, %v6729
    %v6817 = vmul.f32 %v6809, %v6730
    %v6818 = vmul.f32 %v6809, %v6731
    %6828 = vrot.lane.b32.xlu0 %v6810, 126
    %v6829 = vpop.permute.xlu0 %6828
    %6830 = vrot.lane.b32.xlu0 %v6811, 126
    %v6831 = vpop.permute.xlu0 %6830
    %6832 = vrot.lane.b32.xlu0 %v6812, 126
    %v6833 = vpop.permute.xlu0 %6832
    %6834 = vrot.lane.b32.xlu0 %v6813, 126
    %v6835 = vpop.permute.xlu0 %6834
    %6836 = vrot.lane.b32.xlu0 %v6814, 126
    %v6837 = vpop.permute.xlu0 %6836
    %6838 = vrot.lane.b32.xlu0 %v6815, 126
    %v6839 = vpop.permute.xlu0 %6838
    %6840 = vrot.lane.b32.xlu0 %v6816, 126
    %v6841 = vpop.permute.xlu0 %6840
    %6842 = vrot.lane.b32.xlu0 %v6817, 126
    %v6843 = vpop.permute.xlu0 %6842
    %6844 = vrot.lane.b32.xlu0 %v6818, 126
    %v6845 = vpop.permute.xlu0 %6844
    %v6855 = vadd.f32 %v6799, %v6829
    %v6856 = vadd.f32 %v6800, %v6831
    %v6857 = vadd.f32 %v6801, %v6833
    %v6858 = vadd.f32 %v6802, %v6835
    %v6859 = vadd.f32 %v6803, %v6837
    %v6860 = vadd.f32 %v6804, %v6839
    %v6861 = vadd.f32 %v6805, %v6841
    %v6862 = vadd.f32 %v6806, %v6843
    %v6863 = vadd.f32 %v6807, %v6845
    %v6864 = vld [vmem:[%s2 + $0x2] sm:$0xff]
    %v6865 = vld [vmem:[%s2 + $0xa] sm:$0xff]
    %v6866 = vld [vmem:[%s2 + $0x12] sm:$0xff]
    %v6867 = vld [vmem:[%s2 + $0x1a] sm:$0xff]
    %v6868 = vld [vmem:[%s2 + $0x22] sm:$0xff]
    %v6869 = vld [vmem:[%s2 + $0x2a] sm:$0xff]
    %v6870 = vld [vmem:[%s2 + $0x32] sm:$0xff]
    %v6871 = vld [vmem:[%s2 + $0x3a] sm:$0xff]
    %v6872 = vld [vmem:[%s2 + $0x42] sm:$0x1]
    %s6873 = sld [smem:[#allocation2 + $0x8d]]
    %v6874 = vstv %s6873
    %v6875 = vmul.f32 %v6874, %v6864
    %v6876 = vmul.f32 %v6874, %v6865
    %v6877 = vmul.f32 %v6874, %v6866
    %v6878 = vmul.f32 %v6874, %v6867
    %v6879 = vmul.f32 %v6874, %v6868
    %v6880 = vmul.f32 %v6874, %v6869
    %v6881 = vmul.f32 %v6874, %v6870
    %v6882 = vmul.f32 %v6874, %v6871
    %v6883 = vmul.f32 %v6874, %v6872
    %v6884 = vadd.f32 %v6855, %v6875
    %v6885 = vadd.f32 %v6856, %v6876
    %v6886 = vadd.f32 %v6857, %v6877
    %v6887 = vadd.f32 %v6858, %v6878
    %v6888 = vadd.f32 %v6859, %v6879
    %v6889 = vadd.f32 %v6860, %v6880
    %v6890 = vadd.f32 %v6861, %v6881
    %v6891 = vadd.f32 %v6862, %v6882
    %v6892 = vadd.f32 %v6863, %v6883
    %s6893 = sld [smem:[#allocation2 + $0x8e]]
    %v6894 = vstv %s6893
    %v6895 = vmul.f32 %v6894, %v6864
    %v6896 = vmul.f32 %v6894, %v6865
    %v6897 = vmul.f32 %v6894, %v6866
    %v6898 = vmul.f32 %v6894, %v6867
    %v6899 = vmul.f32 %v6894, %v6868
    %v6900 = vmul.f32 %v6894, %v6869
    %v6901 = vmul.f32 %v6894, %v6870
    %v6902 = vmul.f32 %v6894, %v6871
    %v6903 = vmul.f32 %v6894, %v6872
    %6913 = vrot.lane.b32.xlu0 %v6895, 127
    %v6914 = vpop.permute.xlu0 %6913
    %6915 = vrot.lane.b32.xlu0 %v6896, 127
    %v6916 = vpop.permute.xlu0 %6915
    %6917 = vrot.lane.b32.xlu0 %v6897, 127
    %v6918 = vpop.permute.xlu0 %6917
    %6919 = vrot.lane.b32.xlu0 %v6898, 127
    %v6920 = vpop.permute.xlu0 %6919
    %6921 = vrot.lane.b32.xlu0 %v6899, 127
    %v6922 = vpop.permute.xlu0 %6921
    %6923 = vrot.lane.b32.xlu0 %v6900, 127
    %v6924 = vpop.permute.xlu0 %6923
    %6925 = vrot.lane.b32.xlu0 %v6901, 127
    %v6926 = vpop.permute.xlu0 %6925
    %6927 = vrot.lane.b32.xlu0 %v6902, 127
    %v6928 = vpop.permute.xlu0 %6927
    %6929 = vrot.lane.b32.xlu0 %v6903, 127
    %v6930 = vpop.permute.xlu0 %6929
    %v6940 = vadd.f32 %v6884, %v6914
    %v6941 = vadd.f32 %v6885, %v6916
    %v6942 = vadd.f32 %v6886, %v6918
    %v6943 = vadd.f32 %v6887, %v6920
    %v6944 = vadd.f32 %v6888, %v6922
    %v6945 = vadd.f32 %v6889, %v6924
    %v6946 = vadd.f32 %v6890, %v6926
    %v6947 = vadd.f32 %v6891, %v6928
    %v6948 = vadd.f32 %v6892, %v6930
    %s6949 = sld [smem:[#allocation2 + $0x8f]]
    %v6950 = vstv %s6949
    %v6951 = vmul.f32 %v6950, %v6864
    %v6952 = vmul.f32 %v6950, %v6865
    %v6953 = vmul.f32 %v6950, %v6866
    %v6954 = vmul.f32 %v6950, %v6867
    %v6955 = vmul.f32 %v6950, %v6868
    %v6956 = vmul.f32 %v6950, %v6869
    %v6957 = vmul.f32 %v6950, %v6870
    %v6958 = vmul.f32 %v6950, %v6871
    %v6959 = vmul.f32 %v6950, %v6872
    %6969 = vrot.lane.b32.xlu0 %v6951, 126
    %v6970 = vpop.permute.xlu0 %6969
    %6971 = vrot.lane.b32.xlu0 %v6952, 126
    %v6972 = vpop.permute.xlu0 %6971
    %6973 = vrot.lane.b32.xlu0 %v6953, 126
    %v6974 = vpop.permute.xlu0 %6973
    %6975 = vrot.lane.b32.xlu0 %v6954, 126
    %v6976 = vpop.permute.xlu0 %6975
    %6977 = vrot.lane.b32.xlu0 %v6955, 126
    %v6978 = vpop.permute.xlu0 %6977
    %6979 = vrot.lane.b32.xlu0 %v6956, 126
    %v6980 = vpop.permute.xlu0 %6979
    %6981 = vrot.lane.b32.xlu0 %v6957, 126
    %v6982 = vpop.permute.xlu0 %6981
    %6983 = vrot.lane.b32.xlu0 %v6958, 126
    %v6984 = vpop.permute.xlu0 %6983
    %6985 = vrot.lane.b32.xlu0 %v6959, 126
    %v6986 = vpop.permute.xlu0 %6985
    %v6996 = vadd.f32 %v6940, %v6970
    %v6997 = vadd.f32 %v6941, %v6972
    %v6998 = vadd.f32 %v6942, %v6974
    %v6999 = vadd.f32 %v6943, %v6976
    %v7000 = vadd.f32 %v6944, %v6978
    %v7001 = vadd.f32 %v6945, %v6980
    %v7002 = vadd.f32 %v6946, %v6982
    %v7003 = vadd.f32 %v6947, %v6984
    %v7004 = vadd.f32 %v6948, %v6986
    %v7005 = vld [vmem:[%s462] sm:$0xff]
    %v7006 = vld [vmem:[%s462 + $0x8] sm:$0xff]
    %v7007 = vld [vmem:[%s462 + $0x10] sm:$0xff]
    %v7008 = vld [vmem:[%s462 + $0x18] sm:$0xff]
    %v7009 = vld [vmem:[%s462 + $0x20] sm:$0xff]
    %v7010 = vld [vmem:[%s462 + $0x28] sm:$0xff]
    %v7011 = vld [vmem:[%s462 + $0x30] sm:$0xff]
    %v7012 = vld [vmem:[%s462 + $0x38] sm:$0xff]
    %v7013 = vld [vmem:[%s462 + $0x40] sm:$0x1]
    %s7014 = sld [smem:[#allocation2 + $0x90]]
    %v7015 = vstv %s7014
    %v7016 = vmul.f32 %v7015, %v7005
    %v7017 = vmul.f32 %v7015, %v7006
    %v7018 = vmul.f32 %v7015, %v7007
    %v7019 = vmul.f32 %v7015, %v7008
    %v7020 = vmul.f32 %v7015, %v7009
    %v7021 = vmul.f32 %v7015, %v7010
    %v7022 = vmul.f32 %v7015, %v7011
    %v7023 = vmul.f32 %v7015, %v7012
    %v7024 = vmul.f32 %v7015, %v7013
    %v7025 = vadd.f32 %v6996, %v7016
    %v7026 = vadd.f32 %v6997, %v7017
    %v7027 = vadd.f32 %v6998, %v7018
    %v7028 = vadd.f32 %v6999, %v7019
    %v7029 = vadd.f32 %v7000, %v7020
    %v7030 = vadd.f32 %v7001, %v7021
    %v7031 = vadd.f32 %v7002, %v7022
    %v7032 = vadd.f32 %v7003, %v7023
    %v7033 = vadd.f32 %v7004, %v7024
    %s7034 = sld [smem:[#allocation2 + $0x91]]
    %v7035 = vstv %s7034
    %v7036 = vmul.f32 %v7035, %v7005
    %v7037 = vmul.f32 %v7035, %v7006
    %v7038 = vmul.f32 %v7035, %v7007
    %v7039 = vmul.f32 %v7035, %v7008
    %v7040 = vmul.f32 %v7035, %v7009
    %v7041 = vmul.f32 %v7035, %v7010
    %v7042 = vmul.f32 %v7035, %v7011
    %v7043 = vmul.f32 %v7035, %v7012
    %v7044 = vmul.f32 %v7035, %v7013
    %7054 = vrot.lane.b32.xlu0 %v7036, 127
    %v7055 = vpop.permute.xlu0 %7054
    %7056 = vrot.lane.b32.xlu0 %v7037, 127
    %v7057 = vpop.permute.xlu0 %7056
    %7058 = vrot.lane.b32.xlu0 %v7038, 127
    %v7059 = vpop.permute.xlu0 %7058
    %7060 = vrot.lane.b32.xlu0 %v7039, 127
    %v7061 = vpop.permute.xlu0 %7060
    %7062 = vrot.lane.b32.xlu0 %v7040, 127
    %v7063 = vpop.permute.xlu0 %7062
    %7064 = vrot.lane.b32.xlu0 %v7041, 127
    %v7065 = vpop.permute.xlu0 %7064
    %7066 = vrot.lane.b32.xlu0 %v7042, 127
    %v7067 = vpop.permute.xlu0 %7066
    %7068 = vrot.lane.b32.xlu0 %v7043, 127
    %v7069 = vpop.permute.xlu0 %7068
    %7070 = vrot.lane.b32.xlu0 %v7044, 127
    %v7071 = vpop.permute.xlu0 %7070
    %v7081 = vadd.f32 %v7025, %v7055
    %v7082 = vadd.f32 %v7026, %v7057
    %v7083 = vadd.f32 %v7027, %v7059
    %v7084 = vadd.f32 %v7028, %v7061
    %v7085 = vadd.f32 %v7029, %v7063
    %v7086 = vadd.f32 %v7030, %v7065
    %v7087 = vadd.f32 %v7031, %v7067
    %v7088 = vadd.f32 %v7032, %v7069
    %v7089 = vadd.f32 %v7033, %v7071
    %s7090 = sld [smem:[#allocation2 + $0x92]]
    %v7091 = vstv %s7090
    %v7092 = vmul.f32 %v7091, %v7005
    %v7093 = vmul.f32 %v7091, %v7006
    %v7094 = vmul.f32 %v7091, %v7007
    %v7095 = vmul.f32 %v7091, %v7008
    %v7096 = vmul.f32 %v7091, %v7009
    %v7097 = vmul.f32 %v7091, %v7010
    %v7098 = vmul.f32 %v7091, %v7011
    %v7099 = vmul.f32 %v7091, %v7012
    %v7100 = vmul.f32 %v7091, %v7013
    %7110 = vrot.lane.b32.xlu0 %v7092, 126
    %v7111 = vpop.permute.xlu0 %7110
    %7112 = vrot.lane.b32.xlu0 %v7093, 126
    %v7113 = vpop.permute.xlu0 %7112
    %7114 = vrot.lane.b32.xlu0 %v7094, 126
    %v7115 = vpop.permute.xlu0 %7114
    %7116 = vrot.lane.b32.xlu0 %v7095, 126
    %v7117 = vpop.permute.xlu0 %7116
    %7118 = vrot.lane.b32.xlu0 %v7096, 126
    %v7119 = vpop.permute.xlu0 %7118
    %7120 = vrot.lane.b32.xlu0 %v7097, 126
    %v7121 = vpop.permute.xlu0 %7120
    %7122 = vrot.lane.b32.xlu0 %v7098, 126
    %v7123 = vpop.permute.xlu0 %7122
    %7124 = vrot.lane.b32.xlu0 %v7099, 126
    %v7125 = vpop.permute.xlu0 %7124
    %7126 = vrot.lane.b32.xlu0 %v7100, 126
    %v7127 = vpop.permute.xlu0 %7126
    %v7137 = vadd.f32 %v7081, %v7111
    %v7138 = vadd.f32 %v7082, %v7113
    %v7139 = vadd.f32 %v7083, %v7115
    %v7140 = vadd.f32 %v7084, %v7117
    %v7141 = vadd.f32 %v7085, %v7119
    %v7142 = vadd.f32 %v7086, %v7121
    %v7143 = vadd.f32 %v7087, %v7123
    %v7144 = vadd.f32 %v7088, %v7125
    %v7145 = vadd.f32 %v7089, %v7127
    %v7146 = vld [vmem:[%s462 + $0x1] sm:$0xff]
    %v7147 = vld [vmem:[%s462 + $0x9] sm:$0xff]
    %v7148 = vld [vmem:[%s462 + $0x11] sm:$0xff]
    %v7149 = vld [vmem:[%s462 + $0x19] sm:$0xff]
    %v7150 = vld [vmem:[%s462 + $0x21] sm:$0xff]
    %v7151 = vld [vmem:[%s462 + $0x29] sm:$0xff]
    %v7152 = vld [vmem:[%s462 + $0x31] sm:$0xff]
    %v7153 = vld [vmem:[%s462 + $0x39] sm:$0xff]
    %v7154 = vld [vmem:[%s462 + $0x41] sm:$0x1]
    %s7155 = sld [smem:[#allocation2 + $0x93]]
    %v7156 = vstv %s7155
    %v7157 = vmul.f32 %v7156, %v7146
    %v7158 = vmul.f32 %v7156, %v7147
    %v7159 = vmul.f32 %v7156, %v7148
    %v7160 = vmul.f32 %v7156, %v7149
    %v7161 = vmul.f32 %v7156, %v7150
    %v7162 = vmul.f32 %v7156, %v7151
    %v7163 = vmul.f32 %v7156, %v7152
    %v7164 = vmul.f32 %v7156, %v7153
    %v7165 = vmul.f32 %v7156, %v7154
    %v7166 = vadd.f32 %v7137, %v7157
    %v7167 = vadd.f32 %v7138, %v7158
    %v7168 = vadd.f32 %v7139, %v7159
    %v7169 = vadd.f32 %v7140, %v7160
    %v7170 = vadd.f32 %v7141, %v7161
    %v7171 = vadd.f32 %v7142, %v7162
    %v7172 = vadd.f32 %v7143, %v7163
    %v7173 = vadd.f32 %v7144, %v7164
    %v7174 = vadd.f32 %v7145, %v7165
    %s7175 = sld [smem:[#allocation2 + $0x94]]
    %v7176 = vstv %s7175
    %v7177 = vmul.f32 %v7176, %v7146
    %v7178 = vmul.f32 %v7176, %v7147
    %v7179 = vmul.f32 %v7176, %v7148
    %v7180 = vmul.f32 %v7176, %v7149
    %v7181 = vmul.f32 %v7176, %v7150
    %v7182 = vmul.f32 %v7176, %v7151
    %v7183 = vmul.f32 %v7176, %v7152
    %v7184 = vmul.f32 %v7176, %v7153
    %v7185 = vmul.f32 %v7176, %v7154
    %7195 = vrot.lane.b32.xlu0 %v7177, 127
    %v7196 = vpop.permute.xlu0 %7195
    %7197 = vrot.lane.b32.xlu0 %v7178, 127
    %v7198 = vpop.permute.xlu0 %7197
    %7199 = vrot.lane.b32.xlu0 %v7179, 127
    %v7200 = vpop.permute.xlu0 %7199
    %7201 = vrot.lane.b32.xlu0 %v7180, 127
    %v7202 = vpop.permute.xlu0 %7201
    %7203 = vrot.lane.b32.xlu0 %v7181, 127
    %v7204 = vpop.permute.xlu0 %7203
    %7205 = vrot.lane.b32.xlu0 %v7182, 127
    %v7206 = vpop.permute.xlu0 %7205
    %7207 = vrot.lane.b32.xlu0 %v7183, 127
    %v7208 = vpop.permute.xlu0 %7207
    %7209 = vrot.lane.b32.xlu0 %v7184, 127
    %v7210 = vpop.permute.xlu0 %7209
    %7211 = vrot.lane.b32.xlu0 %v7185, 127
    %v7212 = vpop.permute.xlu0 %7211
    %v7222 = vadd.f32 %v7166, %v7196
    %v7223 = vadd.f32 %v7167, %v7198
    %v7224 = vadd.f32 %v7168, %v7200
    %v7225 = vadd.f32 %v7169, %v7202
    %v7226 = vadd.f32 %v7170, %v7204
    %v7227 = vadd.f32 %v7171, %v7206
    %v7228 = vadd.f32 %v7172, %v7208
    %v7229 = vadd.f32 %v7173, %v7210
    %v7230 = vadd.f32 %v7174, %v7212
    %s7231 = sld [smem:[#allocation2 + $0x95]]
    %v7232 = vstv %s7231
    %v7233 = vmul.f32 %v7232, %v7146
    %v7234 = vmul.f32 %v7232, %v7147
    %v7235 = vmul.f32 %v7232, %v7148
    %v7236 = vmul.f32 %v7232, %v7149
    %v7237 = vmul.f32 %v7232, %v7150
    %v7238 = vmul.f32 %v7232, %v7151
    %v7239 = vmul.f32 %v7232, %v7152
    %v7240 = vmul.f32 %v7232, %v7153
    %v7241 = vmul.f32 %v7232, %v7154
    %7251 = vrot.lane.b32.xlu0 %v7233, 126
    %v7252 = vpop.permute.xlu0 %7251
    %7253 = vrot.lane.b32.xlu0 %v7234, 126
    %v7254 = vpop.permute.xlu0 %7253
    %7255 = vrot.lane.b32.xlu0 %v7235, 126
    %v7256 = vpop.permute.xlu0 %7255
    %7257 = vrot.lane.b32.xlu0 %v7236, 126
    %v7258 = vpop.permute.xlu0 %7257
    %7259 = vrot.lane.b32.xlu0 %v7237, 126
    %v7260 = vpop.permute.xlu0 %7259
    %7261 = vrot.lane.b32.xlu0 %v7238, 126
    %v7262 = vpop.permute.xlu0 %7261
    %7263 = vrot.lane.b32.xlu0 %v7239, 126
    %v7264 = vpop.permute.xlu0 %7263
    %7265 = vrot.lane.b32.xlu0 %v7240, 126
    %v7266 = vpop.permute.xlu0 %7265
    %7267 = vrot.lane.b32.xlu0 %v7241, 126
    %v7268 = vpop.permute.xlu0 %7267
    %v7278 = vadd.f32 %v7222, %v7252
    %v7279 = vadd.f32 %v7223, %v7254
    %v7280 = vadd.f32 %v7224, %v7256
    %v7281 = vadd.f32 %v7225, %v7258
    %v7282 = vadd.f32 %v7226, %v7260
    %v7283 = vadd.f32 %v7227, %v7262
    %v7284 = vadd.f32 %v7228, %v7264
    %v7285 = vadd.f32 %v7229, %v7266
    %v7286 = vadd.f32 %v7230, %v7268
    %v7287 = vld [vmem:[%s462 + $0x2] sm:$0xff]
    %v7288 = vld [vmem:[%s462 + $0xa] sm:$0xff]
    %v7289 = vld [vmem:[%s462 + $0x12] sm:$0xff]
    %v7290 = vld [vmem:[%s462 + $0x1a] sm:$0xff]
    %v7291 = vld [vmem:[%s462 + $0x22] sm:$0xff]
    %v7292 = vld [vmem:[%s462 + $0x2a] sm:$0xff]
    %v7293 = vld [vmem:[%s462 + $0x32] sm:$0xff]
    %v7294 = vld [vmem:[%s462 + $0x3a] sm:$0xff]
    %v7295 = vld [vmem:[%s462 + $0x42] sm:$0x1]
    %s7296 = sld [smem:[#allocation2 + $0x96]]
    %v7297 = vstv %s7296
    %v7298 = vmul.f32 %v7297, %v7287
    %v7299 = vmul.f32 %v7297, %v7288
    %v7300 = vmul.f32 %v7297, %v7289
    %v7301 = vmul.f32 %v7297, %v7290
    %v7302 = vmul.f32 %v7297, %v7291
    %v7303 = vmul.f32 %v7297, %v7292
    %v7304 = vmul.f32 %v7297, %v7293
    %v7305 = vmul.f32 %v7297, %v7294
    %v7306 = vmul.f32 %v7297, %v7295
    %v7307 = vadd.f32 %v7278, %v7298
    %v7308 = vadd.f32 %v7279, %v7299
    %v7309 = vadd.f32 %v7280, %v7300
    %v7310 = vadd.f32 %v7281, %v7301
    %v7311 = vadd.f32 %v7282, %v7302
    %v7312 = vadd.f32 %v7283, %v7303
    %v7313 = vadd.f32 %v7284, %v7304
    %v7314 = vadd.f32 %v7285, %v7305
    %v7315 = vadd.f32 %v7286, %v7306
    %s7316 = sld [smem:[#allocation2 + $0x97]]
    %v7317 = vstv %s7316
    %v7318 = vmul.f32 %v7317, %v7287
    %v7319 = vmul.f32 %v7317, %v7288
    %v7320 = vmul.f32 %v7317, %v7289
    %v7321 = vmul.f32 %v7317, %v7290
    %v7322 = vmul.f32 %v7317, %v7291
    %v7323 = vmul.f32 %v7317, %v7292
    %v7324 = vmul.f32 %v7317, %v7293
    %v7325 = vmul.f32 %v7317, %v7294
    %v7326 = vmul.f32 %v7317, %v7295
    %7336 = vrot.lane.b32.xlu0 %v7318, 127
    %v7337 = vpop.permute.xlu0 %7336
    %7338 = vrot.lane.b32.xlu0 %v7319, 127
    %v7339 = vpop.permute.xlu0 %7338
    %7340 = vrot.lane.b32.xlu0 %v7320, 127
    %v7341 = vpop.permute.xlu0 %7340
    %7342 = vrot.lane.b32.xlu0 %v7321, 127
    %v7343 = vpop.permute.xlu0 %7342
    %7344 = vrot.lane.b32.xlu0 %v7322, 127
    %v7345 = vpop.permute.xlu0 %7344
    %7346 = vrot.lane.b32.xlu0 %v7323, 127
    %v7347 = vpop.permute.xlu0 %7346
    %7348 = vrot.lane.b32.xlu0 %v7324, 127
    %v7349 = vpop.permute.xlu0 %7348
    %7350 = vrot.lane.b32.xlu0 %v7325, 127
    %v7351 = vpop.permute.xlu0 %7350
    %7352 = vrot.lane.b32.xlu0 %v7326, 127
    %v7353 = vpop.permute.xlu0 %7352
    %v7363 = vadd.f32 %v7307, %v7337
    %v7364 = vadd.f32 %v7308, %v7339
    %v7365 = vadd.f32 %v7309, %v7341
    %v7366 = vadd.f32 %v7310, %v7343
    %v7367 = vadd.f32 %v7311, %v7345
    %v7368 = vadd.f32 %v7312, %v7347
    %v7369 = vadd.f32 %v7313, %v7349
    %v7370 = vadd.f32 %v7314, %v7351
    %v7371 = vadd.f32 %v7315, %v7353
    %s7372 = sld [smem:[#allocation2 + $0x98]]
    %v7373 = vstv %s7372
    %v7374 = vmul.f32 %v7373, %v7287
    %v7375 = vmul.f32 %v7373, %v7288
    %v7376 = vmul.f32 %v7373, %v7289
    %v7377 = vmul.f32 %v7373, %v7290
    %v7378 = vmul.f32 %v7373, %v7291
    %v7379 = vmul.f32 %v7373, %v7292
    %v7380 = vmul.f32 %v7373, %v7293
    %v7381 = vmul.f32 %v7373, %v7294
    %v7382 = vmul.f32 %v7373, %v7295
    %7392 = vrot.lane.b32.xlu0 %v7374, 126
    %v7393 = vpop.permute.xlu0 %7392
    %7394 = vrot.lane.b32.xlu0 %v7375, 126
    %v7395 = vpop.permute.xlu0 %7394
    %7396 = vrot.lane.b32.xlu0 %v7376, 126
    %v7397 = vpop.permute.xlu0 %7396
    %7398 = vrot.lane.b32.xlu0 %v7377, 126
    %v7399 = vpop.permute.xlu0 %7398
    %7400 = vrot.lane.b32.xlu0 %v7378, 126
    %v7401 = vpop.permute.xlu0 %7400
    %7402 = vrot.lane.b32.xlu0 %v7379, 126
    %v7403 = vpop.permute.xlu0 %7402
    %7404 = vrot.lane.b32.xlu0 %v7380, 126
    %v7405 = vpop.permute.xlu0 %7404
    %7406 = vrot.lane.b32.xlu0 %v7381, 126
    %v7407 = vpop.permute.xlu0 %7406
    %7408 = vrot.lane.b32.xlu0 %v7382, 126
    %v7409 = vpop.permute.xlu0 %7408
    %v7419 = vadd.f32 %v7363, %v7393
    %v7420 = vadd.f32 %v7364, %v7395
    %v7421 = vadd.f32 %v7365, %v7397
    %v7422 = vadd.f32 %v7366, %v7399
    %v7423 = vadd.f32 %v7367, %v7401
    %v7424 = vadd.f32 %v7368, %v7403
    %v7425 = vadd.f32 %v7369, %v7405
    %v7426 = vadd.f32 %v7370, %v7407
    %v7427 = vadd.f32 %v7371, %v7409
    %v7428 = vld [vmem:[%s886] sm:$0xff]
    %v7429 = vld [vmem:[%s886 + $0x8] sm:$0xff]
    %v7430 = vld [vmem:[%s886 + $0x10] sm:$0xff]
    %v7431 = vld [vmem:[%s886 + $0x18] sm:$0xff]
    %v7432 = vld [vmem:[%s886 + $0x20] sm:$0xff]
    %v7433 = vld [vmem:[%s886 + $0x28] sm:$0xff]
    %v7434 = vld [vmem:[%s886 + $0x30] sm:$0xff]
    %v7435 = vld [vmem:[%s886 + $0x38] sm:$0xff]
    %v7436 = vld [vmem:[%s886 + $0x40] sm:$0x1]
    %s7437 = sld [smem:[#allocation2 + $0x99]]
    %v7438 = vstv %s7437
    %v7439 = vmul.f32 %v7438, %v7428
    %v7440 = vmul.f32 %v7438, %v7429
    %v7441 = vmul.f32 %v7438, %v7430
    %v7442 = vmul.f32 %v7438, %v7431
    %v7443 = vmul.f32 %v7438, %v7432
    %v7444 = vmul.f32 %v7438, %v7433
    %v7445 = vmul.f32 %v7438, %v7434
    %v7446 = vmul.f32 %v7438, %v7435
    %v7447 = vmul.f32 %v7438, %v7436
    %v7448 = vadd.f32 %v7419, %v7439
    %v7449 = vadd.f32 %v7420, %v7440
    %v7450 = vadd.f32 %v7421, %v7441
    %v7451 = vadd.f32 %v7422, %v7442
    %v7452 = vadd.f32 %v7423, %v7443
    %v7453 = vadd.f32 %v7424, %v7444
    %v7454 = vadd.f32 %v7425, %v7445
    %v7455 = vadd.f32 %v7426, %v7446
    %v7456 = vadd.f32 %v7427, %v7447
    %s7457 = sld [smem:[#allocation2 + $0x9a]]
    %v7458 = vstv %s7457
    %v7459 = vmul.f32 %v7458, %v7428
    %v7460 = vmul.f32 %v7458, %v7429
    %v7461 = vmul.f32 %v7458, %v7430
    %v7462 = vmul.f32 %v7458, %v7431
    %v7463 = vmul.f32 %v7458, %v7432
    %v7464 = vmul.f32 %v7458, %v7433
    %v7465 = vmul.f32 %v7458, %v7434
    %v7466 = vmul.f32 %v7458, %v7435
    %v7467 = vmul.f32 %v7458, %v7436
    %7477 = vrot.lane.b32.xlu0 %v7459, 127
    %v7478 = vpop.permute.xlu0 %7477
    %7479 = vrot.lane.b32.xlu0 %v7460, 127
    %v7480 = vpop.permute.xlu0 %7479
    %7481 = vrot.lane.b32.xlu0 %v7461, 127
    %v7482 = vpop.permute.xlu0 %7481
    %7483 = vrot.lane.b32.xlu0 %v7462, 127
    %v7484 = vpop.permute.xlu0 %7483
    %7485 = vrot.lane.b32.xlu0 %v7463, 127
    %v7486 = vpop.permute.xlu0 %7485
    %7487 = vrot.lane.b32.xlu0 %v7464, 127
    %v7488 = vpop.permute.xlu0 %7487
    %7489 = vrot.lane.b32.xlu0 %v7465, 127
    %v7490 = vpop.permute.xlu0 %7489
    %7491 = vrot.lane.b32.xlu0 %v7466, 127
    %v7492 = vpop.permute.xlu0 %7491
    %7493 = vrot.lane.b32.xlu0 %v7467, 127
    %v7494 = vpop.permute.xlu0 %7493
    %v7504 = vadd.f32 %v7448, %v7478
    %v7505 = vadd.f32 %v7449, %v7480
    %v7506 = vadd.f32 %v7450, %v7482
    %v7507 = vadd.f32 %v7451, %v7484
    %v7508 = vadd.f32 %v7452, %v7486
    %v7509 = vadd.f32 %v7453, %v7488
    %v7510 = vadd.f32 %v7454, %v7490
    %v7511 = vadd.f32 %v7455, %v7492
    %v7512 = vadd.f32 %v7456, %v7494
    %s7513 = sld [smem:[#allocation2 + $0x9b]]
    %v7514 = vstv %s7513
    %v7515 = vmul.f32 %v7514, %v7428
    %v7516 = vmul.f32 %v7514, %v7429
    %v7517 = vmul.f32 %v7514, %v7430
    %v7518 = vmul.f32 %v7514, %v7431
    %v7519 = vmul.f32 %v7514, %v7432
    %v7520 = vmul.f32 %v7514, %v7433
    %v7521 = vmul.f32 %v7514, %v7434
    %v7522 = vmul.f32 %v7514, %v7435
    %v7523 = vmul.f32 %v7514, %v7436
    %7533 = vrot.lane.b32.xlu0 %v7515, 126
    %v7534 = vpop.permute.xlu0 %7533
    %7535 = vrot.lane.b32.xlu0 %v7516, 126
    %v7536 = vpop.permute.xlu0 %7535
    %7537 = vrot.lane.b32.xlu0 %v7517, 126
    %v7538 = vpop.permute.xlu0 %7537
    %7539 = vrot.lane.b32.xlu0 %v7518, 126
    %v7540 = vpop.permute.xlu0 %7539
    %7541 = vrot.lane.b32.xlu0 %v7519, 126
    %v7542 = vpop.permute.xlu0 %7541
    %7543 = vrot.lane.b32.xlu0 %v7520, 126
    %v7544 = vpop.permute.xlu0 %7543
    %7545 = vrot.lane.b32.xlu0 %v7521, 126
    %v7546 = vpop.permute.xlu0 %7545
    %7547 = vrot.lane.b32.xlu0 %v7522, 126
    %v7548 = vpop.permute.xlu0 %7547
    %7549 = vrot.lane.b32.xlu0 %v7523, 126
    %v7550 = vpop.permute.xlu0 %7549
    %v7560 = vadd.f32 %v7504, %v7534
    %v7561 = vadd.f32 %v7505, %v7536
    %v7562 = vadd.f32 %v7506, %v7538
    %v7563 = vadd.f32 %v7507, %v7540
    %v7564 = vadd.f32 %v7508, %v7542
    %v7565 = vadd.f32 %v7509, %v7544
    %v7566 = vadd.f32 %v7510, %v7546
    %v7567 = vadd.f32 %v7511, %v7548
    %v7568 = vadd.f32 %v7512, %v7550
    %v7569 = vld [vmem:[%s886 + $0x1] sm:$0xff]
    %v7570 = vld [vmem:[%s886 + $0x9] sm:$0xff]
    %v7571 = vld [vmem:[%s886 + $0x11] sm:$0xff]
    %v7572 = vld [vmem:[%s886 + $0x19] sm:$0xff]
    %v7573 = vld [vmem:[%s886 + $0x21] sm:$0xff]
    %v7574 = vld [vmem:[%s886 + $0x29] sm:$0xff]
    %v7575 = vld [vmem:[%s886 + $0x31] sm:$0xff]
    %v7576 = vld [vmem:[%s886 + $0x39] sm:$0xff]
    %v7577 = vld [vmem:[%s886 + $0x41] sm:$0x1]
    %s7578 = sld [smem:[#allocation2 + $0x9c]]
    %v7579 = vstv %s7578
    %v7580 = vmul.f32 %v7579, %v7569
    %v7581 = vmul.f32 %v7579, %v7570
    %v7582 = vmul.f32 %v7579, %v7571
    %v7583 = vmul.f32 %v7579, %v7572
    %v7584 = vmul.f32 %v7579, %v7573
    %v7585 = vmul.f32 %v7579, %v7574
    %v7586 = vmul.f32 %v7579, %v7575
    %v7587 = vmul.f32 %v7579, %v7576
    %v7588 = vmul.f32 %v7579, %v7577
    %v7589 = vadd.f32 %v7560, %v7580
    %v7590 = vadd.f32 %v7561, %v7581
    %v7591 = vadd.f32 %v7562, %v7582
    %v7592 = vadd.f32 %v7563, %v7583
    %v7593 = vadd.f32 %v7564, %v7584
    %v7594 = vadd.f32 %v7565, %v7585
    %v7595 = vadd.f32 %v7566, %v7586
    %v7596 = vadd.f32 %v7567, %v7587
    %v7597 = vadd.f32 %v7568, %v7588
    %s7598 = sld [smem:[#allocation2 + $0x9d]]
    %v7599 = vstv %s7598
    %v7600 = vmul.f32 %v7599, %v7569
    %v7601 = vmul.f32 %v7599, %v7570
    %v7602 = vmul.f32 %v7599, %v7571
    %v7603 = vmul.f32 %v7599, %v7572
    %v7604 = vmul.f32 %v7599, %v7573
    %v7605 = vmul.f32 %v7599, %v7574
    %v7606 = vmul.f32 %v7599, %v7575
    %v7607 = vmul.f32 %v7599, %v7576
    %v7608 = vmul.f32 %v7599, %v7577
    %7618 = vrot.lane.b32.xlu0 %v7600, 127
    %v7619 = vpop.permute.xlu0 %7618
    %7620 = vrot.lane.b32.xlu0 %v7601, 127
    %v7621 = vpop.permute.xlu0 %7620
    %7622 = vrot.lane.b32.xlu0 %v7602, 127
    %v7623 = vpop.permute.xlu0 %7622
    %7624 = vrot.lane.b32.xlu0 %v7603, 127
    %v7625 = vpop.permute.xlu0 %7624
    %7626 = vrot.lane.b32.xlu0 %v7604, 127
    %v7627 = vpop.permute.xlu0 %7626
    %7628 = vrot.lane.b32.xlu0 %v7605, 127
    %v7629 = vpop.permute.xlu0 %7628
    %7630 = vrot.lane.b32.xlu0 %v7606, 127
    %v7631 = vpop.permute.xlu0 %7630
    %7632 = vrot.lane.b32.xlu0 %v7607, 127
    %v7633 = vpop.permute.xlu0 %7632
    %7634 = vrot.lane.b32.xlu0 %v7608, 127
    %v7635 = vpop.permute.xlu0 %7634
    %v7645 = vadd.f32 %v7589, %v7619
    %v7646 = vadd.f32 %v7590, %v7621
    %v7647 = vadd.f32 %v7591, %v7623
    %v7648 = vadd.f32 %v7592, %v7625
    %v7649 = vadd.f32 %v7593, %v7627
    %v7650 = vadd.f32 %v7594, %v7629
    %v7651 = vadd.f32 %v7595, %v7631
    %v7652 = vadd.f32 %v7596, %v7633
    %v7653 = vadd.f32 %v7597, %v7635
    %s7654 = sld [smem:[#allocation2 + $0x9e]]
    %v7655 = vstv %s7654
    %v7656 = vmul.f32 %v7655, %v7569
    %v7657 = vmul.f32 %v7655, %v7570
    %v7658 = vmul.f32 %v7655, %v7571
    %v7659 = vmul.f32 %v7655, %v7572
    %v7660 = vmul.f32 %v7655, %v7573
    %v7661 = vmul.f32 %v7655, %v7574
    %v7662 = vmul.f32 %v7655, %v7575
    %v7663 = vmul.f32 %v7655, %v7576
    %v7664 = vmul.f32 %v7655, %v7577
    %7674 = vrot.lane.b32.xlu0 %v7656, 126
    %v7675 = vpop.permute.xlu0 %7674
    %7676 = vrot.lane.b32.xlu0 %v7657, 126
    %v7677 = vpop.permute.xlu0 %7676
    %7678 = vrot.lane.b32.xlu0 %v7658, 126
    %v7679 = vpop.permute.xlu0 %7678
    %7680 = vrot.lane.b32.xlu0 %v7659, 126
    %v7681 = vpop.permute.xlu0 %7680
    %7682 = vrot.lane.b32.xlu0 %v7660, 126
    %v7683 = vpop.permute.xlu0 %7682
    %7684 = vrot.lane.b32.xlu0 %v7661, 126
    %v7685 = vpop.permute.xlu0 %7684
    %7686 = vrot.lane.b32.xlu0 %v7662, 126
    %v7687 = vpop.permute.xlu0 %7686
    %7688 = vrot.lane.b32.xlu0 %v7663, 126
    %v7689 = vpop.permute.xlu0 %7688
    %7690 = vrot.lane.b32.xlu0 %v7664, 126
    %v7691 = vpop.permute.xlu0 %7690
    %v7701 = vadd.f32 %v7645, %v7675
    %v7702 = vadd.f32 %v7646, %v7677
    %v7703 = vadd.f32 %v7647, %v7679
    %v7704 = vadd.f32 %v7648, %v7681
    %v7705 = vadd.f32 %v7649, %v7683
    %v7706 = vadd.f32 %v7650, %v7685
    %v7707 = vadd.f32 %v7651, %v7687
    %v7708 = vadd.f32 %v7652, %v7689
    %v7709 = vadd.f32 %v7653, %v7691
    %v7710 = vld [vmem:[%s886 + $0x2] sm:$0xff]
    %v7711 = vld [vmem:[%s886 + $0xa] sm:$0xff]
    %v7712 = vld [vmem:[%s886 + $0x12] sm:$0xff]
    %v7713 = vld [vmem:[%s886 + $0x1a] sm:$0xff]
    %v7714 = vld [vmem:[%s886 + $0x22] sm:$0xff]
    %v7715 = vld [vmem:[%s886 + $0x2a] sm:$0xff]
    %v7716 = vld [vmem:[%s886 + $0x32] sm:$0xff]
    %v7717 = vld [vmem:[%s886 + $0x3a] sm:$0xff]
    %v7718 = vld [vmem:[%s886 + $0x42] sm:$0x1]
    %s7719 = sld [smem:[#allocation2 + $0x9f]]
    %v7720 = vstv %s7719
    %v7721 = vmul.f32 %v7720, %v7710
    %v7722 = vmul.f32 %v7720, %v7711
    %v7723 = vmul.f32 %v7720, %v7712
    %v7724 = vmul.f32 %v7720, %v7713
    %v7725 = vmul.f32 %v7720, %v7714
    %v7726 = vmul.f32 %v7720, %v7715
    %v7727 = vmul.f32 %v7720, %v7716
    %v7728 = vmul.f32 %v7720, %v7717
    %v7729 = vmul.f32 %v7720, %v7718
    %v7730 = vadd.f32 %v7701, %v7721
    %v7731 = vadd.f32 %v7702, %v7722
    %v7732 = vadd.f32 %v7703, %v7723
    %v7733 = vadd.f32 %v7704, %v7724
    %v7734 = vadd.f32 %v7705, %v7725
    %v7735 = vadd.f32 %v7706, %v7726
    %v7736 = vadd.f32 %v7707, %v7727
    %v7737 = vadd.f32 %v7708, %v7728
    %v7738 = vadd.f32 %v7709, %v7729
    %s7739 = sld [smem:[#allocation2 + $0xa0]]
    %v7740 = vstv %s7739
    %v7741 = vmul.f32 %v7740, %v7710
    %v7742 = vmul.f32 %v7740, %v7711
    %v7743 = vmul.f32 %v7740, %v7712
    %v7744 = vmul.f32 %v7740, %v7713
    %v7745 = vmul.f32 %v7740, %v7714
    %v7746 = vmul.f32 %v7740, %v7715
    %v7747 = vmul.f32 %v7740, %v7716
    %v7748 = vmul.f32 %v7740, %v7717
    %v7749 = vmul.f32 %v7740, %v7718
    %7759 = vrot.lane.b32.xlu0 %v7741, 127
    %v7760 = vpop.permute.xlu0 %7759
    %7761 = vrot.lane.b32.xlu0 %v7742, 127
    %v7762 = vpop.permute.xlu0 %7761
    %7763 = vrot.lane.b32.xlu0 %v7743, 127
    %v7764 = vpop.permute.xlu0 %7763
    %7765 = vrot.lane.b32.xlu0 %v7744, 127
    %v7766 = vpop.permute.xlu0 %7765
    %7767 = vrot.lane.b32.xlu0 %v7745, 127
    %v7768 = vpop.permute.xlu0 %7767
    %7769 = vrot.lane.b32.xlu0 %v7746, 127
    %v7770 = vpop.permute.xlu0 %7769
    %7771 = vrot.lane.b32.xlu0 %v7747, 127
    %v7772 = vpop.permute.xlu0 %7771
    %7773 = vrot.lane.b32.xlu0 %v7748, 127
    %v7774 = vpop.permute.xlu0 %7773
    %7775 = vrot.lane.b32.xlu0 %v7749, 127
    %v7776 = vpop.permute.xlu0 %7775
    %v7786 = vadd.f32 %v7730, %v7760
    %v7787 = vadd.f32 %v7731, %v7762
    %v7788 = vadd.f32 %v7732, %v7764
    %v7789 = vadd.f32 %v7733, %v7766
    %v7790 = vadd.f32 %v7734, %v7768
    %v7791 = vadd.f32 %v7735, %v7770
    %v7792 = vadd.f32 %v7736, %v7772
    %v7793 = vadd.f32 %v7737, %v7774
    %v7794 = vadd.f32 %v7738, %v7776
    %s7795 = sld [smem:[#allocation2 + $0xa1]]
    %v7796 = vstv %s7795
    %v7797 = vmul.f32 %v7796, %v7710
    %v7798 = vmul.f32 %v7796, %v7711
    %v7799 = vmul.f32 %v7796, %v7712
    %v7800 = vmul.f32 %v7796, %v7713
    %v7801 = vmul.f32 %v7796, %v7714
    %v7802 = vmul.f32 %v7796, %v7715
    %v7803 = vmul.f32 %v7796, %v7716
    %v7804 = vmul.f32 %v7796, %v7717
    %v7805 = vmul.f32 %v7796, %v7718
    %7815 = vrot.lane.b32.xlu0 %v7797, 126
    %v7816 = vpop.permute.xlu0 %7815
    %7817 = vrot.lane.b32.xlu0 %v7798, 126
    %v7818 = vpop.permute.xlu0 %7817
    %7819 = vrot.lane.b32.xlu0 %v7799, 126
    %v7820 = vpop.permute.xlu0 %7819
    %7821 = vrot.lane.b32.xlu0 %v7800, 126
    %v7822 = vpop.permute.xlu0 %7821
    %7823 = vrot.lane.b32.xlu0 %v7801, 126
    %v7824 = vpop.permute.xlu0 %7823
    %7825 = vrot.lane.b32.xlu0 %v7802, 126
    %v7826 = vpop.permute.xlu0 %7825
    %7827 = vrot.lane.b32.xlu0 %v7803, 126
    %v7828 = vpop.permute.xlu0 %7827
    %7829 = vrot.lane.b32.xlu0 %v7804, 126
    %v7830 = vpop.permute.xlu0 %7829
    %7831 = vrot.lane.b32.xlu0 %v7805, 126
    %v7832 = vpop.permute.xlu0 %7831
    %v7842 = vadd.f32 %v7786, %v7816
    %v7843 = vadd.f32 %v7787, %v7818
    %v7844 = vadd.f32 %v7788, %v7820
    %v7845 = vadd.f32 %v7789, %v7822
    %v7846 = vadd.f32 %v7790, %v7824
    %v7847 = vadd.f32 %v7791, %v7826
    %v7848 = vadd.f32 %v7792, %v7828
    %v7849 = vadd.f32 %v7793, %v7830
    %v7850 = vadd.f32 %v7794, %v7832
    %s7851 = sld [smem:[#allocation4 + $0x5]]
    %v7852 = vstv %s7851
    %v7853 = vadd.f32 %v7842, %v7852
    %v7854 = vadd.f32 %v7843, %v7852
    %v7855 = vadd.f32 %v7844, %v7852
    %v7856 = vadd.f32 %v7845, %v7852
    %v7857 = vadd.f32 %v7846, %v7852
    %v7858 = vadd.f32 %v7847, %v7852
    %v7859 = vadd.f32 %v7848, %v7852
    %v7860 = vadd.f32 %v7849, %v7852
    %v7861 = vadd.f32 %v7850, %v7852
    %v7862 = vmul.f32 %v7853, 2.0
    %v7863 = vmul.f32 %v7854, 2.0
    %v7864 = vmul.f32 %v7855, 2.0
    %v7865 = vmul.f32 %v7856, 2.0
    %v7866 = vmul.f32 %v7857, 2.0
    %v7867 = vmul.f32 %v7858, 2.0
    %v7868 = vmul.f32 %v7859, 2.0
    %v7869 = vmul.f32 %v7860, 2.0
    %v7870 = vmul.f32 %v7861, 2.0
    %v7871 = vmax.f32 %v7862, 0.0
    %v7872 = vmax.f32 %v7863, 0.0
    %v7873 = vmax.f32 %v7864, 0.0
    %v7874 = vmax.f32 %v7865, 0.0
    %v7875 = vmax.f32 %v7866, 0.0
    %v7876 = vmax.f32 %v7867, 0.0
    %v7877 = vmax.f32 %v7868, 0.0
    %v7878 = vmax.f32 %v7869, 0.0
    %v7879 = vmax.f32 %v7870, 0.0
    %s7880 = scalar_lea.vmem %s3, 360
    %7881 = vst.msk [vmem:[%s7880] sm:$0xff] %vm1339, %v7871
    %7882 = vst.msk [vmem:[%s7880 + $0x8] sm:$0xff] %vm1339, %v7872
    %7883 = vst.msk [vmem:[%s7880 + $0x10] sm:$0xff] %vm1339, %v7873
    %7884 = vst.msk [vmem:[%s7880 + $0x18] sm:$0xff] %vm1339, %v7874
    %7885 = vst.msk [vmem:[%s7880 + $0x20] sm:$0xff] %vm1339, %v7875
    %7886 = vst.msk [vmem:[%s7880 + $0x28] sm:$0xff] %vm1339, %v7876
    %7887 = vst.msk [vmem:[%s7880 + $0x30] sm:$0xff] %vm1339, %v7877
    %7888 = vst.msk [vmem:[%s7880 + $0x38] sm:$0xff] %vm1339, %v7878
    %7889 = vst.msk [vmem:[%s7880 + $0x40] sm:$0x1] %vm1348, %v7879
    %v7890 = vld [vmem:[%s2] sm:$0xff]
    %v7891 = vld [vmem:[%s2 + $0x8] sm:$0xff]
    %v7892 = vld [vmem:[%s2 + $0x10] sm:$0xff]
    %v7893 = vld [vmem:[%s2 + $0x18] sm:$0xff]
    %v7894 = vld [vmem:[%s2 + $0x20] sm:$0xff]
    %v7895 = vld [vmem:[%s2 + $0x28] sm:$0xff]
    %v7896 = vld [vmem:[%s2 + $0x30] sm:$0xff]
    %v7897 = vld [vmem:[%s2 + $0x38] sm:$0xff]
    %v7898 = vld [vmem:[%s2 + $0x40] sm:$0x1]
    %s7899 = sld [smem:[#allocation2 + $0xa2]]
    %v7900 = vstv %s7899
    %v7901 = vmul.f32 %v7900, %v7890
    %v7902 = vmul.f32 %v7900, %v7891
    %v7903 = vmul.f32 %v7900, %v7892
    %v7904 = vmul.f32 %v7900, %v7893
    %v7905 = vmul.f32 %v7900, %v7894
    %v7906 = vmul.f32 %v7900, %v7895
    %v7907 = vmul.f32 %v7900, %v7896
    %v7908 = vmul.f32 %v7900, %v7897
    %v7909 = vmul.f32 %v7900, %v7898
    %v7910 = vadd.f32 %v7901, 0.0
    %v7911 = vadd.f32 %v7902, 0.0
    %v7912 = vadd.f32 %v7903, 0.0
    %v7913 = vadd.f32 %v7904, 0.0
    %v7914 = vadd.f32 %v7905, 0.0
    %v7915 = vadd.f32 %v7906, 0.0
    %v7916 = vadd.f32 %v7907, 0.0
    %v7917 = vadd.f32 %v7908, 0.0
    %v7918 = vadd.f32 %v7909, 0.0
    %s7919 = sld [smem:[#allocation2 + $0xa3]]
    %v7920 = vstv %s7919
    %v7921 = vmul.f32 %v7920, %v7890
    %v7922 = vmul.f32 %v7920, %v7891
    %v7923 = vmul.f32 %v7920, %v7892
    %v7924 = vmul.f32 %v7920, %v7893
    %v7925 = vmul.f32 %v7920, %v7894
    %v7926 = vmul.f32 %v7920, %v7895
    %v7927 = vmul.f32 %v7920, %v7896
    %v7928 = vmul.f32 %v7920, %v7897
    %v7929 = vmul.f32 %v7920, %v7898
    %7939 = vrot.lane.b32.xlu0 %v7921, 127
    %v7940 = vpop.permute.xlu0 %7939
    %7941 = vrot.lane.b32.xlu0 %v7922, 127
    %v7942 = vpop.permute.xlu0 %7941
    %7943 = vrot.lane.b32.xlu0 %v7923, 127
    %v7944 = vpop.permute.xlu0 %7943
    %7945 = vrot.lane.b32.xlu0 %v7924, 127
    %v7946 = vpop.permute.xlu0 %7945
    %7947 = vrot.lane.b32.xlu0 %v7925, 127
    %v7948 = vpop.permute.xlu0 %7947
    %7949 = vrot.lane.b32.xlu0 %v7926, 127
    %v7950 = vpop.permute.xlu0 %7949
    %7951 = vrot.lane.b32.xlu0 %v7927, 127
    %v7952 = vpop.permute.xlu0 %7951
    %7953 = vrot.lane.b32.xlu0 %v7928, 127
    %v7954 = vpop.permute.xlu0 %7953
    %7955 = vrot.lane.b32.xlu0 %v7929, 127
    %v7956 = vpop.permute.xlu0 %7955
    %v7966 = vadd.f32 %v7910, %v7940
    %v7967 = vadd.f32 %v7911, %v7942
    %v7968 = vadd.f32 %v7912, %v7944
    %v7969 = vadd.f32 %v7913, %v7946
    %v7970 = vadd.f32 %v7914, %v7948
    %v7971 = vadd.f32 %v7915, %v7950
    %v7972 = vadd.f32 %v7916, %v7952
    %v7973 = vadd.f32 %v7917, %v7954
    %v7974 = vadd.f32 %v7918, %v7956
    %s7975 = sld [smem:[#allocation2 + $0xa4]]
    %v7976 = vstv %s7975
    %v7977 = vmul.f32 %v7976, %v7890
    %v7978 = vmul.f32 %v7976, %v7891
    %v7979 = vmul.f32 %v7976, %v7892
    %v7980 = vmul.f32 %v7976, %v7893
    %v7981 = vmul.f32 %v7976, %v7894
    %v7982 = vmul.f32 %v7976, %v7895
    %v7983 = vmul.f32 %v7976, %v7896
    %v7984 = vmul.f32 %v7976, %v7897
    %v7985 = vmul.f32 %v7976, %v7898
    %7995 = vrot.lane.b32.xlu0 %v7977, 126
    %v7996 = vpop.permute.xlu0 %7995
    %7997 = vrot.lane.b32.xlu0 %v7978, 126
    %v7998 = vpop.permute.xlu0 %7997
    %7999 = vrot.lane.b32.xlu0 %v7979, 126
    %v8000 = vpop.permute.xlu0 %7999
    %8001 = vrot.lane.b32.xlu0 %v7980, 126
    %v8002 = vpop.permute.xlu0 %8001
    %8003 = vrot.lane.b32.xlu0 %v7981, 126
    %v8004 = vpop.permute.xlu0 %8003
    %8005 = vrot.lane.b32.xlu0 %v7982, 126
    %v8006 = vpop.permute.xlu0 %8005
    %8007 = vrot.lane.b32.xlu0 %v7983, 126
    %v8008 = vpop.permute.xlu0 %8007
    %8009 = vrot.lane.b32.xlu0 %v7984, 126
    %v8010 = vpop.permute.xlu0 %8009
    %8011 = vrot.lane.b32.xlu0 %v7985, 126
    %v8012 = vpop.permute.xlu0 %8011
    %v8022 = vadd.f32 %v7966, %v7996
    %v8023 = vadd.f32 %v7967, %v7998
    %v8024 = vadd.f32 %v7968, %v8000
    %v8025 = vadd.f32 %v7969, %v8002
    %v8026 = vadd.f32 %v7970, %v8004
    %v8027 = vadd.f32 %v7971, %v8006
    %v8028 = vadd.f32 %v7972, %v8008
    %v8029 = vadd.f32 %v7973, %v8010
    %v8030 = vadd.f32 %v7974, %v8012
    %v8031 = vld [vmem:[%s2 + $0x1] sm:$0xff]
    %v8032 = vld [vmem:[%s2 + $0x9] sm:$0xff]
    %v8033 = vld [vmem:[%s2 + $0x11] sm:$0xff]
    %v8034 = vld [vmem:[%s2 + $0x19] sm:$0xff]
    %v8035 = vld [vmem:[%s2 + $0x21] sm:$0xff]
    %v8036 = vld [vmem:[%s2 + $0x29] sm:$0xff]
    %v8037 = vld [vmem:[%s2 + $0x31] sm:$0xff]
    %v8038 = vld [vmem:[%s2 + $0x39] sm:$0xff]
    %v8039 = vld [vmem:[%s2 + $0x41] sm:$0x1]
    %s8040 = sld [smem:[#allocation2 + $0xa5]]
    %v8041 = vstv %s8040
    %v8042 = vmul.f32 %v8041, %v8031
    %v8043 = vmul.f32 %v8041, %v8032
    %v8044 = vmul.f32 %v8041, %v8033
    %v8045 = vmul.f32 %v8041, %v8034
    %v8046 = vmul.f32 %v8041, %v8035
    %v8047 = vmul.f32 %v8041, %v8036
    %v8048 = vmul.f32 %v8041, %v8037
    %v8049 = vmul.f32 %v8041, %v8038
    %v8050 = vmul.f32 %v8041, %v8039
    %v8051 = vadd.f32 %v8022, %v8042
    %v8052 = vadd.f32 %v8023, %v8043
    %v8053 = vadd.f32 %v8024, %v8044
    %v8054 = vadd.f32 %v8025, %v8045
    %v8055 = vadd.f32 %v8026, %v8046
    %v8056 = vadd.f32 %v8027, %v8047
    %v8057 = vadd.f32 %v8028, %v8048
    %v8058 = vadd.f32 %v8029, %v8049
    %v8059 = vadd.f32 %v8030, %v8050
    %s8060 = sld [smem:[#allocation2 + $0xa6]]
    %v8061 = vstv %s8060
    %v8062 = vmul.f32 %v8061, %v8031
    %v8063 = vmul.f32 %v8061, %v8032
    %v8064 = vmul.f32 %v8061, %v8033
    %v8065 = vmul.f32 %v8061, %v8034
    %v8066 = vmul.f32 %v8061, %v8035
    %v8067 = vmul.f32 %v8061, %v8036
    %v8068 = vmul.f32 %v8061, %v8037
    %v8069 = vmul.f32 %v8061, %v8038
    %v8070 = vmul.f32 %v8061, %v8039
    %8080 = vrot.lane.b32.xlu0 %v8062, 127
    %v8081 = vpop.permute.xlu0 %8080
    %8082 = vrot.lane.b32.xlu0 %v8063, 127
    %v8083 = vpop.permute.xlu0 %8082
    %8084 = vrot.lane.b32.xlu0 %v8064, 127
    %v8085 = vpop.permute.xlu0 %8084
    %8086 = vrot.lane.b32.xlu0 %v8065, 127
    %v8087 = vpop.permute.xlu0 %8086
    %8088 = vrot.lane.b32.xlu0 %v8066, 127
    %v8089 = vpop.permute.xlu0 %8088
    %8090 = vrot.lane.b32.xlu0 %v8067, 127
    %v8091 = vpop.permute.xlu0 %8090
    %8092 = vrot.lane.b32.xlu0 %v8068, 127
    %v8093 = vpop.permute.xlu0 %8092
    %8094 = vrot.lane.b32.xlu0 %v8069, 127
    %v8095 = vpop.permute.xlu0 %8094
    %8096 = vrot.lane.b32.xlu0 %v8070, 127
    %v8097 = vpop.permute.xlu0 %8096
    %v8107 = vadd.f32 %v8051, %v8081
    %v8108 = vadd.f32 %v8052, %v8083
    %v8109 = vadd.f32 %v8053, %v8085
    %v8110 = vadd.f32 %v8054, %v8087
    %v8111 = vadd.f32 %v8055, %v8089
    %v8112 = vadd.f32 %v8056, %v8091
    %v8113 = vadd.f32 %v8057, %v8093
    %v8114 = vadd.f32 %v8058, %v8095
    %v8115 = vadd.f32 %v8059, %v8097
    %s8116 = sld [smem:[#allocation2 + $0xa7]]
    %v8117 = vstv %s8116
    %v8118 = vmul.f32 %v8117, %v8031
    %v8119 = vmul.f32 %v8117, %v8032
    %v8120 = vmul.f32 %v8117, %v8033
    %v8121 = vmul.f32 %v8117, %v8034
    %v8122 = vmul.f32 %v8117, %v8035
    %v8123 = vmul.f32 %v8117, %v8036
    %v8124 = vmul.f32 %v8117, %v8037
    %v8125 = vmul.f32 %v8117, %v8038
    %v8126 = vmul.f32 %v8117, %v8039
    %8136 = vrot.lane.b32.xlu0 %v8118, 126
    %v8137 = vpop.permute.xlu0 %8136
    %8138 = vrot.lane.b32.xlu0 %v8119, 126
    %v8139 = vpop.permute.xlu0 %8138
    %8140 = vrot.lane.b32.xlu0 %v8120, 126
    %v8141 = vpop.permute.xlu0 %8140
    %8142 = vrot.lane.b32.xlu0 %v8121, 126
    %v8143 = vpop.permute.xlu0 %8142
    %8144 = vrot.lane.b32.xlu0 %v8122, 126
    %v8145 = vpop.permute.xlu0 %8144
    %8146 = vrot.lane.b32.xlu0 %v8123, 126
    %v8147 = vpop.permute.xlu0 %8146
    %8148 = vrot.lane.b32.xlu0 %v8124, 126
    %v8149 = vpop.permute.xlu0 %8148
    %8150 = vrot.lane.b32.xlu0 %v8125, 126
    %v8151 = vpop.permute.xlu0 %8150
    %8152 = vrot.lane.b32.xlu0 %v8126, 126
    %v8153 = vpop.permute.xlu0 %8152
    %v8163 = vadd.f32 %v8107, %v8137
    %v8164 = vadd.f32 %v8108, %v8139
    %v8165 = vadd.f32 %v8109, %v8141
    %v8166 = vadd.f32 %v8110, %v8143
    %v8167 = vadd.f32 %v8111, %v8145
    %v8168 = vadd.f32 %v8112, %v8147
    %v8169 = vadd.f32 %v8113, %v8149
    %v8170 = vadd.f32 %v8114, %v8151
    %v8171 = vadd.f32 %v8115, %v8153
    %v8172 = vld [vmem:[%s2 + $0x2] sm:$0xff]
    %v8173 = vld [vmem:[%s2 + $0xa] sm:$0xff]
    %v8174 = vld [vmem:[%s2 + $0x12] sm:$0xff]
    %v8175 = vld [vmem:[%s2 + $0x1a] sm:$0xff]
    %v8176 = vld [vmem:[%s2 + $0x22] sm:$0xff]
    %v8177 = vld [vmem:[%s2 + $0x2a] sm:$0xff]
    %v8178 = vld [vmem:[%s2 + $0x32] sm:$0xff]
    %v8179 = vld [vmem:[%s2 + $0x3a] sm:$0xff]
    %v8180 = vld [vmem:[%s2 + $0x42] sm:$0x1]
    %s8181 = sld [smem:[#allocation2 + $0xa8]]
    %v8182 = vstv %s8181
    %v8183 = vmul.f32 %v8182, %v8172
    %v8184 = vmul.f32 %v8182, %v8173
    %v8185 = vmul.f32 %v8182, %v8174
    %v8186 = vmul.f32 %v8182, %v8175
    %v8187 = vmul.f32 %v8182, %v8176
    %v8188 = vmul.f32 %v8182, %v8177
    %v8189 = vmul.f32 %v8182, %v8178
    %v8190 = vmul.f32 %v8182, %v8179
    %v8191 = vmul.f32 %v8182, %v8180
    %v8192 = vadd.f32 %v8163, %v8183
    %v8193 = vadd.f32 %v8164, %v8184
    %v8194 = vadd.f32 %v8165, %v8185
    %v8195 = vadd.f32 %v8166, %v8186
    %v8196 = vadd.f32 %v8167, %v8187
    %v8197 = vadd.f32 %v8168, %v8188
    %v8198 = vadd.f32 %v8169, %v8189
    %v8199 = vadd.f32 %v8170, %v8190
    %v8200 = vadd.f32 %v8171, %v8191
    %s8201 = sld [smem:[#allocation2 + $0xa9]]
    %v8202 = vstv %s8201
    %v8203 = vmul.f32 %v8202, %v8172
    %v8204 = vmul.f32 %v8202, %v8173
    %v8205 = vmul.f32 %v8202, %v8174
    %v8206 = vmul.f32 %v8202, %v8175
    %v8207 = vmul.f32 %v8202, %v8176
    %v8208 = vmul.f32 %v8202, %v8177
    %v8209 = vmul.f32 %v8202, %v8178
    %v8210 = vmul.f32 %v8202, %v8179
    %v8211 = vmul.f32 %v8202, %v8180
    %8221 = vrot.lane.b32.xlu0 %v8203, 127
    %v8222 = vpop.permute.xlu0 %8221
    %8223 = vrot.lane.b32.xlu0 %v8204, 127
    %v8224 = vpop.permute.xlu0 %8223
    %8225 = vrot.lane.b32.xlu0 %v8205, 127
    %v8226 = vpop.permute.xlu0 %8225
    %8227 = vrot.lane.b32.xlu0 %v8206, 127
    %v8228 = vpop.permute.xlu0 %8227
    %8229 = vrot.lane.b32.xlu0 %v8207, 127
    %v8230 = vpop.permute.xlu0 %8229
    %8231 = vrot.lane.b32.xlu0 %v8208, 127
    %v8232 = vpop.permute.xlu0 %8231
    %8233 = vrot.lane.b32.xlu0 %v8209, 127
    %v8234 = vpop.permute.xlu0 %8233
    %8235 = vrot.lane.b32.xlu0 %v8210, 127
    %v8236 = vpop.permute.xlu0 %8235
    %8237 = vrot.lane.b32.xlu0 %v8211, 127
    %v8238 = vpop.permute.xlu0 %8237
    %v8248 = vadd.f32 %v8192, %v8222
    %v8249 = vadd.f32 %v8193, %v8224
    %v8250 = vadd.f32 %v8194, %v8226
    %v8251 = vadd.f32 %v8195, %v8228
    %v8252 = vadd.f32 %v8196, %v8230
    %v8253 = vadd.f32 %v8197, %v8232
    %v8254 = vadd.f32 %v8198, %v8234
    %v8255 = vadd.f32 %v8199, %v8236
    %v8256 = vadd.f32 %v8200, %v8238
    %s8257 = sld [smem:[#allocation2 + $0xaa]]
    %v8258 = vstv %s8257
    %v8259 = vmul.f32 %v8258, %v8172
    %v8260 = vmul.f32 %v8258, %v8173
    %v8261 = vmul.f32 %v8258, %v8174
    %v8262 = vmul.f32 %v8258, %v8175
    %v8263 = vmul.f32 %v8258, %v8176
    %v8264 = vmul.f32 %v8258, %v8177
    %v8265 = vmul.f32 %v8258, %v8178
    %v8266 = vmul.f32 %v8258, %v8179
    %v8267 = vmul.f32 %v8258, %v8180
    %8277 = vrot.lane.b32.xlu0 %v8259, 126
    %v8278 = vpop.permute.xlu0 %8277
    %8279 = vrot.lane.b32.xlu0 %v8260, 126
    %v8280 = vpop.permute.xlu0 %8279
    %8281 = vrot.lane.b32.xlu0 %v8261, 126
    %v8282 = vpop.permute.xlu0 %8281
    %8283 = vrot.lane.b32.xlu0 %v8262, 126
    %v8284 = vpop.permute.xlu0 %8283
    %8285 = vrot.lane.b32.xlu0 %v8263, 126
    %v8286 = vpop.permute.xlu0 %8285
    %8287 = vrot.lane.b32.xlu0 %v8264, 126
    %v8288 = vpop.permute.xlu0 %8287
    %8289 = vrot.lane.b32.xlu0 %v8265, 126
    %v8290 = vpop.permute.xlu0 %8289
    %8291 = vrot.lane.b32.xlu0 %v8266, 126
    %v8292 = vpop.permute.xlu0 %8291
    %8293 = vrot.lane.b32.xlu0 %v8267, 126
    %v8294 = vpop.permute.xlu0 %8293
    %v8304 = vadd.f32 %v8248, %v8278
    %v8305 = vadd.f32 %v8249, %v8280
    %v8306 = vadd.f32 %v8250, %v8282
    %v8307 = vadd.f32 %v8251, %v8284
    %v8308 = vadd.f32 %v8252, %v8286
    %v8309 = vadd.f32 %v8253, %v8288
    %v8310 = vadd.f32 %v8254, %v8290
    %v8311 = vadd.f32 %v8255, %v8292
    %v8312 = vadd.f32 %v8256, %v8294
    %v8313 = vld [vmem:[%s462] sm:$0xff]
    %v8314 = vld [vmem:[%s462 + $0x8] sm:$0xff]
    %v8315 = vld [vmem:[%s462 + $0x10] sm:$0xff]
    %v8316 = vld [vmem:[%s462 + $0x18] sm:$0xff]
    %v8317 = vld [vmem:[%s462 + $0x20] sm:$0xff]
    %v8318 = vld [vmem:[%s462 + $0x28] sm:$0xff]
    %v8319 = vld [vmem:[%s462 + $0x30] sm:$0xff]
    %v8320 = vld [vmem:[%s462 + $0x38] sm:$0xff]
    %v8321 = vld [vmem:[%s462 + $0x40] sm:$0x1]
    %s8322 = sld [smem:[#allocation2 + $0xab]]
    %v8323 = vstv %s8322
    %v8324 = vmul.f32 %v8323, %v8313
    %v8325 = vmul.f32 %v8323, %v8314
    %v8326 = vmul.f32 %v8323, %v8315
    %v8327 = vmul.f32 %v8323, %v8316
    %v8328 = vmul.f32 %v8323, %v8317
    %v8329 = vmul.f32 %v8323, %v8318
    %v8330 = vmul.f32 %v8323, %v8319
    %v8331 = vmul.f32 %v8323, %v8320
    %v8332 = vmul.f32 %v8323, %v8321
    %v8333 = vadd.f32 %v8304, %v8324
    %v8334 = vadd.f32 %v8305, %v8325
    %v8335 = vadd.f32 %v8306, %v8326
    %v8336 = vadd.f32 %v8307, %v8327
    %v8337 = vadd.f32 %v8308, %v8328
    %v8338 = vadd.f32 %v8309, %v8329
    %v8339 = vadd.f32 %v8310, %v8330
    %v8340 = vadd.f32 %v8311, %v8331
    %v8341 = vadd.f32 %v8312, %v8332
    %s8342 = sld [smem:[#allocation2 + $0xac]]
    %v8343 = vstv %s8342
    %v8344 = vmul.f32 %v8343, %v8313
    %v8345 = vmul.f32 %v8343, %v8314
    %v8346 = vmul.f32 %v8343, %v8315
    %v8347 = vmul.f32 %v8343, %v8316
    %v8348 = vmul.f32 %v8343, %v8317
    %v8349 = vmul.f32 %v8343, %v8318
    %v8350 = vmul.f32 %v8343, %v8319
    %v8351 = vmul.f32 %v8343, %v8320
    %v8352 = vmul.f32 %v8343, %v8321
    %8362 = vrot.lane.b32.xlu0 %v8344, 127
    %v8363 = vpop.permute.xlu0 %8362
    %8364 = vrot.lane.b32.xlu0 %v8345, 127
    %v8365 = vpop.permute.xlu0 %8364
    %8366 = vrot.lane.b32.xlu0 %v8346, 127
    %v8367 = vpop.permute.xlu0 %8366
    %8368 = vrot.lane.b32.xlu0 %v8347, 127
    %v8369 = vpop.permute.xlu0 %8368
    %8370 = vrot.lane.b32.xlu0 %v8348, 127
    %v8371 = vpop.permute.xlu0 %8370
    %8372 = vrot.lane.b32.xlu0 %v8349, 127
    %v8373 = vpop.permute.xlu0 %8372
    %8374 = vrot.lane.b32.xlu0 %v8350, 127
    %v8375 = vpop.permute.xlu0 %8374
    %8376 = vrot.lane.b32.xlu0 %v8351, 127
    %v8377 = vpop.permute.xlu0 %8376
    %8378 = vrot.lane.b32.xlu0 %v8352, 127
    %v8379 = vpop.permute.xlu0 %8378
    %v8389 = vadd.f32 %v8333, %v8363
    %v8390 = vadd.f32 %v8334, %v8365
    %v8391 = vadd.f32 %v8335, %v8367
    %v8392 = vadd.f32 %v8336, %v8369
    %v8393 = vadd.f32 %v8337, %v8371
    %v8394 = vadd.f32 %v8338, %v8373
    %v8395 = vadd.f32 %v8339, %v8375
    %v8396 = vadd.f32 %v8340, %v8377
    %v8397 = vadd.f32 %v8341, %v8379
    %s8398 = sld [smem:[#allocation2 + $0xad]]
    %v8399 = vstv %s8398
    %v8400 = vmul.f32 %v8399, %v8313
    %v8401 = vmul.f32 %v8399, %v8314
    %v8402 = vmul.f32 %v8399, %v8315
    %v8403 = vmul.f32 %v8399, %v8316
    %v8404 = vmul.f32 %v8399, %v8317
    %v8405 = vmul.f32 %v8399, %v8318
    %v8406 = vmul.f32 %v8399, %v8319
    %v8407 = vmul.f32 %v8399, %v8320
    %v8408 = vmul.f32 %v8399, %v8321
    %8418 = vrot.lane.b32.xlu0 %v8400, 126
    %v8419 = vpop.permute.xlu0 %8418
    %8420 = vrot.lane.b32.xlu0 %v8401, 126
    %v8421 = vpop.permute.xlu0 %8420
    %8422 = vrot.lane.b32.xlu0 %v8402, 126
    %v8423 = vpop.permute.xlu0 %8422
    %8424 = vrot.lane.b32.xlu0 %v8403, 126
    %v8425 = vpop.permute.xlu0 %8424
    %8426 = vrot.lane.b32.xlu0 %v8404, 126
    %v8427 = vpop.permute.xlu0 %8426
    %8428 = vrot.lane.b32.xlu0 %v8405, 126
    %v8429 = vpop.permute.xlu0 %8428
    %8430 = vrot.lane.b32.xlu0 %v8406, 126
    %v8431 = vpop.permute.xlu0 %8430
    %8432 = vrot.lane.b32.xlu0 %v8407, 126
    %v8433 = vpop.permute.xlu0 %8432
    %8434 = vrot.lane.b32.xlu0 %v8408, 126
    %v8435 = vpop.permute.xlu0 %8434
    %v8445 = vadd.f32 %v8389, %v8419
    %v8446 = vadd.f32 %v8390, %v8421
    %v8447 = vadd.f32 %v8391, %v8423
    %v8448 = vadd.f32 %v8392, %v8425
    %v8449 = vadd.f32 %v8393, %v8427
    %v8450 = vadd.f32 %v8394, %v8429
    %v8451 = vadd.f32 %v8395, %v8431
    %v8452 = vadd.f32 %v8396, %v8433
    %v8453 = vadd.f32 %v8397, %v8435
    %v8454 = vld [vmem:[%s462 + $0x1] sm:$0xff]
    %v8455 = vld [vmem:[%s462 + $0x9] sm:$0xff]
    %v8456 = vld [vmem:[%s462 + $0x11] sm:$0xff]
    %v8457 = vld [vmem:[%s462 + $0x19] sm:$0xff]
    %v8458 = vld [vmem:[%s462 + $0x21] sm:$0xff]
    %v8459 = vld [vmem:[%s462 + $0x29] sm:$0xff]
    %v8460 = vld [vmem:[%s462 + $0x31] sm:$0xff]
    %v8461 = vld [vmem:[%s462 + $0x39] sm:$0xff]
    %v8462 = vld [vmem:[%s462 + $0x41] sm:$0x1]
    %s8463 = sld [smem:[#allocation2 + $0xae]]
    %v8464 = vstv %s8463
    %v8465 = vmul.f32 %v8464, %v8454
    %v8466 = vmul.f32 %v8464, %v8455
    %v8467 = vmul.f32 %v8464, %v8456
    %v8468 = vmul.f32 %v8464, %v8457
    %v8469 = vmul.f32 %v8464, %v8458
    %v8470 = vmul.f32 %v8464, %v8459
    %v8471 = vmul.f32 %v8464, %v8460
    %v8472 = vmul.f32 %v8464, %v8461
    %v8473 = vmul.f32 %v8464, %v8462
    %v8474 = vadd.f32 %v8445, %v8465
    %v8475 = vadd.f32 %v8446, %v8466
    %v8476 = vadd.f32 %v8447, %v8467
    %v8477 = vadd.f32 %v8448, %v8468
    %v8478 = vadd.f32 %v8449, %v8469
    %v8479 = vadd.f32 %v8450, %v8470
    %v8480 = vadd.f32 %v8451, %v8471
    %v8481 = vadd.f32 %v8452, %v8472
    %v8482 = vadd.f32 %v8453, %v8473
    %s8483 = sld [smem:[#allocation2 + $0xaf]]
    %v8484 = vstv %s8483
    %v8485 = vmul.f32 %v8484, %v8454
    %v8486 = vmul.f32 %v8484, %v8455
    %v8487 = vmul.f32 %v8484, %v8456
    %v8488 = vmul.f32 %v8484, %v8457
    %v8489 = vmul.f32 %v8484, %v8458
    %v8490 = vmul.f32 %v8484, %v8459
    %v8491 = vmul.f32 %v8484, %v8460
    %v8492 = vmul.f32 %v8484, %v8461
    %v8493 = vmul.f32 %v8484, %v8462
    %8503 = vrot.lane.b32.xlu0 %v8485, 127
    %v8504 = vpop.permute.xlu0 %8503
    %8505 = vrot.lane.b32.xlu0 %v8486, 127
    %v8506 = vpop.permute.xlu0 %8505
    %8507 = vrot.lane.b32.xlu0 %v8487, 127
    %v8508 = vpop.permute.xlu0 %8507
    %8509 = vrot.lane.b32.xlu0 %v8488, 127
    %v8510 = vpop.permute.xlu0 %8509
    %8511 = vrot.lane.b32.xlu0 %v8489, 127
    %v8512 = vpop.permute.xlu0 %8511
    %8513 = vrot.lane.b32.xlu0 %v8490, 127
    %v8514 = vpop.permute.xlu0 %8513
    %8515 = vrot.lane.b32.xlu0 %v8491, 127
    %v8516 = vpop.permute.xlu0 %8515
    %8517 = vrot.lane.b32.xlu0 %v8492, 127
    %v8518 = vpop.permute.xlu0 %8517
    %8519 = vrot.lane.b32.xlu0 %v8493, 127
    %v8520 = vpop.permute.xlu0 %8519
    %v8530 = vadd.f32 %v8474, %v8504
    %v8531 = vadd.f32 %v8475, %v8506
    %v8532 = vadd.f32 %v8476, %v8508
    %v8533 = vadd.f32 %v8477, %v8510
    %v8534 = vadd.f32 %v8478, %v8512
    %v8535 = vadd.f32 %v8479, %v8514
    %v8536 = vadd.f32 %v8480, %v8516
    %v8537 = vadd.f32 %v8481, %v8518
    %v8538 = vadd.f32 %v8482, %v8520
    %s8539 = sld [smem:[#allocation2 + $0xb0]]
    %v8540 = vstv %s8539
    %v8541 = vmul.f32 %v8540, %v8454
    %v8542 = vmul.f32 %v8540, %v8455
    %v8543 = vmul.f32 %v8540, %v8456
    %v8544 = vmul.f32 %v8540, %v8457
    %v8545 = vmul.f32 %v8540, %v8458
    %v8546 = vmul.f32 %v8540, %v8459
    %v8547 = vmul.f32 %v8540, %v8460
    %v8548 = vmul.f32 %v8540, %v8461
    %v8549 = vmul.f32 %v8540, %v8462
    %8559 = vrot.lane.b32.xlu0 %v8541, 126
    %v8560 = vpop.permute.xlu0 %8559
    %8561 = vrot.lane.b32.xlu0 %v8542, 126
    %v8562 = vpop.permute.xlu0 %8561
    %8563 = vrot.lane.b32.xlu0 %v8543, 126
    %v8564 = vpop.permute.xlu0 %8563
    %8565 = vrot.lane.b32.xlu0 %v8544, 126
    %v8566 = vpop.permute.xlu0 %8565
    %8567 = vrot.lane.b32.xlu0 %v8545, 126
    %v8568 = vpop.permute.xlu0 %8567
    %8569 = vrot.lane.b32.xlu0 %v8546, 126
    %v8570 = vpop.permute.xlu0 %8569
    %8571 = vrot.lane.b32.xlu0 %v8547, 126
    %v8572 = vpop.permute.xlu0 %8571
    %8573 = vrot.lane.b32.xlu0 %v8548, 126
    %v8574 = vpop.permute.xlu0 %8573
    %8575 = vrot.lane.b32.xlu0 %v8549, 126
    %v8576 = vpop.permute.xlu0 %8575
    %v8586 = vadd.f32 %v8530, %v8560
    %v8587 = vadd.f32 %v8531, %v8562
    %v8588 = vadd.f32 %v8532, %v8564
    %v8589 = vadd.f32 %v8533, %v8566
    %v8590 = vadd.f32 %v8534, %v8568
    %v8591 = vadd.f32 %v8535, %v8570
    %v8592 = vadd.f32 %v8536, %v8572
    %v8593 = vadd.f32 %v8537, %v8574
    %v8594 = vadd.f32 %v8538, %v8576
    %v8595 = vld [vmem:[%s462 + $0x2] sm:$0xff]
    %v8596 = vld [vmem:[%s462 + $0xa] sm:$0xff]
    %v8597 = vld [vmem:[%s462 + $0x12] sm:$0xff]
    %v8598 = vld [vmem:[%s462 + $0x1a] sm:$0xff]
    %v8599 = vld [vmem:[%s462 + $0x22] sm:$0xff]
    %v8600 = vld [vmem:[%s462 + $0x2a] sm:$0xff]
    %v8601 = vld [vmem:[%s462 + $0x32] sm:$0xff]
    %v8602 = vld [vmem:[%s462 + $0x3a] sm:$0xff]
    %v8603 = vld [vmem:[%s462 + $0x42] sm:$0x1]
    %s8604 = sld [smem:[#allocation2 + $0xb1]]
    %v8605 = vstv %s8604
    %v8606 = vmul.f32 %v8605, %v8595
    %v8607 = vmul.f32 %v8605, %v8596
    %v8608 = vmul.f32 %v8605, %v8597
    %v8609 = vmul.f32 %v8605, %v8598
    %v8610 = vmul.f32 %v8605, %v8599
    %v8611 = vmul.f32 %v8605, %v8600
    %v8612 = vmul.f32 %v8605, %v8601
    %v8613 = vmul.f32 %v8605, %v8602
    %v8614 = vmul.f32 %v8605, %v8603
    %v8615 = vadd.f32 %v8586, %v8606
    %v8616 = vadd.f32 %v8587, %v8607
    %v8617 = vadd.f32 %v8588, %v8608
    %v8618 = vadd.f32 %v8589, %v8609
    %v8619 = vadd.f32 %v8590, %v8610
    %v8620 = vadd.f32 %v8591, %v8611
    %v8621 = vadd.f32 %v8592, %v8612
    %v8622 = vadd.f32 %v8593, %v8613
    %v8623 = vadd.f32 %v8594, %v8614
    %s8624 = sld [smem:[#allocation2 + $0xb2]]
    %v8625 = vstv %s8624
    %v8626 = vmul.f32 %v8625, %v8595
    %v8627 = vmul.f32 %v8625, %v8596
    %v8628 = vmul.f32 %v8625, %v8597
    %v8629 = vmul.f32 %v8625, %v8598
    %v8630 = vmul.f32 %v8625, %v8599
    %v8631 = vmul.f32 %v8625, %v8600
    %v8632 = vmul.f32 %v8625, %v8601
    %v8633 = vmul.f32 %v8625, %v8602
    %v8634 = vmul.f32 %v8625, %v8603
    %8644 = vrot.lane.b32.xlu0 %v8626, 127
    %v8645 = vpop.permute.xlu0 %8644
    %8646 = vrot.lane.b32.xlu0 %v8627, 127
    %v8647 = vpop.permute.xlu0 %8646
    %8648 = vrot.lane.b32.xlu0 %v8628, 127
    %v8649 = vpop.permute.xlu0 %8648
    %8650 = vrot.lane.b32.xlu0 %v8629, 127
    %v8651 = vpop.permute.xlu0 %8650
    %8652 = vrot.lane.b32.xlu0 %v8630, 127
    %v8653 = vpop.permute.xlu0 %8652
    %8654 = vrot.lane.b32.xlu0 %v8631, 127
    %v8655 = vpop.permute.xlu0 %8654
    %8656 = vrot.lane.b32.xlu0 %v8632, 127
    %v8657 = vpop.permute.xlu0 %8656
    %8658 = vrot.lane.b32.xlu0 %v8633, 127
    %v8659 = vpop.permute.xlu0 %8658
    %8660 = vrot.lane.b32.xlu0 %v8634, 127
    %v8661 = vpop.permute.xlu0 %8660
    %v8671 = vadd.f32 %v8615, %v8645
    %v8672 = vadd.f32 %v8616, %v8647
    %v8673 = vadd.f32 %v8617, %v8649
    %v8674 = vadd.f32 %v8618, %v8651
    %v8675 = vadd.f32 %v8619, %v8653
    %v8676 = vadd.f32 %v8620, %v8655
    %v8677 = vadd.f32 %v8621, %v8657
    %v8678 = vadd.f32 %v8622, %v8659
    %v8679 = vadd.f32 %v8623, %v8661
    %s8680 = sld [smem:[#allocation2 + $0xb3]]
    %v8681 = vstv %s8680
    %v8682 = vmul.f32 %v8681, %v8595
    %v8683 = vmul.f32 %v8681, %v8596
    %v8684 = vmul.f32 %v8681, %v8597
    %v8685 = vmul.f32 %v8681, %v8598
    %v8686 = vmul.f32 %v8681, %v8599
    %v8687 = vmul.f32 %v8681, %v8600
    %v8688 = vmul.f32 %v8681, %v8601
    %v8689 = vmul.f32 %v8681, %v8602
    %v8690 = vmul.f32 %v8681, %v8603
    %8700 = vrot.lane.b32.xlu0 %v8682, 126
    %v8701 = vpop.permute.xlu0 %8700
    %8702 = vrot.lane.b32.xlu0 %v8683, 126
    %v8703 = vpop.permute.xlu0 %8702
    %8704 = vrot.lane.b32.xlu0 %v8684, 126
    %v8705 = vpop.permute.xlu0 %8704
    %8706 = vrot.lane.b32.xlu0 %v8685, 126
    %v8707 = vpop.permute.xlu0 %8706
    %8708 = vrot.lane.b32.xlu0 %v8686, 126
    %v8709 = vpop.permute.xlu0 %8708
    %8710 = vrot.lane.b32.xlu0 %v8687, 126
    %v8711 = vpop.permute.xlu0 %8710
    %8712 = vrot.lane.b32.xlu0 %v8688, 126
    %v8713 = vpop.permute.xlu0 %8712
    %8714 = vrot.lane.b32.xlu0 %v8689, 126
    %v8715 = vpop.permute.xlu0 %8714
    %8716 = vrot.lane.b32.xlu0 %v8690, 126
    %v8717 = vpop.permute.xlu0 %8716
    %v8727 = vadd.f32 %v8671, %v8701
    %v8728 = vadd.f32 %v8672, %v8703
    %v8729 = vadd.f32 %v8673, %v8705
    %v8730 = vadd.f32 %v8674, %v8707
    %v8731 = vadd.f32 %v8675, %v8709
    %v8732 = vadd.f32 %v8676, %v8711
    %v8733 = vadd.f32 %v8677, %v8713
    %v8734 = vadd.f32 %v8678, %v8715
    %v8735 = vadd.f32 %v8679, %v8717
    %v8736 = vld [vmem:[%s886] sm:$0xff]
    %v8737 = vld [vmem:[%s886 + $0x8] sm:$0xff]
    %v8738 = vld [vmem:[%s886 + $0x10] sm:$0xff]
    %v8739 = vld [vmem:[%s886 + $0x18] sm:$0xff]
    %v8740 = vld [vmem:[%s886 + $0x20] sm:$0xff]
    %v8741 = vld [vmem:[%s886 + $0x28] sm:$0xff]
    %v8742 = vld [vmem:[%s886 + $0x30] sm:$0xff]
    %v8743 = vld [vmem:[%s886 + $0x38] sm:$0xff]
    %v8744 = vld [vmem:[%s886 + $0x40] sm:$0x1]
    %s8745 = sld [smem:[#allocation2 + $0xb4]]
    %v8746 = vstv %s8745
    %v8747 = vmul.f32 %v8746, %v8736
    %v8748 = vmul.f32 %v8746, %v8737
    %v8749 = vmul.f32 %v8746, %v8738
    %v8750 = vmul.f32 %v8746, %v8739
    %v8751 = vmul.f32 %v8746, %v8740
    %v8752 = vmul.f32 %v8746, %v8741
    %v8753 = vmul.f32 %v8746, %v8742
    %v8754 = vmul.f32 %v8746, %v8743
    %v8755 = vmul.f32 %v8746, %v8744
    %v8756 = vadd.f32 %v8727, %v8747
    %v8757 = vadd.f32 %v8728, %v8748
    %v8758 = vadd.f32 %v8729, %v8749
    %v8759 = vadd.f32 %v8730, %v8750
    %v8760 = vadd.f32 %v8731, %v8751
    %v8761 = vadd.f32 %v8732, %v8752
    %v8762 = vadd.f32 %v8733, %v8753
    %v8763 = vadd.f32 %v8734, %v8754
    %v8764 = vadd.f32 %v8735, %v8755
    %s8765 = sld [smem:[#allocation2 + $0xb5]]
    %v8766 = vstv %s8765
    %v8767 = vmul.f32 %v8766, %v8736
    %v8768 = vmul.f32 %v8766, %v8737
    %v8769 = vmul.f32 %v8766, %v8738
    %v8770 = vmul.f32 %v8766, %v8739
    %v8771 = vmul.f32 %v8766, %v8740
    %v8772 = vmul.f32 %v8766, %v8741
    %v8773 = vmul.f32 %v8766, %v8742
    %v8774 = vmul.f32 %v8766, %v8743
    %v8775 = vmul.f32 %v8766, %v8744
    %8785 = vrot.lane.b32.xlu0 %v8767, 127
    %v8786 = vpop.permute.xlu0 %8785
    %8787 = vrot.lane.b32.xlu0 %v8768, 127
    %v8788 = vpop.permute.xlu0 %8787
    %8789 = vrot.lane.b32.xlu0 %v8769, 127
    %v8790 = vpop.permute.xlu0 %8789
    %8791 = vrot.lane.b32.xlu0 %v8770, 127
    %v8792 = vpop.permute.xlu0 %8791
    %8793 = vrot.lane.b32.xlu0 %v8771, 127
    %v8794 = vpop.permute.xlu0 %8793
    %8795 = vrot.lane.b32.xlu0 %v8772, 127
    %v8796 = vpop.permute.xlu0 %8795
    %8797 = vrot.lane.b32.xlu0 %v8773, 127
    %v8798 = vpop.permute.xlu0 %8797
    %8799 = vrot.lane.b32.xlu0 %v8774, 127
    %v8800 = vpop.permute.xlu0 %8799
    %8801 = vrot.lane.b32.xlu0 %v8775, 127
    %v8802 = vpop.permute.xlu0 %8801
    %v8812 = vadd.f32 %v8756, %v8786
    %v8813 = vadd.f32 %v8757, %v8788
    %v8814 = vadd.f32 %v8758, %v8790
    %v8815 = vadd.f32 %v8759, %v8792
    %v8816 = vadd.f32 %v8760, %v8794
    %v8817 = vadd.f32 %v8761, %v8796
    %v8818 = vadd.f32 %v8762, %v8798
    %v8819 = vadd.f32 %v8763, %v8800
    %v8820 = vadd.f32 %v8764, %v8802
    %s8821 = sld [smem:[#allocation2 + $0xb6]]
    %v8822 = vstv %s8821
    %v8823 = vmul.f32 %v8822, %v8736
    %v8824 = vmul.f32 %v8822, %v8737
    %v8825 = vmul.f32 %v8822, %v8738
    %v8826 = vmul.f32 %v8822, %v8739
    %v8827 = vmul.f32 %v8822, %v8740
    %v8828 = vmul.f32 %v8822, %v8741
    %v8829 = vmul.f32 %v8822, %v8742
    %v8830 = vmul.f32 %v8822, %v8743
    %v8831 = vmul.f32 %v8822, %v8744
    %8841 = vrot.lane.b32.xlu0 %v8823, 126
    %v8842 = vpop.permute.xlu0 %8841
    %8843 = vrot.lane.b32.xlu0 %v8824, 126
    %v8844 = vpop.permute.xlu0 %8843
    %8845 = vrot.lane.b32.xlu0 %v8825, 126
    %v8846 = vpop.permute.xlu0 %8845
    %8847 = vrot.lane.b32.xlu0 %v8826, 126
    %v8848 = vpop.permute.xlu0 %8847
    %8849 = vrot.lane.b32.xlu0 %v8827, 126
    %v8850 = vpop.permute.xlu0 %8849
    %8851 = vrot.lane.b32.xlu0 %v8828, 126
    %v8852 = vpop.permute.xlu0 %8851
    %8853 = vrot.lane.b32.xlu0 %v8829, 126
    %v8854 = vpop.permute.xlu0 %8853
    %8855 = vrot.lane.b32.xlu0 %v8830, 126
    %v8856 = vpop.permute.xlu0 %8855
    %8857 = vrot.lane.b32.xlu0 %v8831, 126
    %v8858 = vpop.permute.xlu0 %8857
    %v8868 = vadd.f32 %v8812, %v8842
    %v8869 = vadd.f32 %v8813, %v8844
    %v8870 = vadd.f32 %v8814, %v8846
    %v8871 = vadd.f32 %v8815, %v8848
    %v8872 = vadd.f32 %v8816, %v8850
    %v8873 = vadd.f32 %v8817, %v8852
    %v8874 = vadd.f32 %v8818, %v8854
    %v8875 = vadd.f32 %v8819, %v8856
    %v8876 = vadd.f32 %v8820, %v8858
    %v8877 = vld [vmem:[%s886 + $0x1] sm:$0xff]
    %v8878 = vld [vmem:[%s886 + $0x9] sm:$0xff]
    %v8879 = vld [vmem:[%s886 + $0x11] sm:$0xff]
    %v8880 = vld [vmem:[%s886 + $0x19] sm:$0xff]
    %v8881 = vld [vmem:[%s886 + $0x21] sm:$0xff]
    %v8882 = vld [vmem:[%s886 + $0x29] sm:$0xff]
    %v8883 = vld [vmem:[%s886 + $0x31] sm:$0xff]
    %v8884 = vld [vmem:[%s886 + $0x39] sm:$0xff]
    %v8885 = vld [vmem:[%s886 + $0x41] sm:$0x1]
    %s8886 = sld [smem:[#allocation2 + $0xb7]]
    %v8887 = vstv %s8886
    %v8888 = vmul.f32 %v8887, %v8877
    %v8889 = vmul.f32 %v8887, %v8878
    %v8890 = vmul.f32 %v8887, %v8879
    %v8891 = vmul.f32 %v8887, %v8880
    %v8892 = vmul.f32 %v8887, %v8881
    %v8893 = vmul.f32 %v8887, %v8882
    %v8894 = vmul.f32 %v8887, %v8883
    %v8895 = vmul.f32 %v8887, %v8884
    %v8896 = vmul.f32 %v8887, %v8885
    %v8897 = vadd.f32 %v8868, %v8888
    %v8898 = vadd.f32 %v8869, %v8889
    %v8899 = vadd.f32 %v8870, %v8890
    %v8900 = vadd.f32 %v8871, %v8891
    %v8901 = vadd.f32 %v8872, %v8892
    %v8902 = vadd.f32 %v8873, %v8893
    %v8903 = vadd.f32 %v8874, %v8894
    %v8904 = vadd.f32 %v8875, %v8895
    %v8905 = vadd.f32 %v8876, %v8896
    %s8906 = sld [smem:[#allocation2 + $0xb8]]
    %v8907 = vstv %s8906
    %v8908 = vmul.f32 %v8907, %v8877
    %v8909 = vmul.f32 %v8907, %v8878
    %v8910 = vmul.f32 %v8907, %v8879
    %v8911 = vmul.f32 %v8907, %v8880
    %v8912 = vmul.f32 %v8907, %v8881
    %v8913 = vmul.f32 %v8907, %v8882
    %v8914 = vmul.f32 %v8907, %v8883
    %v8915 = vmul.f32 %v8907, %v8884
    %v8916 = vmul.f32 %v8907, %v8885
    %8926 = vrot.lane.b32.xlu0 %v8908, 127
    %v8927 = vpop.permute.xlu0 %8926
    %8928 = vrot.lane.b32.xlu0 %v8909, 127
    %v8929 = vpop.permute.xlu0 %8928
    %8930 = vrot.lane.b32.xlu0 %v8910, 127
    %v8931 = vpop.permute.xlu0 %8930
    %8932 = vrot.lane.b32.xlu0 %v8911, 127
    %v8933 = vpop.permute.xlu0 %8932
    %8934 = vrot.lane.b32.xlu0 %v8912, 127
    %v8935 = vpop.permute.xlu0 %8934
    %8936 = vrot.lane.b32.xlu0 %v8913, 127
    %v8937 = vpop.permute.xlu0 %8936
    %8938 = vrot.lane.b32.xlu0 %v8914, 127
    %v8939 = vpop.permute.xlu0 %8938
    %8940 = vrot.lane.b32.xlu0 %v8915, 127
    %v8941 = vpop.permute.xlu0 %8940
    %8942 = vrot.lane.b32.xlu0 %v8916, 127
    %v8943 = vpop.permute.xlu0 %8942
    %v8953 = vadd.f32 %v8897, %v8927
    %v8954 = vadd.f32 %v8898, %v8929
    %v8955 = vadd.f32 %v8899, %v8931
    %v8956 = vadd.f32 %v8900, %v8933
    %v8957 = vadd.f32 %v8901, %v8935
    %v8958 = vadd.f32 %v8902, %v8937
    %v8959 = vadd.f32 %v8903, %v8939
    %v8960 = vadd.f32 %v8904, %v8941
    %v8961 = vadd.f32 %v8905, %v8943
    %s8962 = sld [smem:[#allocation2 + $0xb9]]
    %v8963 = vstv %s8962
    %v8964 = vmul.f32 %v8963, %v8877
    %v8965 = vmul.f32 %v8963, %v8878
    %v8966 = vmul.f32 %v8963, %v8879
    %v8967 = vmul.f32 %v8963, %v8880
    %v8968 = vmul.f32 %v8963, %v8881
    %v8969 = vmul.f32 %v8963, %v8882
    %v8970 = vmul.f32 %v8963, %v8883
    %v8971 = vmul.f32 %v8963, %v8884
    %v8972 = vmul.f32 %v8963, %v8885
    %8982 = vrot.lane.b32.xlu0 %v8964, 126
    %v8983 = vpop.permute.xlu0 %8982
    %8984 = vrot.lane.b32.xlu0 %v8965, 126
    %v8985 = vpop.permute.xlu0 %8984
    %8986 = vrot.lane.b32.xlu0 %v8966, 126
    %v8987 = vpop.permute.xlu0 %8986
    %8988 = vrot.lane.b32.xlu0 %v8967, 126
    %v8989 = vpop.permute.xlu0 %8988
    %8990 = vrot.lane.b32.xlu0 %v8968, 126
    %v8991 = vpop.permute.xlu0 %8990
    %8992 = vrot.lane.b32.xlu0 %v8969, 126
    %v8993 = vpop.permute.xlu0 %8992
    %8994 = vrot.lane.b32.xlu0 %v8970, 126
    %v8995 = vpop.permute.xlu0 %8994
    %8996 = vrot.lane.b32.xlu0 %v8971, 126
    %v8997 = vpop.permute.xlu0 %8996
    %8998 = vrot.lane.b32.xlu0 %v8972, 126
    %v8999 = vpop.permute.xlu0 %8998
    %v9009 = vadd.f32 %v8953, %v8983
    %v9010 = vadd.f32 %v8954, %v8985
    %v9011 = vadd.f32 %v8955, %v8987
    %v9012 = vadd.f32 %v8956, %v8989
    %v9013 = vadd.f32 %v8957, %v8991
    %v9014 = vadd.f32 %v8958, %v8993
    %v9015 = vadd.f32 %v8959, %v8995
    %v9016 = vadd.f32 %v8960, %v8997
    %v9017 = vadd.f32 %v8961, %v8999
    %v9018 = vld [vmem:[%s886 + $0x2] sm:$0xff]
    %v9019 = vld [vmem:[%s886 + $0xa] sm:$0xff]
    %v9020 = vld [vmem:[%s886 + $0x12] sm:$0xff]
    %v9021 = vld [vmem:[%s886 + $0x1a] sm:$0xff]
    %v9022 = vld [vmem:[%s886 + $0x22] sm:$0xff]
    %v9023 = vld [vmem:[%s886 + $0x2a] sm:$0xff]
    %v9024 = vld [vmem:[%s886 + $0x32] sm:$0xff]
    %v9025 = vld [vmem:[%s886 + $0x3a] sm:$0xff]
    %v9026 = vld [vmem:[%s886 + $0x42] sm:$0x1]
    %s9027 = sld [smem:[#allocation2 + $0xba]]
    %v9028 = vstv %s9027
    %v9029 = vmul.f32 %v9028, %v9018
    %v9030 = vmul.f32 %v9028, %v9019
    %v9031 = vmul.f32 %v9028, %v9020
    %v9032 = vmul.f32 %v9028, %v9021
    %v9033 = vmul.f32 %v9028, %v9022
    %v9034 = vmul.f32 %v9028, %v9023
    %v9035 = vmul.f32 %v9028, %v9024
    %v9036 = vmul.f32 %v9028, %v9025
    %v9037 = vmul.f32 %v9028, %v9026
    %v9038 = vadd.f32 %v9009, %v9029
    %v9039 = vadd.f32 %v9010, %v9030
    %v9040 = vadd.f32 %v9011, %v9031
    %v9041 = vadd.f32 %v9012, %v9032
    %v9042 = vadd.f32 %v9013, %v9033
    %v9043 = vadd.f32 %v9014, %v9034
    %v9044 = vadd.f32 %v9015, %v9035
    %v9045 = vadd.f32 %v9016, %v9036
    %v9046 = vadd.f32 %v9017, %v9037
    %s9047 = sld [smem:[#allocation2 + $0xbb]]
    %v9048 = vstv %s9047
    %v9049 = vmul.f32 %v9048, %v9018
    %v9050 = vmul.f32 %v9048, %v9019
    %v9051 = vmul.f32 %v9048, %v9020
    %v9052 = vmul.f32 %v9048, %v9021
    %v9053 = vmul.f32 %v9048, %v9022
    %v9054 = vmul.f32 %v9048, %v9023
    %v9055 = vmul.f32 %v9048, %v9024
    %v9056 = vmul.f32 %v9048, %v9025
    %v9057 = vmul.f32 %v9048, %v9026
    %9067 = vrot.lane.b32.xlu0 %v9049, 127
    %v9068 = vpop.permute.xlu0 %9067
    %9069 = vrot.lane.b32.xlu0 %v9050, 127
    %v9070 = vpop.permute.xlu0 %9069
    %9071 = vrot.lane.b32.xlu0 %v9051, 127
    %v9072 = vpop.permute.xlu0 %9071
    %9073 = vrot.lane.b32.xlu0 %v9052, 127
    %v9074 = vpop.permute.xlu0 %9073
    %9075 = vrot.lane.b32.xlu0 %v9053, 127
    %v9076 = vpop.permute.xlu0 %9075
    %9077 = vrot.lane.b32.xlu0 %v9054, 127
    %v9078 = vpop.permute.xlu0 %9077
    %9079 = vrot.lane.b32.xlu0 %v9055, 127
    %v9080 = vpop.permute.xlu0 %9079
    %9081 = vrot.lane.b32.xlu0 %v9056, 127
    %v9082 = vpop.permute.xlu0 %9081
    %9083 = vrot.lane.b32.xlu0 %v9057, 127
    %v9084 = vpop.permute.xlu0 %9083
    %v9094 = vadd.f32 %v9038, %v9068
    %v9095 = vadd.f32 %v9039, %v9070
    %v9096 = vadd.f32 %v9040, %v9072
    %v9097 = vadd.f32 %v9041, %v9074
    %v9098 = vadd.f32 %v9042, %v9076
    %v9099 = vadd.f32 %v9043, %v9078
    %v9100 = vadd.f32 %v9044, %v9080
    %v9101 = vadd.f32 %v9045, %v9082
    %v9102 = vadd.f32 %v9046, %v9084
    %s9103 = sld [smem:[#allocation2 + $0xbc]]
    %v9104 = vstv %s9103
    %v9105 = vmul.f32 %v9104, %v9018
    %v9106 = vmul.f32 %v9104, %v9019
    %v9107 = vmul.f32 %v9104, %v9020
    %v9108 = vmul.f32 %v9104, %v9021
    %v9109 = vmul.f32 %v9104, %v9022
    %v9110 = vmul.f32 %v9104, %v9023
    %v9111 = vmul.f32 %v9104, %v9024
    %v9112 = vmul.f32 %v9104, %v9025
    %v9113 = vmul.f32 %v9104, %v9026
    %9123 = vrot.lane.b32.xlu0 %v9105, 126
    %v9124 = vpop.permute.xlu0 %9123
    %9125 = vrot.lane.b32.xlu0 %v9106, 126
    %v9126 = vpop.permute.xlu0 %9125
    %9127 = vrot.lane.b32.xlu0 %v9107, 126
    %v9128 = vpop.permute.xlu0 %9127
    %9129 = vrot.lane.b32.xlu0 %v9108, 126
    %v9130 = vpop.permute.xlu0 %9129
    %9131 = vrot.lane.b32.xlu0 %v9109, 126
    %v9132 = vpop.permute.xlu0 %9131
    %9133 = vrot.lane.b32.xlu0 %v9110, 126
    %v9134 = vpop.permute.xlu0 %9133
    %9135 = vrot.lane.b32.xlu0 %v9111, 126
    %v9136 = vpop.permute.xlu0 %9135
    %9137 = vrot.lane.b32.xlu0 %v9112, 126
    %v9138 = vpop.permute.xlu0 %9137
    %9139 = vrot.lane.b32.xlu0 %v9113, 126
    %v9140 = vpop.permute.xlu0 %9139
    %v9150 = vadd.f32 %v9094, %v9124
    %v9151 = vadd.f32 %v9095, %v9126
    %v9152 = vadd.f32 %v9096, %v9128
    %v9153 = vadd.f32 %v9097, %v9130
    %v9154 = vadd.f32 %v9098, %v9132
    %v9155 = vadd.f32 %v9099, %v9134
    %v9156 = vadd.f32 %v9100, %v9136
    %v9157 = vadd.f32 %v9101, %v9138
    %v9158 = vadd.f32 %v9102, %v9140
    %s9159 = sld [smem:[#allocation4 + $0x6]]
    %v9160 = vstv %s9159
    %v9161 = vadd.f32 %v9150, %v9160
    %v9162 = vadd.f32 %v9151, %v9160
    %v9163 = vadd.f32 %v9152, %v9160
    %v9164 = vadd.f32 %v9153, %v9160
    %v9165 = vadd.f32 %v9154, %v9160
    %v9166 = vadd.f32 %v9155, %v9160
    %v9167 = vadd.f32 %v9156, %v9160
    %v9168 = vadd.f32 %v9157, %v9160
    %v9169 = vadd.f32 %v9158, %v9160
    %v9170 = vmul.f32 %v9161, 2.0
    %v9171 = vmul.f32 %v9162, 2.0
    %v9172 = vmul.f32 %v9163, 2.0
    %v9173 = vmul.f32 %v9164, 2.0
    %v9174 = vmul.f32 %v9165, 2.0
    %v9175 = vmul.f32 %v9166, 2.0
    %v9176 = vmul.f32 %v9167, 2.0
    %v9177 = vmul.f32 %v9168, 2.0
    %v9178 = vmul.f32 %v9169, 2.0
    %v9179 = vmax.f32 %v9170, 0.0
    %v9180 = vmax.f32 %v9171, 0.0
    %v9181 = vmax.f32 %v9172, 0.0
    %v9182 = vmax.f32 %v9173, 0.0
    %v9183 = vmax.f32 %v9174, 0.0
    %v9184 = vmax.f32 %v9175, 0.0
    %v9185 = vmax.f32 %v9176, 0.0
    %v9186 = vmax.f32 %v9177, 0.0
    %v9187 = vmax.f32 %v9178, 0.0
    %s9188 = scalar_lea.vmem %s3, 432
    %9189 = vst.msk [vmem:[%s9188] sm:$0xff] %vm1339, %v9179
    %9190 = vst.msk [vmem:[%s9188 + $0x8] sm:$0xff] %vm1339, %v9180
    %9191 = vst.msk [vmem:[%s9188 + $0x10] sm:$0xff] %vm1339, %v9181
    %9192 = vst.msk [vmem:[%s9188 + $0x18] sm:$0xff] %vm1339, %v9182
    %9193 = vst.msk [vmem:[%s9188 + $0x20] sm:$0xff] %vm1339, %v9183
    %9194 = vst.msk [vmem:[%s9188 + $0x28] sm:$0xff] %vm1339, %v9184
    %9195 = vst.msk [vmem:[%s9188 + $0x30] sm:$0xff] %vm1339, %v9185
    %9196 = vst.msk [vmem:[%s9188 + $0x38] sm:$0xff] %vm1339, %v9186
    %9197 = vst.msk [vmem:[%s9188 + $0x40] sm:$0x1] %vm1348, %v9187
    %v9198 = vld [vmem:[%s2] sm:$0xff]
    %v9199 = vld [vmem:[%s2 + $0x8] sm:$0xff]
    %v9200 = vld [vmem:[%s2 + $0x10] sm:$0xff]
    %v9201 = vld [vmem:[%s2 + $0x18] sm:$0xff]
    %v9202 = vld [vmem:[%s2 + $0x20] sm:$0xff]
    %v9203 = vld [vmem:[%s2 + $0x28] sm:$0xff]
    %v9204 = vld [vmem:[%s2 + $0x30] sm:$0xff]
    %v9205 = vld [vmem:[%s2 + $0x38] sm:$0xff]
    %v9206 = vld [vmem:[%s2 + $0x40] sm:$0x1]
    %s9207 = sld [smem:[#allocation2 + $0xbd]]
    %v9208 = vstv %s9207
    %v9209 = vmul.f32 %v9208, %v9198
    %v9210 = vmul.f32 %v9208, %v9199
    %v9211 = vmul.f32 %v9208, %v9200
    %v9212 = vmul.f32 %v9208, %v9201
    %v9213 = vmul.f32 %v9208, %v9202
    %v9214 = vmul.f32 %v9208, %v9203
    %v9215 = vmul.f32 %v9208, %v9204
    %v9216 = vmul.f32 %v9208, %v9205
    %v9217 = vmul.f32 %v9208, %v9206
    %v9218 = vadd.f32 %v9209, 0.0
    %v9219 = vadd.f32 %v9210, 0.0
    %v9220 = vadd.f32 %v9211, 0.0
    %v9221 = vadd.f32 %v9212, 0.0
    %v9222 = vadd.f32 %v9213, 0.0
    %v9223 = vadd.f32 %v9214, 0.0
    %v9224 = vadd.f32 %v9215, 0.0
    %v9225 = vadd.f32 %v9216, 0.0
    %v9226 = vadd.f32 %v9217, 0.0
    %s9227 = sld [smem:[#allocation2 + $0xbe]]
    %v9228 = vstv %s9227
    %v9229 = vmul.f32 %v9228, %v9198
    %v9230 = vmul.f32 %v9228, %v9199
    %v9231 = vmul.f32 %v9228, %v9200
    %v9232 = vmul.f32 %v9228, %v9201
    %v9233 = vmul.f32 %v9228, %v9202
    %v9234 = vmul.f32 %v9228, %v9203
    %v9235 = vmul.f32 %v9228, %v9204
    %v9236 = vmul.f32 %v9228, %v9205
    %v9237 = vmul.f32 %v9228, %v9206
    %9247 = vrot.lane.b32.xlu0 %v9229, 127
    %v9248 = vpop.permute.xlu0 %9247
    %9249 = vrot.lane.b32.xlu0 %v9230, 127
    %v9250 = vpop.permute.xlu0 %9249
    %9251 = vrot.lane.b32.xlu0 %v9231, 127
    %v9252 = vpop.permute.xlu0 %9251
    %9253 = vrot.lane.b32.xlu0 %v9232, 127
    %v9254 = vpop.permute.xlu0 %9253
    %9255 = vrot.lane.b32.xlu0 %v9233, 127
    %v9256 = vpop.permute.xlu0 %9255
    %9257 = vrot.lane.b32.xlu0 %v9234, 127
    %v9258 = vpop.permute.xlu0 %9257
    %9259 = vrot.lane.b32.xlu0 %v9235, 127
    %v9260 = vpop.permute.xlu0 %9259
    %9261 = vrot.lane.b32.xlu0 %v9236, 127
    %v9262 = vpop.permute.xlu0 %9261
    %9263 = vrot.lane.b32.xlu0 %v9237, 127
    %v9264 = vpop.permute.xlu0 %9263
    %v9274 = vadd.f32 %v9218, %v9248
    %v9275 = vadd.f32 %v9219, %v9250
    %v9276 = vadd.f32 %v9220, %v9252
    %v9277 = vadd.f32 %v9221, %v9254
    %v9278 = vadd.f32 %v9222, %v9256
    %v9279 = vadd.f32 %v9223, %v9258
    %v9280 = vadd.f32 %v9224, %v9260
    %v9281 = vadd.f32 %v9225, %v9262
    %v9282 = vadd.f32 %v9226, %v9264
    %s9283 = sld [smem:[#allocation2 + $0xbf]]
    %v9284 = vstv %s9283
    %v9285 = vmul.f32 %v9284, %v9198
    %v9286 = vmul.f32 %v9284, %v9199
    %v9287 = vmul.f32 %v9284, %v9200
    %v9288 = vmul.f32 %v9284, %v9201
    %v9289 = vmul.f32 %v9284, %v9202
    %v9290 = vmul.f32 %v9284, %v9203
    %v9291 = vmul.f32 %v9284, %v9204
    %v9292 = vmul.f32 %v9284, %v9205
    %v9293 = vmul.f32 %v9284, %v9206
    %9303 = vrot.lane.b32.xlu0 %v9285, 126
    %v9304 = vpop.permute.xlu0 %9303
    %9305 = vrot.lane.b32.xlu0 %v9286, 126
    %v9306 = vpop.permute.xlu0 %9305
    %9307 = vrot.lane.b32.xlu0 %v9287, 126
    %v9308 = vpop.permute.xlu0 %9307
    %9309 = vrot.lane.b32.xlu0 %v9288, 126
    %v9310 = vpop.permute.xlu0 %9309
    %9311 = vrot.lane.b32.xlu0 %v9289, 126
    %v9312 = vpop.permute.xlu0 %9311
    %9313 = vrot.lane.b32.xlu0 %v9290, 126
    %v9314 = vpop.permute.xlu0 %9313
    %9315 = vrot.lane.b32.xlu0 %v9291, 126
    %v9316 = vpop.permute.xlu0 %9315
    %9317 = vrot.lane.b32.xlu0 %v9292, 126
    %v9318 = vpop.permute.xlu0 %9317
    %9319 = vrot.lane.b32.xlu0 %v9293, 126
    %v9320 = vpop.permute.xlu0 %9319
    %v9330 = vadd.f32 %v9274, %v9304
    %v9331 = vadd.f32 %v9275, %v9306
    %v9332 = vadd.f32 %v9276, %v9308
    %v9333 = vadd.f32 %v9277, %v9310
    %v9334 = vadd.f32 %v9278, %v9312
    %v9335 = vadd.f32 %v9279, %v9314
    %v9336 = vadd.f32 %v9280, %v9316
    %v9337 = vadd.f32 %v9281, %v9318
    %v9338 = vadd.f32 %v9282, %v9320
    %v9339 = vld [vmem:[%s2 + $0x1] sm:$0xff]
    %v9340 = vld [vmem:[%s2 + $0x9] sm:$0xff]
    %v9341 = vld [vmem:[%s2 + $0x11] sm:$0xff]
    %v9342 = vld [vmem:[%s2 + $0x19] sm:$0xff]
    %v9343 = vld [vmem:[%s2 + $0x21] sm:$0xff]
    %v9344 = vld [vmem:[%s2 + $0x29] sm:$0xff]
    %v9345 = vld [vmem:[%s2 + $0x31] sm:$0xff]
    %v9346 = vld [vmem:[%s2 + $0x39] sm:$0xff]
    %v9347 = vld [vmem:[%s2 + $0x41] sm:$0x1]
    %s9348 = sld [smem:[#allocation2 + $0xc0]]
    %v9349 = vstv %s9348
    %v9350 = vmul.f32 %v9349, %v9339
    %v9351 = vmul.f32 %v9349, %v9340
    %v9352 = vmul.f32 %v9349, %v9341
    %v9353 = vmul.f32 %v9349, %v9342
    %v9354 = vmul.f32 %v9349, %v9343
    %v9355 = vmul.f32 %v9349, %v9344
    %v9356 = vmul.f32 %v9349, %v9345
    %v9357 = vmul.f32 %v9349, %v9346
    %v9358 = vmul.f32 %v9349, %v9347
    %v9359 = vadd.f32 %v9330, %v9350
    %v9360 = vadd.f32 %v9331, %v9351
    %v9361 = vadd.f32 %v9332, %v9352
    %v9362 = vadd.f32 %v9333, %v9353
    %v9363 = vadd.f32 %v9334, %v9354
    %v9364 = vadd.f32 %v9335, %v9355
    %v9365 = vadd.f32 %v9336, %v9356
    %v9366 = vadd.f32 %v9337, %v9357
    %v9367 = vadd.f32 %v9338, %v9358
    %s9368 = sld [smem:[#allocation2 + $0xc1]]
    %v9369 = vstv %s9368
    %v9370 = vmul.f32 %v9369, %v9339
    %v9371 = vmul.f32 %v9369, %v9340
    %v9372 = vmul.f32 %v9369, %v9341
    %v9373 = vmul.f32 %v9369, %v9342
    %v9374 = vmul.f32 %v9369, %v9343
    %v9375 = vmul.f32 %v9369, %v9344
    %v9376 = vmul.f32 %v9369, %v9345
    %v9377 = vmul.f32 %v9369, %v9346
    %v9378 = vmul.f32 %v9369, %v9347
    %9388 = vrot.lane.b32.xlu0 %v9370, 127
    %v9389 = vpop.permute.xlu0 %9388
    %9390 = vrot.lane.b32.xlu0 %v9371, 127
    %v9391 = vpop.permute.xlu0 %9390
    %9392 = vrot.lane.b32.xlu0 %v9372, 127
    %v9393 = vpop.permute.xlu0 %9392
    %9394 = vrot.lane.b32.xlu0 %v9373, 127
    %v9395 = vpop.permute.xlu0 %9394
    %9396 = vrot.lane.b32.xlu0 %v9374, 127
    %v9397 = vpop.permute.xlu0 %9396
    %9398 = vrot.lane.b32.xlu0 %v9375, 127
    %v9399 = vpop.permute.xlu0 %9398
    %9400 = vrot.lane.b32.xlu0 %v9376, 127
    %v9401 = vpop.permute.xlu0 %9400
    %9402 = vrot.lane.b32.xlu0 %v9377, 127
    %v9403 = vpop.permute.xlu0 %9402
    %9404 = vrot.lane.b32.xlu0 %v9378, 127
    %v9405 = vpop.permute.xlu0 %9404
    %v9415 = vadd.f32 %v9359, %v9389
    %v9416 = vadd.f32 %v9360, %v9391
    %v9417 = vadd.f32 %v9361, %v9393
    %v9418 = vadd.f32 %v9362, %v9395
    %v9419 = vadd.f32 %v9363, %v9397
    %v9420 = vadd.f32 %v9364, %v9399
    %v9421 = vadd.f32 %v9365, %v9401
    %v9422 = vadd.f32 %v9366, %v9403
    %v9423 = vadd.f32 %v9367, %v9405
    %s9424 = sld [smem:[#allocation2 + $0xc2]]
    %v9425 = vstv %s9424
    %v9426 = vmul.f32 %v9425, %v9339
    %v9427 = vmul.f32 %v9425, %v9340
    %v9428 = vmul.f32 %v9425, %v9341
    %v9429 = vmul.f32 %v9425, %v9342
    %v9430 = vmul.f32 %v9425, %v9343
    %v9431 = vmul.f32 %v9425, %v9344
    %v9432 = vmul.f32 %v9425, %v9345
    %v9433 = vmul.f32 %v9425, %v9346
    %v9434 = vmul.f32 %v9425, %v9347
    %9444 = vrot.lane.b32.xlu0 %v9426, 126
    %v9445 = vpop.permute.xlu0 %9444
    %9446 = vrot.lane.b32.xlu0 %v9427, 126
    %v9447 = vpop.permute.xlu0 %9446
    %9448 = vrot.lane.b32.xlu0 %v9428, 126
    %v9449 = vpop.permute.xlu0 %9448
    %9450 = vrot.lane.b32.xlu0 %v9429, 126
    %v9451 = vpop.permute.xlu0 %9450
    %9452 = vrot.lane.b32.xlu0 %v9430, 126
    %v9453 = vpop.permute.xlu0 %9452
    %9454 = vrot.lane.b32.xlu0 %v9431, 126
    %v9455 = vpop.permute.xlu0 %9454
    %9456 = vrot.lane.b32.xlu0 %v9432, 126
    %v9457 = vpop.permute.xlu0 %9456
    %9458 = vrot.lane.b32.xlu0 %v9433, 126
    %v9459 = vpop.permute.xlu0 %9458
    %9460 = vrot.lane.b32.xlu0 %v9434, 126
    %v9461 = vpop.permute.xlu0 %9460
    %v9471 = vadd.f32 %v9415, %v9445
    %v9472 = vadd.f32 %v9416, %v9447
    %v9473 = vadd.f32 %v9417, %v9449
    %v9474 = vadd.f32 %v9418, %v9451
    %v9475 = vadd.f32 %v9419, %v9453
    %v9476 = vadd.f32 %v9420, %v9455
    %v9477 = vadd.f32 %v9421, %v9457
    %v9478 = vadd.f32 %v9422, %v9459
    %v9479 = vadd.f32 %v9423, %v9461
    %v9480 = vld [vmem:[%s2 + $0x2] sm:$0xff]
    %v9481 = vld [vmem:[%s2 + $0xa] sm:$0xff]
    %v9482 = vld [vmem:[%s2 + $0x12] sm:$0xff]
    %v9483 = vld [vmem:[%s2 + $0x1a] sm:$0xff]
    %v9484 = vld [vmem:[%s2 + $0x22] sm:$0xff]
    %v9485 = vld [vmem:[%s2 + $0x2a] sm:$0xff]
    %v9486 = vld [vmem:[%s2 + $0x32] sm:$0xff]
    %v9487 = vld [vmem:[%s2 + $0x3a] sm:$0xff]
    %v9488 = vld [vmem:[%s2 + $0x42] sm:$0x1]
    %s9489 = sld [smem:[#allocation2 + $0xc3]]
    %v9490 = vstv %s9489
    %v9491 = vmul.f32 %v9490, %v9480
    %v9492 = vmul.f32 %v9490, %v9481
    %v9493 = vmul.f32 %v9490, %v9482
    %v9494 = vmul.f32 %v9490, %v9483
    %v9495 = vmul.f32 %v9490, %v9484
    %v9496 = vmul.f32 %v9490, %v9485
    %v9497 = vmul.f32 %v9490, %v9486
    %v9498 = vmul.f32 %v9490, %v9487
    %v9499 = vmul.f32 %v9490, %v9488
    %v9500 = vadd.f32 %v9471, %v9491
    %v9501 = vadd.f32 %v9472, %v9492
    %v9502 = vadd.f32 %v9473, %v9493
    %v9503 = vadd.f32 %v9474, %v9494
    %v9504 = vadd.f32 %v9475, %v9495
    %v9505 = vadd.f32 %v9476, %v9496
    %v9506 = vadd.f32 %v9477, %v9497
    %v9507 = vadd.f32 %v9478, %v9498
    %v9508 = vadd.f32 %v9479, %v9499
    %s9509 = sld [smem:[#allocation2 + $0xc4]]
    %v9510 = vstv %s9509
    %v9511 = vmul.f32 %v9510, %v9480
    %v9512 = vmul.f32 %v9510, %v9481
    %v9513 = vmul.f32 %v9510, %v9482
    %v9514 = vmul.f32 %v9510, %v9483
    %v9515 = vmul.f32 %v9510, %v9484
    %v9516 = vmul.f32 %v9510, %v9485
    %v9517 = vmul.f32 %v9510, %v9486
    %v9518 = vmul.f32 %v9510, %v9487
    %v9519 = vmul.f32 %v9510, %v9488
    %9529 = vrot.lane.b32.xlu0 %v9511, 127
    %v9530 = vpop.permute.xlu0 %9529
    %9531 = vrot.lane.b32.xlu0 %v9512, 127
    %v9532 = vpop.permute.xlu0 %9531
    %9533 = vrot.lane.b32.xlu0 %v9513, 127
    %v9534 = vpop.permute.xlu0 %9533
    %9535 = vrot.lane.b32.xlu0 %v9514, 127
    %v9536 = vpop.permute.xlu0 %9535
    %9537 = vrot.lane.b32.xlu0 %v9515, 127
    %v9538 = vpop.permute.xlu0 %9537
    %9539 = vrot.lane.b32.xlu0 %v9516, 127
    %v9540 = vpop.permute.xlu0 %9539
    %9541 = vrot.lane.b32.xlu0 %v9517, 127
    %v9542 = vpop.permute.xlu0 %9541
    %9543 = vrot.lane.b32.xlu0 %v9518, 127
    %v9544 = vpop.permute.xlu0 %9543
    %9545 = vrot.lane.b32.xlu0 %v9519, 127
    %v9546 = vpop.permute.xlu0 %9545
    %v9556 = vadd.f32 %v9500, %v9530
    %v9557 = vadd.f32 %v9501, %v9532
    %v9558 = vadd.f32 %v9502, %v9534
    %v9559 = vadd.f32 %v9503, %v9536
    %v9560 = vadd.f32 %v9504, %v9538
    %v9561 = vadd.f32 %v9505, %v9540
    %v9562 = vadd.f32 %v9506, %v9542
    %v9563 = vadd.f32 %v9507, %v9544
    %v9564 = vadd.f32 %v9508, %v9546
    %s9565 = sld [smem:[#allocation2 + $0xc5]]
    %v9566 = vstv %s9565
    %v9567 = vmul.f32 %v9566, %v9480
    %v9568 = vmul.f32 %v9566, %v9481
    %v9569 = vmul.f32 %v9566, %v9482
    %v9570 = vmul.f32 %v9566, %v9483
    %v9571 = vmul.f32 %v9566, %v9484
    %v9572 = vmul.f32 %v9566, %v9485
    %v9573 = vmul.f32 %v9566, %v9486
    %v9574 = vmul.f32 %v9566, %v9487
    %v9575 = vmul.f32 %v9566, %v9488
    %9585 = vrot.lane.b32.xlu0 %v9567, 126
    %v9586 = vpop.permute.xlu0 %9585
    %9587 = vrot.lane.b32.xlu0 %v9568, 126
    %v9588 = vpop.permute.xlu0 %9587
    %9589 = vrot.lane.b32.xlu0 %v9569, 126
    %v9590 = vpop.permute.xlu0 %9589
    %9591 = vrot.lane.b32.xlu0 %v9570, 126
    %v9592 = vpop.permute.xlu0 %9591
    %9593 = vrot.lane.b32.xlu0 %v9571, 126
    %v9594 = vpop.permute.xlu0 %9593
    %9595 = vrot.lane.b32.xlu0 %v9572, 126
    %v9596 = vpop.permute.xlu0 %9595
    %9597 = vrot.lane.b32.xlu0 %v9573, 126
    %v9598 = vpop.permute.xlu0 %9597
    %9599 = vrot.lane.b32.xlu0 %v9574, 126
    %v9600 = vpop.permute.xlu0 %9599
    %9601 = vrot.lane.b32.xlu0 %v9575, 126
    %v9602 = vpop.permute.xlu0 %9601
    %v9612 = vadd.f32 %v9556, %v9586
    %v9613 = vadd.f32 %v9557, %v9588
    %v9614 = vadd.f32 %v9558, %v9590
    %v9615 = vadd.f32 %v9559, %v9592
    %v9616 = vadd.f32 %v9560, %v9594
    %v9617 = vadd.f32 %v9561, %v9596
    %v9618 = vadd.f32 %v9562, %v9598
    %v9619 = vadd.f32 %v9563, %v9600
    %v9620 = vadd.f32 %v9564, %v9602
    %v9621 = vld [vmem:[%s462] sm:$0xff]
    %v9622 = vld [vmem:[%s462 + $0x8] sm:$0xff]
    %v9623 = vld [vmem:[%s462 + $0x10] sm:$0xff]
    %v9624 = vld [vmem:[%s462 + $0x18] sm:$0xff]
    %v9625 = vld [vmem:[%s462 + $0x20] sm:$0xff]
    %v9626 = vld [vmem:[%s462 + $0x28] sm:$0xff]
    %v9627 = vld [vmem:[%s462 + $0x30] sm:$0xff]
    %v9628 = vld [vmem:[%s462 + $0x38] sm:$0xff]
    %v9629 = vld [vmem:[%s462 + $0x40] sm:$0x1]
    %s9630 = sld [smem:[#allocation2 + $0xc6]]
    %v9631 = vstv %s9630
    %v9632 = vmul.f32 %v9631, %v9621
    %v9633 = vmul.f32 %v9631, %v9622
    %v9634 = vmul.f32 %v9631, %v9623
    %v9635 = vmul.f32 %v9631, %v9624
    %v9636 = vmul.f32 %v9631, %v9625
    %v9637 = vmul.f32 %v9631, %v9626
    %v9638 = vmul.f32 %v9631, %v9627
    %v9639 = vmul.f32 %v9631, %v9628
    %v9640 = vmul.f32 %v9631, %v9629
    %v9641 = vadd.f32 %v9612, %v9632
    %v9642 = vadd.f32 %v9613, %v9633
    %v9643 = vadd.f32 %v9614, %v9634
    %v9644 = vadd.f32 %v9615, %v9635
    %v9645 = vadd.f32 %v9616, %v9636
    %v9646 = vadd.f32 %v9617, %v9637
    %v9647 = vadd.f32 %v9618, %v9638
    %v9648 = vadd.f32 %v9619, %v9639
    %v9649 = vadd.f32 %v9620, %v9640
    %s9650 = sld [smem:[#allocation2 + $0xc7]]
    %v9651 = vstv %s9650
    %v9652 = vmul.f32 %v9651, %v9621
    %v9653 = vmul.f32 %v9651, %v9622
    %v9654 = vmul.f32 %v9651, %v9623
    %v9655 = vmul.f32 %v9651, %v9624
    %v9656 = vmul.f32 %v9651, %v9625
    %v9657 = vmul.f32 %v9651, %v9626
    %v9658 = vmul.f32 %v9651, %v9627
    %v9659 = vmul.f32 %v9651, %v9628
    %v9660 = vmul.f32 %v9651, %v9629
    %9670 = vrot.lane.b32.xlu0 %v9652, 127
    %v9671 = vpop.permute.xlu0 %9670
    %9672 = vrot.lane.b32.xlu0 %v9653, 127
    %v9673 = vpop.permute.xlu0 %9672
    %9674 = vrot.lane.b32.xlu0 %v9654, 127
    %v9675 = vpop.permute.xlu0 %9674
    %9676 = vrot.lane.b32.xlu0 %v9655, 127
    %v9677 = vpop.permute.xlu0 %9676
    %9678 = vrot.lane.b32.xlu0 %v9656, 127
    %v9679 = vpop.permute.xlu0 %9678
    %9680 = vrot.lane.b32.xlu0 %v9657, 127
    %v9681 = vpop.permute.xlu0 %9680
    %9682 = vrot.lane.b32.xlu0 %v9658, 127
    %v9683 = vpop.permute.xlu0 %9682
    %9684 = vrot.lane.b32.xlu0 %v9659, 127
    %v9685 = vpop.permute.xlu0 %9684
    %9686 = vrot.lane.b32.xlu0 %v9660, 127
    %v9687 = vpop.permute.xlu0 %9686
    %v9697 = vadd.f32 %v9641, %v9671
    %v9698 = vadd.f32 %v9642, %v9673
    %v9699 = vadd.f32 %v9643, %v9675
    %v9700 = vadd.f32 %v9644, %v9677
    %v9701 = vadd.f32 %v9645, %v9679
    %v9702 = vadd.f32 %v9646, %v9681
    %v9703 = vadd.f32 %v9647, %v9683
    %v9704 = vadd.f32 %v9648, %v9685
    %v9705 = vadd.f32 %v9649, %v9687
    %s9706 = sld [smem:[#allocation2 + $0xc8]]
    %v9707 = vstv %s9706
    %v9708 = vmul.f32 %v9707, %v9621
    %v9709 = vmul.f32 %v9707, %v9622
    %v9710 = vmul.f32 %v9707, %v9623
    %v9711 = vmul.f32 %v9707, %v9624
    %v9712 = vmul.f32 %v9707, %v9625
    %v9713 = vmul.f32 %v9707, %v9626
    %v9714 = vmul.f32 %v9707, %v9627
    %v9715 = vmul.f32 %v9707, %v9628
    %v9716 = vmul.f32 %v9707, %v9629
    %9726 = vrot.lane.b32.xlu0 %v9708, 126
    %v9727 = vpop.permute.xlu0 %9726
    %9728 = vrot.lane.b32.xlu0 %v9709, 126
    %v9729 = vpop.permute.xlu0 %9728
    %9730 = vrot.lane.b32.xlu0 %v9710, 126
    %v9731 = vpop.permute.xlu0 %9730
    %9732 = vrot.lane.b32.xlu0 %v9711, 126
    %v9733 = vpop.permute.xlu0 %9732
    %9734 = vrot.lane.b32.xlu0 %v9712, 126
    %v9735 = vpop.permute.xlu0 %9734
    %9736 = vrot.lane.b32.xlu0 %v9713, 126
    %v9737 = vpop.permute.xlu0 %9736
    %9738 = vrot.lane.b32.xlu0 %v9714, 126
    %v9739 = vpop.permute.xlu0 %9738
    %9740 = vrot.lane.b32.xlu0 %v9715, 126
    %v9741 = vpop.permute.xlu0 %9740
    %9742 = vrot.lane.b32.xlu0 %v9716, 126
    %v9743 = vpop.permute.xlu0 %9742
    %v9753 = vadd.f32 %v9697, %v9727
    %v9754 = vadd.f32 %v9698, %v9729
    %v9755 = vadd.f32 %v9699, %v9731
    %v9756 = vadd.f32 %v9700, %v9733
    %v9757 = vadd.f32 %v9701, %v9735
    %v9758 = vadd.f32 %v9702, %v9737
    %v9759 = vadd.f32 %v9703, %v9739
    %v9760 = vadd.f32 %v9704, %v9741
    %v9761 = vadd.f32 %v9705, %v9743
    %v9762 = vld [vmem:[%s462 + $0x1] sm:$0xff]
    %v9763 = vld [vmem:[%s462 + $0x9] sm:$0xff]
    %v9764 = vld [vmem:[%s462 + $0x11] sm:$0xff]
    %v9765 = vld [vmem:[%s462 + $0x19] sm:$0xff]
    %v9766 = vld [vmem:[%s462 + $0x21] sm:$0xff]
    %v9767 = vld [vmem:[%s462 + $0x29] sm:$0xff]
    %v9768 = vld [vmem:[%s462 + $0x31] sm:$0xff]
    %v9769 = vld [vmem:[%s462 + $0x39] sm:$0xff]
    %v9770 = vld [vmem:[%s462 + $0x41] sm:$0x1]
    %s9771 = sld [smem:[#allocation2 + $0xc9]]
    %v9772 = vstv %s9771
    %v9773 = vmul.f32 %v9772, %v9762
    %v9774 = vmul.f32 %v9772, %v9763
    %v9775 = vmul.f32 %v9772, %v9764
    %v9776 = vmul.f32 %v9772, %v9765
    %v9777 = vmul.f32 %v9772, %v9766
    %v9778 = vmul.f32 %v9772, %v9767
    %v9779 = vmul.f32 %v9772, %v9768
    %v9780 = vmul.f32 %v9772, %v9769
    %v9781 = vmul.f32 %v9772, %v9770
    %v9782 = vadd.f32 %v9753, %v9773
    %v9783 = vadd.f32 %v9754, %v9774
    %v9784 = vadd.f32 %v9755, %v9775
    %v9785 = vadd.f32 %v9756, %v9776
    %v9786 = vadd.f32 %v9757, %v9777
    %v9787 = vadd.f32 %v9758, %v9778
    %v9788 = vadd.f32 %v9759, %v9779
    %v9789 = vadd.f32 %v9760, %v9780
    %v9790 = vadd.f32 %v9761, %v9781
    %s9791 = sld [smem:[#allocation2 + $0xca]]
    %v9792 = vstv %s9791
    %v9793 = vmul.f32 %v9792, %v9762
    %v9794 = vmul.f32 %v9792, %v9763
    %v9795 = vmul.f32 %v9792, %v9764
    %v9796 = vmul.f32 %v9792, %v9765
    %v9797 = vmul.f32 %v9792, %v9766
    %v9798 = vmul.f32 %v9792, %v9767
    %v9799 = vmul.f32 %v9792, %v9768
    %v9800 = vmul.f32 %v9792, %v9769
    %v9801 = vmul.f32 %v9792, %v9770
    %9811 = vrot.lane.b32.xlu0 %v9793, 127
    %v9812 = vpop.permute.xlu0 %9811
    %9813 = vrot.lane.b32.xlu0 %v9794, 127
    %v9814 = vpop.permute.xlu0 %9813
    %9815 = vrot.lane.b32.xlu0 %v9795, 127
    %v9816 = vpop.permute.xlu0 %9815
    %9817 = vrot.lane.b32.xlu0 %v9796, 127
    %v9818 = vpop.permute.xlu0 %9817
    %9819 = vrot.lane.b32.xlu0 %v9797, 127
    %v9820 = vpop.permute.xlu0 %9819
    %9821 = vrot.lane.b32.xlu0 %v9798, 127
    %v9822 = vpop.permute.xlu0 %9821
    %9823 = vrot.lane.b32.xlu0 %v9799, 127
    %v9824 = vpop.permute.xlu0 %9823
    %9825 = vrot.lane.b32.xlu0 %v9800, 127
    %v9826 = vpop.permute.xlu0 %9825
    %9827 = vrot.lane.b32.xlu0 %v9801, 127
    %v9828 = vpop.permute.xlu0 %9827
    %v9838 = vadd.f32 %v9782, %v9812
    %v9839 = vadd.f32 %v9783, %v9814
    %v9840 = vadd.f32 %v9784, %v9816
    %v9841 = vadd.f32 %v9785, %v9818
    %v9842 = vadd.f32 %v9786, %v9820
    %v9843 = vadd.f32 %v9787, %v9822
    %v9844 = vadd.f32 %v9788, %v9824
    %v9845 = vadd.f32 %v9789, %v9826
    %v9846 = vadd.f32 %v9790, %v9828
    %s9847 = sld [smem:[#allocation2 + $0xcb]]
    %v9848 = vstv %s9847
    %v9849 = vmul.f32 %v9848, %v9762
    %v9850 = vmul.f32 %v9848, %v9763
    %v9851 = vmul.f32 %v9848, %v9764
    %v9852 = vmul.f32 %v9848, %v9765
    %v9853 = vmul.f32 %v9848, %v9766
    %v9854 = vmul.f32 %v9848, %v9767
    %v9855 = vmul.f32 %v9848, %v9768
    %v9856 = vmul.f32 %v9848, %v9769
    %v9857 = vmul.f32 %v9848, %v9770
    %9867 = vrot.lane.b32.xlu0 %v9849, 126
    %v9868 = vpop.permute.xlu0 %9867
    %9869 = vrot.lane.b32.xlu0 %v9850, 126
    %v9870 = vpop.permute.xlu0 %9869
    %9871 = vrot.lane.b32.xlu0 %v9851, 126
    %v9872 = vpop.permute.xlu0 %9871
    %9873 = vrot.lane.b32.xlu0 %v9852, 126
    %v9874 = vpop.permute.xlu0 %9873
    %9875 = vrot.lane.b32.xlu0 %v9853, 126
    %v9876 = vpop.permute.xlu0 %9875
    %9877 = vrot.lane.b32.xlu0 %v9854, 126
    %v9878 = vpop.permute.xlu0 %9877
    %9879 = vrot.lane.b32.xlu0 %v9855, 126
    %v9880 = vpop.permute.xlu0 %9879
    %9881 = vrot.lane.b32.xlu0 %v9856, 126
    %v9882 = vpop.permute.xlu0 %9881
    %9883 = vrot.lane.b32.xlu0 %v9857, 126
    %v9884 = vpop.permute.xlu0 %9883
    %v9894 = vadd.f32 %v9838, %v9868
    %v9895 = vadd.f32 %v9839, %v9870
    %v9896 = vadd.f32 %v9840, %v9872
    %v9897 = vadd.f32 %v9841, %v9874
    %v9898 = vadd.f32 %v9842, %v9876
    %v9899 = vadd.f32 %v9843, %v9878
    %v9900 = vadd.f32 %v9844, %v9880
    %v9901 = vadd.f32 %v9845, %v9882
    %v9902 = vadd.f32 %v9846, %v9884
    %v9903 = vld [vmem:[%s462 + $0x2] sm:$0xff]
    %v9904 = vld [vmem:[%s462 + $0xa] sm:$0xff]
    %v9905 = vld [vmem:[%s462 + $0x12] sm:$0xff]
    %v9906 = vld [vmem:[%s462 + $0x1a] sm:$0xff]
    %v9907 = vld [vmem:[%s462 + $0x22] sm:$0xff]
    %v9908 = vld [vmem:[%s462 + $0x2a] sm:$0xff]
    %v9909 = vld [vmem:[%s462 + $0x32] sm:$0xff]
    %v9910 = vld [vmem:[%s462 + $0x3a] sm:$0xff]
    %v9911 = vld [vmem:[%s462 + $0x42] sm:$0x1]
    %s9912 = sld [smem:[#allocation2 + $0xcc]]
    %v9913 = vstv %s9912
    %v9914 = vmul.f32 %v9913, %v9903
    %v9915 = vmul.f32 %v9913, %v9904
    %v9916 = vmul.f32 %v9913, %v9905
    %v9917 = vmul.f32 %v9913, %v9906
    %v9918 = vmul.f32 %v9913, %v9907
    %v9919 = vmul.f32 %v9913, %v9908
    %v9920 = vmul.f32 %v9913, %v9909
    %v9921 = vmul.f32 %v9913, %v9910
    %v9922 = vmul.f32 %v9913, %v9911
    %v9923 = vadd.f32 %v9894, %v9914
    %v9924 = vadd.f32 %v9895, %v9915
    %v9925 = vadd.f32 %v9896, %v9916
    %v9926 = vadd.f32 %v9897, %v9917
    %v9927 = vadd.f32 %v9898, %v9918
    %v9928 = vadd.f32 %v9899, %v9919
    %v9929 = vadd.f32 %v9900, %v9920
    %v9930 = vadd.f32 %v9901, %v9921
    %v9931 = vadd.f32 %v9902, %v9922
    %s9932 = sld [smem:[#allocation2 + $0xcd]]
    %v9933 = vstv %s9932
    %v9934 = vmul.f32 %v9933, %v9903
    %v9935 = vmul.f32 %v9933, %v9904
    %v9936 = vmul.f32 %v9933, %v9905
    %v9937 = vmul.f32 %v9933, %v9906
    %v9938 = vmul.f32 %v9933, %v9907
    %v9939 = vmul.f32 %v9933, %v9908
    %v9940 = vmul.f32 %v9933, %v9909
    %v9941 = vmul.f32 %v9933, %v9910
    %v9942 = vmul.f32 %v9933, %v9911
    %9952 = vrot.lane.b32.xlu0 %v9934, 127
    %v9953 = vpop.permute.xlu0 %9952
    %9954 = vrot.lane.b32.xlu0 %v9935, 127
    %v9955 = vpop.permute.xlu0 %9954
    %9956 = vrot.lane.b32.xlu0 %v9936, 127
    %v9957 = vpop.permute.xlu0 %9956
    %9958 = vrot.lane.b32.xlu0 %v9937, 127
    %v9959 = vpop.permute.xlu0 %9958
    %9960 = vrot.lane.b32.xlu0 %v9938, 127
    %v9961 = vpop.permute.xlu0 %9960
    %9962 = vrot.lane.b32.xlu0 %v9939, 127
    %v9963 = vpop.permute.xlu0 %9962
    %9964 = vrot.lane.b32.xlu0 %v9940, 127
    %v9965 = vpop.permute.xlu0 %9964
    %9966 = vrot.lane.b32.xlu0 %v9941, 127
    %v9967 = vpop.permute.xlu0 %9966
    %9968 = vrot.lane.b32.xlu0 %v9942, 127
    %v9969 = vpop.permute.xlu0 %9968
    %v9979 = vadd.f32 %v9923, %v9953
    %v9980 = vadd.f32 %v9924, %v9955
    %v9981 = vadd.f32 %v9925, %v9957
    %v9982 = vadd.f32 %v9926, %v9959
    %v9983 = vadd.f32 %v9927, %v9961
    %v9984 = vadd.f32 %v9928, %v9963
    %v9985 = vadd.f32 %v9929, %v9965
    %v9986 = vadd.f32 %v9930, %v9967
    %v9987 = vadd.f32 %v9931, %v9969
    %s9988 = sld [smem:[#allocation2 + $0xce]]
    %v9989 = vstv %s9988
    %v9990 = vmul.f32 %v9989, %v9903
    %v9991 = vmul.f32 %v9989, %v9904
    %v9992 = vmul.f32 %v9989, %v9905
    %v9993 = vmul.f32 %v9989, %v9906
    %v9994 = vmul.f32 %v9989, %v9907
    %v9995 = vmul.f32 %v9989, %v9908
    %v9996 = vmul.f32 %v9989, %v9909
    %v9997 = vmul.f32 %v9989, %v9910
    %v9998 = vmul.f32 %v9989, %v9911
    %10008 = vrot.lane.b32.xlu0 %v9990, 126
    %v10009 = vpop.permute.xlu0 %10008
    %10010 = vrot.lane.b32.xlu0 %v9991, 126
    %v10011 = vpop.permute.xlu0 %10010
    %10012 = vrot.lane.b32.xlu0 %v9992, 126
    %v10013 = vpop.permute.xlu0 %10012
    %10014 = vrot.lane.b32.xlu0 %v9993, 126
    %v10015 = vpop.permute.xlu0 %10014
    %10016 = vrot.lane.b32.xlu0 %v9994, 126
    %v10017 = vpop.permute.xlu0 %10016
    %10018 = vrot.lane.b32.xlu0 %v9995, 126
    %v10019 = vpop.permute.xlu0 %10018
    %10020 = vrot.lane.b32.xlu0 %v9996, 126
    %v10021 = vpop.permute.xlu0 %10020
    %10022 = vrot.lane.b32.xlu0 %v9997, 126
    %v10023 = vpop.permute.xlu0 %10022
    %10024 = vrot.lane.b32.xlu0 %v9998, 126
    %v10025 = vpop.permute.xlu0 %10024
    %v10035 = vadd.f32 %v9979, %v10009
    %v10036 = vadd.f32 %v9980, %v10011
    %v10037 = vadd.f32 %v9981, %v10013
    %v10038 = vadd.f32 %v9982, %v10015
    %v10039 = vadd.f32 %v9983, %v10017
    %v10040 = vadd.f32 %v9984, %v10019
    %v10041 = vadd.f32 %v9985, %v10021
    %v10042 = vadd.f32 %v9986, %v10023
    %v10043 = vadd.f32 %v9987, %v10025
    %v10044 = vld [vmem:[%s886] sm:$0xff]
    %v10045 = vld [vmem:[%s886 + $0x8] sm:$0xff]
    %v10046 = vld [vmem:[%s886 + $0x10] sm:$0xff]
    %v10047 = vld [vmem:[%s886 + $0x18] sm:$0xff]
    %v10048 = vld [vmem:[%s886 + $0x20] sm:$0xff]
    %v10049 = vld [vmem:[%s886 + $0x28] sm:$0xff]
    %v10050 = vld [vmem:[%s886 + $0x30] sm:$0xff]
    %v10051 = vld [vmem:[%s886 + $0x38] sm:$0xff]
    %v10052 = vld [vmem:[%s886 + $0x40] sm:$0x1]
    %s10053 = sld [smem:[#allocation2 + $0xcf]]
    %v10054 = vstv %s10053
    %v10055 = vmul.f32 %v10054, %v10044
    %v10056 = vmul.f32 %v10054, %v10045
    %v10057 = vmul.f32 %v10054, %v10046
    %v10058 = vmul.f32 %v10054, %v10047
    %v10059 = vmul.f32 %v10054, %v10048
    %v10060 = vmul.f32 %v10054, %v10049
    %v10061 = vmul.f32 %v10054, %v10050
    %v10062 = vmul.f32 %v10054, %v10051
    %v10063 = vmul.f32 %v10054, %v10052
    %v10064 = vadd.f32 %v10035, %v10055
    %v10065 = vadd.f32 %v10036, %v10056
    %v10066 = vadd.f32 %v10037, %v10057
    %v10067 = vadd.f32 %v10038, %v10058
    %v10068 = vadd.f32 %v10039, %v10059
    %v10069 = vadd.f32 %v10040, %v10060
    %v10070 = vadd.f32 %v10041, %v10061
    %v10071 = vadd.f32 %v10042, %v10062
    %v10072 = vadd.f32 %v10043, %v10063
    %s10073 = sld [smem:[#allocation2 + $0xd0]]
    %v10074 = vstv %s10073
    %v10075 = vmul.f32 %v10074, %v10044
    %v10076 = vmul.f32 %v10074, %v10045
    %v10077 = vmul.f32 %v10074, %v10046
    %v10078 = vmul.f32 %v10074, %v10047
    %v10079 = vmul.f32 %v10074, %v10048
    %v10080 = vmul.f32 %v10074, %v10049
    %v10081 = vmul.f32 %v10074, %v10050
    %v10082 = vmul.f32 %v10074, %v10051
    %v10083 = vmul.f32 %v10074, %v10052
    %10093 = vrot.lane.b32.xlu0 %v10075, 127
    %v10094 = vpop.permute.xlu0 %10093
    %10095 = vrot.lane.b32.xlu0 %v10076, 127
    %v10096 = vpop.permute.xlu0 %10095
    %10097 = vrot.lane.b32.xlu0 %v10077, 127
    %v10098 = vpop.permute.xlu0 %10097
    %10099 = vrot.lane.b32.xlu0 %v10078, 127
    %v10100 = vpop.permute.xlu0 %10099
    %10101 = vrot.lane.b32.xlu0 %v10079, 127
    %v10102 = vpop.permute.xlu0 %10101
    %10103 = vrot.lane.b32.xlu0 %v10080, 127
    %v10104 = vpop.permute.xlu0 %10103
    %10105 = vrot.lane.b32.xlu0 %v10081, 127
    %v10106 = vpop.permute.xlu0 %10105
    %10107 = vrot.lane.b32.xlu0 %v10082, 127
    %v10108 = vpop.permute.xlu0 %10107
    %10109 = vrot.lane.b32.xlu0 %v10083, 127
    %v10110 = vpop.permute.xlu0 %10109
    %v10120 = vadd.f32 %v10064, %v10094
    %v10121 = vadd.f32 %v10065, %v10096
    %v10122 = vadd.f32 %v10066, %v10098
    %v10123 = vadd.f32 %v10067, %v10100
    %v10124 = vadd.f32 %v10068, %v10102
    %v10125 = vadd.f32 %v10069, %v10104
    %v10126 = vadd.f32 %v10070, %v10106
    %v10127 = vadd.f32 %v10071, %v10108
    %v10128 = vadd.f32 %v10072, %v10110
    %s10129 = sld [smem:[#allocation2 + $0xd1]]
    %v10130 = vstv %s10129
    %v10131 = vmul.f32 %v10130, %v10044
    %v10132 = vmul.f32 %v10130, %v10045
    %v10133 = vmul.f32 %v10130, %v10046
    %v10134 = vmul.f32 %v10130, %v10047
    %v10135 = vmul.f32 %v10130, %v10048
    %v10136 = vmul.f32 %v10130, %v10049
    %v10137 = vmul.f32 %v10130, %v10050
    %v10138 = vmul.f32 %v10130, %v10051
    %v10139 = vmul.f32 %v10130, %v10052
    %10149 = vrot.lane.b32.xlu0 %v10131, 126
    %v10150 = vpop.permute.xlu0 %10149
    %10151 = vrot.lane.b32.xlu0 %v10132, 126
    %v10152 = vpop.permute.xlu0 %10151
    %10153 = vrot.lane.b32.xlu0 %v10133, 126
    %v10154 = vpop.permute.xlu0 %10153
    %10155 = vrot.lane.b32.xlu0 %v10134, 126
    %v10156 = vpop.permute.xlu0 %10155
    %10157 = vrot.lane.b32.xlu0 %v10135, 126
    %v10158 = vpop.permute.xlu0 %10157
    %10159 = vrot.lane.b32.xlu0 %v10136, 126
    %v10160 = vpop.permute.xlu0 %10159
    %10161 = vrot.lane.b32.xlu0 %v10137, 126
    %v10162 = vpop.permute.xlu0 %10161
    %10163 = vrot.lane.b32.xlu0 %v10138, 126
    %v10164 = vpop.permute.xlu0 %10163
    %10165 = vrot.lane.b32.xlu0 %v10139, 126
    %v10166 = vpop.permute.xlu0 %10165
    %v10176 = vadd.f32 %v10120, %v10150
    %v10177 = vadd.f32 %v10121, %v10152
    %v10178 = vadd.f32 %v10122, %v10154
    %v10179 = vadd.f32 %v10123, %v10156
    %v10180 = vadd.f32 %v10124, %v10158
    %v10181 = vadd.f32 %v10125, %v10160
    %v10182 = vadd.f32 %v10126, %v10162
    %v10183 = vadd.f32 %v10127, %v10164
    %v10184 = vadd.f32 %v10128, %v10166
    %v10185 = vld [vmem:[%s886 + $0x1] sm:$0xff]
    %v10186 = vld [vmem:[%s886 + $0x9] sm:$0xff]
    %v10187 = vld [vmem:[%s886 + $0x11] sm:$0xff]
    %v10188 = vld [vmem:[%s886 + $0x19] sm:$0xff]
    %v10189 = vld [vmem:[%s886 + $0x21] sm:$0xff]
    %v10190 = vld [vmem:[%s886 + $0x29] sm:$0xff]
    %v10191 = vld [vmem:[%s886 + $0x31] sm:$0xff]
    %v10192 = vld [vmem:[%s886 + $0x39] sm:$0xff]
    %v10193 = vld [vmem:[%s886 + $0x41] sm:$0x1]
    %s10194 = sld [smem:[#allocation2 + $0xd2]]
    %v10195 = vstv %s10194
    %v10196 = vmul.f32 %v10195, %v10185
    %v10197 = vmul.f32 %v10195, %v10186
    %v10198 = vmul.f32 %v10195, %v10187
    %v10199 = vmul.f32 %v10195, %v10188
    %v10200 = vmul.f32 %v10195, %v10189
    %v10201 = vmul.f32 %v10195, %v10190
    %v10202 = vmul.f32 %v10195, %v10191
    %v10203 = vmul.f32 %v10195, %v10192
    %v10204 = vmul.f32 %v10195, %v10193
    %v10205 = vadd.f32 %v10176, %v10196
    %v10206 = vadd.f32 %v10177, %v10197
    %v10207 = vadd.f32 %v10178, %v10198
    %v10208 = vadd.f32 %v10179, %v10199
    %v10209 = vadd.f32 %v10180, %v10200
    %v10210 = vadd.f32 %v10181, %v10201
    %v10211 = vadd.f32 %v10182, %v10202
    %v10212 = vadd.f32 %v10183, %v10203
    %v10213 = vadd.f32 %v10184, %v10204
    %s10214 = sld [smem:[#allocation2 + $0xd3]]
    %v10215 = vstv %s10214
    %v10216 = vmul.f32 %v10215, %v10185
    %v10217 = vmul.f32 %v10215, %v10186
    %v10218 = vmul.f32 %v10215, %v10187
    %v10219 = vmul.f32 %v10215, %v10188
    %v10220 = vmul.f32 %v10215, %v10189
    %v10221 = vmul.f32 %v10215, %v10190
    %v10222 = vmul.f32 %v10215, %v10191
    %v10223 = vmul.f32 %v10215, %v10192
    %v10224 = vmul.f32 %v10215, %v10193
    %10234 = vrot.lane.b32.xlu0 %v10216, 127
    %v10235 = vpop.permute.xlu0 %10234
    %10236 = vrot.lane.b32.xlu0 %v10217, 127
    %v10237 = vpop.permute.xlu0 %10236
    %10238 = vrot.lane.b32.xlu0 %v10218, 127
    %v10239 = vpop.permute.xlu0 %10238
    %10240 = vrot.lane.b32.xlu0 %v10219, 127
    %v10241 = vpop.permute.xlu0 %10240
    %10242 = vrot.lane.b32.xlu0 %v10220, 127
    %v10243 = vpop.permute.xlu0 %10242
    %10244 = vrot.lane.b32.xlu0 %v10221, 127
    %v10245 = vpop.permute.xlu0 %10244
    %10246 = vrot.lane.b32.xlu0 %v10222, 127
    %v10247 = vpop.permute.xlu0 %10246
    %10248 = vrot.lane.b32.xlu0 %v10223, 127
    %v10249 = vpop.permute.xlu0 %10248
    %10250 = vrot.lane.b32.xlu0 %v10224, 127
    %v10251 = vpop.permute.xlu0 %10250
    %v10261 = vadd.f32 %v10205, %v10235
    %v10262 = vadd.f32 %v10206, %v10237
    %v10263 = vadd.f32 %v10207, %v10239
    %v10264 = vadd.f32 %v10208, %v10241
    %v10265 = vadd.f32 %v10209, %v10243
    %v10266 = vadd.f32 %v10210, %v10245
    %v10267 = vadd.f32 %v10211, %v10247
    %v10268 = vadd.f32 %v10212, %v10249
    %v10269 = vadd.f32 %v10213, %v10251
    %s10270 = sld [smem:[#allocation2 + $0xd4]]
    %v10271 = vstv %s10270
    %v10272 = vmul.f32 %v10271, %v10185
    %v10273 = vmul.f32 %v10271, %v10186
    %v10274 = vmul.f32 %v10271, %v10187
    %v10275 = vmul.f32 %v10271, %v10188
    %v10276 = vmul.f32 %v10271, %v10189
    %v10277 = vmul.f32 %v10271, %v10190
    %v10278 = vmul.f32 %v10271, %v10191
    %v10279 = vmul.f32 %v10271, %v10192
    %v10280 = vmul.f32 %v10271, %v10193
    %10290 = vrot.lane.b32.xlu0 %v10272, 126
    %v10291 = vpop.permute.xlu0 %10290
    %10292 = vrot.lane.b32.xlu0 %v10273, 126
    %v10293 = vpop.permute.xlu0 %10292
    %10294 = vrot.lane.b32.xlu0 %v10274, 126
    %v10295 = vpop.permute.xlu0 %10294
    %10296 = vrot.lane.b32.xlu0 %v10275, 126
    %v10297 = vpop.permute.xlu0 %10296
    %10298 = vrot.lane.b32.xlu0 %v10276, 126
    %v10299 = vpop.permute.xlu0 %10298
    %10300 = vrot.lane.b32.xlu0 %v10277, 126
    %v10301 = vpop.permute.xlu0 %10300
    %10302 = vrot.lane.b32.xlu0 %v10278, 126
    %v10303 = vpop.permute.xlu0 %10302
    %10304 = vrot.lane.b32.xlu0 %v10279, 126
    %v10305 = vpop.permute.xlu0 %10304
    %10306 = vrot.lane.b32.xlu0 %v10280, 126
    %v10307 = vpop.permute.xlu0 %10306
    %v10317 = vadd.f32 %v10261, %v10291
    %v10318 = vadd.f32 %v10262, %v10293
    %v10319 = vadd.f32 %v10263, %v10295
    %v10320 = vadd.f32 %v10264, %v10297
    %v10321 = vadd.f32 %v10265, %v10299
    %v10322 = vadd.f32 %v10266, %v10301
    %v10323 = vadd.f32 %v10267, %v10303
    %v10324 = vadd.f32 %v10268, %v10305
    %v10325 = vadd.f32 %v10269, %v10307
    %v10326 = vld [vmem:[%s886 + $0x2] sm:$0xff]
    %v10327 = vld [vmem:[%s886 + $0xa] sm:$0xff]
    %v10328 = vld [vmem:[%s886 + $0x12] sm:$0xff]
    %v10329 = vld [vmem:[%s886 + $0x1a] sm:$0xff]
    %v10330 = vld [vmem:[%s886 + $0x22] sm:$0xff]
    %v10331 = vld [vmem:[%s886 + $0x2a] sm:$0xff]
    %v10332 = vld [vmem:[%s886 + $0x32] sm:$0xff]
    %v10333 = vld [vmem:[%s886 + $0x3a] sm:$0xff]
    %v10334 = vld [vmem:[%s886 + $0x42] sm:$0x1]
    %s10335 = sld [smem:[#allocation2 + $0xd5]]
    %v10336 = vstv %s10335
    %v10337 = vmul.f32 %v10336, %v10326
    %v10338 = vmul.f32 %v10336, %v10327
    %v10339 = vmul.f32 %v10336, %v10328
    %v10340 = vmul.f32 %v10336, %v10329
    %v10341 = vmul.f32 %v10336, %v10330
    %v10342 = vmul.f32 %v10336, %v10331
    %v10343 = vmul.f32 %v10336, %v10332
    %v10344 = vmul.f32 %v10336, %v10333
    %v10345 = vmul.f32 %v10336, %v10334
    %v10346 = vadd.f32 %v10317, %v10337
    %v10347 = vadd.f32 %v10318, %v10338
    %v10348 = vadd.f32 %v10319, %v10339
    %v10349 = vadd.f32 %v10320, %v10340
    %v10350 = vadd.f32 %v10321, %v10341
    %v10351 = vadd.f32 %v10322, %v10342
    %v10352 = vadd.f32 %v10323, %v10343
    %v10353 = vadd.f32 %v10324, %v10344
    %v10354 = vadd.f32 %v10325, %v10345
    %s10355 = sld [smem:[#allocation2 + $0xd6]]
    %v10356 = vstv %s10355
    %v10357 = vmul.f32 %v10356, %v10326
    %v10358 = vmul.f32 %v10356, %v10327
    %v10359 = vmul.f32 %v10356, %v10328
    %v10360 = vmul.f32 %v10356, %v10329
    %v10361 = vmul.f32 %v10356, %v10330
    %v10362 = vmul.f32 %v10356, %v10331
    %v10363 = vmul.f32 %v10356, %v10332
    %v10364 = vmul.f32 %v10356, %v10333
    %v10365 = vmul.f32 %v10356, %v10334
    %10375 = vrot.lane.b32.xlu0 %v10357, 127
    %v10376 = vpop.permute.xlu0 %10375
    %10377 = vrot.lane.b32.xlu0 %v10358, 127
    %v10378 = vpop.permute.xlu0 %10377
    %10379 = vrot.lane.b32.xlu0 %v10359, 127
    %v10380 = vpop.permute.xlu0 %10379
    %10381 = vrot.lane.b32.xlu0 %v10360, 127
    %v10382 = vpop.permute.xlu0 %10381
    %10383 = vrot.lane.b32.xlu0 %v10361, 127
    %v10384 = vpop.permute.xlu0 %10383
    %10385 = vrot.lane.b32.xlu0 %v10362, 127
    %v10386 = vpop.permute.xlu0 %10385
    %10387 = vrot.lane.b32.xlu0 %v10363, 127
    %v10388 = vpop.permute.xlu0 %10387
    %10389 = vrot.lane.b32.xlu0 %v10364, 127
    %v10390 = vpop.permute.xlu0 %10389
    %10391 = vrot.lane.b32.xlu0 %v10365, 127
    %v10392 = vpop.permute.xlu0 %10391
    %v10402 = vadd.f32 %v10346, %v10376
    %v10403 = vadd.f32 %v10347, %v10378
    %v10404 = vadd.f32 %v10348, %v10380
    %v10405 = vadd.f32 %v10349, %v10382
    %v10406 = vadd.f32 %v10350, %v10384
    %v10407 = vadd.f32 %v10351, %v10386
    %v10408 = vadd.f32 %v10352, %v10388
    %v10409 = vadd.f32 %v10353, %v10390
    %v10410 = vadd.f32 %v10354, %v10392
    %s10411 = sld [smem:[#allocation2 + $0xd7]]
    %v10412 = vstv %s10411
    %v10413 = vmul.f32 %v10412, %v10326
    %v10414 = vmul.f32 %v10412, %v10327
    %v10415 = vmul.f32 %v10412, %v10328
    %v10416 = vmul.f32 %v10412, %v10329
    %v10417 = vmul.f32 %v10412, %v10330
    %v10418 = vmul.f32 %v10412, %v10331
    %v10419 = vmul.f32 %v10412, %v10332
    %v10420 = vmul.f32 %v10412, %v10333
    %v10421 = vmul.f32 %v10412, %v10334
    %10431 = vrot.lane.b32.xlu0 %v10413, 126
    %v10432 = vpop.permute.xlu0 %10431
    %10433 = vrot.lane.b32.xlu0 %v10414, 126
    %v10434 = vpop.permute.xlu0 %10433
    %10435 = vrot.lane.b32.xlu0 %v10415, 126
    %v10436 = vpop.permute.xlu0 %10435
    %10437 = vrot.lane.b32.xlu0 %v10416, 126
    %v10438 = vpop.permute.xlu0 %10437
    %10439 = vrot.lane.b32.xlu0 %v10417, 126
    %v10440 = vpop.permute.xlu0 %10439
    %10441 = vrot.lane.b32.xlu0 %v10418, 126
    %v10442 = vpop.permute.xlu0 %10441
    %10443 = vrot.lane.b32.xlu0 %v10419, 126
    %v10444 = vpop.permute.xlu0 %10443
    %10445 = vrot.lane.b32.xlu0 %v10420, 126
    %v10446 = vpop.permute.xlu0 %10445
    %10447 = vrot.lane.b32.xlu0 %v10421, 126
    %v10448 = vpop.permute.xlu0 %10447
    %v10458 = vadd.f32 %v10402, %v10432
    %v10459 = vadd.f32 %v10403, %v10434
    %v10460 = vadd.f32 %v10404, %v10436
    %v10461 = vadd.f32 %v10405, %v10438
    %v10462 = vadd.f32 %v10406, %v10440
    %v10463 = vadd.f32 %v10407, %v10442
    %v10464 = vadd.f32 %v10408, %v10444
    %v10465 = vadd.f32 %v10409, %v10446
    %v10466 = vadd.f32 %v10410, %v10448
    %s10467 = sld [smem:[#allocation4 + $0x7]]
    %v10468 = vstv %s10467
    %v10469 = vadd.f32 %v10458, %v10468
    %v10470 = vadd.f32 %v10459, %v10468
    %v10471 = vadd.f32 %v10460, %v10468
    %v10472 = vadd.f32 %v10461, %v10468
    %v10473 = vadd.f32 %v10462, %v10468
    %v10474 = vadd.f32 %v10463, %v10468
    %v10475 = vadd.f32 %v10464, %v10468
    %v10476 = vadd.f32 %v10465, %v10468
    %v10477 = vadd.f32 %v10466, %v10468
    %v10478 = vmul.f32 %v10469, 2.0
    %v10479 = vmul.f32 %v10470, 2.0
    %v10480 = vmul.f32 %v10471, 2.0
    %v10481 = vmul.f32 %v10472, 2.0
    %v10482 = vmul.f32 %v10473, 2.0
    %v10483 = vmul.f32 %v10474, 2.0
    %v10484 = vmul.f32 %v10475, 2.0
    %v10485 = vmul.f32 %v10476, 2.0
    %v10486 = vmul.f32 %v10477, 2.0
    %v10487 = vmax.f32 %v10478, 0.0
    %v10488 = vmax.f32 %v10479, 0.0
    %v10489 = vmax.f32 %v10480, 0.0
    %v10490 = vmax.f32 %v10481, 0.0
    %v10491 = vmax.f32 %v10482, 0.0
    %v10492 = vmax.f32 %v10483, 0.0
    %v10493 = vmax.f32 %v10484, 0.0
    %v10494 = vmax.f32 %v10485, 0.0
    %v10495 = vmax.f32 %v10486, 0.0
    %s10496 = scalar_lea.vmem %s3, 504
    %10497 = vst.msk [vmem:[%s10496] sm:$0xff] %vm1339, %v10487
    %10498 = vst.msk [vmem:[%s10496 + $0x8] sm:$0xff] %vm1339, %v10488
    %10499 = vst.msk [vmem:[%s10496 + $0x10] sm:$0xff] %vm1339, %v10489
    %10500 = vst.msk [vmem:[%s10496 + $0x18] sm:$0xff] %vm1339, %v10490
    %10501 = vst.msk [vmem:[%s10496 + $0x20] sm:$0xff] %vm1339, %v10491
    %10502 = vst.msk [vmem:[%s10496 + $0x28] sm:$0xff] %vm1339, %v10492
    %10503 = vst.msk [vmem:[%s10496 + $0x30] sm:$0xff] %vm1339, %v10493
    %10504 = vst.msk [vmem:[%s10496 + $0x38] sm:$0xff] %vm1339, %v10494
    %10505 = vst.msk [vmem:[%s10496 + $0x40] sm:$0x1] %vm1348, %v10495
    // Predicated region
    $region22: #{_conv_double_relu_impl.1} parent=1 // pred_check
      _
    $region23: #{_conv_double_relu_impl.1} parent=1 // pred_check_branch
      %10507 = sbr.rel (0) target = $region25
    $region24: #{_conv_double_relu_impl.1} parent=1 // pred_region
      _
    $region25: #{_conv_double_relu_impl.1} parent=1 // pred_fallthru
      _
    // Predicated region
    $region26: #{_conv_double_relu_impl.1} parent=1 // pred_check
      _
    $region27: #{_conv_double_relu_impl.1} parent=1 // pred_check_branch
      %10509 = sbr.rel (0) target = $region29
    $region28: #{_conv_double_relu_impl.1} parent=1 // pred_region
      _
    $region29: #{_conv_double_relu_impl.1} parent=1 // pred_fallthru
      _
    %10510 = vsyncpa [#allocation3], 1
    %10511 = vsyncpa [#allocation5], 1

</llo_original>
